<compile_context>
chip_gen: v7x
topology: tpu7x:2x2x1
jax: 0.10.0
libtpu: 0.0.40
codegen_flags: <defaults>
</compile_context>

<pallas_src>
import functools

import numpy as np
import jax
import jax.numpy as jnp
from jax.experimental import pallas as pl
from jax.experimental.pallas import tpu as pltpu

_WDT = jnp.bfloat16   # MXU weight / operand dtype (accumulation stays f32)


# ------------------------------- Pallas kernel --------------------------------

def _actionformer6_kernel(x_ref, act_ref,
                          cmat_ref, gng_ref, gnb_ref, cb_ref,
                          lw_ref, lb_ref,
                          n3g_ref, n3b_ref,
                          wv_ref, wo_ref, bo_ref,
                          wih_ref, whh_ref, bih_ref, bhh_ref,
                          dwx_ref, dwa_ref, db_ref,
                          o_ref, *, t_steps, hid, groups, gsz, eps):
    """One batch element per grid step.  All activations are flat NCHW rows."""
    f32 = jnp.float32

    def mm(a, w):          # bf16 MXU matmul, f32 accumulation
        return jnp.dot(a.astype(_WDT), w, preferred_element_type=f32)

    def gn_silu_conv(x, i):
        # GroupNorm: each group is a contiguous gsz-wide lane slice of the flat row.
        parts = []
        for g in range(groups):
            sl = x[:, g * gsz:(g + 1) * gsz]
            mu = jnp.mean(sl, axis=1, keepdims=True)
            xc = sl - mu
            var = jnp.mean(xc * xc, axis=1, keepdims=True)
            parts.append(xc * jax.lax.rsqrt(var + eps))
        h = jnp.concatenate(parts, axis=1) * gng_ref[i] + gnb_ref[i]
        h = h * jax.nn.sigmoid(h)                        # SiLU
        return mm(h, cmat_ref[i]) + cb_ref[i]            # 3x3 conv == one flat matmul

    # ---- encoder: ResBlock(conv1) + ResBlock(conv2), skip = Identity ----
    x = x_ref[...].astype(f32)                           # (1, C*H*W)
    h = gn_silu_conv(x, 0)
    h = gn_silu_conv(h, 1)
    x = x + h
    h = gn_silu_conv(x, 2)
    h = gn_silu_conv(h, 3)
    x = x + h

    # ---- flatten (already NCHW-flat) -> Linear ----
    x = mm(x, lw_ref[...]) + lb_ref[...]                 # (1, E)

    # ---- hoisted action-side math, batched over the T-1 context rows ----
    a = act_ref[...].astype(f32)                         # (Tc, A); row t-1 feeds step t
    mu = jnp.mean(a, axis=1, keepdims=True)
    ac = a - mu
    var = jnp.mean(ac * ac, axis=1, keepdims=True)
    a_n = ac * jax.lax.rsqrt(var + eps) * n3g_ref[...] + n3b_ref[...]      # norm3
    s = mm(mm(a_n, wv_ref[...]), wo_ref[...]) + bo_ref[...]                # attn2 @ len-1
    gi_all = mm(s, wih_ref[...]) + bih_ref[...]                            # (Tc, 3E)
    adec = mm(a, dwa_ref[...])                                             # (Tc, dec)

    # ---- GRU recurrence: only gh = x @ Whh depends on the carried state ----
    whh = whh_ref[...]
    bhh = bhh_ref[...]
    xs = [x]
    for t in range(1, t_steps):                          # static unrolled loop
        gi = gi_all[t - 1:t, :]
        gh = mm(x, whh) + bhh
        r = jax.nn.sigmoid(gi[:, :hid] + gh[:, :hid])
        z = jax.nn.sigmoid(gi[:, hid:2 * hid] + gh[:, hid:2 * hid])
        n = jnp.tanh(gi[:, 2 * hid:] + r * gh[:, 2 * hid:])
        x = (1.0 - z) * n + z * x
        xs.append(x)

    # ---- decoder (stub: Linear on concat([x, action])), batched over T ----
    d = mm(jnp.concatenate(xs, axis=0), dwx_ref[...]) + db_ref[...]        # (T, dec)
    pieces = [d[0:1, :]]                                 # t=0: action term is zeros
    for t in range(1, t_steps):
        pieces.append(d[t:t + 1, :] + adec[t - 1:t, :])
    o_ref[...] = jnp.concatenate(pieces, axis=1).astype(o_ref.dtype)       # (1, T*dec)


# ------------------------- weight / operator construction ---------------------

def _make_shift_mats_np(h, w):
    """9 zero-padding shift matrices S_k[out_p, src_q] for a 3x3 'same' conv."""
    hw = h * w
    mats = np.zeros((9, hw, hw), np.float32)
    for ky in range(3):
        for kx in range(3):
            dy, dx = ky - 1, kx - 1
            m = mats[ky * 3 + kx]
            for y in range(h):
                for x in range(w):
                    sy, sx = y + dy, x + dx
                    if 0 <= sy < h and 0 <= sx < w:
                        m[y * w + x, sy * w + sx] = 1.0
    return mats


def _conv_matrix_np(w_taps, shifts):
    """Flat-NCHW conv operator M (Cin*HW, Cout*HW): out_flat = x_flat @ M.

    w_taps[k, ci, co] == PyTorch weight[co, ci, ky, kx] with k = 3*ky + kx.
    """
    c_in, c_out = w_taps.shape[1], w_taps.shape[2]
    hw = shifts.shape[1]
    m = np.zeros((c_in * hw, c_out * hw), np.float32)
    for k in range(9):
        m += np.kron(w_taps[k], shifts[k].T)
    return m


def init_params(key, *, c, h, w, embed_dims, action_dims, heads, dim_head,
                dec_out, groups=4, std=0.05):
    hw = h * w
    chw = c * hw
    inner = heads * dim_head
    ks = jax.random.split(key, 16)
    shifts = _make_shift_mats_np(h, w)

    # 4 GN->SiLU->conv layers: rb1.in_layers, rb1.out_layers, rb2.in_layers, rb2.out_layers.
    cmats, gams, bets, cbs = [], [], [], []
    for i in range(4):
        # NOTE: the out_layers convs are zero_module()-initialised in PyTorch; random
        # weights here stand in for a trained checkpoint.
        w_taps = np.asarray(jax.random.normal(ks[i], (9, c, c), jnp.float32)) * std
        bias_c = np.asarray(jax.random.normal(ks[4 + i], (c,), jnp.float32)) * std
        cmats.append(_conv_matrix_np(w_taps, shifts))
        cbs.append(np.repeat(bias_c, hw))
        gams.append(np.repeat(np.ones(c, np.float32), hw))
        bets.append(np.repeat(np.zeros(c, np.float32), hw))

    p = {}
    p["conv_mat"] = jnp.asarray(np.stack(cmats), _WDT)                         # (4, CHW, CHW)
    p["conv_b"] = jnp.asarray(np.stack(cbs)[:, None, :], jnp.float32)          # (4, 1, CHW)
    p["gn_g"] = jnp.asarray(np.stack(gams)[:, None, :], jnp.float32)           # (4, 1, CHW)
    p["gn_b"] = jnp.asarray(np.stack(bets)[:, None, :], jnp.float32)           # (4, 1, CHW)

    # Linear(flatten_dims, embed_dims); rows in PyTorch NCHW flatten order (c*HW + y*W + x),
    # which is exactly the kernel's flat activation layout -> no permutation needed.
    p["lin_w"] = (jax.random.normal(ks[8], (chw, embed_dims), jnp.float32) * std).astype(_WDT)
    p["lin_b"] = jnp.zeros((1, embed_dims), jnp.float32)
    # norm3 = LayerNorm(action_dims)
    p["n3_g"] = jnp.ones((1, action_dims), jnp.float32)
    p["n3_b"] = jnp.zeros((1, action_dims), jnp.float32)
    # attn2 = CrossAttention(embed_dims, context_dim=action_dims).  At sequence length 1
    # only to_v / to_out reach the output; attn1/norm1/norm2 and attn2.to_q/to_k are dead.
    p["attn2_wv"] = (jax.random.normal(ks[9], (action_dims, inner), jnp.float32) * std).astype(_WDT)
    p["attn2_wo"] = (jax.random.normal(ks[10], (inner, embed_dims), jnp.float32) * std).astype(_WDT)
    p["attn2_bo"] = jnp.zeros((1, embed_dims), jnp.float32)
    # GRU(input=embed_dims, hidden=embed_dims), PyTorch gate order (r, z, n).
    p["gru_wih"] = (jax.random.normal(ks[11], (embed_dims, 3 * embed_dims), jnp.float32) * std).astype(_WDT)
    p["gru_whh"] = (jax.random.normal(ks[12], (embed_dims, 3 * embed_dims), jnp.float32) * std).astype(_WDT)
    p["gru_bih"] = jax.random.normal(ks[13], (1, 3 * embed_dims), jnp.float32) * std
    p["gru_bhh"] = jax.random.normal(ks[14], (1, 3 * embed_dims), jnp.float32) * std
    # TODO(synk): decoder is instantiate_from_config(decoder_config) (unknown arch);
    # stubbed as a Linear on concat([x, action]), split into two matmuls.
    kx, ka = jax.random.split(ks[15])
    p["dec_wx"] = (jax.random.normal(kx, (embed_dims, dec_out), jnp.float32) * std).astype(_WDT)
    p["dec_wa"] = (jax.random.normal(ka, (action_dims, dec_out), jnp.float32) * std).astype(_WDT)
    p["dec_b"] = jnp.zeros((1, dec_out), jnp.float32)
    return p


# -------------------------------- forward pass ---------------------------------

def _full_spec(arr):
    nd = arr.ndim

    def idx(i):
        return (0,) * nd
    return pl.BlockSpec(arr.shape, idx)


def actionformer6_forward(params, latent_bev, actions, *, groups=4):
    b, c, h, w = latent_bev.shape
    chw = c * h * w
    t_steps = actions.shape[1]
    a_dims = actions.shape[2]
    embed = params["lin_b"].shape[1]
    dec_out = params["dec_b"].shape[1]
    gsz = (c // groups) * h * w

    # PyTorch x.reshape(b, -1) on NCHW == this flat layout; zero data movement needed.
    x_flat = latent_bev.reshape(b, 1, chw).astype(jnp.float32)
    if t_steps >= 2:
        act_ctx = actions[:, :t_steps - 1, :].astype(jnp.float32)   # (B, T-1, A)
    else:
        act_ctx = jnp.zeros((b, 1, a_dims), jnp.float32)            # unused dummy
    tc = act_ctx.shape[1]

    kern = functools.partial(_actionformer6_kernel, t_steps=t_steps, hid=embed,
                             groups=groups, gsz=gsz, eps=1e-5)

    weights = (params["conv_mat"], params["gn_g"], params["gn_b"], params["conv_b"],
               params["lin_w"], params["lin_b"],
               params["n3_g"], params["n3_b"],
               params["attn2_wv"], params["attn2_wo"], params["attn2_bo"],
               params["gru_wih"], params["gru_whh"], params["gru_bih"], params["gru_bhh"],
               params["dec_wx"], params["dec_wa"], params["dec_b"])

    in_specs = ([pl.BlockSpec((None, 1, chw), lambda i: (i, 0, 0)),
                 pl.BlockSpec((None, tc, a_dims), lambda i: (i, 0, 0))]
                + [_full_spec(wgt) for wgt in weights])

    out = pl.pallas_call(
        kern,
        out_shape=jax.ShapeDtypeStruct((b, 1, t_steps * dec_out), jnp.float32),
        grid=(b,),
        in_specs=in_specs,
        out_specs=pl.BlockSpec((None, 1, t_steps * dec_out), lambda i: (i, 0, 0)),
        compiler_params=pltpu.CompilerParams(
            dimension_semantics=("parallel",)),       # batch across the 2 v7x TensorCores
    )(x_flat, act_ctx, *weights)

    out = out.reshape(b, t_steps * dec_out)
    return [out[:, t * dec_out:(t + 1) * dec_out] for t in range(t_steps)]


# ------------------------------------ main --------------------------------------

if __name__ == "__main__":
    B = 2
    C_BEV = 8                 # latent_bev_dims (GroupNorm(4, C) -> multiple of 4)
    H = W = 8
    EMBED_DIMS = 128          # == GRU hidden size (x is reused as the GRU hidden state)
    ACTION_DIMS = 16
    HEADS = 4
    DIM_HEAD = 32             # inner = 128
    T_STEPS = 4
    DEC_OUT = 32

    key = jax.random.PRNGKey(0)
    k_par, k_bev, k_act = jax.random.split(key, 3)

    params = init_params(k_par, c=C_BEV, h=H, w=W, embed_dims=EMBED_DIMS,
                         action_dims=ACTION_DIMS, heads=HEADS, dim_head=DIM_HEAD,
                         dec_out=DEC_OUT)

    latent_bev = jax.random.normal(k_bev, (B, C_BEV, H, W), jnp.float32)
    actions = jax.random.normal(k_act, (B, T_STEPS, ACTION_DIMS), jnp.float32)

    fwd = jax.jit(actionformer6_forward)
    outs = fwd(params, latent_bev, actions)
    outs = [jax.block_until_ready(o) for o in outs]

    assert len(outs) == T_STEPS
    for o in outs:
        assert o.shape == (B, DEC_OUT)
        assert bool(jnp.all(jnp.isfinite(o)))
    print("KERNEL_OK")
</pallas_src>

<mosaic_0001>
module attributes {stable_mosaic.version = 11 : i64} {
  func.func @_actionformer6_kernel(%arg0: i32, %arg1: memref<1x1x512xf32, #tpu.memory_space<vmem>>, %arg2: memref<1x3x16xf32, #tpu.memory_space<vmem>>, %arg3: memref<4x512x512xbf16, #tpu.memory_space<vmem>>, %arg4: memref<4x1x512xf32, #tpu.memory_space<vmem>>, %arg5: memref<4x1x512xf32, #tpu.memory_space<vmem>>, %arg6: memref<4x1x512xf32, #tpu.memory_space<vmem>>, %arg7: memref<512x128xbf16, #tpu.memory_space<vmem>>, %arg8: memref<1x128xf32, #tpu.memory_space<vmem>>, %arg9: memref<1x16xf32, #tpu.memory_space<vmem>>, %arg10: memref<1x16xf32, #tpu.memory_space<vmem>>, %arg11: memref<16x128xbf16, #tpu.memory_space<vmem>>, %arg12: memref<128x128xbf16, #tpu.memory_space<vmem>>, %arg13: memref<1x128xf32, #tpu.memory_space<vmem>>, %arg14: memref<128x384xbf16, #tpu.memory_space<vmem>>, %arg15: memref<128x384xbf16, #tpu.memory_space<vmem>>, %arg16: memref<1x384xf32, #tpu.memory_space<vmem>>, %arg17: memref<1x384xf32, #tpu.memory_space<vmem>>, %arg18: memref<128x32xbf16, #tpu.memory_space<vmem>>, %arg19: memref<16x32xbf16, #tpu.memory_space<vmem>>, %arg20: memref<1x32xf32, #tpu.memory_space<vmem>>, %arg21: memref<1x1x128xf32, #tpu.memory_space<vmem>>) attributes {dimension_semantics = [#tpu.dimension_semantics<parallel>], iteration_bounds = array<i64: 2>, scalar_prefetch = 0 : i64, scratch_operands = 0 : i64, tpu.core_type = #tpu.core_type<tc>, window_params = [{transform_indices = @transform_0, window_bounds = array<i64: 1, 1, 512>}, {transform_indices = @transform_1, window_bounds = array<i64: 1, 3, 16>}, {pipeline_mode = #tpu.pipeline_mode<synchronous>, transform_indices = @transform_2, window_bounds = array<i64: 4, 512, 512>}, {pipeline_mode = #tpu.pipeline_mode<synchronous>, transform_indices = @transform_3, window_bounds = array<i64: 4, 1, 512>}, {pipeline_mode = #tpu.pipeline_mode<synchronous>, transform_indices = @transform_4, window_bounds = array<i64: 4, 1, 512>}, {pipeline_mode = #tpu.pipeline_mode<synchronous>, transform_indices = @transform_5, window_bounds = array<i64: 4, 1, 512>}, {pipeline_mode = #tpu.pipeline_mode<synchronous>, transform_indices = @transform_6, window_bounds = array<i64: 512, 128>}, {pipeline_mode = #tpu.pipeline_mode<synchronous>, transform_indices = @transform_7, window_bounds = array<i64: 1, 128>}, {pipeline_mode = #tpu.pipeline_mode<synchronous>, transform_indices = @transform_8, window_bounds = array<i64: 1, 16>}, {pipeline_mode = #tpu.pipeline_mode<synchronous>, transform_indices = @transform_9, window_bounds = array<i64: 1, 16>}, {pipeline_mode = #tpu.pipeline_mode<synchronous>, transform_indices = @transform_10, window_bounds = array<i64: 16, 128>}, {pipeline_mode = #tpu.pipeline_mode<synchronous>, transform_indices = @transform_11, window_bounds = array<i64: 128, 128>}, {pipeline_mode = #tpu.pipeline_mode<synchronous>, transform_indices = @transform_12, window_bounds = array<i64: 1, 128>}, {pipeline_mode = #tpu.pipeline_mode<synchronous>, transform_indices = @transform_13, window_bounds = array<i64: 128, 384>}, {pipeline_mode = #tpu.pipeline_mode<synchronous>, transform_indices = @transform_14, window_bounds = array<i64: 128, 384>}, {pipeline_mode = #tpu.pipeline_mode<synchronous>, transform_indices = @transform_15, window_bounds = array<i64: 1, 384>}, {pipeline_mode = #tpu.pipeline_mode<synchronous>, transform_indices = @transform_16, window_bounds = array<i64: 1, 384>}, {pipeline_mode = #tpu.pipeline_mode<synchronous>, transform_indices = @transform_17, window_bounds = array<i64: 128, 32>}, {pipeline_mode = #tpu.pipeline_mode<synchronous>, transform_indices = @transform_18, window_bounds = array<i64: 16, 32>}, {pipeline_mode = #tpu.pipeline_mode<synchronous>, transform_indices = @transform_19, window_bounds = array<i64: 1, 32>}, {transform_indices = @transform_20, window_bounds = array<i64: 1, 1, 128>}]} {
    %c0 = arith.constant 0 : index
    %c0_0 = arith.constant 0 : index
    %c0_1 = arith.constant 0 : index
    %0 = vector.load %arg1[%c0, %c0_0, %c0_1] : memref<1x1x512xf32, #tpu.memory_space<vmem>>, vector<1x1x512xf32>
    %1 = vector.shape_cast %0 : vector<1x1x512xf32> to vector<1x512xf32>
    %2 = vector.extract_strided_slice %1 {offsets = [0, 0], sizes = [1, 128], strides = [1, 1]} : vector<1x512xf32> to vector<1x128xf32>
    %cst = arith.constant dense<0.000000e+00> : vector<1xf32>
    %3 = vector.multi_reduction <add>, %2, %cst [1] : vector<1x128xf32> to vector<1xf32>
    %4 = vector.shape_cast %3 : vector<1xf32> to vector<1x1xf32>
    %cst_2 = arith.constant 1.280000e+02 : f32
    %5 = vector.broadcast %cst_2 : f32 to vector<1x1xf32>
    %6 = arith.divf %4, %5 : vector<1x1xf32>
    %7 = vector.broadcast %6 : vector<1x1xf32> to vector<1x128xf32>
    %8 = arith.subf %2, %7 : vector<1x128xf32>
    %9 = arith.mulf %8, %8 : vector<1x128xf32>
    %cst_3 = arith.constant dense<0.000000e+00> : vector<1xf32>
    %10 = vector.multi_reduction <add>, %9, %cst_3 [1] : vector<1x128xf32> to vector<1xf32>
    %11 = vector.shape_cast %10 : vector<1xf32> to vector<1x1xf32>
    %cst_4 = arith.constant 1.280000e+02 : f32
    %12 = vector.broadcast %cst_4 : f32 to vector<1x1xf32>
    %13 = arith.divf %11, %12 : vector<1x1xf32>
    %cst_5 = arith.constant 9.99999974E-6 : f32
    %14 = vector.broadcast %cst_5 : f32 to vector<1x1xf32>
    %15 = arith.addf %13, %14 : vector<1x1xf32>
    %16 = math.rsqrt %15 : vector<1x1xf32>
    %17 = vector.broadcast %16 : vector<1x1xf32> to vector<1x128xf32>
    %18 = arith.mulf %8, %17 : vector<1x128xf32>
    %19 = vector.extract_strided_slice %1 {offsets = [0, 128], sizes = [1, 128], strides = [1, 1]} : vector<1x512xf32> to vector<1x128xf32>
    %cst_6 = arith.constant dense<0.000000e+00> : vector<1xf32>
    %20 = vector.multi_reduction <add>, %19, %cst_6 [1] : vector<1x128xf32> to vector<1xf32>
    %21 = vector.shape_cast %20 : vector<1xf32> to vector<1x1xf32>
    %cst_7 = arith.constant 1.280000e+02 : f32
    %22 = vector.broadcast %cst_7 : f32 to vector<1x1xf32>
    %23 = arith.divf %21, %22 : vector<1x1xf32>
    %24 = vector.broadcast %23 : vector<1x1xf32> to vector<1x128xf32>
    %25 = arith.subf %19, %24 : vector<1x128xf32>
    %26 = arith.mulf %25, %25 : vector<1x128xf32>
    %cst_8 = arith.constant dense<0.000000e+00> : vector<1xf32>
    %27 = vector.multi_reduction <add>, %26, %cst_8 [1] : vector<1x128xf32> to vector<1xf32>
    %28 = vector.shape_cast %27 : vector<1xf32> to vector<1x1xf32>
    %cst_9 = arith.constant 1.280000e+02 : f32
    %29 = vector.broadcast %cst_9 : f32 to vector<1x1xf32>
    %30 = arith.divf %28, %29 : vector<1x1xf32>
    %cst_10 = arith.constant 9.99999974E-6 : f32
    %31 = vector.broadcast %cst_10 : f32 to vector<1x1xf32>
    %32 = arith.addf %30, %31 : vector<1x1xf32>
    %33 = math.rsqrt %32 : vector<1x1xf32>
    %34 = vector.broadcast %33 : vector<1x1xf32> to vector<1x128xf32>
    %35 = arith.mulf %25, %34 : vector<1x128xf32>
    %36 = vector.extract_strided_slice %1 {offsets = [0, 256], sizes = [1, 128], strides = [1, 1]} : vector<1x512xf32> to vector<1x128xf32>
    %cst_11 = arith.constant dense<0.000000e+00> : vector<1xf32>
    %37 = vector.multi_reduction <add>, %36, %cst_11 [1] : vector<1x128xf32> to vector<1xf32>
    %38 = vector.shape_cast %37 : vector<1xf32> to vector<1x1xf32>
    %cst_12 = arith.constant 1.280000e+02 : f32
    %39 = vector.broadcast %cst_12 : f32 to vector<1x1xf32>
    %40 = arith.divf %38, %39 : vector<1x1xf32>
    %41 = vector.broadcast %40 : vector<1x1xf32> to vector<1x128xf32>
    %42 = arith.subf %36, %41 : vector<1x128xf32>
    %43 = arith.mulf %42, %42 : vector<1x128xf32>
    %cst_13 = arith.constant dense<0.000000e+00> : vector<1xf32>
    %44 = vector.multi_reduction <add>, %43, %cst_13 [1] : vector<1x128xf32> to vector<1xf32>
    %45 = vector.shape_cast %44 : vector<1xf32> to vector<1x1xf32>
    %cst_14 = arith.constant 1.280000e+02 : f32
    %46 = vector.broadcast %cst_14 : f32 to vector<1x1xf32>
    %47 = arith.divf %45, %46 : vector<1x1xf32>
    %cst_15 = arith.constant 9.99999974E-6 : f32
    %48 = vector.broadcast %cst_15 : f32 to vector<1x1xf32>
    %49 = arith.addf %47, %48 : vector<1x1xf32>
    %50 = math.rsqrt %49 : vector<1x1xf32>
    %51 = vector.broadcast %50 : vector<1x1xf32> to vector<1x128xf32>
    %52 = arith.mulf %42, %51 : vector<1x128xf32>
    %53 = vector.extract_strided_slice %1 {offsets = [0, 384], sizes = [1, 128], strides = [1, 1]} : vector<1x512xf32> to vector<1x128xf32>
    %cst_16 = arith.constant dense<0.000000e+00> : vector<1xf32>
    %54 = vector.multi_reduction <add>, %53, %cst_16 [1] : vector<1x128xf32> to vector<1xf32>
    %55 = vector.shape_cast %54 : vector<1xf32> to vector<1x1xf32>
    %cst_17 = arith.constant 1.280000e+02 : f32
    %56 = vector.broadcast %cst_17 : f32 to vector<1x1xf32>
    %57 = arith.divf %55, %56 : vector<1x1xf32>
    %58 = vector.broadcast %57 : vector<1x1xf32> to vector<1x128xf32>
    %59 = arith.subf %53, %58 : vector<1x128xf32>
    %60 = arith.mulf %59, %59 : vector<1x128xf32>
    %cst_18 = arith.constant dense<0.000000e+00> : vector<1xf32>
    %61 = vector.multi_reduction <add>, %60, %cst_18 [1] : vector<1x128xf32> to vector<1xf32>
    %62 = vector.shape_cast %61 : vector<1xf32> to vector<1x1xf32>
    %cst_19 = arith.constant 1.280000e+02 : f32
    %63 = vector.broadcast %cst_19 : f32 to vector<1x1xf32>
    %64 = arith.divf %62, %63 : vector<1x1xf32>
    %cst_20 = arith.constant 9.99999974E-6 : f32
    %65 = vector.broadcast %cst_20 : f32 to vector<1x1xf32>
    %66 = arith.addf %64, %65 : vector<1x1xf32>
    %67 = math.rsqrt %66 : vector<1x1xf32>
    %68 = vector.broadcast %67 : vector<1x1xf32> to vector<1x128xf32>
    %69 = arith.mulf %59, %68 : vector<1x128xf32>
    %70 = tpu.concatenate %18, %35, %52, %69 in 1 : vector<1x128xf32>, vector<1x128xf32>, vector<1x128xf32>, vector<1x128xf32> -> vector<1x512xf32>
    %c0_21 = arith.constant 0 : index
    %c0_22 = arith.constant 0 : index
    %c0_23 = arith.constant 0 : index
    %71 = vector.load %arg4[%c0_21, %c0_22, %c0_23] : memref<4x1x512xf32, #tpu.memory_space<vmem>>, vector<1x1x512xf32>
    %72 = vector.shape_cast %71 : vector<1x1x512xf32> to vector<1x512xf32>
    %73 = arith.mulf %70, %72 : vector<1x512xf32>
    %c0_24 = arith.constant 0 : index
    %c0_25 = arith.constant 0 : index
    %c0_26 = arith.constant 0 : index
    %74 = vector.load %arg5[%c0_24, %c0_25, %c0_26] : memref<4x1x512xf32, #tpu.memory_space<vmem>>, vector<1x1x512xf32>
    %75 = vector.shape_cast %74 : vector<1x1x512xf32> to vector<1x512xf32>
    %76 = arith.addf %73, %75 : vector<1x512xf32>
    %77 = arith.negf %76 : vector<1x512xf32>
    %78 = math.exp %77 : vector<1x512xf32>
    %cst_27 = arith.constant 1.000000e+00 : f32
    %79 = vector.broadcast %cst_27 : f32 to vector<1x512xf32>
    %80 = arith.addf %79, %78 : vector<1x512xf32>
    %81 = arith.divf %79, %80 : vector<1x512xf32>
    %82 = arith.mulf %76, %81 : vector<1x512xf32>
    %c0_28 = arith.constant 0 : index
    %c0_29 = arith.constant 0 : index
    %c0_30 = arith.constant 0 : index
    %83 = vector.load %arg3[%c0_28, %c0_29, %c0_30] : memref<4x512x512xbf16, #tpu.memory_space<vmem>>, vector<1x512x512xbf16>
    %84 = vector.shape_cast %83 : vector<1x512x512xbf16> to vector<512x512xbf16>
    %85 = arith.truncf %82 : vector<1x512xf32> to vector<1x512xbf16>
    %cst_31 = arith.constant dense<0.000000e+00> : vector<1x512xf32>
    %86 = tpu.matmul %85, %84, %cst_31 {dimension_numbers = #tpu.dot_dimension_numbers<[1], [0], [0], [1], [0, 0, 1, 1], [], []>} : vector<1x512xbf16>, vector<512x512xbf16>, vector<1x512xf32> -> vector<1x512xf32>
    %c0_32 = arith.constant 0 : index
    %c0_33 = arith.constant 0 : index
    %c0_34 = arith.constant 0 : index
    %87 = vector.load %arg6[%c0_32, %c0_33, %c0_34] : memref<4x1x512xf32, #tpu.memory_space<vmem>>, vector<1x1x512xf32>
    %88 = vector.shape_cast %87 : vector<1x1x512xf32> to vector<1x512xf32>
    %89 = arith.addf %86, %88 : vector<1x512xf32>
    %90 = vector.extract_strided_slice %89 {offsets = [0, 0], sizes = [1, 128], strides = [1, 1]} : vector<1x512xf32> to vector<1x128xf32>
    %cst_35 = arith.constant dense<0.000000e+00> : vector<1xf32>
    %91 = vector.multi_reduction <add>, %90, %cst_35 [1] : vector<1x128xf32> to vector<1xf32>
    %92 = vector.shape_cast %91 : vector<1xf32> to vector<1x1xf32>
    %cst_36 = arith.constant 1.280000e+02 : f32
    %93 = vector.broadcast %cst_36 : f32 to vector<1x1xf32>
    %94 = arith.divf %92, %93 : vector<1x1xf32>
    %95 = vector.broadcast %94 : vector<1x1xf32> to vector<1x128xf32>
    %96 = arith.subf %90, %95 : vector<1x128xf32>
    %97 = arith.mulf %96, %96 : vector<1x128xf32>
    %cst_37 = arith.constant dense<0.000000e+00> : vector<1xf32>
    %98 = vector.multi_reduction <add>, %97, %cst_37 [1] : vector<1x128xf32> to vector<1xf32>
    %99 = vector.shape_cast %98 : vector<1xf32> to vector<1x1xf32>
    %cst_38 = arith.constant 1.280000e+02 : f32
    %100 = vector.broadcast %cst_38 : f32 to vector<1x1xf32>
    %101 = arith.divf %99, %100 : vector<1x1xf32>
    %cst_39 = arith.constant 9.99999974E-6 : f32
    %102 = vector.broadcast %cst_39 : f32 to vector<1x1xf32>
    %103 = arith.addf %101, %102 : vector<1x1xf32>
    %104 = math.rsqrt %103 : vector<1x1xf32>
    %105 = vector.broadcast %104 : vector<1x1xf32> to vector<1x128xf32>
    %106 = arith.mulf %96, %105 : vector<1x128xf32>
    %107 = vector.extract_strided_slice %89 {offsets = [0, 128], sizes = [1, 128], strides = [1, 1]} : vector<1x512xf32> to vector<1x128xf32>
    %cst_40 = arith.constant dense<0.000000e+00> : vector<1xf32>
    %108 = vector.multi_reduction <add>, %107, %cst_40 [1] : vector<1x128xf32> to vector<1xf32>
    %109 = vector.shape_cast %108 : vector<1xf32> to vector<1x1xf32>
    %cst_41 = arith.constant 1.280000e+02 : f32
    %110 = vector.broadcast %cst_41 : f32 to vector<1x1xf32>
    %111 = arith.divf %109, %110 : vector<1x1xf32>
    %112 = vector.broadcast %111 : vector<1x1xf32> to vector<1x128xf32>
    %113 = arith.subf %107, %112 : vector<1x128xf32>
    %114 = arith.mulf %113, %113 : vector<1x128xf32>
    %cst_42 = arith.constant dense<0.000000e+00> : vector<1xf32>
    %115 = vector.multi_reduction <add>, %114, %cst_42 [1] : vector<1x128xf32> to vector<1xf32>
    %116 = vector.shape_cast %115 : vector<1xf32> to vector<1x1xf32>
    %cst_43 = arith.constant 1.280000e+02 : f32
    %117 = vector.broadcast %cst_43 : f32 to vector<1x1xf32>
    %118 = arith.divf %116, %117 : vector<1x1xf32>
    %cst_44 = arith.constant 9.99999974E-6 : f32
    %119 = vector.broadcast %cst_44 : f32 to vector<1x1xf32>
    %120 = arith.addf %118, %119 : vector<1x1xf32>
    %121 = math.rsqrt %120 : vector<1x1xf32>
    %122 = vector.broadcast %121 : vector<1x1xf32> to vector<1x128xf32>
    %123 = arith.mulf %113, %122 : vector<1x128xf32>
    %124 = vector.extract_strided_slice %89 {offsets = [0, 256], sizes = [1, 128], strides = [1, 1]} : vector<1x512xf32> to vector<1x128xf32>
    %cst_45 = arith.constant dense<0.000000e+00> : vector<1xf32>
    %125 = vector.multi_reduction <add>, %124, %cst_45 [1] : vector<1x128xf32> to vector<1xf32>
    %126 = vector.shape_cast %125 : vector<1xf32> to vector<1x1xf32>
    %cst_46 = arith.constant 1.280000e+02 : f32
    %127 = vector.broadcast %cst_46 : f32 to vector<1x1xf32>
    %128 = arith.divf %126, %127 : vector<1x1xf32>
    %129 = vector.broadcast %128 : vector<1x1xf32> to vector<1x128xf32>
    %130 = arith.subf %124, %129 : vector<1x128xf32>
    %131 = arith.mulf %130, %130 : vector<1x128xf32>
    %cst_47 = arith.constant dense<0.000000e+00> : vector<1xf32>
    %132 = vector.multi_reduction <add>, %131, %cst_47 [1] : vector<1x128xf32> to vector<1xf32>
    %133 = vector.shape_cast %132 : vector<1xf32> to vector<1x1xf32>
    %cst_48 = arith.constant 1.280000e+02 : f32
    %134 = vector.broadcast %cst_48 : f32 to vector<1x1xf32>
    %135 = arith.divf %133, %134 : vector<1x1xf32>
    %cst_49 = arith.constant 9.99999974E-6 : f32
    %136 = vector.broadcast %cst_49 : f32 to vector<1x1xf32>
    %137 = arith.addf %135, %136 : vector<1x1xf32>
    %138 = math.rsqrt %137 : vector<1x1xf32>
    %139 = vector.broadcast %138 : vector<1x1xf32> to vector<1x128xf32>
    %140 = arith.mulf %130, %139 : vector<1x128xf32>
    %141 = vector.extract_strided_slice %89 {offsets = [0, 384], sizes = [1, 128], strides = [1, 1]} : vector<1x512xf32> to vector<1x128xf32>
    %cst_50 = arith.constant dense<0.000000e+00> : vector<1xf32>
    %142 = vector.multi_reduction <add>, %141, %cst_50 [1] : vector<1x128xf32> to vector<1xf32>
    %143 = vector.shape_cast %142 : vector<1xf32> to vector<1x1xf32>
    %cst_51 = arith.constant 1.280000e+02 : f32
    %144 = vector.broadcast %cst_51 : f32 to vector<1x1xf32>
    %145 = arith.divf %143, %144 : vector<1x1xf32>
    %146 = vector.broadcast %145 : vector<1x1xf32> to vector<1x128xf32>
    %147 = arith.subf %141, %146 : vector<1x128xf32>
    %148 = arith.mulf %147, %147 : vector<1x128xf32>
    %cst_52 = arith.constant dense<0.000000e+00> : vector<1xf32>
    %149 = vector.multi_reduction <add>, %148, %cst_52 [1] : vector<1x128xf32> to vector<1xf32>
    %150 = vector.shape_cast %149 : vector<1xf32> to vector<1x1xf32>
    %cst_53 = arith.constant 1.280000e+02 : f32
    %151 = vector.broadcast %cst_53 : f32 to vector<1x1xf32>
    %152 = arith.divf %150, %151 : vector<1x1xf32>
    %cst_54 = arith.constant 9.99999974E-6 : f32
    %153 = vector.broadcast %cst_54 : f32 to vector<1x1xf32>
    %154 = arith.addf %152, %153 : vector<1x1xf32>
    %155 = math.rsqrt %154 : vector<1x1xf32>
    %156 = vector.broadcast %155 : vector<1x1xf32> to vector<1x128xf32>
    %157 = arith.mulf %147, %156 : vector<1x128xf32>
    %158 = tpu.concatenate %106, %123, %140, %157 in 1 : vector<1x128xf32>, vector<1x128xf32>, vector<1x128xf32>, vector<1x128xf32> -> vector<1x512xf32>
    %c1 = arith.constant 1 : index
    %c0_55 = arith.constant 0 : index
    %c0_56 = arith.constant 0 : index
    %159 = vector.load %arg4[%c1, %c0_55, %c0_56] : memref<4x1x512xf32, #tpu.memory_space<vmem>>, vector<1x1x512xf32>
    %160 = vector.shape_cast %159 : vector<1x1x512xf32> to vector<1x512xf32>
    %161 = arith.mulf %158, %160 : vector<1x512xf32>
    %c1_57 = arith.constant 1 : index
    %c0_58 = arith.constant 0 : index
    %c0_59 = arith.constant 0 : index
    %162 = vector.load %arg5[%c1_57, %c0_58, %c0_59] : memref<4x1x512xf32, #tpu.memory_space<vmem>>, vector<1x1x512xf32>
    %163 = vector.shape_cast %162 : vector<1x1x512xf32> to vector<1x512xf32>
    %164 = arith.addf %161, %163 : vector<1x512xf32>
    %165 = arith.negf %164 : vector<1x512xf32>
    %166 = math.exp %165 : vector<1x512xf32>
    %cst_60 = arith.constant 1.000000e+00 : f32
    %167 = vector.broadcast %cst_60 : f32 to vector<1x512xf32>
    %168 = arith.addf %167, %166 : vector<1x512xf32>
    %169 = arith.divf %167, %168 : vector<1x512xf32>
    %170 = arith.mulf %164, %169 : vector<1x512xf32>
    %c1_61 = arith.constant 1 : index
    %c0_62 = arith.constant 0 : index
    %c0_63 = arith.constant 0 : index
    %171 = vector.load %arg3[%c1_61, %c0_62, %c0_63] : memref<4x512x512xbf16, #tpu.memory_space<vmem>>, vector<1x512x512xbf16>
    %172 = vector.shape_cast %171 : vector<1x512x512xbf16> to vector<512x512xbf16>
    %173 = arith.truncf %170 : vector<1x512xf32> to vector<1x512xbf16>
    %cst_64 = arith.constant dense<0.000000e+00> : vector<1x512xf32>
    %174 = tpu.matmul %173, %172, %cst_64 {dimension_numbers = #tpu.dot_dimension_numbers<[1], [0], [0], [1], [0, 0, 1, 1], [], []>} : vector<1x512xbf16>, vector<512x512xbf16>, vector<1x512xf32> -> vector<1x512xf32>
    %c1_65 = arith.constant 1 : index
    %c0_66 = arith.constant 0 : index
    %c0_67 = arith.constant 0 : index
    %175 = vector.load %arg6[%c1_65, %c0_66, %c0_67] : memref<4x1x512xf32, #tpu.memory_space<vmem>>, vector<1x1x512xf32>
    %176 = vector.shape_cast %175 : vector<1x1x512xf32> to vector<1x512xf32>
    %177 = arith.addf %174, %176 : vector<1x512xf32>
    %178 = arith.addf %1, %177 : vector<1x512xf32>
    %179 = vector.extract_strided_slice %178 {offsets = [0, 0], sizes = [1, 128], strides = [1, 1]} : vector<1x512xf32> to vector<1x128xf32>
    %cst_68 = arith.constant dense<0.000000e+00> : vector<1xf32>
    %180 = vector.multi_reduction <add>, %179, %cst_68 [1] : vector<1x128xf32> to vector<1xf32>
    %181 = vector.shape_cast %180 : vector<1xf32> to vector<1x1xf32>
    %cst_69 = arith.constant 1.280000e+02 : f32
    %182 = vector.broadcast %cst_69 : f32 to vector<1x1xf32>
    %183 = arith.divf %181, %182 : vector<1x1xf32>
    %184 = vector.broadcast %183 : vector<1x1xf32> to vector<1x128xf32>
    %185 = arith.subf %179, %184 : vector<1x128xf32>
    %186 = arith.mulf %185, %185 : vector<1x128xf32>
    %cst_70 = arith.constant dense<0.000000e+00> : vector<1xf32>
    %187 = vector.multi_reduction <add>, %186, %cst_70 [1] : vector<1x128xf32> to vector<1xf32>
    %188 = vector.shape_cast %187 : vector<1xf32> to vector<1x1xf32>
    %cst_71 = arith.constant 1.280000e+02 : f32
    %189 = vector.broadcast %cst_71 : f32 to vector<1x1xf32>
    %190 = arith.divf %188, %189 : vector<1x1xf32>
    %cst_72 = arith.constant 9.99999974E-6 : f32
    %191 = vector.broadcast %cst_72 : f32 to vector<1x1xf32>
    %192 = arith.addf %190, %191 : vector<1x1xf32>
    %193 = math.rsqrt %192 : vector<1x1xf32>
    %194 = vector.broadcast %193 : vector<1x1xf32> to vector<1x128xf32>
    %195 = arith.mulf %185, %194 : vector<1x128xf32>
    %196 = vector.extract_strided_slice %178 {offsets = [0, 128], sizes = [1, 128], strides = [1, 1]} : vector<1x512xf32> to vector<1x128xf32>
    %cst_73 = arith.constant dense<0.000000e+00> : vector<1xf32>
    %197 = vector.multi_reduction <add>, %196, %cst_73 [1] : vector<1x128xf32> to vector<1xf32>
    %198 = vector.shape_cast %197 : vector<1xf32> to vector<1x1xf32>
    %cst_74 = arith.constant 1.280000e+02 : f32
    %199 = vector.broadcast %cst_74 : f32 to vector<1x1xf32>
    %200 = arith.divf %198, %199 : vector<1x1xf32>
    %201 = vector.broadcast %200 : vector<1x1xf32> to vector<1x128xf32>
    %202 = arith.subf %196, %201 : vector<1x128xf32>
    %203 = arith.mulf %202, %202 : vector<1x128xf32>
    %cst_75 = arith.constant dense<0.000000e+00> : vector<1xf32>
    %204 = vector.multi_reduction <add>, %203, %cst_75 [1] : vector<1x128xf32> to vector<1xf32>
    %205 = vector.shape_cast %204 : vector<1xf32> to vector<1x1xf32>
    %cst_76 = arith.constant 1.280000e+02 : f32
    %206 = vector.broadcast %cst_76 : f32 to vector<1x1xf32>
    %207 = arith.divf %205, %206 : vector<1x1xf32>
    %cst_77 = arith.constant 9.99999974E-6 : f32
    %208 = vector.broadcast %cst_77 : f32 to vector<1x1xf32>
    %209 = arith.addf %207, %208 : vector<1x1xf32>
    %210 = math.rsqrt %209 : vector<1x1xf32>
    %211 = vector.broadcast %210 : vector<1x1xf32> to vector<1x128xf32>
    %212 = arith.mulf %202, %211 : vector<1x128xf32>
    %213 = vector.extract_strided_slice %178 {offsets = [0, 256], sizes = [1, 128], strides = [1, 1]} : vector<1x512xf32> to vector<1x128xf32>
    %cst_78 = arith.constant dense<0.000000e+00> : vector<1xf32>
    %214 = vector.multi_reduction <add>, %213, %cst_78 [1] : vector<1x128xf32> to vector<1xf32>
    %215 = vector.shape_cast %214 : vector<1xf32> to vector<1x1xf32>
    %cst_79 = arith.constant 1.280000e+02 : f32
    %216 = vector.broadcast %cst_79 : f32 to vector<1x1xf32>
    %217 = arith.divf %215, %216 : vector<1x1xf32>
    %218 = vector.broadcast %217 : vector<1x1xf32> to vector<1x128xf32>
    %219 = arith.subf %213, %218 : vector<1x128xf32>
    %220 = arith.mulf %219, %219 : vector<1x128xf32>
    %cst_80 = arith.constant dense<0.000000e+00> : vector<1xf32>
    %221 = vector.multi_reduction <add>, %220, %cst_80 [1] : vector<1x128xf32> to vector<1xf32>
    %222 = vector.shape_cast %221 : vector<1xf32> to vector<1x1xf32>
    %cst_81 = arith.constant 1.280000e+02 : f32
    %223 = vector.broadcast %cst_81 : f32 to vector<1x1xf32>
    %224 = arith.divf %222, %223 : vector<1x1xf32>
    %cst_82 = arith.constant 9.99999974E-6 : f32
    %225 = vector.broadcast %cst_82 : f32 to vector<1x1xf32>
    %226 = arith.addf %224, %225 : vector<1x1xf32>
    %227 = math.rsqrt %226 : vector<1x1xf32>
    %228 = vector.broadcast %227 : vector<1x1xf32> to vector<1x128xf32>
    %229 = arith.mulf %219, %228 : vector<1x128xf32>
    %230 = vector.extract_strided_slice %178 {offsets = [0, 384], sizes = [1, 128], strides = [1, 1]} : vector<1x512xf32> to vector<1x128xf32>
    %cst_83 = arith.constant dense<0.000000e+00> : vector<1xf32>
    %231 = vector.multi_reduction <add>, %230, %cst_83 [1] : vector<1x128xf32> to vector<1xf32>
    %232 = vector.shape_cast %231 : vector<1xf32> to vector<1x1xf32>
    %cst_84 = arith.constant 1.280000e+02 : f32
    %233 = vector.broadcast %cst_84 : f32 to vector<1x1xf32>
    %234 = arith.divf %232, %233 : vector<1x1xf32>
    %235 = vector.broadcast %234 : vector<1x1xf32> to vector<1x128xf32>
    %236 = arith.subf %230, %235 : vector<1x128xf32>
    %237 = arith.mulf %236, %236 : vector<1x128xf32>
    %cst_85 = arith.constant dense<0.000000e+00> : vector<1xf32>
    %238 = vector.multi_reduction <add>, %237, %cst_85 [1] : vector<1x128xf32> to vector<1xf32>
    %239 = vector.shape_cast %238 : vector<1xf32> to vector<1x1xf32>
    %cst_86 = arith.constant 1.280000e+02 : f32
    %240 = vector.broadcast %cst_86 : f32 to vector<1x1xf32>
    %241 = arith.divf %239, %240 : vector<1x1xf32>
    %cst_87 = arith.constant 9.99999974E-6 : f32
    %242 = vector.broadcast %cst_87 : f32 to vector<1x1xf32>
    %243 = arith.addf %241, %242 : vector<1x1xf32>
    %244 = math.rsqrt %243 : vector<1x1xf32>
    %245 = vector.broadcast %244 : vector<1x1xf32> to vector<1x128xf32>
    %246 = arith.mulf %236, %245 : vector<1x128xf32>
    %247 = tpu.concatenate %195, %212, %229, %246 in 1 : vector<1x128xf32>, vector<1x128xf32>, vector<1x128xf32>, vector<1x128xf32> -> vector<1x512xf32>
    %c2 = arith.constant 2 : index
    %c0_88 = arith.constant 0 : index
    %c0_89 = arith.constant 0 : index
    %248 = vector.load %arg4[%c2, %c0_88, %c0_89] : memref<4x1x512xf32, #tpu.memory_space<vmem>>, vector<1x1x512xf32>
    %249 = vector.shape_cast %248 : vector<1x1x512xf32> to vector<1x512xf32>
    %250 = arith.mulf %247, %249 : vector<1x512xf32>
    %c2_90 = arith.constant 2 : index
    %c0_91 = arith.constant 0 : index
    %c0_92 = arith.constant 0 : index
    %251 = vector.load %arg5[%c2_90, %c0_91, %c0_92] : memref<4x1x512xf32, #tpu.memory_space<vmem>>, vector<1x1x512xf32>
    %252 = vector.shape_cast %251 : vector<1x1x512xf32> to vector<1x512xf32>
    %253 = arith.addf %250, %252 : vector<1x512xf32>
    %254 = arith.negf %253 : vector<1x512xf32>
    %255 = math.exp %254 : vector<1x512xf32>
    %cst_93 = arith.constant 1.000000e+00 : f32
    %256 = vector.broadcast %cst_93 : f32 to vector<1x512xf32>
    %257 = arith.addf %256, %255 : vector<1x512xf32>
    %258 = arith.divf %256, %257 : vector<1x512xf32>
    %259 = arith.mulf %253, %258 : vector<1x512xf32>
    %c2_94 = arith.constant 2 : index
    %c0_95 = arith.constant 0 : index
    %c0_96 = arith.constant 0 : index
    %260 = vector.load %arg3[%c2_94, %c0_95, %c0_96] : memref<4x512x512xbf16, #tpu.memory_space<vmem>>, vector<1x512x512xbf16>
    %261 = vector.shape_cast %260 : vector<1x512x512xbf16> to vector<512x512xbf16>
    %262 = arith.truncf %259 : vector<1x512xf32> to vector<1x512xbf16>
    %cst_97 = arith.constant dense<0.000000e+00> : vector<1x512xf32>
    %263 = tpu.matmul %262, %261, %cst_97 {dimension_numbers = #tpu.dot_dimension_numbers<[1], [0], [0], [1], [0, 0, 1, 1], [], []>} : vector<1x512xbf16>, vector<512x512xbf16>, vector<1x512xf32> -> vector<1x512xf32>
    %c2_98 = arith.constant 2 : index
    %c0_99 = arith.constant 0 : index
    %c0_100 = arith.constant 0 : index
    %264 = vector.load %arg6[%c2_98, %c0_99, %c0_100] : memref<4x1x512xf32, #tpu.memory_space<vmem>>, vector<1x1x512xf32>
    %265 = vector.shape_cast %264 : vector<1x1x512xf32> to vector<1x512xf32>
    %266 = arith.addf %263, %265 : vector<1x512xf32>
    %267 = vector.extract_strided_slice %266 {offsets = [0, 0], sizes = [1, 128], strides = [1, 1]} : vector<1x512xf32> to vector<1x128xf32>
    %cst_101 = arith.constant dense<0.000000e+00> : vector<1xf32>
    %268 = vector.multi_reduction <add>, %267, %cst_101 [1] : vector<1x128xf32> to vector<1xf32>
    %269 = vector.shape_cast %268 : vector<1xf32> to vector<1x1xf32>
    %cst_102 = arith.constant 1.280000e+02 : f32
    %270 = vector.broadcast %cst_102 : f32 to vector<1x1xf32>
    %271 = arith.divf %269, %270 : vector<1x1xf32>
    %272 = vector.broadcast %271 : vector<1x1xf32> to vector<1x128xf32>
    %273 = arith.subf %267, %272 : vector<1x128xf32>
    %274 = arith.mulf %273, %273 : vector<1x128xf32>
    %cst_103 = arith.constant dense<0.000000e+00> : vector<1xf32>
    %275 = vector.multi_reduction <add>, %274, %cst_103 [1] : vector<1x128xf32> to vector<1xf32>
    %276 = vector.shape_cast %275 : vector<1xf32> to vector<1x1xf32>
    %cst_104 = arith.constant 1.280000e+02 : f32
    %277 = vector.broadcast %cst_104 : f32 to vector<1x1xf32>
    %278 = arith.divf %276, %277 : vector<1x1xf32>
    %cst_105 = arith.constant 9.99999974E-6 : f32
    %279 = vector.broadcast %cst_105 : f32 to vector<1x1xf32>
    %280 = arith.addf %278, %279 : vector<1x1xf32>
    %281 = math.rsqrt %280 : vector<1x1xf32>
    %282 = vector.broadcast %281 : vector<1x1xf32> to vector<1x128xf32>
    %283 = arith.mulf %273, %282 : vector<1x128xf32>
    %284 = vector.extract_strided_slice %266 {offsets = [0, 128], sizes = [1, 128], strides = [1, 1]} : vector<1x512xf32> to vector<1x128xf32>
    %cst_106 = arith.constant dense<0.000000e+00> : vector<1xf32>
    %285 = vector.multi_reduction <add>, %284, %cst_106 [1] : vector<1x128xf32> to vector<1xf32>
    %286 = vector.shape_cast %285 : vector<1xf32> to vector<1x1xf32>
    %cst_107 = arith.constant 1.280000e+02 : f32
    %287 = vector.broadcast %cst_107 : f32 to vector<1x1xf32>
    %288 = arith.divf %286, %287 : vector<1x1xf32>
    %289 = vector.broadcast %288 : vector<1x1xf32> to vector<1x128xf32>
    %290 = arith.subf %284, %289 : vector<1x128xf32>
    %291 = arith.mulf %290, %290 : vector<1x128xf32>
    %cst_108 = arith.constant dense<0.000000e+00> : vector<1xf32>
    %292 = vector.multi_reduction <add>, %291, %cst_108 [1] : vector<1x128xf32> to vector<1xf32>
    %293 = vector.shape_cast %292 : vector<1xf32> to vector<1x1xf32>
    %cst_109 = arith.constant 1.280000e+02 : f32
    %294 = vector.broadcast %cst_109 : f32 to vector<1x1xf32>
    %295 = arith.divf %293, %294 : vector<1x1xf32>
    %cst_110 = arith.constant 9.99999974E-6 : f32
    %296 = vector.broadcast %cst_110 : f32 to vector<1x1xf32>
    %297 = arith.addf %295, %296 : vector<1x1xf32>
    %298 = math.rsqrt %297 : vector<1x1xf32>
    %299 = vector.broadcast %298 : vector<1x1xf32> to vector<1x128xf32>
    %300 = arith.mulf %290, %299 : vector<1x128xf32>
    %301 = vector.extract_strided_slice %266 {offsets = [0, 256], sizes = [1, 128], strides = [1, 1]} : vector<1x512xf32> to vector<1x128xf32>
    %cst_111 = arith.constant dense<0.000000e+00> : vector<1xf32>
    %302 = vector.multi_reduction <add>, %301, %cst_111 [1] : vector<1x128xf32> to vector<1xf32>
    %303 = vector.shape_cast %302 : vector<1xf32> to vector<1x1xf32>
    %cst_112 = arith.constant 1.280000e+02 : f32
    %304 = vector.broadcast %cst_112 : f32 to vector<1x1xf32>
    %305 = arith.divf %303, %304 : vector<1x1xf32>
    %306 = vector.broadcast %305 : vector<1x1xf32> to vector<1x128xf32>
    %307 = arith.subf %301, %306 : vector<1x128xf32>
    %308 = arith.mulf %307, %307 : vector<1x128xf32>
    %cst_113 = arith.constant dense<0.000000e+00> : vector<1xf32>
    %309 = vector.multi_reduction <add>, %308, %cst_113 [1] : vector<1x128xf32> to vector<1xf32>
    %310 = vector.shape_cast %309 : vector<1xf32> to vector<1x1xf32>
    %cst_114 = arith.constant 1.280000e+02 : f32
    %311 = vector.broadcast %cst_114 : f32 to vector<1x1xf32>
    %312 = arith.divf %310, %311 : vector<1x1xf32>
    %cst_115 = arith.constant 9.99999974E-6 : f32
    %313 = vector.broadcast %cst_115 : f32 to vector<1x1xf32>
    %314 = arith.addf %312, %313 : vector<1x1xf32>
    %315 = math.rsqrt %314 : vector<1x1xf32>
    %316 = vector.broadcast %315 : vector<1x1xf32> to vector<1x128xf32>
    %317 = arith.mulf %307, %316 : vector<1x128xf32>
    %318 = vector.extract_strided_slice %266 {offsets = [0, 384], sizes = [1, 128], strides = [1, 1]} : vector<1x512xf32> to vector<1x128xf32>
    %cst_116 = arith.constant dense<0.000000e+00> : vector<1xf32>
    %319 = vector.multi_reduction <add>, %318, %cst_116 [1] : vector<1x128xf32> to vector<1xf32>
    %320 = vector.shape_cast %319 : vector<1xf32> to vector<1x1xf32>
    %cst_117 = arith.constant 1.280000e+02 : f32
    %321 = vector.broadcast %cst_117 : f32 to vector<1x1xf32>
    %322 = arith.divf %320, %321 : vector<1x1xf32>
    %323 = vector.broadcast %322 : vector<1x1xf32> to vector<1x128xf32>
    %324 = arith.subf %318, %323 : vector<1x128xf32>
    %325 = arith.mulf %324, %324 : vector<1x128xf32>
    %cst_118 = arith.constant dense<0.000000e+00> : vector<1xf32>
    %326 = vector.multi_reduction <add>, %325, %cst_118 [1] : vector<1x128xf32> to vector<1xf32>
    %327 = vector.shape_cast %326 : vector<1xf32> to vector<1x1xf32>
    %cst_119 = arith.constant 1.280000e+02 : f32
    %328 = vector.broadcast %cst_119 : f32 to vector<1x1xf32>
    %329 = arith.divf %327, %328 : vector<1x1xf32>
    %cst_120 = arith.constant 9.99999974E-6 : f32
    %330 = vector.broadcast %cst_120 : f32 to vector<1x1xf32>
    %331 = arith.addf %329, %330 : vector<1x1xf32>
    %332 = math.rsqrt %331 : vector<1x1xf32>
    %333 = vector.broadcast %332 : vector<1x1xf32> to vector<1x128xf32>
    %334 = arith.mulf %324, %333 : vector<1x128xf32>
    %335 = tpu.concatenate %283, %300, %317, %334 in 1 : vector<1x128xf32>, vector<1x128xf32>, vector<1x128xf32>, vector<1x128xf32> -> vector<1x512xf32>
    %c3 = arith.constant 3 : index
    %c0_121 = arith.constant 0 : index
    %c0_122 = arith.constant 0 : index
    %336 = vector.load %arg4[%c3, %c0_121, %c0_122] : memref<4x1x512xf32, #tpu.memory_space<vmem>>, vector<1x1x512xf32>
    %337 = vector.shape_cast %336 : vector<1x1x512xf32> to vector<1x512xf32>
    %338 = arith.mulf %335, %337 : vector<1x512xf32>
    %c3_123 = arith.constant 3 : index
    %c0_124 = arith.constant 0 : index
    %c0_125 = arith.constant 0 : index
    %339 = vector.load %arg5[%c3_123, %c0_124, %c0_125] : memref<4x1x512xf32, #tpu.memory_space<vmem>>, vector<1x1x512xf32>
    %340 = vector.shape_cast %339 : vector<1x1x512xf32> to vector<1x512xf32>
    %341 = arith.addf %338, %340 : vector<1x512xf32>
    %342 = arith.negf %341 : vector<1x512xf32>
    %343 = math.exp %342 : vector<1x512xf32>
    %cst_126 = arith.constant 1.000000e+00 : f32
    %344 = vector.broadcast %cst_126 : f32 to vector<1x512xf32>
    %345 = arith.addf %344, %343 : vector<1x512xf32>
    %346 = arith.divf %344, %345 : vector<1x512xf32>
    %347 = arith.mulf %341, %346 : vector<1x512xf32>
    %c3_127 = arith.constant 3 : index
    %c0_128 = arith.constant 0 : index
    %c0_129 = arith.constant 0 : index
    %348 = vector.load %arg3[%c3_127, %c0_128, %c0_129] : memref<4x512x512xbf16, #tpu.memory_space<vmem>>, vector<1x512x512xbf16>
    %349 = vector.shape_cast %348 : vector<1x512x512xbf16> to vector<512x512xbf16>
    %350 = arith.truncf %347 : vector<1x512xf32> to vector<1x512xbf16>
    %cst_130 = arith.constant dense<0.000000e+00> : vector<1x512xf32>
    %351 = tpu.matmul %350, %349, %cst_130 {dimension_numbers = #tpu.dot_dimension_numbers<[1], [0], [0], [1], [0, 0, 1, 1], [], []>} : vector<1x512xbf16>, vector<512x512xbf16>, vector<1x512xf32> -> vector<1x512xf32>
    %c3_131 = arith.constant 3 : index
    %c0_132 = arith.constant 0 : index
    %c0_133 = arith.constant 0 : index
    %352 = vector.load %arg6[%c3_131, %c0_132, %c0_133] : memref<4x1x512xf32, #tpu.memory_space<vmem>>, vector<1x1x512xf32>
    %353 = vector.shape_cast %352 : vector<1x1x512xf32> to vector<1x512xf32>
    %354 = arith.addf %351, %353 : vector<1x512xf32>
    %355 = arith.addf %178, %354 : vector<1x512xf32>
    %c0_134 = arith.constant 0 : index
    %c0_135 = arith.constant 0 : index
    %356 = vector.load %arg7[%c0_134, %c0_135] : memref<512x128xbf16, #tpu.memory_space<vmem>>, vector<512x128xbf16>
    %357 = arith.truncf %355 : vector<1x512xf32> to vector<1x512xbf16>
    %cst_136 = arith.constant dense<0.000000e+00> : vector<1x128xf32>
    %358 = tpu.matmul %357, %356, %cst_136 {dimension_numbers = #tpu.dot_dimension_numbers<[1], [0], [0], [1], [0, 0, 1, 1], [], []>} : vector<1x512xbf16>, vector<512x128xbf16>, vector<1x128xf32> -> vector<1x128xf32>
    %c0_137 = arith.constant 0 : index
    %c0_138 = arith.constant 0 : index
    %359 = vector.load %arg8[%c0_137, %c0_138] : memref<1x128xf32, #tpu.memory_space<vmem>>, vector<1x128xf32>
    %360 = arith.addf %358, %359 : vector<1x128xf32>
    %c0_139 = arith.constant 0 : index
    %c0_140 = arith.constant 0 : index
    %c0_141 = arith.constant 0 : index
    %361 = vector.load %arg2[%c0_139, %c0_140, %c0_141] : memref<1x3x16xf32, #tpu.memory_space<vmem>>, vector<1x3x16xf32>
    %362 = vector.shape_cast %361 : vector<1x3x16xf32> to vector<3x16xf32>
    %cst_142 = arith.constant dense<0.000000e+00> : vector<3xf32>
    %363 = vector.multi_reduction <add>, %362, %cst_142 [1] : vector<3x16xf32> to vector<3xf32>
    %364 = vector.shape_cast %363 : vector<3xf32> to vector<3x1xf32>
    %cst_143 = arith.constant 1.600000e+01 : f32
    %365 = vector.broadcast %cst_143 : f32 to vector<3x1xf32>
    %366 = arith.divf %364, %365 : vector<3x1xf32>
    %367 = vector.broadcast %366 : vector<3x1xf32> to vector<3x16xf32>
    %368 = arith.subf %362, %367 : vector<3x16xf32>
    %369 = arith.mulf %368, %368 : vector<3x16xf32>
    %cst_144 = arith.constant dense<0.000000e+00> : vector<3xf32>
    %370 = vector.multi_reduction <add>, %369, %cst_144 [1] : vector<3x16xf32> to vector<3xf32>
    %371 = vector.shape_cast %370 : vector<3xf32> to vector<3x1xf32>
    %cst_145 = arith.constant 1.600000e+01 : f32
    %372 = vector.broadcast %cst_145 : f32 to vector<3x1xf32>
    %373 = arith.divf %371, %372 : vector<3x1xf32>
    %cst_146 = arith.constant 9.99999974E-6 : f32
    %374 = vector.broadcast %cst_146 : f32 to vector<3x1xf32>
    %375 = arith.addf %373, %374 : vector<3x1xf32>
    %376 = math.rsqrt %375 : vector<3x1xf32>
    %377 = vector.broadcast %376 : vector<3x1xf32> to vector<3x16xf32>
    %378 = arith.mulf %368, %377 : vector<3x16xf32>
    %c0_147 = arith.constant 0 : index
    %c0_148 = arith.constant 0 : index
    %379 = vector.load %arg9[%c0_147, %c0_148] : memref<1x16xf32, #tpu.memory_space<vmem>>, vector<1x16xf32>
    %380 = vector.broadcast %379 : vector<1x16xf32> to vector<3x16xf32>
    %381 = arith.mulf %378, %380 : vector<3x16xf32>
    %c0_149 = arith.constant 0 : index
    %c0_150 = arith.constant 0 : index
    %382 = vector.load %arg10[%c0_149, %c0_150] : memref<1x16xf32, #tpu.memory_space<vmem>>, vector<1x16xf32>
    %383 = vector.broadcast %382 : vector<1x16xf32> to vector<3x16xf32>
    %384 = arith.addf %381, %383 : vector<3x16xf32>
    %c0_151 = arith.constant 0 : index
    %c0_152 = arith.constant 0 : index
    %385 = vector.load %arg11[%c0_151, %c0_152] : memref<16x128xbf16, #tpu.memory_space<vmem>>, vector<16x128xbf16>
    %386 = arith.truncf %384 : vector<3x16xf32> to vector<3x16xbf16>
    %cst_153 = arith.constant dense<0.000000e+00> : vector<3x128xf32>
    %387 = tpu.matmul %386, %385, %cst_153 {dimension_numbers = #tpu.dot_dimension_numbers<[1], [0], [0], [1], [0, 0, 1, 1], [], []>} : vector<3x16xbf16>, vector<16x128xbf16>, vector<3x128xf32> -> vector<3x128xf32>
    %c0_154 = arith.constant 0 : index
    %c0_155 = arith.constant 0 : index
    %388 = vector.load %arg12[%c0_154, %c0_155] : memref<128x128xbf16, #tpu.memory_space<vmem>>, vector<128x128xbf16>
    %389 = arith.truncf %387 : vector<3x128xf32> to vector<3x128xbf16>
    %cst_156 = arith.constant dense<0.000000e+00> : vector<3x128xf32>
    %390 = tpu.matmul %389, %388, %cst_156 {dimension_numbers = #tpu.dot_dimension_numbers<[1], [0], [0], [1], [0, 0, 1, 1], [], []>} : vector<3x128xbf16>, vector<128x128xbf16>, vector<3x128xf32> -> vector<3x128xf32>
    %c0_157 = arith.constant 0 : index
    %c0_158 = arith.constant 0 : index
    %391 = vector.load %arg13[%c0_157, %c0_158] : memref<1x128xf32, #tpu.memory_space<vmem>>, vector<1x128xf32>
    %392 = vector.broadcast %391 : vector<1x128xf32> to vector<3x128xf32>
    %393 = arith.addf %390, %392 : vector<3x128xf32>
    %c0_159 = arith.constant 0 : index
    %c0_160 = arith.constant 0 : index
    %394 = vector.load %arg14[%c0_159, %c0_160] : memref<128x384xbf16, #tpu.memory_space<vmem>>, vector<128x384xbf16>
    %395 = arith.truncf %393 : vector<3x128xf32> to vector<3x128xbf16>
    %cst_161 = arith.constant dense<0.000000e+00> : vector<3x384xf32>
    %396 = tpu.matmul %395, %394, %cst_161 {dimension_numbers = #tpu.dot_dimension_numbers<[1], [0], [0], [1], [0, 0, 1, 1], [], []>} : vector<3x128xbf16>, vector<128x384xbf16>, vector<3x384xf32> -> vector<3x384xf32>
    %c0_162 = arith.constant 0 : index
    %c0_163 = arith.constant 0 : index
    %397 = vector.load %arg16[%c0_162, %c0_163] : memref<1x384xf32, #tpu.memory_space<vmem>>, vector<1x384xf32>
    %398 = vector.broadcast %397 : vector<1x384xf32> to vector<3x384xf32>
    %399 = arith.addf %396, %398 : vector<3x384xf32>
    %c0_164 = arith.constant 0 : index
    %c0_165 = arith.constant 0 : index
    %400 = vector.load %arg19[%c0_164, %c0_165] : memref<16x32xbf16, #tpu.memory_space<vmem>>, vector<16x32xbf16>
    %401 = arith.truncf %362 : vector<3x16xf32> to vector<3x16xbf16>
    %cst_166 = arith.constant dense<0.000000e+00> : vector<3x32xf32>
    %402 = tpu.matmul %401, %400, %cst_166 {dimension_numbers = #tpu.dot_dimension_numbers<[1], [0], [0], [1], [0, 0, 1, 1], [], []>} : vector<3x16xbf16>, vector<16x32xbf16>, vector<3x32xf32> -> vector<3x32xf32>
    %c0_167 = arith.constant 0 : index
    %c0_168 = arith.constant 0 : index
    %403 = vector.load %arg15[%c0_167, %c0_168] : memref<128x384xbf16, #tpu.memory_space<vmem>>, vector<128x384xbf16>
    %c0_169 = arith.constant 0 : index
    %c0_170 = arith.constant 0 : index
    %404 = vector.load %arg17[%c0_169, %c0_170] : memref<1x384xf32, #tpu.memory_space<vmem>>, vector<1x384xf32>
    %405 = vector.extract_strided_slice %399 {offsets = [0, 0], sizes = [1, 384], strides = [1, 1]} : vector<3x384xf32> to vector<1x384xf32>
    %406 = arith.truncf %360 : vector<1x128xf32> to vector<1x128xbf16>
    %cst_171 = arith.constant dense<0.000000e+00> : vector<1x384xf32>
    %407 = tpu.matmul %406, %403, %cst_171 {dimension_numbers = #tpu.dot_dimension_numbers<[1], [0], [0], [1], [0, 0, 1, 1], [], []>} : vector<1x128xbf16>, vector<128x384xbf16>, vector<1x384xf32> -> vector<1x384xf32>
    %408 = arith.addf %407, %404 : vector<1x384xf32>
    %409 = vector.extract_strided_slice %405 {offsets = [0, 0], sizes = [1, 128], strides = [1, 1]} : vector<1x384xf32> to vector<1x128xf32>
    %410 = vector.extract_strided_slice %408 {offsets = [0, 0], sizes = [1, 128], strides = [1, 1]} : vector<1x384xf32> to vector<1x128xf32>
    %411 = arith.addf %409, %410 : vector<1x128xf32>
    %412 = arith.negf %411 : vector<1x128xf32>
    %413 = math.exp %412 : vector<1x128xf32>
    %cst_172 = arith.constant 1.000000e+00 : f32
    %414 = vector.broadcast %cst_172 : f32 to vector<1x128xf32>
    %415 = arith.addf %414, %413 : vector<1x128xf32>
    %416 = arith.divf %414, %415 : vector<1x128xf32>
    %417 = vector.extract_strided_slice %405 {offsets = [0, 128], sizes = [1, 128], strides = [1, 1]} : vector<1x384xf32> to vector<1x128xf32>
    %418 = vector.extract_strided_slice %408 {offsets = [0, 128], sizes = [1, 128], strides = [1, 1]} : vector<1x384xf32> to vector<1x128xf32>
    %419 = arith.addf %417, %418 : vector<1x128xf32>
    %420 = arith.negf %419 : vector<1x128xf32>
    %421 = math.exp %420 : vector<1x128xf32>
    %cst_173 = arith.constant 1.000000e+00 : f32
    %422 = vector.broadcast %cst_173 : f32 to vector<1x128xf32>
    %423 = arith.addf %422, %421 : vector<1x128xf32>
    %424 = arith.divf %422, %423 : vector<1x128xf32>
    %425 = vector.extract_strided_slice %405 {offsets = [0, 256], sizes = [1, 128], strides = [1, 1]} : vector<1x384xf32> to vector<1x128xf32>
    %426 = vector.extract_strided_slice %408 {offsets = [0, 256], sizes = [1, 128], strides = [1, 1]} : vector<1x384xf32> to vector<1x128xf32>
    %427 = arith.mulf %416, %426 : vector<1x128xf32>
    %428 = arith.addf %425, %427 : vector<1x128xf32>
    %429 = math.tanh %428 : vector<1x128xf32>
    %cst_174 = arith.constant 1.000000e+00 : f32
    %430 = vector.broadcast %cst_174 : f32 to vector<1x128xf32>
    %431 = arith.subf %430, %424 : vector<1x128xf32>
    %432 = arith.mulf %431, %429 : vector<1x128xf32>
    %433 = arith.mulf %424, %360 : vector<1x128xf32>
    %434 = arith.addf %432, %433 : vector<1x128xf32>
    %435 = vector.extract_strided_slice %399 {offsets = [1, 0], sizes = [1, 384], strides = [1, 1]} : vector<3x384xf32> to vector<1x384xf32>
    %436 = arith.truncf %434 : vector<1x128xf32> to vector<1x128xbf16>
    %cst_175 = arith.constant dense<0.000000e+00> : vector<1x384xf32>
    %437 = tpu.matmul %436, %403, %cst_175 {dimension_numbers = #tpu.dot_dimension_numbers<[1], [0], [0], [1], [0, 0, 1, 1], [], []>} : vector<1x128xbf16>, vector<128x384xbf16>, vector<1x384xf32> -> vector<1x384xf32>
    %438 = arith.addf %437, %404 : vector<1x384xf32>
    %439 = vector.extract_strided_slice %435 {offsets = [0, 0], sizes = [1, 128], strides = [1, 1]} : vector<1x384xf32> to vector<1x128xf32>
    %440 = vector.extract_strided_slice %438 {offsets = [0, 0], sizes = [1, 128], strides = [1, 1]} : vector<1x384xf32> to vector<1x128xf32>
    %441 = arith.addf %439, %440 : vector<1x128xf32>
    %442 = arith.negf %441 : vector<1x128xf32>
    %443 = math.exp %442 : vector<1x128xf32>
    %cst_176 = arith.constant 1.000000e+00 : f32
    %444 = vector.broadcast %cst_176 : f32 to vector<1x128xf32>
    %445 = arith.addf %444, %443 : vector<1x128xf32>
    %446 = arith.divf %444, %445 : vector<1x128xf32>
    %447 = vector.extract_strided_slice %435 {offsets = [0, 128], sizes = [1, 128], strides = [1, 1]} : vector<1x384xf32> to vector<1x128xf32>
    %448 = vector.extract_strided_slice %438 {offsets = [0, 128], sizes = [1, 128], strides = [1, 1]} : vector<1x384xf32> to vector<1x128xf32>
    %449 = arith.addf %447, %448 : vector<1x128xf32>
    %450 = arith.negf %449 : vector<1x128xf32>
    %451 = math.exp %450 : vector<1x128xf32>
    %cst_177 = arith.constant 1.000000e+00 : f32
    %452 = vector.broadcast %cst_177 : f32 to vector<1x128xf32>
    %453 = arith.addf %452, %451 : vector<1x128xf32>
    %454 = arith.divf %452, %453 : vector<1x128xf32>
    %455 = vector.extract_strided_slice %435 {offsets = [0, 256], sizes = [1, 128], strides = [1, 1]} : vector<1x384xf32> to vector<1x128xf32>
    %456 = vector.extract_strided_slice %438 {offsets = [0, 256], sizes = [1, 128], strides = [1, 1]} : vector<1x384xf32> to vector<1x128xf32>
    %457 = arith.mulf %446, %456 : vector<1x128xf32>
    %458 = arith.addf %455, %457 : vector<1x128xf32>
    %459 = math.tanh %458 : vector<1x128xf32>
    %cst_178 = arith.constant 1.000000e+00 : f32
    %460 = vector.broadcast %cst_178 : f32 to vector<1x128xf32>
    %461 = arith.subf %460, %454 : vector<1x128xf32>
    %462 = arith.mulf %461, %459 : vector<1x128xf32>
    %463 = arith.mulf %454, %434 : vector<1x128xf32>
    %464 = arith.addf %462, %463 : vector<1x128xf32>
    %465 = vector.extract_strided_slice %399 {offsets = [2, 0], sizes = [1, 384], strides = [1, 1]} : vector<3x384xf32> to vector<1x384xf32>
    %466 = arith.truncf %464 : vector<1x128xf32> to vector<1x128xbf16>
    %cst_179 = arith.constant dense<0.000000e+00> : vector<1x384xf32>
    %467 = tpu.matmul %466, %403, %cst_179 {dimension_numbers = #tpu.dot_dimension_numbers<[1], [0], [0], [1], [0, 0, 1, 1], [], []>} : vector<1x128xbf16>, vector<128x384xbf16>, vector<1x384xf32> -> vector<1x384xf32>
    %468 = arith.addf %467, %404 : vector<1x384xf32>
    %469 = vector.extract_strided_slice %465 {offsets = [0, 0], sizes = [1, 128], strides = [1, 1]} : vector<1x384xf32> to vector<1x128xf32>
    %470 = vector.extract_strided_slice %468 {offsets = [0, 0], sizes = [1, 128], strides = [1, 1]} : vector<1x384xf32> to vector<1x128xf32>
    %471 = arith.addf %469, %470 : vector<1x128xf32>
    %472 = arith.negf %471 : vector<1x128xf32>
    %473 = math.exp %472 : vector<1x128xf32>
    %cst_180 = arith.constant 1.000000e+00 : f32
    %474 = vector.broadcast %cst_180 : f32 to vector<1x128xf32>
    %475 = arith.addf %474, %473 : vector<1x128xf32>
    %476 = arith.divf %474, %475 : vector<1x128xf32>
    %477 = vector.extract_strided_slice %465 {offsets = [0, 128], sizes = [1, 128], strides = [1, 1]} : vector<1x384xf32> to vector<1x128xf32>
    %478 = vector.extract_strided_slice %468 {offsets = [0, 128], sizes = [1, 128], strides = [1, 1]} : vector<1x384xf32> to vector<1x128xf32>
    %479 = arith.addf %477, %478 : vector<1x128xf32>
    %480 = arith.negf %479 : vector<1x128xf32>
    %481 = math.exp %480 : vector<1x128xf32>
    %cst_181 = arith.constant 1.000000e+00 : f32
    %482 = vector.broadcast %cst_181 : f32 to vector<1x128xf32>
    %483 = arith.addf %482, %481 : vector<1x128xf32>
    %484 = arith.divf %482, %483 : vector<1x128xf32>
    %485 = vector.extract_strided_slice %465 {offsets = [0, 256], sizes = [1, 128], strides = [1, 1]} : vector<1x384xf32> to vector<1x128xf32>
    %486 = vector.extract_strided_slice %468 {offsets = [0, 256], sizes = [1, 128], strides = [1, 1]} : vector<1x384xf32> to vector<1x128xf32>
    %487 = arith.mulf %476, %486 : vector<1x128xf32>
    %488 = arith.addf %485, %487 : vector<1x128xf32>
    %489 = math.tanh %488 : vector<1x128xf32>
    %cst_182 = arith.constant 1.000000e+00 : f32
    %490 = vector.broadcast %cst_182 : f32 to vector<1x128xf32>
    %491 = arith.subf %490, %484 : vector<1x128xf32>
    %492 = arith.mulf %491, %489 : vector<1x128xf32>
    %493 = arith.mulf %484, %464 : vector<1x128xf32>
    %494 = arith.addf %492, %493 : vector<1x128xf32>
    %495 = tpu.concatenate %360, %434, %464, %494 in 0 : vector<1x128xf32>, vector<1x128xf32>, vector<1x128xf32>, vector<1x128xf32> -> vector<4x128xf32>
    %c0_183 = arith.constant 0 : index
    %c0_184 = arith.constant 0 : index
    %496 = vector.load %arg18[%c0_183, %c0_184] : memref<128x32xbf16, #tpu.memory_space<vmem>>, vector<128x32xbf16>
    %497 = arith.truncf %495 : vector<4x128xf32> to vector<4x128xbf16>
    %cst_185 = arith.constant dense<0.000000e+00> : vector<4x32xf32>
    %498 = tpu.matmul %497, %496, %cst_185 {dimension_numbers = #tpu.dot_dimension_numbers<[1], [0], [0], [1], [0, 0, 1, 1], [], []>} : vector<4x128xbf16>, vector<128x32xbf16>, vector<4x32xf32> -> vector<4x32xf32>
    %c0_186 = arith.constant 0 : index
    %c0_187 = arith.constant 0 : index
    %499 = vector.load %arg20[%c0_186, %c0_187] : memref<1x32xf32, #tpu.memory_space<vmem>>, vector<1x32xf32>
    %500 = vector.broadcast %499 : vector<1x32xf32> to vector<4x32xf32>
    %501 = arith.addf %498, %500 : vector<4x32xf32>
    %502 = vector.extract_strided_slice %501 {offsets = [0, 0], sizes = [1, 32], strides = [1, 1]} : vector<4x32xf32> to vector<1x32xf32>
    %503 = vector.extract_strided_slice %501 {offsets = [1, 0], sizes = [1, 32], strides = [1, 1]} : vector<4x32xf32> to vector<1x32xf32>
    %504 = vector.extract_strided_slice %402 {offsets = [0, 0], sizes = [1, 32], strides = [1, 1]} : vector<3x32xf32> to vector<1x32xf32>
    %505 = arith.addf %503, %504 : vector<1x32xf32>
    %506 = vector.extract_strided_slice %501 {offsets = [2, 0], sizes = [1, 32], strides = [1, 1]} : vector<4x32xf32> to vector<1x32xf32>
    %507 = vector.extract_strided_slice %402 {offsets = [1, 0], sizes = [1, 32], strides = [1, 1]} : vector<3x32xf32> to vector<1x32xf32>
    %508 = arith.addf %506, %507 : vector<1x32xf32>
    %509 = vector.extract_strided_slice %501 {offsets = [3, 0], sizes = [1, 32], strides = [1, 1]} : vector<4x32xf32> to vector<1x32xf32>
    %510 = vector.extract_strided_slice %402 {offsets = [2, 0], sizes = [1, 32], strides = [1, 1]} : vector<3x32xf32> to vector<1x32xf32>
    %511 = arith.addf %509, %510 : vector<1x32xf32>
    %512 = tpu.concatenate %502, %505, %508, %511 in 1 : vector<1x32xf32>, vector<1x32xf32>, vector<1x32xf32>, vector<1x32xf32> -> vector<1x128xf32>
    %c0_188 = arith.constant 0 : index
    %c0_189 = arith.constant 0 : index
    %c0_190 = arith.constant 0 : index
    %513 = vector.load %arg21[%c0_188, %c0_189, %c0_190] : memref<1x1x128xf32, #tpu.memory_space<vmem>>, vector<1x1x128xf32>
    %514 = vector.shape_cast %513 : vector<1x1x128xf32> to vector<1x128xf32>
    %515 = vector.shape_cast %512 : vector<1x128xf32> to vector<1x1x128xf32>
    tpu.vector_store %arg21[%c0_188, %c0_189, %c0_190], %515 {strides = array<i32>} : memref<1x1x128xf32, #tpu.memory_space<vmem>>, vector<1x1x128xf32>,
    return
  }
  func.func @transform_0(%arg0: i32) -> (i32, i32, i32) {
    %c0_i32 = arith.constant 0 : i32
    %c0_i32_0 = arith.constant 0 : i32
    %c0_i32_1 = arith.constant 0 : i32
    return %arg0, %c0_i32, %c0_i32_0 : i32, i32, i32
  }
  func.func @transform_1(%arg0: i32) -> (i32, i32, i32) {
    %c0_i32 = arith.constant 0 : i32
    %c0_i32_0 = arith.constant 0 : i32
    %c0_i32_1 = arith.constant 0 : i32
    return %arg0, %c0_i32, %c0_i32_0 : i32, i32, i32
  }
  func.func @transform_2(%arg0: i32) -> (i32, i32, i32) {
    %c0_i32 = arith.constant 0 : i32
    %c0_i32_0 = arith.constant 0 : i32
    %c0_i32_1 = arith.constant 0 : i32
    %c0_i32_2 = arith.constant 0 : i32
    return %c0_i32, %c0_i32_0, %c0_i32_1 : i32, i32, i32
  }
  func.func @transform_3(%arg0: i32) -> (i32, i32, i32) {
    %c0_i32 = arith.constant 0 : i32
    %c0_i32_0 = arith.constant 0 : i32
    %c0_i32_1 = arith.constant 0 : i32
    %c0_i32_2 = arith.constant 0 : i32
    return %c0_i32, %c0_i32_0, %c0_i32_1 : i32, i32, i32
  }
  func.func @transform_4(%arg0: i32) -> (i32, i32, i32) {
    %c0_i32 = arith.constant 0 : i32
    %c0_i32_0 = arith.constant 0 : i32
    %c0_i32_1 = arith.constant 0 : i32
    %c0_i32_2 = arith.constant 0 : i32
    return %c0_i32, %c0_i32_0, %c0_i32_1 : i32, i32, i32
  }
  func.func @transform_5(%arg0: i32) -> (i32, i32, i32) {
    %c0_i32 = arith.constant 0 : i32
    %c0_i32_0 = arith.constant 0 : i32
    %c0_i32_1 = arith.constant 0 : i32
    %c0_i32_2 = arith.constant 0 : i32
    return %c0_i32, %c0_i32_0, %c0_i32_1 : i32, i32, i32
  }
  func.func @transform_6(%arg0: i32) -> (i32, i32) {
    %c0_i32 = arith.constant 0 : i32
    %c0_i32_0 = arith.constant 0 : i32
    %c0_i32_1 = arith.constant 0 : i32
    return %c0_i32, %c0_i32_0 : i32, i32
  }
  func.func @transform_7(%arg0: i32) -> (i32, i32) {
    %c0_i32 = arith.constant 0 : i32
    %c0_i32_0 = arith.constant 0 : i32
    %c0_i32_1 = arith.constant 0 : i32
    return %c0_i32, %c0_i32_0 : i32, i32
  }
  func.func @transform_8(%arg0: i32) -> (i32, i32) {
    %c0_i32 = arith.constant 0 : i32
    %c0_i32_0 = arith.constant 0 : i32
    %c0_i32_1 = arith.constant 0 : i32
    return %c0_i32, %c0_i32_0 : i32, i32
  }
  func.func @transform_9(%arg0: i32) -> (i32, i32) {
    %c0_i32 = arith.constant 0 : i32
    %c0_i32_0 = arith.constant 0 : i32
    %c0_i32_1 = arith.constant 0 : i32
    return %c0_i32, %c0_i32_0 : i32, i32
  }
  func.func @transform_10(%arg0: i32) -> (i32, i32) {
    %c0_i32 = arith.constant 0 : i32
    %c0_i32_0 = arith.constant 0 : i32
    %c0_i32_1 = arith.constant 0 : i32
    return %c0_i32, %c0_i32_0 : i32, i32
  }
  func.func @transform_11(%arg0: i32) -> (i32, i32) {
    %c0_i32 = arith.constant 0 : i32
    %c0_i32_0 = arith.constant 0 : i32
    %c0_i32_1 = arith.constant 0 : i32
    return %c0_i32, %c0_i32_0 : i32, i32
  }
  func.func @transform_12(%arg0: i32) -> (i32, i32) {
    %c0_i32 = arith.constant 0 : i32
    %c0_i32_0 = arith.constant 0 : i32
    %c0_i32_1 = arith.constant 0 : i32
    return %c0_i32, %c0_i32_0 : i32, i32
  }
  func.func @transform_13(%arg0: i32) -> (i32, i32) {
    %c0_i32 = arith.constant 0 : i32
    %c0_i32_0 = arith.constant 0 : i32
    %c0_i32_1 = arith.constant 0 : i32
    return %c0_i32, %c0_i32_0 : i32, i32
  }
  func.func @transform_14(%arg0: i32) -> (i32, i32) {
    %c0_i32 = arith.constant 0 : i32
    %c0_i32_0 = arith.constant 0 : i32
    %c0_i32_1 = arith.constant 0 : i32
    return %c0_i32, %c0_i32_0 : i32, i32
  }
  func.func @transform_15(%arg0: i32) -> (i32, i32) {
    %c0_i32 = arith.constant 0 : i32
    %c0_i32_0 = arith.constant 0 : i32
    %c0_i32_1 = arith.constant 0 : i32
    return %c0_i32, %c0_i32_0 : i32, i32
  }
  func.func @transform_16(%arg0: i32) -> (i32, i32) {
    %c0_i32 = arith.constant 0 : i32
    %c0_i32_0 = arith.constant 0 : i32
    %c0_i32_1 = arith.constant 0 : i32
    return %c0_i32, %c0_i32_0 : i32, i32
  }
  func.func @transform_17(%arg0: i32) -> (i32, i32) {
    %c0_i32 = arith.constant 0 : i32
    %c0_i32_0 = arith.constant 0 : i32
    %c0_i32_1 = arith.constant 0 : i32
    return %c0_i32, %c0_i32_0 : i32, i32
  }
  func.func @transform_18(%arg0: i32) -> (i32, i32) {
    %c0_i32 = arith.constant 0 : i32
    %c0_i32_0 = arith.constant 0 : i32
    %c0_i32_1 = arith.constant 0 : i32
    return %c0_i32, %c0_i32_0 : i32, i32
  }
  func.func @transform_19(%arg0: i32) -> (i32, i32) {
    %c0_i32 = arith.constant 0 : i32
    %c0_i32_0 = arith.constant 0 : i32
    %c0_i32_1 = arith.constant 0 : i32
    return %c0_i32, %c0_i32_0 : i32, i32
  }
  func.func @transform_20(%arg0: i32) -> (i32, i32, i32) {
    %c0_i32 = arith.constant 0 : i32
    %c0_i32_0 = arith.constant 0 : i32
    %c0_i32_1 = arith.constant 0 : i32
    return %arg0, %c0_i32, %c0_i32_0 : i32, i32, i32
  }
}

</mosaic_0001>

<llo_original>
// kernel: actionformer6_forward.1
$region0: #{actionformer6_forward.1}
  #allocation0 [shape = 'u32[]', space=smem, size = 0x4, offset = 0x4, fixed_abs, tag = 'smem constant byte address 0x4 - core index']
  #allocation1 [shape = 'u32[144,128]{1,0:T(1,128)}', space=vmem, size = 0x12000, scoped, tag = 'internal scratch']
  %s0 = inlined_call_operand.vmem [shape: f32[2,1,512], index: 0, kind: input, shape index: {}]
  %s1 = inlined_call_operand.hbm [shape: f32[2,3,16], index: 1, kind: input, shape index: {}]
  %s2 = inlined_call_operand.hbm [shape: bf16[4,512,512], index: 2, kind: input, shape index: {}]
  %s3 = inlined_call_operand.hbm [shape: f32[4,1,512], index: 3, kind: input, shape index: {}]
  %s4 = inlined_call_operand.hbm [shape: f32[4,1,512], index: 4, kind: input, shape index: {}]
  %s5 = inlined_call_operand.hbm [shape: f32[4,1,512], index: 5, kind: input, shape index: {}]
  %s6 = inlined_call_operand.hbm [shape: bf16[512,128], index: 6, kind: input, shape index: {}]
  %s7 = inlined_call_operand.hbm [shape: f32[1,128], index: 7, kind: input, shape index: {}]
  %s8 = inlined_call_operand.hbm [shape: f32[1,16], index: 8, kind: input, shape index: {}]
  %s9 = inlined_call_operand.hbm [shape: f32[1,16], index: 9, kind: input, shape index: {}]
  %s10 = inlined_call_operand.hbm [shape: bf16[16,128], index: 10, kind: input, shape index: {}]
  %s11 = inlined_call_operand.hbm [shape: bf16[128,128], index: 11, kind: input, shape index: {}]
  %s12 = inlined_call_operand.hbm [shape: f32[1,128], index: 12, kind: input, shape index: {}]
  %s13 = inlined_call_operand.hbm [shape: bf16[128,384], index: 13, kind: input, shape index: {}]
  %s14 = inlined_call_operand.hbm [shape: bf16[128,384], index: 14, kind: input, shape index: {}]
  %s15 = inlined_call_operand.hbm [shape: f32[1,384], index: 15, kind: input, shape index: {}]
  %s16 = inlined_call_operand.hbm [shape: f32[1,384], index: 16, kind: input, shape index: {}]
  %s17 = inlined_call_operand.vmem [shape: bf16[128,32], index: 17, kind: input, shape index: {}]
  %s18 = inlined_call_operand.hbm [shape: bf16[16,32], index: 18, kind: input, shape index: {}]
  %s19 = inlined_call_operand.hbm [shape: f32[1,32], index: 19, kind: input, shape index: {}]
  %s20 = inlined_call_operand.vmem [shape: f32[2,1,128], index: 20, kind: output, shape index: {}]
  %s21 = sld [smem:[#allocation0]]
  $region185: #{actionformer6_forward.1} parent=0
    _
  %s23 = ssub.s32 1, %s21
  %s24 = scalar_select 0, %s23, %s21
  $region1: #{actionformer6_forward.1} parent=0
    #allocation2 [shape = 'u8[4096]{0}', space=vmem, size = 0x1000, scoped, tag = 'input window, operand 1']
    #allocation3 [shape = 's32[2]{0}', space=sflag, size = 0x8, scoped, tag = 'scoped memory for actionformer6_forward.1']
    #allocation4 [shape = 'u8[2097152]{0}', space=vmem, size = 0x200000, scoped, tag = 'input window, operand 2, single buffered']
    #allocation5 [shape = 's32[1]{0}', space=sflag, size = 0x4, scoped, tag = 'scoped memory for actionformer6_forward.1']
    #allocation6 [shape = 'u8[8192]{0}', space=vmem, size = 0x2000, scoped, tag = 'input window, operand 3, single buffered']
    #allocation7 [shape = 'u8[8192]{0}', space=vmem, size = 0x2000, scoped, tag = 'input window, operand 4, single buffered']
    #allocation8 [shape = 's32[1]{0}', space=sflag, size = 0x4, scoped, tag = 'scoped memory for actionformer6_forward.1']
    #allocation9 [shape = 'u8[8192]{0}', space=vmem, size = 0x2000, scoped, tag = 'input window, operand 5, single buffered']
    #allocation10 [shape = 'u8[131072]{0}', space=vmem, size = 0x20000, scoped, tag = 'input window, operand 6, single buffered']
    #allocation11 [shape = 's32[1]{0}', space=sflag, size = 0x4, scoped, tag = 'scoped memory for actionformer6_forward.1']
    #allocation12 [shape = 'u8[512]{0}', space=vmem, size = 0x400, scoped, tag = 'input window, operand 7, single buffered']
    #allocation13 [shape = 'u8[512]{0}', space=vmem, size = 0x400, scoped, tag = 'input window, operand 8, single buffered']
    #allocation14 [shape = 's32[1]{0}', space=sflag, size = 0x4, scoped, tag = 'scoped memory for actionformer6_forward.1']
    #allocation15 [shape = 'u8[512]{0}', space=vmem, size = 0x400, scoped, tag = 'input window, operand 9, single buffered']
    #allocation16 [shape = 'u8[4096]{0}', space=vmem, size = 0x1000, scoped, tag = 'input window, operand 10, single buffered']
    #allocation17 [shape = 's32[1]{0}', space=sflag, size = 0x4, scoped, tag = 'scoped memory for actionformer6_forward.1']
    #allocation18 [shape = 'u8[32768]{0}', space=vmem, size = 0x8000, scoped, tag = 'input window, operand 11, single buffered']
    #allocation19 [shape = 'u8[512]{0}', space=vmem, size = 0x400, scoped, tag = 'input window, operand 12, single buffered']
    #allocation20 [shape = 's32[1]{0}', space=sflag, size = 0x4, scoped, tag = 'scoped memory for actionformer6_forward.1']
    #allocation21 [shape = 'u8[98304]{0}', space=vmem, size = 0x18000, scoped, tag = 'input window, operand 13, single buffered']
    #allocation22 [shape = 'u8[98304]{0}', space=vmem, size = 0x18000, scoped, tag = 'input window, operand 14, single buffered']
    #allocation23 [shape = 's32[1]{0}', space=sflag, size = 0x4, scoped, tag = 'scoped memory for actionformer6_forward.1']
    #allocation24 [shape = 'u8[1536]{0}', space=vmem, size = 0x800, scoped, tag = 'input window, operand 15, single buffered']
    #allocation25 [shape = 'u8[1536]{0}', space=vmem, size = 0x800, scoped, tag = 'input window, operand 16, single buffered']
    #allocation26 [shape = 's32[1]{0}', space=sflag, size = 0x4, scoped, tag = 'scoped memory for actionformer6_forward.1']
    #allocation27 [shape = 'u8[4096]{0}', space=vmem, size = 0x1000, scoped, tag = 'input window, operand 18, single buffered']
    #allocation28 [shape = 'u8[512]{0}', space=vmem, size = 0x400, scoped, tag = 'input window, operand 19, single buffered']
    #allocation29 [shape = 's32[1]{0}', space=sflag, size = 0x4, scoped, tag = 'scoped memory for actionformer6_forward.1']
    %25 = vsyncpa [#allocation3], 0
    %s26 = scalar_lea.sflag [#allocation3], 1
    %27 = vsyncpa %s26, 0
    %28 = vsyncpa [#allocation5], 0
    %29 = vsyncpa [#allocation8], 0
    %30 = vsyncpa [#allocation11], 0
    %31 = vsyncpa [#allocation14], 0
    %32 = vsyncpa [#allocation17], 0
    %33 = vsyncpa [#allocation20], 0
    %34 = vsyncpa [#allocation23], 0
    %35 = vsyncpa [#allocation26], 0
    %36 = vsyncpa [#allocation29], 0
    loop: start=0, step=1, limit=4
    $region2: #{actionformer6_forward.1} parent=1 // loop_pre_header
      _
    $region3: #{actionformer6_forward.1} parent=1 // loop_header
      %s38 = sphi 0, %s42
      %p39 = scmp.ge.s32.totalorder %s38, 4
      %s48 = sphi 0, %s50
      %s51 = sphi 0, %s48
      %s52 = sphi 0, %s51
      %s68 = sphi 0, %s52
      %s74 = sphi 0, %s76
      %s77 = sphi 0, %s74
      %s78 = sphi 0, %s77
      %s94 = sphi 0, %s78
      %s98 = sphi 0, %s98
      %s100 = sphi 0, %s98
      %s101 = sphi 0, %s100
      %s115 = sphi 0, %s101
      %s119 = sphi 0, %s119
      %s121 = sphi 0, %s119
      %s122 = sphi 0, %s121
      %s136 = sphi 0, %s122
      %s140 = sphi 0, %s140
      %s142 = sphi 0, %s140
      %s143 = sphi 0, %s142
      %s157 = sphi 0, %s143
      %s161 = sphi 0, %s161
      %s163 = sphi 0, %s161
      %s164 = sphi 0, %s163
      %s178 = sphi 0, %s164
      %s182 = sphi 0, %s182
      %s184 = sphi 0, %s182
      %s185 = sphi 0, %s184
      %s199 = sphi 0, %s185
      %s203 = sphi 0, %s203
      %s205 = sphi 0, %s203
      %s206 = sphi 0, %s205
      %s220 = sphi 0, %s206
      %s224 = sphi 0, %s224
      %s226 = sphi 0, %s224
      %s227 = sphi 0, %s226
      %s241 = sphi 0, %s227
      %s245 = sphi 0, %s245
      %s247 = sphi 0, %s245
      %s248 = sphi 0, %s247
      %s262 = sphi 0, %s248
      %s266 = sphi 0, %s266
      %s268 = sphi 0, %s266
      %s269 = sphi 0, %s268
      %s283 = sphi 0, %s269
      %s287 = sphi 0, %s287
      %s289 = sphi 0, %s287
      %s290 = sphi 0, %s289
      %s304 = sphi 0, %s290
      %s308 = sphi 0, %s308
      %s310 = sphi 0, %s308
      %s311 = sphi 0, %s310
      %s325 = sphi 0, %s311
      %s329 = sphi 0, %s329
      %s331 = sphi 0, %s329
      %s332 = sphi 0, %s331
      %s346 = sphi 0, %s332
      %s350 = sphi 0, %s350
      %s352 = sphi 0, %s350
      %s353 = sphi 0, %s352
      %s367 = sphi 0, %s353
      %s371 = sphi 0, %s371
      %s373 = sphi 0, %s371
      %s374 = sphi 0, %s373
      %s388 = sphi 0, %s374
      %s392 = sphi 0, %s392
      %s394 = sphi 0, %s392
      %s395 = sphi 0, %s394
      %s409 = sphi 0, %s395
      %s413 = sphi 0, %s413
      %s415 = sphi 0, %s413
      %s416 = sphi 0, %s415
      %s430 = sphi 0, %s416
      %s434 = sphi 0, %s434
      %s436 = sphi 0, %s434
      %s437 = sphi 0, %s436
      %s451 = sphi 0, %s437
      %s455 = sphi 0, %s455
      %s457 = sphi 0, %s455
      %s458 = sphi 0, %s457
      %s472 = sphi 0, %s458
      %s478 = sphi 0, %s480
      %s481 = sphi 0, %s478
      %s482 = sphi 0, %s481
      %s498 = sphi 0, %s482
    $region4: #{actionformer6_forward.1} parent=1 // loop_header_branch
      %41 = sbr.rel (%p39) target = $region8
    $region5: #{actionformer6_forward.1} parent=1 // loop_body
      %s43 = ssub.s32 %s38, 1
      %s44 = ssub.s32 %s38, 2
      %s45 = sadd.s32 %s38, 1
      %s46 = ssub.s32 %s38, %s45
      %p47 = scmp.eq.s32.totalorder %s46, 0
      %s49 = sadd.s32 %s48, 1
      %s50 = scalar_select %p47, %s48, %s49
      %p53 = pneg %p47
      %p54 = scmp.eq.s32.totalorder %s38, 1
      %p55 = por %p53, %p54
      %p56 = scmp.ne.s32.totalorder %s48, %s51
      %p57 = scmp.eq.s32.totalorder %s38, 0
      %p58 = por %p56, %p57
      %p59 = scmp.ne.s32.totalorder %s48, %s51
      %p60 = scmp.eq.s32.totalorder %s43, 1
      %p61 = por %p59, %p60
      %p62 = scmp.ne.s32.totalorder %s51, %s52
      %p63 = scmp.eq.s32.totalorder %s43, 0
      %p64 = por %p62, %p63
      %p65 = scmp.ne.s32.totalorder %s51, %s52
      %p66 = scmp.eq.s32.totalorder %s44, 1
      %p67 = por %p65, %p66
      %p69 = scmp.ne.s32.totalorder %s52, %s68
      %p70 = scmp.eq.s32.totalorder %s44, 0
      %p71 = por %p69, %p70
      %s72 = ssub.s32 %s38, %s45
      %p73 = scmp.eq.s32.totalorder %s72, 0
      %s75 = sadd.s32 %s74, 1
      %s76 = scalar_select %p73, %s74, %s75
      %p79 = pneg %p73
      %p80 = scmp.eq.s32.totalorder %s38, 1
      %p81 = por %p79, %p80
      %p82 = scmp.ne.s32.totalorder %s74, %s77
      %p83 = scmp.eq.s32.totalorder %s38, 0
      %p84 = por %p82, %p83
      %p85 = scmp.ne.s32.totalorder %s74, %s77
      %p86 = scmp.eq.s32.totalorder %s43, 1
      %p87 = por %p85, %p86
      %p88 = scmp.ne.s32.totalorder %s77, %s78
      %p89 = scmp.eq.s32.totalorder %s43, 0
      %p90 = por %p88, %p89
      %p91 = scmp.ne.s32.totalorder %s77, %s78
      %p92 = scmp.eq.s32.totalorder %s44, 1
      %p93 = por %p91, %p92
      %p95 = scmp.ne.s32.totalorder %s78, %s94
      %p96 = scmp.eq.s32.totalorder %s44, 0
      %p97 = por %p95, %p96
      %s99 = sadd.s32 %s98, 1
      %p102 = scmp.eq.s32.totalorder %s38, 1
      %p103 = scmp.ne.s32.totalorder %s98, %s100
      %p104 = scmp.eq.s32.totalorder %s38, 0
      %p105 = por %p103, %p104
      %p106 = scmp.ne.s32.totalorder %s98, %s100
      %p107 = scmp.eq.s32.totalorder %s43, 1
      %p108 = por %p106, %p107
      %p109 = scmp.ne.s32.totalorder %s100, %s101
      %p110 = scmp.eq.s32.totalorder %s43, 0
      %p111 = por %p109, %p110
      %p112 = scmp.ne.s32.totalorder %s100, %s101
      %p113 = scmp.eq.s32.totalorder %s44, 1
      %p114 = por %p112, %p113
      %p116 = scmp.ne.s32.totalorder %s101, %s115
      %p117 = scmp.eq.s32.totalorder %s44, 0
      %p118 = por %p116, %p117
      %s120 = sadd.s32 %s119, 1
      %p123 = scmp.eq.s32.totalorder %s38, 1
      %p124 = scmp.ne.s32.totalorder %s119, %s121
      %p125 = scmp.eq.s32.totalorder %s38, 0
      %p126 = por %p124, %p125
      %p127 = scmp.ne.s32.totalorder %s119, %s121
      %p128 = scmp.eq.s32.totalorder %s43, 1
      %p129 = por %p127, %p128
      %p130 = scmp.ne.s32.totalorder %s121, %s122
      %p131 = scmp.eq.s32.totalorder %s43, 0
      %p132 = por %p130, %p131
      %p133 = scmp.ne.s32.totalorder %s121, %s122
      %p134 = scmp.eq.s32.totalorder %s44, 1
      %p135 = por %p133, %p134
      %p137 = scmp.ne.s32.totalorder %s122, %s136
      %p138 = scmp.eq.s32.totalorder %s44, 0
      %p139 = por %p137, %p138
      %s141 = sadd.s32 %s140, 1
      %p144 = scmp.eq.s32.totalorder %s38, 1
      %p145 = scmp.ne.s32.totalorder %s140, %s142
      %p146 = scmp.eq.s32.totalorder %s38, 0
      %p147 = por %p145, %p146
      %p148 = scmp.ne.s32.totalorder %s140, %s142
      %p149 = scmp.eq.s32.totalorder %s43, 1
      %p150 = por %p148, %p149
      %p151 = scmp.ne.s32.totalorder %s142, %s143
      %p152 = scmp.eq.s32.totalorder %s43, 0
      %p153 = por %p151, %p152
      %p154 = scmp.ne.s32.totalorder %s142, %s143
      %p155 = scmp.eq.s32.totalorder %s44, 1
      %p156 = por %p154, %p155
      %p158 = scmp.ne.s32.totalorder %s143, %s157
      %p159 = scmp.eq.s32.totalorder %s44, 0
      %p160 = por %p158, %p159
      %s162 = sadd.s32 %s161, 1
      %p165 = scmp.eq.s32.totalorder %s38, 1
      %p166 = scmp.ne.s32.totalorder %s161, %s163
      %p167 = scmp.eq.s32.totalorder %s38, 0
      %p168 = por %p166, %p167
      %p169 = scmp.ne.s32.totalorder %s161, %s163
      %p170 = scmp.eq.s32.totalorder %s43, 1
      %p171 = por %p169, %p170
      %p172 = scmp.ne.s32.totalorder %s163, %s164
      %p173 = scmp.eq.s32.totalorder %s43, 0
      %p174 = por %p172, %p173
      %p175 = scmp.ne.s32.totalorder %s163, %s164
      %p176 = scmp.eq.s32.totalorder %s44, 1
      %p177 = por %p175, %p176
      %p179 = scmp.ne.s32.totalorder %s164, %s178
      %p180 = scmp.eq.s32.totalorder %s44, 0
      %p181 = por %p179, %p180
      %s183 = sadd.s32 %s182, 1
      %p186 = scmp.eq.s32.totalorder %s38, 1
      %p187 = scmp.ne.s32.totalorder %s182, %s184
      %p188 = scmp.eq.s32.totalorder %s38, 0
      %p189 = por %p187, %p188
      %p190 = scmp.ne.s32.totalorder %s182, %s184
      %p191 = scmp.eq.s32.totalorder %s43, 1
      %p192 = por %p190, %p191
      %p193 = scmp.ne.s32.totalorder %s184, %s185
      %p194 = scmp.eq.s32.totalorder %s43, 0
      %p195 = por %p193, %p194
      %p196 = scmp.ne.s32.totalorder %s184, %s185
      %p197 = scmp.eq.s32.totalorder %s44, 1
      %p198 = por %p196, %p197
      %p200 = scmp.ne.s32.totalorder %s185, %s199
      %p201 = scmp.eq.s32.totalorder %s44, 0
      %p202 = por %p200, %p201
      %s204 = sadd.s32 %s203, 1
      %p207 = scmp.eq.s32.totalorder %s38, 1
      %p208 = scmp.ne.s32.totalorder %s203, %s205
      %p209 = scmp.eq.s32.totalorder %s38, 0
      %p210 = por %p208, %p209
      %p211 = scmp.ne.s32.totalorder %s203, %s205
      %p212 = scmp.eq.s32.totalorder %s43, 1
      %p213 = por %p211, %p212
      %p214 = scmp.ne.s32.totalorder %s205, %s206
      %p215 = scmp.eq.s32.totalorder %s43, 0
      %p216 = por %p214, %p215
      %p217 = scmp.ne.s32.totalorder %s205, %s206
      %p218 = scmp.eq.s32.totalorder %s44, 1
      %p219 = por %p217, %p218
      %p221 = scmp.ne.s32.totalorder %s206, %s220
      %p222 = scmp.eq.s32.totalorder %s44, 0
      %p223 = por %p221, %p222
      %s225 = sadd.s32 %s224, 1
      %p228 = scmp.eq.s32.totalorder %s38, 1
      %p229 = scmp.ne.s32.totalorder %s224, %s226
      %p230 = scmp.eq.s32.totalorder %s38, 0
      %p231 = por %p229, %p230
      %p232 = scmp.ne.s32.totalorder %s224, %s226
      %p233 = scmp.eq.s32.totalorder %s43, 1
      %p234 = por %p232, %p233
      %p235 = scmp.ne.s32.totalorder %s226, %s227
      %p236 = scmp.eq.s32.totalorder %s43, 0
      %p237 = por %p235, %p236
      %p238 = scmp.ne.s32.totalorder %s226, %s227
      %p239 = scmp.eq.s32.totalorder %s44, 1
      %p240 = por %p238, %p239
      %p242 = scmp.ne.s32.totalorder %s227, %s241
      %p243 = scmp.eq.s32.totalorder %s44, 0
      %p244 = por %p242, %p243
      %s246 = sadd.s32 %s245, 1
      %p249 = scmp.eq.s32.totalorder %s38, 1
      %p250 = scmp.ne.s32.totalorder %s245, %s247
      %p251 = scmp.eq.s32.totalorder %s38, 0
      %p252 = por %p250, %p251
      %p253 = scmp.ne.s32.totalorder %s245, %s247
      %p254 = scmp.eq.s32.totalorder %s43, 1
      %p255 = por %p253, %p254
      %p256 = scmp.ne.s32.totalorder %s247, %s248
      %p257 = scmp.eq.s32.totalorder %s43, 0
      %p258 = por %p256, %p257
      %p259 = scmp.ne.s32.totalorder %s247, %s248
      %p260 = scmp.eq.s32.totalorder %s44, 1
      %p261 = por %p259, %p260
      %p263 = scmp.ne.s32.totalorder %s248, %s262
      %p264 = scmp.eq.s32.totalorder %s44, 0
      %p265 = por %p263, %p264
      %s267 = sadd.s32 %s266, 1
      %p270 = scmp.eq.s32.totalorder %s38, 1
      %p271 = scmp.ne.s32.totalorder %s266, %s268
      %p272 = scmp.eq.s32.totalorder %s38, 0
      %p273 = por %p271, %p272
      %p274 = scmp.ne.s32.totalorder %s266, %s268
      %p275 = scmp.eq.s32.totalorder %s43, 1
      %p276 = por %p274, %p275
      %p277 = scmp.ne.s32.totalorder %s268, %s269
      %p278 = scmp.eq.s32.totalorder %s43, 0
      %p279 = por %p277, %p278
      %p280 = scmp.ne.s32.totalorder %s268, %s269
      %p281 = scmp.eq.s32.totalorder %s44, 1
      %p282 = por %p280, %p281
      %p284 = scmp.ne.s32.totalorder %s269, %s283
      %p285 = scmp.eq.s32.totalorder %s44, 0
      %p286 = por %p284, %p285
      %s288 = sadd.s32 %s287, 1
      %p291 = scmp.eq.s32.totalorder %s38, 1
      %p292 = scmp.ne.s32.totalorder %s287, %s289
      %p293 = scmp.eq.s32.totalorder %s38, 0
      %p294 = por %p292, %p293
      %p295 = scmp.ne.s32.totalorder %s287, %s289
      %p296 = scmp.eq.s32.totalorder %s43, 1
      %p297 = por %p295, %p296
      %p298 = scmp.ne.s32.totalorder %s289, %s290
      %p299 = scmp.eq.s32.totalorder %s43, 0
      %p300 = por %p298, %p299
      %p301 = scmp.ne.s32.totalorder %s289, %s290
      %p302 = scmp.eq.s32.totalorder %s44, 1
      %p303 = por %p301, %p302
      %p305 = scmp.ne.s32.totalorder %s290, %s304
      %p306 = scmp.eq.s32.totalorder %s44, 0
      %p307 = por %p305, %p306
      %s309 = sadd.s32 %s308, 1
      %p312 = scmp.eq.s32.totalorder %s38, 1
      %p313 = scmp.ne.s32.totalorder %s308, %s310
      %p314 = scmp.eq.s32.totalorder %s38, 0
      %p315 = por %p313, %p314
      %p316 = scmp.ne.s32.totalorder %s308, %s310
      %p317 = scmp.eq.s32.totalorder %s43, 1
      %p318 = por %p316, %p317
      %p319 = scmp.ne.s32.totalorder %s310, %s311
      %p320 = scmp.eq.s32.totalorder %s43, 0
      %p321 = por %p319, %p320
      %p322 = scmp.ne.s32.totalorder %s310, %s311
      %p323 = scmp.eq.s32.totalorder %s44, 1
      %p324 = por %p322, %p323
      %p326 = scmp.ne.s32.totalorder %s311, %s325
      %p327 = scmp.eq.s32.totalorder %s44, 0
      %p328 = por %p326, %p327
      %s330 = sadd.s32 %s329, 1
      %p333 = scmp.eq.s32.totalorder %s38, 1
      %p334 = scmp.ne.s32.totalorder %s329, %s331
      %p335 = scmp.eq.s32.totalorder %s38, 0
      %p336 = por %p334, %p335
      %p337 = scmp.ne.s32.totalorder %s329, %s331
      %p338 = scmp.eq.s32.totalorder %s43, 1
      %p339 = por %p337, %p338
      %p340 = scmp.ne.s32.totalorder %s331, %s332
      %p341 = scmp.eq.s32.totalorder %s43, 0
      %p342 = por %p340, %p341
      %p343 = scmp.ne.s32.totalorder %s331, %s332
      %p344 = scmp.eq.s32.totalorder %s44, 1
      %p345 = por %p343, %p344
      %p347 = scmp.ne.s32.totalorder %s332, %s346
      %p348 = scmp.eq.s32.totalorder %s44, 0
      %p349 = por %p347, %p348
      %s351 = sadd.s32 %s350, 1
      %p354 = scmp.eq.s32.totalorder %s38, 1
      %p355 = scmp.ne.s32.totalorder %s350, %s352
      %p356 = scmp.eq.s32.totalorder %s38, 0
      %p357 = por %p355, %p356
      %p358 = scmp.ne.s32.totalorder %s350, %s352
      %p359 = scmp.eq.s32.totalorder %s43, 1
      %p360 = por %p358, %p359
      %p361 = scmp.ne.s32.totalorder %s352, %s353
      %p362 = scmp.eq.s32.totalorder %s43, 0
      %p363 = por %p361, %p362
      %p364 = scmp.ne.s32.totalorder %s352, %s353
      %p365 = scmp.eq.s32.totalorder %s44, 1
      %p366 = por %p364, %p365
      %p368 = scmp.ne.s32.totalorder %s353, %s367
      %p369 = scmp.eq.s32.totalorder %s44, 0
      %p370 = por %p368, %p369
      %s372 = sadd.s32 %s371, 1
      %p375 = scmp.eq.s32.totalorder %s38, 1
      %p376 = scmp.ne.s32.totalorder %s371, %s373
      %p377 = scmp.eq.s32.totalorder %s38, 0
      %p378 = por %p376, %p377
      %p379 = scmp.ne.s32.totalorder %s371, %s373
      %p380 = scmp.eq.s32.totalorder %s43, 1
      %p381 = por %p379, %p380
      %p382 = scmp.ne.s32.totalorder %s373, %s374
      %p383 = scmp.eq.s32.totalorder %s43, 0
      %p384 = por %p382, %p383
      %p385 = scmp.ne.s32.totalorder %s373, %s374
      %p386 = scmp.eq.s32.totalorder %s44, 1
      %p387 = por %p385, %p386
      %p389 = scmp.ne.s32.totalorder %s374, %s388
      %p390 = scmp.eq.s32.totalorder %s44, 0
      %p391 = por %p389, %p390
      %s393 = sadd.s32 %s392, 1
      %p396 = scmp.eq.s32.totalorder %s38, 1
      %p397 = scmp.ne.s32.totalorder %s392, %s394
      %p398 = scmp.eq.s32.totalorder %s38, 0
      %p399 = por %p397, %p398
      %p400 = scmp.ne.s32.totalorder %s392, %s394
      %p401 = scmp.eq.s32.totalorder %s43, 1
      %p402 = por %p400, %p401
      %p403 = scmp.ne.s32.totalorder %s394, %s395
      %p404 = scmp.eq.s32.totalorder %s43, 0
      %p405 = por %p403, %p404
      %p406 = scmp.ne.s32.totalorder %s394, %s395
      %p407 = scmp.eq.s32.totalorder %s44, 1
      %p408 = por %p406, %p407
      %p410 = scmp.ne.s32.totalorder %s395, %s409
      %p411 = scmp.eq.s32.totalorder %s44, 0
      %p412 = por %p410, %p411
      %s414 = sadd.s32 %s413, 1
      %p417 = scmp.eq.s32.totalorder %s38, 1
      %p418 = scmp.ne.s32.totalorder %s413, %s415
      %p419 = scmp.eq.s32.totalorder %s38, 0
      %p420 = por %p418, %p419
      %p421 = scmp.ne.s32.totalorder %s413, %s415
      %p422 = scmp.eq.s32.totalorder %s43, 1
      %p423 = por %p421, %p422
      %p424 = scmp.ne.s32.totalorder %s415, %s416
      %p425 = scmp.eq.s32.totalorder %s43, 0
      %p426 = por %p424, %p425
      %p427 = scmp.ne.s32.totalorder %s415, %s416
      %p428 = scmp.eq.s32.totalorder %s44, 1
      %p429 = por %p427, %p428
      %p431 = scmp.ne.s32.totalorder %s416, %s430
      %p432 = scmp.eq.s32.totalorder %s44, 0
      %p433 = por %p431, %p432
      %s435 = sadd.s32 %s434, 1
      %p438 = scmp.eq.s32.totalorder %s38, 1
      %p439 = scmp.ne.s32.totalorder %s434, %s436
      %p440 = scmp.eq.s32.totalorder %s38, 0
      %p441 = por %p439, %p440
      %p442 = scmp.ne.s32.totalorder %s434, %s436
      %p443 = scmp.eq.s32.totalorder %s43, 1
      %p444 = por %p442, %p443
      %p445 = scmp.ne.s32.totalorder %s436, %s437
      %p446 = scmp.eq.s32.totalorder %s43, 0
      %p447 = por %p445, %p446
      %p448 = scmp.ne.s32.totalorder %s436, %s437
      %p449 = scmp.eq.s32.totalorder %s44, 1
      %p450 = por %p448, %p449
      %p452 = scmp.ne.s32.totalorder %s437, %s451
      %p453 = scmp.eq.s32.totalorder %s44, 0
      %p454 = por %p452, %p453
      %s456 = sadd.s32 %s455, 1
      %p459 = scmp.eq.s32.totalorder %s38, 1
      %p460 = scmp.ne.s32.totalorder %s455, %s457
      %p461 = scmp.eq.s32.totalorder %s38, 0
      %p462 = por %p460, %p461
      %p463 = scmp.ne.s32.totalorder %s455, %s457
      %p464 = scmp.eq.s32.totalorder %s43, 1
      %p465 = por %p463, %p464
      %p466 = scmp.ne.s32.totalorder %s457, %s458
      %p467 = scmp.eq.s32.totalorder %s43, 0
      %p468 = por %p466, %p467
      %p469 = scmp.ne.s32.totalorder %s457, %s458
      %p470 = scmp.eq.s32.totalorder %s44, 1
      %p471 = por %p469, %p470
      %p473 = scmp.ne.s32.totalorder %s458, %s472
      %p474 = scmp.eq.s32.totalorder %s44, 0
      %p475 = por %p473, %p474
      %s476 = ssub.s32 %s38, %s45
      %p477 = scmp.eq.s32.totalorder %s476, 0
      %s479 = sadd.s32 %s478, 1
      %s480 = scalar_select %p477, %s478, %s479
      %p483 = pneg %p477
      %p484 = scmp.eq.s32.totalorder %s38, 1
      %p485 = por %p483, %p484
      %p486 = scmp.ne.s32.totalorder %s478, %s481
      %p487 = scmp.eq.s32.totalorder %s38, 0
      %p488 = por %p486, %p487
      %p489 = scmp.ne.s32.totalorder %s478, %s481
      %p490 = scmp.eq.s32.totalorder %s43, 1
      %p491 = por %p489, %p490
      %p492 = scmp.ne.s32.totalorder %s481, %s482
      %p493 = scmp.eq.s32.totalorder %s43, 0
      %p494 = por %p492, %p493
      %p495 = scmp.ne.s32.totalorder %s481, %s482
      %p496 = scmp.eq.s32.totalorder %s44, 1
      %p497 = por %p495, %p496
      %p499 = scmp.ne.s32.totalorder %s482, %s498
      %p500 = scmp.eq.s32.totalorder %s44, 0
      %p501 = por %p499, %p500
      %p502 = scmp.le.s32.totalorder 1, %s38
      %p503 = scmp.lt.s32.totalorder %s38, 3
      %p504 = pnand %p502, %p503
      %p505 = pneg %p504
      // Predicated region
      $region9: #{actionformer6_forward.1} parent=5 // pred_check
        _
      $region10: #{actionformer6_forward.1} parent=5 // pred_check_branch
        %507 = sbr.rel (%p504) target = $region12
      $region11: #{actionformer6_forward.1} parent=5 // pred_region
        %s508 = ssub.s32 %s38, 1
        // Predicated region
        $region13: #{actionformer6_forward.1} parent=11 // pred_check
          %p509 = pneg %p111
        $region14: #{actionformer6_forward.1} parent=11 // pred_check_branch
          %511 = sbr.rel (%p509) target = $region16
        $region15: #{actionformer6_forward.1} parent=11 // pred_region
          %s513 = ssub.s32 65536, 65536
          %514 = vsyncadd [#allocation5], %s513
          %s515 = sshll.u32 [#allocation4], 4
          %s516 = int_to_ptr.vmem [resolvable:$true] %s515
          %521 = dma.hbm_to_vmem [thread:$0]  %s2, 65536, %s516, [#allocation5], 256, 256, 16
        $region16: #{actionformer6_forward.1} parent=11 // pred_fallthru
          _
        // Predicated region
        $region17: #{actionformer6_forward.1} parent=11 // pred_check
          %p522 = pneg %p132
        $region18: #{actionformer6_forward.1} parent=11 // pred_check_branch
          %524 = sbr.rel (%p522) target = $region20
        $region19: #{actionformer6_forward.1} parent=11 // pred_region
          %s526 = ssub.s32 256, 256
          %527 = vsyncadd [#allocation5], %s526
          %s528 = sshll.u32 [#allocation6], 4
          %s529 = int_to_ptr.vmem [resolvable:$true] %s528
          %534 = dma.hbm_to_vmem [thread:$0]  %s3, 256, %s529, [#allocation5], 64, 64, 4
        $region20: #{actionformer6_forward.1} parent=11 // pred_fallthru
          _
        // Predicated region
        $region21: #{actionformer6_forward.1} parent=11 // pred_check
          %p535 = pneg %p153
        $region22: #{actionformer6_forward.1} parent=11 // pred_check_branch
          %537 = sbr.rel (%p535) target = $region24
        $region23: #{actionformer6_forward.1} parent=11 // pred_region
          %s539 = ssub.s32 256, 256
          %540 = vsyncadd [#allocation8], %s539
          %s541 = sshll.u32 [#allocation7], 4
          %s542 = int_to_ptr.vmem [resolvable:$true] %s541
          %547 = dma.hbm_to_vmem [thread:$0]  %s4, 256, %s542, [#allocation8], 64, 64, 4
        $region24: #{actionformer6_forward.1} parent=11 // pred_fallthru
          _
        // Predicated region
        $region25: #{actionformer6_forward.1} parent=11 // pred_check
          %p548 = pneg %p174
        $region26: #{actionformer6_forward.1} parent=11 // pred_check_branch
          %550 = sbr.rel (%p548) target = $region28
        $region27: #{actionformer6_forward.1} parent=11 // pred_region
          %s552 = ssub.s32 256, 256
          %553 = vsyncadd [#allocation8], %s552
          %s554 = sshll.u32 [#allocation9], 4
          %s555 = int_to_ptr.vmem [resolvable:$true] %s554
          %560 = dma.hbm_to_vmem [thread:$0]  %s5, 256, %s555, [#allocation8], 64, 64, 4
        $region28: #{actionformer6_forward.1} parent=11 // pred_fallthru
          _
        // Predicated region
        $region29: #{actionformer6_forward.1} parent=11 // pred_check
          %p561 = pneg %p195
        $region30: #{actionformer6_forward.1} parent=11 // pred_check_branch
          %563 = sbr.rel (%p561) target = $region32
        $region31: #{actionformer6_forward.1} parent=11 // pred_region
          %s565 = ssub.s32 4096, 4096
          %566 = vsyncadd [#allocation11], %s565
          %s567 = sshll.u32 [#allocation10], 4
          %s568 = int_to_ptr.vmem [resolvable:$true] %s567
          %573 = dma.hbm_to_vmem [thread:$0]  %s6, 4096, %s568, [#allocation11], 64, 64, 4
        $region32: #{actionformer6_forward.1} parent=11 // pred_fallthru
          _
        // Predicated region
        $region33: #{actionformer6_forward.1} parent=11 // pred_check
          %p574 = pneg %p216
        $region34: #{actionformer6_forward.1} parent=11 // pred_check_branch
          %576 = sbr.rel (%p574) target = $region36
        $region35: #{actionformer6_forward.1} parent=11 // pred_region
          %s578 = ssub.s32 16, 16
          %579 = vsyncadd [#allocation11], %s578
          %s581 = sshll.u32 [#allocation12], 4
          %s582 = int_to_ptr.vmem [resolvable:$true] %s581
          %584 = dma.hbm_to_vmem [thread:$0]  %s7, 16, %s582, [#allocation11]
        $region36: #{actionformer6_forward.1} parent=11 // pred_fallthru
          _
        // Predicated region
        $region37: #{actionformer6_forward.1} parent=11 // pred_check
          %p585 = pneg %p237
        $region38: #{actionformer6_forward.1} parent=11 // pred_check_branch
          %587 = sbr.rel (%p585) target = $region40
        $region39: #{actionformer6_forward.1} parent=11 // pred_region
          %s589 = ssub.s32 16, 16
          %590 = vsyncadd [#allocation14], %s589
          %s592 = sshll.u32 [#allocation13], 4
          %s593 = int_to_ptr.vmem [resolvable:$true] %s592
          %595 = dma.hbm_to_vmem [thread:$0]  %s8, 16, %s593, [#allocation14]
        $region40: #{actionformer6_forward.1} parent=11 // pred_fallthru
          _
        // Predicated region
        $region41: #{actionformer6_forward.1} parent=11 // pred_check
          %p596 = pneg %p258
        $region42: #{actionformer6_forward.1} parent=11 // pred_check_branch
          %598 = sbr.rel (%p596) target = $region44
        $region43: #{actionformer6_forward.1} parent=11 // pred_region
          %s600 = ssub.s32 16, 16
          %601 = vsyncadd [#allocation14], %s600
          %s603 = sshll.u32 [#allocation15], 4
          %s604 = int_to_ptr.vmem [resolvable:$true] %s603
          %606 = dma.hbm_to_vmem [thread:$0]  %s9, 16, %s604, [#allocation14]
        $region44: #{actionformer6_forward.1} parent=11 // pred_fallthru
          _
        // Predicated region
        $region45: #{actionformer6_forward.1} parent=11 // pred_check
          %p607 = pneg %p279
        $region46: #{actionformer6_forward.1} parent=11 // pred_check_branch
          %609 = sbr.rel (%p607) target = $region48
        $region47: #{actionformer6_forward.1} parent=11 // pred_region
          %s611 = ssub.s32 128, 128
          %612 = vsyncadd [#allocation17], %s611
          %s613 = sshll.u32 [#allocation16], 4
          %s614 = int_to_ptr.vmem [resolvable:$true] %s613
          %619 = dma.hbm_to_vmem [thread:$0]  %s10, 128, %s614, [#allocation17], 64, 64, 4
        $region48: #{actionformer6_forward.1} parent=11 // pred_fallthru
          _
        // Predicated region
        $region49: #{actionformer6_forward.1} parent=11 // pred_check
          %p620 = pneg %p300
        $region50: #{actionformer6_forward.1} parent=11 // pred_check_branch
          %622 = sbr.rel (%p620) target = $region52
        $region51: #{actionformer6_forward.1} parent=11 // pred_region
          %s624 = ssub.s32 1024, 1024
          %625 = vsyncadd [#allocation17], %s624
          %s626 = sshll.u32 [#allocation18], 4
          %s627 = int_to_ptr.vmem [resolvable:$true] %s626
          %632 = dma.hbm_to_vmem [thread:$0]  %s11, 1024, %s627, [#allocation17], 64, 64, 4
        $region52: #{actionformer6_forward.1} parent=11 // pred_fallthru
          _
        // Predicated region
        $region53: #{actionformer6_forward.1} parent=11 // pred_check
          %p633 = pneg %p321
        $region54: #{actionformer6_forward.1} parent=11 // pred_check_branch
          %635 = sbr.rel (%p633) target = $region56
        $region55: #{actionformer6_forward.1} parent=11 // pred_region
          %s637 = ssub.s32 16, 16
          %638 = vsyncadd [#allocation20], %s637
          %s640 = sshll.u32 [#allocation19], 4
          %s641 = int_to_ptr.vmem [resolvable:$true] %s640
          %643 = dma.hbm_to_vmem [thread:$0]  %s12, 16, %s641, [#allocation20]
        $region56: #{actionformer6_forward.1} parent=11 // pred_fallthru
          _
        // Predicated region
        $region57: #{actionformer6_forward.1} parent=11 // pred_check
          %p644 = pneg %p342
        $region58: #{actionformer6_forward.1} parent=11 // pred_check_branch
          %646 = sbr.rel (%p644) target = $region60
        $region59: #{actionformer6_forward.1} parent=11 // pred_region
          %s648 = ssub.s32 3072, 3072
          %649 = vsyncadd [#allocation20], %s648
          %s650 = sshll.u32 [#allocation21], 4
          %s651 = int_to_ptr.vmem [resolvable:$true] %s650
          %656 = dma.hbm_to_vmem [thread:$0]  %s13, 3072, %s651, [#allocation20], 192, 192, 12
        $region60: #{actionformer6_forward.1} parent=11 // pred_fallthru
          _
        // Predicated region
        $region61: #{actionformer6_forward.1} parent=11 // pred_check
          %p657 = pneg %p363
        $region62: #{actionformer6_forward.1} parent=11 // pred_check_branch
          %659 = sbr.rel (%p657) target = $region64
        $region63: #{actionformer6_forward.1} parent=11 // pred_region
          %s661 = ssub.s32 3072, 3072
          %662 = vsyncadd [#allocation23], %s661
          %s663 = sshll.u32 [#allocation22], 4
          %s664 = int_to_ptr.vmem [resolvable:$true] %s663
          %669 = dma.hbm_to_vmem [thread:$0]  %s14, 3072, %s664, [#allocation23], 192, 192, 12
        $region64: #{actionformer6_forward.1} parent=11 // pred_fallthru
          _
        // Predicated region
        $region65: #{actionformer6_forward.1} parent=11 // pred_check
          %p670 = pneg %p384
        $region66: #{actionformer6_forward.1} parent=11 // pred_check_branch
          %672 = sbr.rel (%p670) target = $region68
        $region67: #{actionformer6_forward.1} parent=11 // pred_region
          %s674 = ssub.s32 48, 48
          %675 = vsyncadd [#allocation23], %s674
          %s677 = sshll.u32 [#allocation24], 4
          %s678 = int_to_ptr.vmem [resolvable:$true] %s677
          %680 = dma.hbm_to_vmem [thread:$0]  %s15, 48, %s678, [#allocation23]
        $region68: #{actionformer6_forward.1} parent=11 // pred_fallthru
          _
        // Predicated region
        $region69: #{actionformer6_forward.1} parent=11 // pred_check
          %p681 = pneg %p405
        $region70: #{actionformer6_forward.1} parent=11 // pred_check_branch
          %683 = sbr.rel (%p681) target = $region72
        $region71: #{actionformer6_forward.1} parent=11 // pred_region
          %s685 = ssub.s32 48, 48
          %686 = vsyncadd [#allocation26], %s685
          %s688 = sshll.u32 [#allocation25], 4
          %s689 = int_to_ptr.vmem [resolvable:$true] %s688
          %691 = dma.hbm_to_vmem [thread:$0]  %s16, 48, %s689, [#allocation26]
        $region72: #{actionformer6_forward.1} parent=11 // pred_fallthru
          _
        // Predicated region
        $region73: #{actionformer6_forward.1} parent=11 // pred_check
          %p692 = pneg %p426
        $region74: #{actionformer6_forward.1} parent=11 // pred_check_branch
          %694 = sbr.rel (%p692) target = $region76
        $region75: #{actionformer6_forward.1} parent=11 // pred_region
          _
        $region76: #{actionformer6_forward.1} parent=11 // pred_fallthru
          _
        // Predicated region
        $region77: #{actionformer6_forward.1} parent=11 // pred_check
          %p695 = pneg %p447
        $region78: #{actionformer6_forward.1} parent=11 // pred_check_branch
          %697 = sbr.rel (%p695) target = $region80
        $region79: #{actionformer6_forward.1} parent=11 // pred_region
          %s699 = ssub.s32 128, 128
          %700 = vsyncadd [#allocation26], %s699
          %s701 = sshll.u32 [#allocation27], 4
          %s702 = int_to_ptr.vmem [resolvable:$true] %s701
          %707 = dma.hbm_to_vmem [thread:$0]  %s18, 128, %s702, [#allocation26], 64, 64, 4
        $region80: #{actionformer6_forward.1} parent=11 // pred_fallthru
          _
        // Predicated region
        $region81: #{actionformer6_forward.1} parent=11 // pred_check
          %p708 = pneg %p468
        $region82: #{actionformer6_forward.1} parent=11 // pred_check_branch
          %710 = sbr.rel (%p708) target = $region84
        $region83: #{actionformer6_forward.1} parent=11 // pred_region
          %s712 = ssub.s32 16, 16
          %713 = vsyncadd [#allocation29], %s712
          %s715 = sshll.u32 [#allocation28], 4
          %s716 = int_to_ptr.vmem [resolvable:$true] %s715
          %718 = dma.hbm_to_vmem [thread:$0]  %s19, 16, %s716, [#allocation29]
        $region84: #{actionformer6_forward.1} parent=11 // pred_fallthru
          _
      $region12: #{actionformer6_forward.1} parent=5 // pred_fallthru
        _
      %p719 = scmp.lt.s32.totalorder %s38, 2
      // Predicated region
      $region85: #{actionformer6_forward.1} parent=5 // pred_check
        %p720 = pneg %p719
      $region86: #{actionformer6_forward.1} parent=5 // pred_check_branch
        %722 = sbr.rel (%p720) target = $region88
      $region87: #{actionformer6_forward.1} parent=5 // pred_region
        // Predicated region
        $region89: #{actionformer6_forward.1} parent=87 // pred_check
          %p723 = pneg %p58
        $region90: #{actionformer6_forward.1} parent=87 // pred_check_branch
          %725 = sbr.rel (%p723) target = $region92
        $region91: #{actionformer6_forward.1} parent=87 // pred_region
          %p726 = scmp.lt.s32.totalorder %s38, 1
          %s727 = scalar_select %p726, %s38, 1
          %s728 = smul.addr %s727, 4
          %s729 = scalar_lea.vmem %s0, %s728
        $region92: #{actionformer6_forward.1} parent=87 // pred_fallthru
          _
        // Predicated region
        $region93: #{actionformer6_forward.1} parent=87 // pred_check
          %p730 = pneg %p84
        $region94: #{actionformer6_forward.1} parent=87 // pred_check_branch
          %732 = sbr.rel (%p730) target = $region96
        $region95: #{actionformer6_forward.1} parent=87 // pred_region
          %s733 = sand.u32 %s74, 1
          %s734 = scalar_lea.sflag [#allocation3], %s733
          %s735 = sand.u32 %s74, 1
          %s736 = smul.addr %s735, 4
          %s737 = scalar_lea.vmem [#allocation2], %s736
          %s739 = ssub.s32 64, 64
          %740 = vsyncadd %s734, %s739
          %s741 = smul.addr %s38, 64
          %s742 = scalar_lea.hbm %s1, %s741
          %s744 = sshll.u32 %s737, 4
          %s745 = int_to_ptr.vmem [resolvable:$true] %s744
          %747 = dma.hbm_to_vmem [thread:$0]  %s742, 64, %s745, %s734
        $region96: #{actionformer6_forward.1} parent=87 // pred_fallthru
          _
      $region88: #{actionformer6_forward.1} parent=5 // pred_fallthru
        _
      %p748 = scmp.le.s32.totalorder 1, %s38
      %p749 = scmp.lt.s32.totalorder %s38, 3
      %p750 = pnand %p748, %p749
      %p751 = pneg %p750
      // Predicated region
      $region97: #{actionformer6_forward.1} parent=5 // pred_check
        _
      $region98: #{actionformer6_forward.1} parent=5 // pred_check_branch
        %753 = sbr.rel (%p750) target = $region100
      $region99: #{actionformer6_forward.1} parent=5 // pred_region
        %s754 = ssub.s32 %s38, 1
        %s755 = sand.u32 %s77, 1
        %s756 = scalar_lea.sflag [#allocation3], %s755
        %s757 = sand.u32 %s77, 1
        %s758 = smul.addr %s757, 4
        %s759 = scalar_lea.vmem [#allocation2], %s758
        // Predicated region
        $region101: #{actionformer6_forward.1} parent=99 // pred_check
          %p760 = pneg %p90
        $region102: #{actionformer6_forward.1} parent=99 // pred_check_branch
          %762 = sbr.rel (%p760) target = $region104
        $region103: #{actionformer6_forward.1} parent=99 // pred_region
          %763 = dma.done %s756, 64
        $region104: #{actionformer6_forward.1} parent=99 // pred_fallthru
          _
        // Predicated region
        $region105: #{actionformer6_forward.1} parent=99 // pred_check
          %p764 = pneg %p111
        $region106: #{actionformer6_forward.1} parent=99 // pred_check_branch
          %766 = sbr.rel (%p764) target = $region108
        $region107: #{actionformer6_forward.1} parent=99 // pred_region
          %767 = dma.done [#allocation5], 65536
        $region108: #{actionformer6_forward.1} parent=99 // pred_fallthru
          _
        // Predicated region
        $region109: #{actionformer6_forward.1} parent=99 // pred_check
          %p768 = pneg %p132
        $region110: #{actionformer6_forward.1} parent=99 // pred_check_branch
          %770 = sbr.rel (%p768) target = $region112
        $region111: #{actionformer6_forward.1} parent=99 // pred_region
          %771 = dma.done [#allocation5], 256
        $region112: #{actionformer6_forward.1} parent=99 // pred_fallthru
          _
        // Predicated region
        $region113: #{actionformer6_forward.1} parent=99 // pred_check
          %p772 = pneg %p153
        $region114: #{actionformer6_forward.1} parent=99 // pred_check_branch
          %774 = sbr.rel (%p772) target = $region116
        $region115: #{actionformer6_forward.1} parent=99 // pred_region
          %775 = dma.done [#allocation8], 256
        $region116: #{actionformer6_forward.1} parent=99 // pred_fallthru
          _
        // Predicated region
        $region117: #{actionformer6_forward.1} parent=99 // pred_check
          %p776 = pneg %p174
        $region118: #{actionformer6_forward.1} parent=99 // pred_check_branch
          %778 = sbr.rel (%p776) target = $region120
        $region119: #{actionformer6_forward.1} parent=99 // pred_region
          %779 = dma.done [#allocation8], 256
        $region120: #{actionformer6_forward.1} parent=99 // pred_fallthru
          _
        // Predicated region
        $region121: #{actionformer6_forward.1} parent=99 // pred_check
          %p780 = pneg %p195
        $region122: #{actionformer6_forward.1} parent=99 // pred_check_branch
          %782 = sbr.rel (%p780) target = $region124
        $region123: #{actionformer6_forward.1} parent=99 // pred_region
          %783 = dma.done [#allocation11], 4096
        $region124: #{actionformer6_forward.1} parent=99 // pred_fallthru
          _
        // Predicated region
        $region125: #{actionformer6_forward.1} parent=99 // pred_check
          %p784 = pneg %p216
        $region126: #{actionformer6_forward.1} parent=99 // pred_check_branch
          %786 = sbr.rel (%p784) target = $region128
        $region127: #{actionformer6_forward.1} parent=99 // pred_region
          %787 = dma.done [#allocation11], 16
        $region128: #{actionformer6_forward.1} parent=99 // pred_fallthru
          _
        // Predicated region
        $region129: #{actionformer6_forward.1} parent=99 // pred_check
          %p788 = pneg %p237
        $region130: #{actionformer6_forward.1} parent=99 // pred_check_branch
          %790 = sbr.rel (%p788) target = $region132
        $region131: #{actionformer6_forward.1} parent=99 // pred_region
          %791 = dma.done [#allocation14], 16
        $region132: #{actionformer6_forward.1} parent=99 // pred_fallthru
          _
        // Predicated region
        $region133: #{actionformer6_forward.1} parent=99 // pred_check
          %p792 = pneg %p258
        $region134: #{actionformer6_forward.1} parent=99 // pred_check_branch
          %794 = sbr.rel (%p792) target = $region136
        $region135: #{actionformer6_forward.1} parent=99 // pred_region
          %795 = dma.done [#allocation14], 16
        $region136: #{actionformer6_forward.1} parent=99 // pred_fallthru
          _
        // Predicated region
        $region137: #{actionformer6_forward.1} parent=99 // pred_check
          %p796 = pneg %p279
        $region138: #{actionformer6_forward.1} parent=99 // pred_check_branch
          %798 = sbr.rel (%p796) target = $region140
        $region139: #{actionformer6_forward.1} parent=99 // pred_region
          %799 = dma.done [#allocation17], 128
        $region140: #{actionformer6_forward.1} parent=99 // pred_fallthru
          _
        // Predicated region
        $region141: #{actionformer6_forward.1} parent=99 // pred_check
          %p800 = pneg %p300
        $region142: #{actionformer6_forward.1} parent=99 // pred_check_branch
          %802 = sbr.rel (%p800) target = $region144
        $region143: #{actionformer6_forward.1} parent=99 // pred_region
          %803 = dma.done [#allocation17], 1024
        $region144: #{actionformer6_forward.1} parent=99 // pred_fallthru
          _
        // Predicated region
        $region145: #{actionformer6_forward.1} parent=99 // pred_check
          %p804 = pneg %p321
        $region146: #{actionformer6_forward.1} parent=99 // pred_check_branch
          %806 = sbr.rel (%p804) target = $region148
        $region147: #{actionformer6_forward.1} parent=99 // pred_region
          %807 = dma.done [#allocation20], 16
        $region148: #{actionformer6_forward.1} parent=99 // pred_fallthru
          _
        // Predicated region
        $region149: #{actionformer6_forward.1} parent=99 // pred_check
          %p808 = pneg %p342
        $region150: #{actionformer6_forward.1} parent=99 // pred_check_branch
          %810 = sbr.rel (%p808) target = $region152
        $region151: #{actionformer6_forward.1} parent=99 // pred_region
          %811 = dma.done [#allocation20], 3072
        $region152: #{actionformer6_forward.1} parent=99 // pred_fallthru
          _
        // Predicated region
        $region153: #{actionformer6_forward.1} parent=99 // pred_check
          %p812 = pneg %p363
        $region154: #{actionformer6_forward.1} parent=99 // pred_check_branch
          %814 = sbr.rel (%p812) target = $region156
        $region155: #{actionformer6_forward.1} parent=99 // pred_region
          %815 = dma.done [#allocation23], 3072
        $region156: #{actionformer6_forward.1} parent=99 // pred_fallthru
          _
        // Predicated region
        $region157: #{actionformer6_forward.1} parent=99 // pred_check
          %p816 = pneg %p384
        $region158: #{actionformer6_forward.1} parent=99 // pred_check_branch
          %818 = sbr.rel (%p816) target = $region160
        $region159: #{actionformer6_forward.1} parent=99 // pred_region
          %819 = dma.done [#allocation23], 48
        $region160: #{actionformer6_forward.1} parent=99 // pred_fallthru
          _
        // Predicated region
        $region161: #{actionformer6_forward.1} parent=99 // pred_check
          %p820 = pneg %p405
        $region162: #{actionformer6_forward.1} parent=99 // pred_check_branch
          %822 = sbr.rel (%p820) target = $region164
        $region163: #{actionformer6_forward.1} parent=99 // pred_region
          %823 = dma.done [#allocation26], 48
        $region164: #{actionformer6_forward.1} parent=99 // pred_fallthru
          _
        // Predicated region
        $region165: #{actionformer6_forward.1} parent=99 // pred_check
          %p824 = pneg %p447
        $region166: #{actionformer6_forward.1} parent=99 // pred_check_branch
          %826 = sbr.rel (%p824) target = $region168
        $region167: #{actionformer6_forward.1} parent=99 // pred_region
          %827 = dma.done [#allocation26], 128
        $region168: #{actionformer6_forward.1} parent=99 // pred_fallthru
          _
        // Predicated region
        $region169: #{actionformer6_forward.1} parent=99 // pred_check
          %p828 = pneg %p468
        $region170: #{actionformer6_forward.1} parent=99 // pred_check_branch
          %830 = sbr.rel (%p828) target = $region172
        $region171: #{actionformer6_forward.1} parent=99 // pred_region
          %831 = dma.done [#allocation29], 16
        $region172: #{actionformer6_forward.1} parent=99 // pred_fallthru
          _
        %p832 = scmp.lt.s32.totalorder %s43, 1
        %s833 = scalar_select %p832, %s43, 1
        %s834 = smul.addr %s833, 4
        %s835 = scalar_lea.vmem %s0, %s834
        %p836 = pneg %p64
        %p837 = pneg %p61
        %s838 = sand.u32 %s77, 1
        %s839 = scalar_lea.sflag [#allocation3], %s838
        %s840 = sand.u32 %s77, 1
        %s841 = smul.addr %s840, 4
        %s842 = scalar_lea.vmem [#allocation2], %s841
        %p843 = pneg %p90
        %p844 = pneg %p87
        %p845 = pneg %p111
        %p846 = pneg %p108
        %p847 = pneg %p132
        %p848 = pneg %p129
        %p849 = pneg %p153
        %p850 = pneg %p150
        %p851 = pneg %p174
        %p852 = pneg %p171
        %p853 = pneg %p195
        %p854 = pneg %p192
        %p855 = pneg %p216
        %p856 = pneg %p213
        %p857 = pneg %p237
        %p858 = pneg %p234
        %p859 = pneg %p258
        %p860 = pneg %p255
        %p861 = pneg %p279
        %p862 = pneg %p276
        %p863 = pneg %p300
        %p864 = pneg %p297
        %p865 = pneg %p321
        %p866 = pneg %p318
        %p867 = pneg %p342
        %p868 = pneg %p339
        %p869 = pneg %p363
        %p870 = pneg %p360
        %p871 = pneg %p384
        %p872 = pneg %p381
        %p873 = pneg %p405
        %p874 = pneg %p402
        %p875 = pneg %p426
        %p876 = pneg %p423
        %p877 = pneg %p447
        %p878 = pneg %p444
        %p879 = pneg %p468
        %p880 = pneg %p465
        %p881 = pneg %p494
        %p882 = pneg %p491
        %p883 = scmp.lt.s32.totalorder %s43, 1
        %s884 = scalar_select %p883, %s43, 1
        %s885 = scalar_lea.vmem %s20, %s884
        %p886 = scmp.lt.s32.totalorder %s43, 1
        %s887 = scalar_select %p886, %s43, 1
        %s888 = smul.addr %s887, 4
        %s889 = scalar_lea.vmem %s0, %s888
        %p890 = scmp.lt.s32.totalorder %s43, 1
        %s891 = scalar_select %p890, %s43, 1
        %s892 = scalar_lea.vmem %s20, %s891
        %v894 = vld [vmem:[%s889] sm:$0xf]
        %vm895 = vcmask 1040384
        %v896 = vsel %vm895, %v894, 0.0
        %897 = vadd.xlane.f32.xlu0 %v896
        %v898 = vpop.xlane.xlu0 %897
        %v899 = vrcp.pop 128.0
        %v900 = vmul.f32 %v898, %v899
        %v901 = vsub.f32 %v894, %v900
        %v902 = vmul.f32 %v901, %v901
        %v903 = vsel %vm895, %v902, 0.0
        %904 = vadd.xlane.f32.xlu0 %v903
        %v905 = vpop.xlane.xlu0 %904
        %v906 = vmul.f32 %v905, %v899
        %v907 = vadd.f32 %v906, 1e-05
        %v908 = vrsqrt.pop %v907
        %v909 = vmul.f32 %v901, %v908
        %v911 = vlaneseq
        %v912 = vshrl.u32 %v911, 7
        %v913 = vsub.s32 1, %v912
        %v914 = vrot.slane %v894, %v913
        %v916 = vsel %vm895, %v914, 0.0
        %917 = vadd.xlane.f32.xlu0 %v916
        %v918 = vpop.xlane.xlu0 %917
        %v919 = vmul.f32 %v918, %v899
        %v920 = vrot.slane %v894, 1
        %v922 = vsub.f32 %v920, %v919
        %v923 = vmul.f32 %v922, %v922
        %v924 = vsel %vm895, %v923, 0.0
        %925 = vadd.xlane.f32.xlu0 %v924
        %v926 = vpop.xlane.xlu0 %925
        %v927 = vmul.f32 %v926, %v899
        %v928 = vadd.f32 %v927, 1e-05
        %v929 = vrsqrt.pop %v928
        %v930 = vmul.f32 %v922, %v929
        %v931 = vlaneseq
        %v932 = vshrl.u32 %v931, 7
        %v933 = vsub.s32 2, %v932
        %v934 = vrot.slane %v894, %v933
        %v936 = vsel %vm895, %v934, 0.0
        %937 = vadd.xlane.f32.xlu0 %v936
        %v938 = vpop.xlane.xlu0 %937
        %v939 = vmul.f32 %v938, %v899
        %v940 = vrot.slane %v894, 2
        %v942 = vsub.f32 %v940, %v939
        %v943 = vmul.f32 %v942, %v942
        %v944 = vsel %vm895, %v943, 0.0
        %945 = vadd.xlane.f32.xlu0 %v944
        %v946 = vpop.xlane.xlu0 %945
        %v947 = vmul.f32 %v946, %v899
        %v948 = vadd.f32 %v947, 1e-05
        %v949 = vrsqrt.pop %v948
        %v950 = vmul.f32 %v942, %v949
        %v951 = vlaneseq
        %v952 = vshrl.u32 %v951, 7
        %v953 = vsub.s32 3, %v952
        %v954 = vrot.slane %v894, %v953
        %v956 = vsel %vm895, %v954, 0.0
        %957 = vadd.xlane.f32.xlu0 %v956
        %v958 = vpop.xlane.xlu0 %957
        %v959 = vmul.f32 %v958, %v899
        %v960 = vrot.slane %v894, 3
        %v962 = vsub.f32 %v960, %v959
        %v963 = vmul.f32 %v962, %v962
        %v964 = vsel %vm895, %v963, 0.0
        %965 = vadd.xlane.f32.xlu0 %v964
        %v966 = vpop.xlane.xlu0 %965
        %v967 = vmul.f32 %v966, %v899
        %v968 = vadd.f32 %v967, 1e-05
        %v969 = vrsqrt.pop %v968
        %v970 = vmul.f32 %v962, %v969
        %v971 = vld [vmem:[#allocation6] sm:$0xf]
        %v973 = vlaneseq
        %v974 = vshrl.u32 %v973, 7
        %v975 = vsub.s32 0, %v974
        %v976 = vrot.slane %v971, %v975
        %v977 = vlaneseq
        %v978 = vshrl.u32 %v977, 7
        %v979 = vsub.s32 1, %v978
        %v980 = vrot.slane %v971, %v979
        %v981 = vlaneseq
        %v982 = vshrl.u32 %v981, 7
        %v983 = vsub.s32 2, %v982
        %v984 = vrot.slane %v971, %v983
        %v985 = vlaneseq
        %v986 = vshrl.u32 %v985, 7
        %v987 = vsub.s32 3, %v986
        %v988 = vrot.slane %v971, %v987
        %v993 = vmul.f32 %v909, %v976
        %v994 = vmul.f32 %v930, %v980
        %v995 = vmul.f32 %v950, %v984
        %v996 = vmul.f32 %v970, %v988
        %v997 = vld [vmem:[#allocation7] sm:$0xf]
        %v999 = vlaneseq
        %v1000 = vshrl.u32 %v999, 7
        %v1001 = vsub.s32 0, %v1000
        %v1002 = vrot.slane %v997, %v1001
        %v1003 = vlaneseq
        %v1004 = vshrl.u32 %v1003, 7
        %v1005 = vsub.s32 1, %v1004
        %v1006 = vrot.slane %v997, %v1005
        %v1007 = vlaneseq
        %v1008 = vshrl.u32 %v1007, 7
        %v1009 = vsub.s32 2, %v1008
        %v1010 = vrot.slane %v997, %v1009
        %v1011 = vlaneseq
        %v1012 = vshrl.u32 %v1011, 7
        %v1013 = vsub.s32 3, %v1012
        %v1014 = vrot.slane %v997, %v1013
        %v1019 = vadd.f32 %v993, %v1002
        %v1020 = vadd.f32 %v994, %v1006
        %v1021 = vadd.f32 %v995, %v1010
        %v1022 = vadd.f32 %v996, %v1014
        %v1023 = vxor.u32 %v1019, 2147483648
        %v1024 = vxor.u32 %v1020, 2147483648
        %v1025 = vxor.u32 %v1021, 2147483648
        %v1026 = vxor.u32 %v1022, 2147483648
        %v1027 = vmul.f32 %v1023, 1.442695
        %v1028 = vpow.pop %v1027
        %v1029 = vmul.f32 %v1024, 1.442695
        %v1030 = vpow.pop %v1029
        %v1031 = vmul.f32 %v1025, 1.442695
        %v1032 = vpow.pop %v1031
        %v1033 = vmul.f32 %v1026, 1.442695
        %v1034 = vpow.pop %v1033
        %v1035 = vadd.f32 %v1028, 1.0
        %v1036 = vadd.f32 %v1030, 1.0
        %v1037 = vadd.f32 %v1032, 1.0
        %v1038 = vadd.f32 %v1034, 1.0
        %v1039 = vrcp.pop %v1035
        %v1040 = vmul.f32 1.0, %v1039
        %v1041 = vrcp.pop %v1036
        %v1042 = vmul.f32 1.0, %v1041
        %v1043 = vrcp.pop %v1037
        %v1044 = vmul.f32 1.0, %v1043
        %v1045 = vrcp.pop %v1038
        %v1046 = vmul.f32 1.0, %v1045
        %v1047 = vmul.f32 %v1019, %v1040
        %v1048 = vmul.f32 %v1020, %v1042
        %v1049 = vmul.f32 %v1021, %v1044
        %v1050 = vmul.f32 %v1022, %v1046
        %v1051 = vld [vmem:[#allocation4] sm:$0xff]
        %v1052 = vld [vmem:[#allocation4 + $0x8] sm:$0xff]
        %v1053 = vld [vmem:[#allocation4 + $0x10] sm:$0xff]
        %v1054 = vld [vmem:[#allocation4 + $0x18] sm:$0xff]
        %v1055 = vld [vmem:[#allocation4 + $0x20] sm:$0xff]
        %v1056 = vld [vmem:[#allocation4 + $0x28] sm:$0xff]
        %v1057 = vld [vmem:[#allocation4 + $0x30] sm:$0xff]
        %v1058 = vld [vmem:[#allocation4 + $0x38] sm:$0xff]
        %v1059 = vld [vmem:[#allocation4 + $0x40] sm:$0xff]
        %v1060 = vld [vmem:[#allocation4 + $0x48] sm:$0xff]
        %v1061 = vld [vmem:[#allocation4 + $0x50] sm:$0xff]
        %v1062 = vld [vmem:[#allocation4 + $0x58] sm:$0xff]
        %v1063 = vld [vmem:[#allocation4 + $0x60] sm:$0xff]
        %v1064 = vld [vmem:[#allocation4 + $0x68] sm:$0xff]
        %v1065 = vld [vmem:[#allocation4 + $0x70] sm:$0xff]
        %v1066 = vld [vmem:[#allocation4 + $0x78] sm:$0xff]
        %v1067 = vld [vmem:[#allocation4 + $0x80] sm:$0xff]
        %v1068 = vld [vmem:[#allocation4 + $0x88] sm:$0xff]
        %v1069 = vld [vmem:[#allocation4 + $0x90] sm:$0xff]
        %v1070 = vld [vmem:[#allocation4 + $0x98] sm:$0xff]
        %v1071 = vld [vmem:[#allocation4 + $0xa0] sm:$0xff]
        %v1072 = vld [vmem:[#allocation4 + $0xa8] sm:$0xff]
        %v1073 = vld [vmem:[#allocation4 + $0xb0] sm:$0xff]
        %v1074 = vld [vmem:[#allocation4 + $0xb8] sm:$0xff]
        %v1075 = vld [vmem:[#allocation4 + $0xc0] sm:$0xff]
        %v1076 = vld [vmem:[#allocation4 + $0xc8] sm:$0xff]
        %v1077 = vld [vmem:[#allocation4 + $0xd0] sm:$0xff]
        %v1078 = vld [vmem:[#allocation4 + $0xd8] sm:$0xff]
        %v1079 = vld [vmem:[#allocation4 + $0xe0] sm:$0xff]
        %v1080 = vld [vmem:[#allocation4 + $0xe8] sm:$0xff]
        %v1081 = vld [vmem:[#allocation4 + $0xf0] sm:$0xff]
        %v1082 = vld [vmem:[#allocation4 + $0xf8] sm:$0xff]
        %v1083 = vld [vmem:[#allocation4 + $0x100] sm:$0xff]
        %v1084 = vld [vmem:[#allocation4 + $0x108] sm:$0xff]
        %v1085 = vld [vmem:[#allocation4 + $0x110] sm:$0xff]
        %v1086 = vld [vmem:[#allocation4 + $0x118] sm:$0xff]
        %v1087 = vld [vmem:[#allocation4 + $0x120] sm:$0xff]
        %v1088 = vld [vmem:[#allocation4 + $0x128] sm:$0xff]
        %v1089 = vld [vmem:[#allocation4 + $0x130] sm:$0xff]
        %v1090 = vld [vmem:[#allocation4 + $0x138] sm:$0xff]
        %v1091 = vld [vmem:[#allocation4 + $0x140] sm:$0xff]
        %v1092 = vld [vmem:[#allocation4 + $0x148] sm:$0xff]
        %v1093 = vld [vmem:[#allocation4 + $0x150] sm:$0xff]
        %v1094 = vld [vmem:[#allocation4 + $0x158] sm:$0xff]
        %v1095 = vld [vmem:[#allocation4 + $0x160] sm:$0xff]
        %v1096 = vld [vmem:[#allocation4 + $0x168] sm:$0xff]
        %v1097 = vld [vmem:[#allocation4 + $0x170] sm:$0xff]
        %v1098 = vld [vmem:[#allocation4 + $0x178] sm:$0xff]
        %v1099 = vld [vmem:[#allocation4 + $0x180] sm:$0xff]
        %v1100 = vld [vmem:[#allocation4 + $0x188] sm:$0xff]
        %v1101 = vld [vmem:[#allocation4 + $0x190] sm:$0xff]
        %v1102 = vld [vmem:[#allocation4 + $0x198] sm:$0xff]
        %v1103 = vld [vmem:[#allocation4 + $0x1a0] sm:$0xff]
        %v1104 = vld [vmem:[#allocation4 + $0x1a8] sm:$0xff]
        %v1105 = vld [vmem:[#allocation4 + $0x1b0] sm:$0xff]
        %v1106 = vld [vmem:[#allocation4 + $0x1b8] sm:$0xff]
        %v1107 = vld [vmem:[#allocation4 + $0x1c0] sm:$0xff]
        %v1108 = vld [vmem:[#allocation4 + $0x1c8] sm:$0xff]
        %v1109 = vld [vmem:[#allocation4 + $0x1d0] sm:$0xff]
        %v1110 = vld [vmem:[#allocation4 + $0x1d8] sm:$0xff]
        %v1111 = vld [vmem:[#allocation4 + $0x1e0] sm:$0xff]
        %v1112 = vld [vmem:[#allocation4 + $0x1e8] sm:$0xff]
        %v1113 = vld [vmem:[#allocation4 + $0x1f0] sm:$0xff]
        %v1114 = vld [vmem:[#allocation4 + $0x1f8] sm:$0xff]
        %v1115 = vld [vmem:[#allocation4 + $0x200] sm:$0xff]
        %v1116 = vld [vmem:[#allocation4 + $0x208] sm:$0xff]
        %v1117 = vld [vmem:[#allocation4 + $0x210] sm:$0xff]
        %v1118 = vld [vmem:[#allocation4 + $0x218] sm:$0xff]
        %v1119 = vld [vmem:[#allocation4 + $0x220] sm:$0xff]
        %v1120 = vld [vmem:[#allocation4 + $0x228] sm:$0xff]
        %v1121 = vld [vmem:[#allocation4 + $0x230] sm:$0xff]
        %v1122 = vld [vmem:[#allocation4 + $0x238] sm:$0xff]
        %v1123 = vld [vmem:[#allocation4 + $0x240] sm:$0xff]
        %v1124 = vld [vmem:[#allocation4 + $0x248] sm:$0xff]
        %v1125 = vld [vmem:[#allocation4 + $0x250] sm:$0xff]
        %v1126 = vld [vmem:[#allocation4 + $0x258] sm:$0xff]
        %v1127 = vld [vmem:[#allocation4 + $0x260] sm:$0xff]
        %v1128 = vld [vmem:[#allocation4 + $0x268] sm:$0xff]
        %v1129 = vld [vmem:[#allocation4 + $0x270] sm:$0xff]
        %v1130 = vld [vmem:[#allocation4 + $0x278] sm:$0xff]
        %v1131 = vld [vmem:[#allocation4 + $0x280] sm:$0xff]
        %v1132 = vld [vmem:[#allocation4 + $0x288] sm:$0xff]
        %v1133 = vld [vmem:[#allocation4 + $0x290] sm:$0xff]
        %v1134 = vld [vmem:[#allocation4 + $0x298] sm:$0xff]
        %v1135 = vld [vmem:[#allocation4 + $0x2a0] sm:$0xff]
        %v1136 = vld [vmem:[#allocation4 + $0x2a8] sm:$0xff]
        %v1137 = vld [vmem:[#allocation4 + $0x2b0] sm:$0xff]
        %v1138 = vld [vmem:[#allocation4 + $0x2b8] sm:$0xff]
        %v1139 = vld [vmem:[#allocation4 + $0x2c0] sm:$0xff]
        %v1140 = vld [vmem:[#allocation4 + $0x2c8] sm:$0xff]
        %v1141 = vld [vmem:[#allocation4 + $0x2d0] sm:$0xff]
        %v1142 = vld [vmem:[#allocation4 + $0x2d8] sm:$0xff]
        %v1143 = vld [vmem:[#allocation4 + $0x2e0] sm:$0xff]
        %v1144 = vld [vmem:[#allocation4 + $0x2e8] sm:$0xff]
        %v1145 = vld [vmem:[#allocation4 + $0x2f0] sm:$0xff]
        %v1146 = vld [vmem:[#allocation4 + $0x2f8] sm:$0xff]
        %v1147 = vld [vmem:[#allocation4 + $0x300] sm:$0xff]
        %v1148 = vld [vmem:[#allocation4 + $0x308] sm:$0xff]
        %v1149 = vld [vmem:[#allocation4 + $0x310] sm:$0xff]
        %v1150 = vld [vmem:[#allocation4 + $0x318] sm:$0xff]
        %v1151 = vld [vmem:[#allocation4 + $0x320] sm:$0xff]
        %v1152 = vld [vmem:[#allocation4 + $0x328] sm:$0xff]
        %v1153 = vld [vmem:[#allocation4 + $0x330] sm:$0xff]
        %v1154 = vld [vmem:[#allocation4 + $0x338] sm:$0xff]
        %v1155 = vld [vmem:[#allocation4 + $0x340] sm:$0xff]
        %v1156 = vld [vmem:[#allocation4 + $0x348] sm:$0xff]
        %v1157 = vld [vmem:[#allocation4 + $0x350] sm:$0xff]
        %v1158 = vld [vmem:[#allocation4 + $0x358] sm:$0xff]
        %v1159 = vld [vmem:[#allocation4 + $0x360] sm:$0xff]
        %v1160 = vld [vmem:[#allocation4 + $0x368] sm:$0xff]
        %v1161 = vld [vmem:[#allocation4 + $0x370] sm:$0xff]
        %v1162 = vld [vmem:[#allocation4 + $0x378] sm:$0xff]
        %v1163 = vld [vmem:[#allocation4 + $0x380] sm:$0xff]
        %v1164 = vld [vmem:[#allocation4 + $0x388] sm:$0xff]
        %v1165 = vld [vmem:[#allocation4 + $0x390] sm:$0xff]
        %v1166 = vld [vmem:[#allocation4 + $0x398] sm:$0xff]
        %v1167 = vld [vmem:[#allocation4 + $0x3a0] sm:$0xff]
        %v1168 = vld [vmem:[#allocation4 + $0x3a8] sm:$0xff]
        %v1169 = vld [vmem:[#allocation4 + $0x3b0] sm:$0xff]
        %v1170 = vld [vmem:[#allocation4 + $0x3b8] sm:$0xff]
        %v1171 = vld [vmem:[#allocation4 + $0x3c0] sm:$0xff]
        %v1172 = vld [vmem:[#allocation4 + $0x3c8] sm:$0xff]
        %v1173 = vld [vmem:[#allocation4 + $0x3d0] sm:$0xff]
        %v1174 = vld [vmem:[#allocation4 + $0x3d8] sm:$0xff]
        %v1175 = vld [vmem:[#allocation4 + $0x3e0] sm:$0xff]
        %v1176 = vld [vmem:[#allocation4 + $0x3e8] sm:$0xff]
        %v1177 = vld [vmem:[#allocation4 + $0x3f0] sm:$0xff]
        %v1178 = vld [vmem:[#allocation4 + $0x3f8] sm:$0xff]
        %v1179 = vpack.c.bf16 %v1047, %v1047
        %v1180 = vpack.c.bf16 %v1048, %v1048
        %v1181 = vpack.c.bf16 %v1049, %v1049
        %v1182 = vpack.c.bf16 %v1050, %v1050
        %v1183 = vld [vmem:[#allocation9] sm:$0xf]
        %v1312 = vunpack.c.l.b16 %v1051
        %v1313 = vunpack.c.h.b16 %v1051
        %v1314 = vunpack.c.l.b16 %v1052
        %v1315 = vunpack.c.h.b16 %v1052
        %v1316 = vunpack.c.l.b16 %v1053
        %v1317 = vunpack.c.h.b16 %v1053
        %v1318 = vunpack.c.l.b16 %v1054
        %v1319 = vunpack.c.h.b16 %v1054
        %v1320 = vunpack.c.l.b16 %v1055
        %v1321 = vunpack.c.h.b16 %v1055
        %v1322 = vunpack.c.l.b16 %v1056
        %v1323 = vunpack.c.h.b16 %v1056
        %v1324 = vunpack.c.l.b16 %v1057
        %v1325 = vunpack.c.h.b16 %v1057
        %v1326 = vunpack.c.l.b16 %v1058
        %v1327 = vunpack.c.h.b16 %v1058
        %v1328 = vunpack.c.l.b16 %v1059
        %v1329 = vunpack.c.h.b16 %v1059
        %v1330 = vunpack.c.l.b16 %v1060
        %v1331 = vunpack.c.h.b16 %v1060
        %v1332 = vunpack.c.l.b16 %v1061
        %v1333 = vunpack.c.h.b16 %v1061
        %v1334 = vunpack.c.l.b16 %v1062
        %v1335 = vunpack.c.h.b16 %v1062
        %v1336 = vunpack.c.l.b16 %v1063
        %v1337 = vunpack.c.h.b16 %v1063
        %v1338 = vunpack.c.l.b16 %v1064
        %v1339 = vunpack.c.h.b16 %v1064
        %v1340 = vunpack.c.l.b16 %v1065
        %v1341 = vunpack.c.h.b16 %v1065
        %v1342 = vunpack.c.l.b16 %v1066
        %v1343 = vunpack.c.h.b16 %v1066
        %v1344 = vunpack.c.l.b16 %v1067
        %v1345 = vunpack.c.h.b16 %v1067
        %v1346 = vunpack.c.l.b16 %v1068
        %v1347 = vunpack.c.h.b16 %v1068
        %v1348 = vunpack.c.l.b16 %v1069
        %v1349 = vunpack.c.h.b16 %v1069
        %v1350 = vunpack.c.l.b16 %v1070
        %v1351 = vunpack.c.h.b16 %v1070
        %v1352 = vunpack.c.l.b16 %v1071
        %v1353 = vunpack.c.h.b16 %v1071
        %v1354 = vunpack.c.l.b16 %v1072
        %v1355 = vunpack.c.h.b16 %v1072
        %v1356 = vunpack.c.l.b16 %v1073
        %v1357 = vunpack.c.h.b16 %v1073
        %v1358 = vunpack.c.l.b16 %v1074
        %v1359 = vunpack.c.h.b16 %v1074
        %v1360 = vunpack.c.l.b16 %v1075
        %v1361 = vunpack.c.h.b16 %v1075
        %v1362 = vunpack.c.l.b16 %v1076
        %v1363 = vunpack.c.h.b16 %v1076
        %v1364 = vunpack.c.l.b16 %v1077
        %v1365 = vunpack.c.h.b16 %v1077
        %v1366 = vunpack.c.l.b16 %v1078
        %v1367 = vunpack.c.h.b16 %v1078
        %v1368 = vunpack.c.l.b16 %v1079
        %v1369 = vunpack.c.h.b16 %v1079
        %v1370 = vunpack.c.l.b16 %v1080
        %v1371 = vunpack.c.h.b16 %v1080
        %v1372 = vunpack.c.l.b16 %v1081
        %v1373 = vunpack.c.h.b16 %v1081
        %v1374 = vunpack.c.l.b16 %v1082
        %v1375 = vunpack.c.h.b16 %v1082
        %v1376 = vunpack.c.l.b16 %v1083
        %v1377 = vunpack.c.h.b16 %v1083
        %v1378 = vunpack.c.l.b16 %v1084
        %v1379 = vunpack.c.h.b16 %v1084
        %v1380 = vunpack.c.l.b16 %v1085
        %v1381 = vunpack.c.h.b16 %v1085
        %v1382 = vunpack.c.l.b16 %v1086
        %v1383 = vunpack.c.h.b16 %v1086
        %v1384 = vunpack.c.l.b16 %v1087
        %v1385 = vunpack.c.h.b16 %v1087
        %v1386 = vunpack.c.l.b16 %v1088
        %v1387 = vunpack.c.h.b16 %v1088
        %v1388 = vunpack.c.l.b16 %v1089
        %v1389 = vunpack.c.h.b16 %v1089
        %v1390 = vunpack.c.l.b16 %v1090
        %v1391 = vunpack.c.h.b16 %v1090
        %v1392 = vunpack.c.l.b16 %v1091
        %v1393 = vunpack.c.h.b16 %v1091
        %v1394 = vunpack.c.l.b16 %v1092
        %v1395 = vunpack.c.h.b16 %v1092
        %v1396 = vunpack.c.l.b16 %v1093
        %v1397 = vunpack.c.h.b16 %v1093
        %v1398 = vunpack.c.l.b16 %v1094
        %v1399 = vunpack.c.h.b16 %v1094
        %v1400 = vunpack.c.l.b16 %v1095
        %v1401 = vunpack.c.h.b16 %v1095
        %v1402 = vunpack.c.l.b16 %v1096
        %v1403 = vunpack.c.h.b16 %v1096
        %v1404 = vunpack.c.l.b16 %v1097
        %v1405 = vunpack.c.h.b16 %v1097
        %v1406 = vunpack.c.l.b16 %v1098
        %v1407 = vunpack.c.h.b16 %v1098
        %v1408 = vunpack.c.l.b16 %v1099
        %v1409 = vunpack.c.h.b16 %v1099
        %v1410 = vunpack.c.l.b16 %v1100
        %v1411 = vunpack.c.h.b16 %v1100
        %v1412 = vunpack.c.l.b16 %v1101
        %v1413 = vunpack.c.h.b16 %v1101
        %v1414 = vunpack.c.l.b16 %v1102
        %v1415 = vunpack.c.h.b16 %v1102
        %v1416 = vunpack.c.l.b16 %v1103
        %v1417 = vunpack.c.h.b16 %v1103
        %v1418 = vunpack.c.l.b16 %v1104
        %v1419 = vunpack.c.h.b16 %v1104
        %v1420 = vunpack.c.l.b16 %v1105
        %v1421 = vunpack.c.h.b16 %v1105
        %v1422 = vunpack.c.l.b16 %v1106
        %v1423 = vunpack.c.h.b16 %v1106
        %v1424 = vunpack.c.l.b16 %v1107
        %v1425 = vunpack.c.h.b16 %v1107
        %v1426 = vunpack.c.l.b16 %v1108
        %v1427 = vunpack.c.h.b16 %v1108
        %v1428 = vunpack.c.l.b16 %v1109
        %v1429 = vunpack.c.h.b16 %v1109
        %v1430 = vunpack.c.l.b16 %v1110
        %v1431 = vunpack.c.h.b16 %v1110
        %v1432 = vunpack.c.l.b16 %v1111
        %v1433 = vunpack.c.h.b16 %v1111
        %v1434 = vunpack.c.l.b16 %v1112
        %v1435 = vunpack.c.h.b16 %v1112
        %v1436 = vunpack.c.l.b16 %v1113
        %v1437 = vunpack.c.h.b16 %v1113
        %v1438 = vunpack.c.l.b16 %v1114
        %v1439 = vunpack.c.h.b16 %v1114
        %v1440 = vunpack.c.l.b16 %v1115
        %v1441 = vunpack.c.h.b16 %v1115
        %v1442 = vunpack.c.l.b16 %v1116
        %v1443 = vunpack.c.h.b16 %v1116
        %v1444 = vunpack.c.l.b16 %v1117
        %v1445 = vunpack.c.h.b16 %v1117
        %v1446 = vunpack.c.l.b16 %v1118
        %v1447 = vunpack.c.h.b16 %v1118
        %v1448 = vunpack.c.l.b16 %v1119
        %v1449 = vunpack.c.h.b16 %v1119
        %v1450 = vunpack.c.l.b16 %v1120
        %v1451 = vunpack.c.h.b16 %v1120
        %v1452 = vunpack.c.l.b16 %v1121
        %v1453 = vunpack.c.h.b16 %v1121
        %v1454 = vunpack.c.l.b16 %v1122
        %v1455 = vunpack.c.h.b16 %v1122
        %v1456 = vunpack.c.l.b16 %v1123
        %v1457 = vunpack.c.h.b16 %v1123
        %v1458 = vunpack.c.l.b16 %v1124
        %v1459 = vunpack.c.h.b16 %v1124
        %v1460 = vunpack.c.l.b16 %v1125
        %v1461 = vunpack.c.h.b16 %v1125
        %v1462 = vunpack.c.l.b16 %v1126
        %v1463 = vunpack.c.h.b16 %v1126
        %v1464 = vunpack.c.l.b16 %v1127
        %v1465 = vunpack.c.h.b16 %v1127
        %v1466 = vunpack.c.l.b16 %v1128
        %v1467 = vunpack.c.h.b16 %v1128
        %v1468 = vunpack.c.l.b16 %v1129
        %v1469 = vunpack.c.h.b16 %v1129
        %v1470 = vunpack.c.l.b16 %v1130
        %v1471 = vunpack.c.h.b16 %v1130
        %v1472 = vunpack.c.l.b16 %v1131
        %v1473 = vunpack.c.h.b16 %v1131
        %v1474 = vunpack.c.l.b16 %v1132
        %v1475 = vunpack.c.h.b16 %v1132
        %v1476 = vunpack.c.l.b16 %v1133
        %v1477 = vunpack.c.h.b16 %v1133
        %v1478 = vunpack.c.l.b16 %v1134
        %v1479 = vunpack.c.h.b16 %v1134
        %v1480 = vunpack.c.l.b16 %v1135
        %v1481 = vunpack.c.h.b16 %v1135
        %v1482 = vunpack.c.l.b16 %v1136
        %v1483 = vunpack.c.h.b16 %v1136
        %v1484 = vunpack.c.l.b16 %v1137
        %v1485 = vunpack.c.h.b16 %v1137
        %v1486 = vunpack.c.l.b16 %v1138
        %v1487 = vunpack.c.h.b16 %v1138
        %v1488 = vunpack.c.l.b16 %v1139
        %v1489 = vunpack.c.h.b16 %v1139
        %v1490 = vunpack.c.l.b16 %v1140
        %v1491 = vunpack.c.h.b16 %v1140
        %v1492 = vunpack.c.l.b16 %v1141
        %v1493 = vunpack.c.h.b16 %v1141
        %v1494 = vunpack.c.l.b16 %v1142
        %v1495 = vunpack.c.h.b16 %v1142
        %v1496 = vunpack.c.l.b16 %v1143
        %v1497 = vunpack.c.h.b16 %v1143
        %v1498 = vunpack.c.l.b16 %v1144
        %v1499 = vunpack.c.h.b16 %v1144
        %v1500 = vunpack.c.l.b16 %v1145
        %v1501 = vunpack.c.h.b16 %v1145
        %v1502 = vunpack.c.l.b16 %v1146
        %v1503 = vunpack.c.h.b16 %v1146
        %v1504 = vunpack.c.l.b16 %v1147
        %v1505 = vunpack.c.h.b16 %v1147
        %v1506 = vunpack.c.l.b16 %v1148
        %v1507 = vunpack.c.h.b16 %v1148
        %v1508 = vunpack.c.l.b16 %v1149
        %v1509 = vunpack.c.h.b16 %v1149
        %v1510 = vunpack.c.l.b16 %v1150
        %v1511 = vunpack.c.h.b16 %v1150
        %v1512 = vunpack.c.l.b16 %v1151
        %v1513 = vunpack.c.h.b16 %v1151
        %v1514 = vunpack.c.l.b16 %v1152
        %v1515 = vunpack.c.h.b16 %v1152
        %v1516 = vunpack.c.l.b16 %v1153
        %v1517 = vunpack.c.h.b16 %v1153
        %v1518 = vunpack.c.l.b16 %v1154
        %v1519 = vunpack.c.h.b16 %v1154
        %v1520 = vunpack.c.l.b16 %v1155
        %v1521 = vunpack.c.h.b16 %v1155
        %v1522 = vunpack.c.l.b16 %v1156
        %v1523 = vunpack.c.h.b16 %v1156
        %v1524 = vunpack.c.l.b16 %v1157
        %v1525 = vunpack.c.h.b16 %v1157
        %v1526 = vunpack.c.l.b16 %v1158
        %v1527 = vunpack.c.h.b16 %v1158
        %v1528 = vunpack.c.l.b16 %v1159
        %v1529 = vunpack.c.h.b16 %v1159
        %v1530 = vunpack.c.l.b16 %v1160
        %v1531 = vunpack.c.h.b16 %v1160
        %v1532 = vunpack.c.l.b16 %v1161
        %v1533 = vunpack.c.h.b16 %v1161
        %v1534 = vunpack.c.l.b16 %v1162
        %v1535 = vunpack.c.h.b16 %v1162
        %v1536 = vunpack.c.l.b16 %v1163
        %v1537 = vunpack.c.h.b16 %v1163
        %v1538 = vunpack.c.l.b16 %v1164
        %v1539 = vunpack.c.h.b16 %v1164
        %v1540 = vunpack.c.l.b16 %v1165
        %v1541 = vunpack.c.h.b16 %v1165
        %v1542 = vunpack.c.l.b16 %v1166
        %v1543 = vunpack.c.h.b16 %v1166
        %v1544 = vunpack.c.l.b16 %v1167
        %v1545 = vunpack.c.h.b16 %v1167
        %v1546 = vunpack.c.l.b16 %v1168
        %v1547 = vunpack.c.h.b16 %v1168
        %v1548 = vunpack.c.l.b16 %v1169
        %v1549 = vunpack.c.h.b16 %v1169
        %v1550 = vunpack.c.l.b16 %v1170
        %v1551 = vunpack.c.h.b16 %v1170
        %v1552 = vunpack.c.l.b16 %v1171
        %v1553 = vunpack.c.h.b16 %v1171
        %v1554 = vunpack.c.l.b16 %v1172
        %v1555 = vunpack.c.h.b16 %v1172
        %v1556 = vunpack.c.l.b16 %v1173
        %v1557 = vunpack.c.h.b16 %v1173
        %v1558 = vunpack.c.l.b16 %v1174
        %v1559 = vunpack.c.h.b16 %v1174
        %v1560 = vunpack.c.l.b16 %v1175
        %v1561 = vunpack.c.h.b16 %v1175
        %v1562 = vunpack.c.l.b16 %v1176
        %v1563 = vunpack.c.h.b16 %v1176
        %v1564 = vunpack.c.l.b16 %v1177
        %v1565 = vunpack.c.h.b16 %v1177
        %v1566 = vunpack.c.l.b16 %v1178
        %v1567 = vunpack.c.h.b16 %v1178
        %v1568 = vpack.c.b16 %v1316, %v1312
        %v1569 = vpack.c.b16 %v1317, %v1313
        %v1570 = vpack.c.b16 %v1318, %v1314
        %v1571 = vpack.c.b16 %v1319, %v1315
        %v1572 = vpack.c.b16 %v1324, %v1320
        %v1573 = vpack.c.b16 %v1325, %v1321
        %v1574 = vpack.c.b16 %v1326, %v1322
        %v1575 = vpack.c.b16 %v1327, %v1323
        %v1576 = vpack.c.b16 %v1332, %v1328
        %v1577 = vpack.c.b16 %v1333, %v1329
        %v1578 = vpack.c.b16 %v1334, %v1330
        %v1579 = vpack.c.b16 %v1335, %v1331
        %v1580 = vpack.c.b16 %v1340, %v1336
        %v1581 = vpack.c.b16 %v1341, %v1337
        %v1582 = vpack.c.b16 %v1342, %v1338
        %v1583 = vpack.c.b16 %v1343, %v1339
        %v1584 = vpack.c.b16 %v1348, %v1344
        %v1585 = vpack.c.b16 %v1349, %v1345
        %v1586 = vpack.c.b16 %v1350, %v1346
        %v1587 = vpack.c.b16 %v1351, %v1347
        %v1588 = vpack.c.b16 %v1356, %v1352
        %v1589 = vpack.c.b16 %v1357, %v1353
        %v1590 = vpack.c.b16 %v1358, %v1354
        %v1591 = vpack.c.b16 %v1359, %v1355
        %v1592 = vpack.c.b16 %v1364, %v1360
        %v1593 = vpack.c.b16 %v1365, %v1361
        %v1594 = vpack.c.b16 %v1366, %v1362
        %v1595 = vpack.c.b16 %v1367, %v1363
        %v1596 = vpack.c.b16 %v1372, %v1368
        %v1597 = vpack.c.b16 %v1373, %v1369
        %v1598 = vpack.c.b16 %v1374, %v1370
        %v1599 = vpack.c.b16 %v1375, %v1371
        %v1600 = vpack.c.b16 %v1380, %v1376
        %v1601 = vpack.c.b16 %v1381, %v1377
        %v1602 = vpack.c.b16 %v1382, %v1378
        %v1603 = vpack.c.b16 %v1383, %v1379
        %v1604 = vpack.c.b16 %v1388, %v1384
        %v1605 = vpack.c.b16 %v1389, %v1385
        %v1606 = vpack.c.b16 %v1390, %v1386
        %v1607 = vpack.c.b16 %v1391, %v1387
        %v1608 = vpack.c.b16 %v1396, %v1392
        %v1609 = vpack.c.b16 %v1397, %v1393
        %v1610 = vpack.c.b16 %v1398, %v1394
        %v1611 = vpack.c.b16 %v1399, %v1395
        %v1612 = vpack.c.b16 %v1404, %v1400
        %v1613 = vpack.c.b16 %v1405, %v1401
        %v1614 = vpack.c.b16 %v1406, %v1402
        %v1615 = vpack.c.b16 %v1407, %v1403
        %v1616 = vpack.c.b16 %v1412, %v1408
        %v1617 = vpack.c.b16 %v1413, %v1409
        %v1618 = vpack.c.b16 %v1414, %v1410
        %v1619 = vpack.c.b16 %v1415, %v1411
        %v1620 = vpack.c.b16 %v1420, %v1416
        %v1621 = vpack.c.b16 %v1421, %v1417
        %v1622 = vpack.c.b16 %v1422, %v1418
        %v1623 = vpack.c.b16 %v1423, %v1419
        %v1624 = vpack.c.b16 %v1428, %v1424
        %v1625 = vpack.c.b16 %v1429, %v1425
        %v1626 = vpack.c.b16 %v1430, %v1426
        %v1627 = vpack.c.b16 %v1431, %v1427
        %v1628 = vpack.c.b16 %v1436, %v1432
        %v1629 = vpack.c.b16 %v1437, %v1433
        %v1630 = vpack.c.b16 %v1438, %v1434
        %v1631 = vpack.c.b16 %v1439, %v1435
        %v1632 = vpack.c.b16 %v1444, %v1440
        %v1633 = vpack.c.b16 %v1445, %v1441
        %v1634 = vpack.c.b16 %v1446, %v1442
        %v1635 = vpack.c.b16 %v1447, %v1443
        %v1636 = vpack.c.b16 %v1452, %v1448
        %v1637 = vpack.c.b16 %v1453, %v1449
        %v1638 = vpack.c.b16 %v1454, %v1450
        %v1639 = vpack.c.b16 %v1455, %v1451
        %v1640 = vpack.c.b16 %v1460, %v1456
        %v1641 = vpack.c.b16 %v1461, %v1457
        %v1642 = vpack.c.b16 %v1462, %v1458
        %v1643 = vpack.c.b16 %v1463, %v1459
        %v1644 = vpack.c.b16 %v1468, %v1464
        %v1645 = vpack.c.b16 %v1469, %v1465
        %v1646 = vpack.c.b16 %v1470, %v1466
        %v1647 = vpack.c.b16 %v1471, %v1467
        %v1648 = vpack.c.b16 %v1476, %v1472
        %v1649 = vpack.c.b16 %v1477, %v1473
        %v1650 = vpack.c.b16 %v1478, %v1474
        %v1651 = vpack.c.b16 %v1479, %v1475
        %v1652 = vpack.c.b16 %v1484, %v1480
        %v1653 = vpack.c.b16 %v1485, %v1481
        %v1654 = vpack.c.b16 %v1486, %v1482
        %v1655 = vpack.c.b16 %v1487, %v1483
        %v1656 = vpack.c.b16 %v1492, %v1488
        %v1657 = vpack.c.b16 %v1493, %v1489
        %v1658 = vpack.c.b16 %v1494, %v1490
        %v1659 = vpack.c.b16 %v1495, %v1491
        %v1660 = vpack.c.b16 %v1500, %v1496
        %v1661 = vpack.c.b16 %v1501, %v1497
        %v1662 = vpack.c.b16 %v1502, %v1498
        %v1663 = vpack.c.b16 %v1503, %v1499
        %v1664 = vpack.c.b16 %v1508, %v1504
        %v1665 = vpack.c.b16 %v1509, %v1505
        %v1666 = vpack.c.b16 %v1510, %v1506
        %v1667 = vpack.c.b16 %v1511, %v1507
        %v1668 = vpack.c.b16 %v1516, %v1512
        %v1669 = vpack.c.b16 %v1517, %v1513
        %v1670 = vpack.c.b16 %v1518, %v1514
        %v1671 = vpack.c.b16 %v1519, %v1515
        %v1672 = vpack.c.b16 %v1524, %v1520
        %v1673 = vpack.c.b16 %v1525, %v1521
        %v1674 = vpack.c.b16 %v1526, %v1522
        %v1675 = vpack.c.b16 %v1527, %v1523
        %v1676 = vpack.c.b16 %v1532, %v1528
        %v1677 = vpack.c.b16 %v1533, %v1529
        %v1678 = vpack.c.b16 %v1534, %v1530
        %v1679 = vpack.c.b16 %v1535, %v1531
        %v1680 = vpack.c.b16 %v1540, %v1536
        %v1681 = vpack.c.b16 %v1541, %v1537
        %v1682 = vpack.c.b16 %v1542, %v1538
        %v1683 = vpack.c.b16 %v1543, %v1539
        %v1684 = vpack.c.b16 %v1548, %v1544
        %v1685 = vpack.c.b16 %v1549, %v1545
        %v1686 = vpack.c.b16 %v1550, %v1546
        %v1687 = vpack.c.b16 %v1551, %v1547
        %v1688 = vpack.c.b16 %v1556, %v1552
        %v1689 = vpack.c.b16 %v1557, %v1553
        %v1690 = vpack.c.b16 %v1558, %v1554
        %v1691 = vpack.c.b16 %v1559, %v1555
        %v1692 = vpack.c.b16 %v1564, %v1560
        %v1693 = vpack.c.b16 %v1565, %v1561
        %v1694 = vpack.c.b16 %v1566, %v1562
        %v1695 = vpack.c.b16 %v1567, %v1563
        %v1825 = vlaneseq
        %v1826 = vshrl.u32 %v1825, 7
        %v1827 = vsub.s32 0, %v1826
        %v1828 = vrot.slane %v1183, %v1827
        %v1829 = vlaneseq
        %v1830 = vshrl.u32 %v1829, 7
        %v1831 = vsub.s32 1, %v1830
        %v1832 = vrot.slane %v1183, %v1831
        %v1833 = vlaneseq
        %v1834 = vshrl.u32 %v1833, 7
        %v1835 = vsub.s32 2, %v1834
        %v1836 = vrot.slane %v1183, %v1835
        %v1837 = vlaneseq
        %v1838 = vshrl.u32 %v1837, 7
        %v1839 = vsub.s32 3, %v1838
        %v1840 = vrot.slane %v1183, %v1839
        %1845 = vmatprep.subr.bf16.mxu0 %v1569
        %1846 = vmatpush1.bf16.msra.mxu0 %v1568
        %1847 = vmatprep.subr.bf16.mxu0 %v1573
        %1848 = vmatpush1.bf16.msra.mxu0 %v1572
        %1849 = vmatprep.subr.bf16.mxu0 %v1577
        %1850 = vmatpush1.bf16.msra.mxu0 %v1576
        %1851 = vmatprep.subr.bf16.mxu0 %v1581
        %1852 = vmatpush1.bf16.msra.mxu0 %v1580
        %1853 = vmatprep.subr.bf16.mxu0 %v1585
        %1854 = vmatpush1.bf16.msra.mxu0 %v1584
        %1855 = vmatprep.subr.bf16.mxu0 %v1589
        %1856 = vmatpush1.bf16.msra.mxu0 %v1588
        %1857 = vmatprep.subr.bf16.mxu0 %v1593
        %1858 = vmatpush1.bf16.msra.mxu0 %v1592
        %1859 = vmatprep.subr.bf16.mxu0 %v1597
        %1860 = vmatpush1.bf16.msra.mxu0 %v1596
        %1861 = vmatprep.subr.bf16.mxu0 %v1601
        %1862 = vmatpush1.bf16.msra.mxu0 %v1600
        %1863 = vmatprep.subr.bf16.mxu0 %v1605
        %1864 = vmatpush1.bf16.msra.mxu0 %v1604
        %1865 = vmatprep.subr.bf16.mxu0 %v1609
        %1866 = vmatpush1.bf16.msra.mxu0 %v1608
        %1867 = vmatprep.subr.bf16.mxu0 %v1613
        %1868 = vmatpush1.bf16.msra.mxu0 %v1612
        %1869 = vmatprep.subr.bf16.mxu0 %v1617
        %1870 = vmatpush1.bf16.msra.mxu0 %v1616
        %1871 = vmatprep.subr.bf16.mxu0 %v1621
        %1872 = vmatpush1.bf16.msra.mxu0 %v1620
        %1873 = vmatprep.subr.bf16.mxu0 %v1625
        %1874 = vmatpush1.bf16.msra.mxu0 %v1624
        %1875 = vmatprep.subr.bf16.mxu0 %v1629
        %1876 = vmatpush1.bf16.msra.mxu0 %v1628
        %1877 = vmatprep.mubr.bf16.mxu0 %v1180
        %1878 = vmatmul.mubr.bf16.gmra.mrb[0].mxu0 %v1179
        %v1879 = vpop.f32.mrb[0].mxu0
        %v1880 = vadd.f32 %v1828, %v1879
        %v1881 = vpop.f32.mrb[0].mxu0
        %v1882 = vadd.f32 %v1832, %v1881
        %v1883 = vpop.f32.mrb[0].mxu0
        %v1884 = vpop.f32.mrb[0].mxu0
        %1885 = vdwg.mxu0
        %1886 = vmatprep.subr.bf16.mxu0 %v1633
        %1887 = vmatpush1.bf16.msra.mxu0 %v1632
        %1888 = vmatprep.subr.bf16.mxu0 %v1637
        %1889 = vmatpush1.bf16.msra.mxu0 %v1636
        %1890 = vmatprep.subr.bf16.mxu0 %v1641
        %1891 = vmatpush1.bf16.msra.mxu0 %v1640
        %1892 = vmatprep.subr.bf16.mxu0 %v1645
        %1893 = vmatpush1.bf16.msra.mxu0 %v1644
        %1894 = vmatprep.subr.bf16.mxu0 %v1649
        %1895 = vmatpush1.bf16.msra.mxu0 %v1648
        %1896 = vmatprep.subr.bf16.mxu0 %v1653
        %1897 = vmatpush1.bf16.msra.mxu0 %v1652
        %1898 = vmatprep.subr.bf16.mxu0 %v1657
        %1899 = vmatpush1.bf16.msra.mxu0 %v1656
        %1900 = vmatprep.subr.bf16.mxu0 %v1661
        %1901 = vmatpush1.bf16.msra.mxu0 %v1660
        %1902 = vmatprep.subr.bf16.mxu0 %v1665
        %1903 = vmatpush1.bf16.msra.mxu0 %v1664
        %1904 = vmatprep.subr.bf16.mxu0 %v1669
        %1905 = vmatpush1.bf16.msra.mxu0 %v1668
        %1906 = vmatprep.subr.bf16.mxu0 %v1673
        %1907 = vmatpush1.bf16.msra.mxu0 %v1672
        %1908 = vmatprep.subr.bf16.mxu0 %v1677
        %1909 = vmatpush1.bf16.msra.mxu0 %v1676
        %1910 = vmatprep.subr.bf16.mxu0 %v1681
        %1911 = vmatpush1.bf16.msra.mxu0 %v1680
        %1912 = vmatprep.subr.bf16.mxu0 %v1685
        %1913 = vmatpush1.bf16.msra.mxu0 %v1684
        %1914 = vmatprep.subr.bf16.mxu0 %v1689
        %1915 = vmatpush1.bf16.msra.mxu0 %v1688
        %1916 = vmatprep.subr.bf16.mxu0 %v1693
        %1917 = vmatpush1.bf16.msra.mxu0 %v1692
        %1918 = vmatprep.mubr.bf16.mxu0 %v1182
        %1919 = vmatmul.mubr.bf16.gmra.mrb[0].mxu0 %v1181
        %v1920 = vpop.f32.mrb[0].mxu0
        %v1921 = vadd.f32 %v1880, %v1920
        %v1922 = vpop.f32.mrb[0].mxu0
        %v1923 = vadd.f32 %v1882, %v1922
        %v1924 = vpop.f32.mrb[0].mxu0
        %v1925 = vpop.f32.mrb[0].mxu0
        %1926 = vdwg.mxu0
        %1927 = vmatprep.subr.bf16.mxu0 %v1571
        %1928 = vmatpush1.bf16.msra.mxu0 %v1570
        %1929 = vmatprep.subr.bf16.mxu0 %v1575
        %1930 = vmatpush1.bf16.msra.mxu0 %v1574
        %1931 = vmatprep.subr.bf16.mxu0 %v1579
        %1932 = vmatpush1.bf16.msra.mxu0 %v1578
        %1933 = vmatprep.subr.bf16.mxu0 %v1583
        %1934 = vmatpush1.bf16.msra.mxu0 %v1582
        %1935 = vmatprep.subr.bf16.mxu0 %v1587
        %1936 = vmatpush1.bf16.msra.mxu0 %v1586
        %1937 = vmatprep.subr.bf16.mxu0 %v1591
        %1938 = vmatpush1.bf16.msra.mxu0 %v1590
        %1939 = vmatprep.subr.bf16.mxu0 %v1595
        %1940 = vmatpush1.bf16.msra.mxu0 %v1594
        %1941 = vmatprep.subr.bf16.mxu0 %v1599
        %1942 = vmatpush1.bf16.msra.mxu0 %v1598
        %1943 = vmatprep.subr.bf16.mxu0 %v1603
        %1944 = vmatpush1.bf16.msra.mxu0 %v1602
        %1945 = vmatprep.subr.bf16.mxu0 %v1607
        %1946 = vmatpush1.bf16.msra.mxu0 %v1606
        %1947 = vmatprep.subr.bf16.mxu0 %v1611
        %1948 = vmatpush1.bf16.msra.mxu0 %v1610
        %1949 = vmatprep.subr.bf16.mxu0 %v1615
        %1950 = vmatpush1.bf16.msra.mxu0 %v1614
        %1951 = vmatprep.subr.bf16.mxu0 %v1619
        %1952 = vmatpush1.bf16.msra.mxu0 %v1618
        %1953 = vmatprep.subr.bf16.mxu0 %v1623
        %1954 = vmatpush1.bf16.msra.mxu0 %v1622
        %1955 = vmatprep.subr.bf16.mxu0 %v1627
        %1956 = vmatpush1.bf16.msra.mxu0 %v1626
        %1957 = vmatprep.subr.bf16.mxu0 %v1631
        %1958 = vmatpush1.bf16.msra.mxu0 %v1630
        %1959 = vmatprep.mubr.bf16.mxu0 %v1180
        %1960 = vmatmul.mubr.bf16.gmra.mrb[0].mxu0 %v1179
        %v1961 = vpop.f32.mrb[0].mxu0
        %v1962 = vadd.f32 %v1836, %v1961
        %v1963 = vpop.f32.mrb[0].mxu0
        %v1964 = vadd.f32 %v1840, %v1963
        %v1965 = vpop.f32.mrb[0].mxu0
        %v1966 = vpop.f32.mrb[0].mxu0
        %1967 = vdwg.mxu0
        %1968 = vmatprep.subr.bf16.mxu0 %v1635
        %1969 = vmatpush1.bf16.msra.mxu0 %v1634
        %1970 = vmatprep.subr.bf16.mxu0 %v1639
        %1971 = vmatpush1.bf16.msra.mxu0 %v1638
        %1972 = vmatprep.subr.bf16.mxu0 %v1643
        %1973 = vmatpush1.bf16.msra.mxu0 %v1642
        %1974 = vmatprep.subr.bf16.mxu0 %v1647
        %1975 = vmatpush1.bf16.msra.mxu0 %v1646
        %1976 = vmatprep.subr.bf16.mxu0 %v1651
        %1977 = vmatpush1.bf16.msra.mxu0 %v1650
        %1978 = vmatprep.subr.bf16.mxu0 %v1655
        %1979 = vmatpush1.bf16.msra.mxu0 %v1654
        %1980 = vmatprep.subr.bf16.mxu0 %v1659
        %1981 = vmatpush1.bf16.msra.mxu0 %v1658
        %1982 = vmatprep.subr.bf16.mxu0 %v1663
        %1983 = vmatpush1.bf16.msra.mxu0 %v1662
        %1984 = vmatprep.subr.bf16.mxu0 %v1667
        %1985 = vmatpush1.bf16.msra.mxu0 %v1666
        %1986 = vmatprep.subr.bf16.mxu0 %v1671
        %1987 = vmatpush1.bf16.msra.mxu0 %v1670
        %1988 = vmatprep.subr.bf16.mxu0 %v1675
        %1989 = vmatpush1.bf16.msra.mxu0 %v1674
        %1990 = vmatprep.subr.bf16.mxu0 %v1679
        %1991 = vmatpush1.bf16.msra.mxu0 %v1678
        %1992 = vmatprep.subr.bf16.mxu0 %v1683
        %1993 = vmatpush1.bf16.msra.mxu0 %v1682
        %1994 = vmatprep.subr.bf16.mxu0 %v1687
        %1995 = vmatpush1.bf16.msra.mxu0 %v1686
        %1996 = vmatprep.subr.bf16.mxu0 %v1691
        %1997 = vmatpush1.bf16.msra.mxu0 %v1690
        %1998 = vmatprep.subr.bf16.mxu0 %v1695
        %1999 = vmatpush1.bf16.msra.mxu0 %v1694
        %2000 = vmatprep.mubr.bf16.mxu0 %v1182
        %2001 = vmatmul.mubr.bf16.gmra.mrb[0].mxu0 %v1181
        %v2002 = vpop.f32.mrb[0].mxu0
        %v2003 = vadd.f32 %v1962, %v2002
        %v2004 = vpop.f32.mrb[0].mxu0
        %v2005 = vadd.f32 %v1964, %v2004
        %v2006 = vpop.f32.mrb[0].mxu0
        %v2007 = vpop.f32.mrb[0].mxu0
        %2008 = vdwg.mxu0
        %v2009 = vsel %vm895, %v1921, 0.0
        %2010 = vadd.xlane.f32.xlu0 %v2009
        %v2011 = vpop.xlane.xlu0 %2010
        %v2012 = vmul.f32 %v2011, %v899
        %v2013 = vsub.f32 %v1921, %v2012
        %v2014 = vmul.f32 %v2013, %v2013
        %v2015 = vsel %vm895, %v2014, 0.0
        %2016 = vadd.xlane.f32.xlu0 %v2015
        %v2017 = vpop.xlane.xlu0 %2016
        %v2018 = vmul.f32 %v2017, %v899
        %v2019 = vadd.f32 %v2018, 1e-05
        %v2020 = vrsqrt.pop %v2019
        %v2021 = vmul.f32 %v2013, %v2020
        %v2022 = vsel %vm895, %v1923, 0.0
        %2023 = vadd.xlane.f32.xlu0 %v2022
        %v2024 = vpop.xlane.xlu0 %2023
        %v2025 = vmul.f32 %v2024, %v899
        %v2026 = vsub.f32 %v1923, %v2025
        %v2027 = vmul.f32 %v2026, %v2026
        %v2028 = vsel %vm895, %v2027, 0.0
        %2029 = vadd.xlane.f32.xlu0 %v2028
        %v2030 = vpop.xlane.xlu0 %2029
        %v2031 = vmul.f32 %v2030, %v899
        %v2032 = vadd.f32 %v2031, 1e-05
        %v2033 = vrsqrt.pop %v2032
        %v2034 = vmul.f32 %v2026, %v2033
        %v2035 = vsel %vm895, %v2003, 0.0
        %2036 = vadd.xlane.f32.xlu0 %v2035
        %v2037 = vpop.xlane.xlu0 %2036
        %v2038 = vmul.f32 %v2037, %v899
        %v2039 = vsub.f32 %v2003, %v2038
        %v2040 = vmul.f32 %v2039, %v2039
        %v2041 = vsel %vm895, %v2040, 0.0
        %2042 = vadd.xlane.f32.xlu0 %v2041
        %v2043 = vpop.xlane.xlu0 %2042
        %v2044 = vmul.f32 %v2043, %v899
        %v2045 = vadd.f32 %v2044, 1e-05
        %v2046 = vrsqrt.pop %v2045
        %v2047 = vmul.f32 %v2039, %v2046
        %v2048 = vsel %vm895, %v2005, 0.0
        %2049 = vadd.xlane.f32.xlu0 %v2048
        %v2050 = vpop.xlane.xlu0 %2049
        %v2051 = vmul.f32 %v2050, %v899
        %v2052 = vsub.f32 %v2005, %v2051
        %v2053 = vmul.f32 %v2052, %v2052
        %v2054 = vsel %vm895, %v2053, 0.0
        %2055 = vadd.xlane.f32.xlu0 %v2054
        %v2056 = vpop.xlane.xlu0 %2055
        %v2057 = vmul.f32 %v2056, %v899
        %v2058 = vadd.f32 %v2057, 1e-05
        %v2059 = vrsqrt.pop %v2058
        %v2060 = vmul.f32 %v2052, %v2059
        %s2061 = scalar_lea.vmem [#allocation6], 4
        %v2062 = vld [vmem:[%s2061] sm:$0xf]
        %v2064 = vlaneseq
        %v2065 = vshrl.u32 %v2064, 7
        %v2066 = vsub.s32 0, %v2065
        %v2067 = vrot.slane %v2062, %v2066
        %v2068 = vlaneseq
        %v2069 = vshrl.u32 %v2068, 7
        %v2070 = vsub.s32 1, %v2069
        %v2071 = vrot.slane %v2062, %v2070
        %v2072 = vlaneseq
        %v2073 = vshrl.u32 %v2072, 7
        %v2074 = vsub.s32 2, %v2073
        %v2075 = vrot.slane %v2062, %v2074
        %v2076 = vlaneseq
        %v2077 = vshrl.u32 %v2076, 7
        %v2078 = vsub.s32 3, %v2077
        %v2079 = vrot.slane %v2062, %v2078
        %v2084 = vmul.f32 %v2021, %v2067
        %v2085 = vmul.f32 %v2034, %v2071
        %v2086 = vmul.f32 %v2047, %v2075
        %v2087 = vmul.f32 %v2060, %v2079
        %s2088 = scalar_lea.vmem [#allocation7], 4
        %v2089 = vld [vmem:[%s2088] sm:$0xf]
        %v2091 = vlaneseq
        %v2092 = vshrl.u32 %v2091, 7
        %v2093 = vsub.s32 0, %v2092
        %v2094 = vrot.slane %v2089, %v2093
        %v2095 = vlaneseq
        %v2096 = vshrl.u32 %v2095, 7
        %v2097 = vsub.s32 1, %v2096
        %v2098 = vrot.slane %v2089, %v2097
        %v2099 = vlaneseq
        %v2100 = vshrl.u32 %v2099, 7
        %v2101 = vsub.s32 2, %v2100
        %v2102 = vrot.slane %v2089, %v2101
        %v2103 = vlaneseq
        %v2104 = vshrl.u32 %v2103, 7
        %v2105 = vsub.s32 3, %v2104
        %v2106 = vrot.slane %v2089, %v2105
        %v2111 = vadd.f32 %v2084, %v2094
        %v2112 = vadd.f32 %v2085, %v2098
        %v2113 = vadd.f32 %v2086, %v2102
        %v2114 = vadd.f32 %v2087, %v2106
        %v2115 = vxor.u32 %v2111, 2147483648
        %v2116 = vxor.u32 %v2112, 2147483648
        %v2117 = vxor.u32 %v2113, 2147483648
        %v2118 = vxor.u32 %v2114, 2147483648
        %v2119 = vmul.f32 %v2115, 1.442695
        %v2120 = vpow.pop %v2119
        %v2121 = vmul.f32 %v2116, 1.442695
        %v2122 = vpow.pop %v2121
        %v2123 = vmul.f32 %v2117, 1.442695
        %v2124 = vpow.pop %v2123
        %v2125 = vmul.f32 %v2118, 1.442695
        %v2126 = vpow.pop %v2125
        %v2127 = vadd.f32 %v2120, 1.0
        %v2128 = vadd.f32 %v2122, 1.0
        %v2129 = vadd.f32 %v2124, 1.0
        %v2130 = vadd.f32 %v2126, 1.0
        %v2131 = vrcp.pop %v2127
        %v2132 = vmul.f32 1.0, %v2131
        %v2133 = vrcp.pop %v2128
        %v2134 = vmul.f32 1.0, %v2133
        %v2135 = vrcp.pop %v2129
        %v2136 = vmul.f32 1.0, %v2135
        %v2137 = vrcp.pop %v2130
        %v2138 = vmul.f32 1.0, %v2137
        %v2139 = vmul.f32 %v2111, %v2132
        %v2140 = vmul.f32 %v2112, %v2134
        %v2141 = vmul.f32 %v2113, %v2136
        %v2142 = vmul.f32 %v2114, %v2138
        %s2143 = scalar_lea.vmem [#allocation4], 1024
        %v2144 = vld [vmem:[%s2143] sm:$0xff]
        %v2145 = vld [vmem:[%s2143 + $0x8] sm:$0xff]
        %v2146 = vld [vmem:[%s2143 + $0x10] sm:$0xff]
        %v2147 = vld [vmem:[%s2143 + $0x18] sm:$0xff]
        %v2148 = vld [vmem:[%s2143 + $0x20] sm:$0xff]
        %v2149 = vld [vmem:[%s2143 + $0x28] sm:$0xff]
        %v2150 = vld [vmem:[%s2143 + $0x30] sm:$0xff]
        %v2151 = vld [vmem:[%s2143 + $0x38] sm:$0xff]
        %v2152 = vld [vmem:[%s2143 + $0x40] sm:$0xff]
        %v2153 = vld [vmem:[%s2143 + $0x48] sm:$0xff]
        %v2154 = vld [vmem:[%s2143 + $0x50] sm:$0xff]
        %v2155 = vld [vmem:[%s2143 + $0x58] sm:$0xff]
        %v2156 = vld [vmem:[%s2143 + $0x60] sm:$0xff]
        %v2157 = vld [vmem:[%s2143 + $0x68] sm:$0xff]
        %v2158 = vld [vmem:[%s2143 + $0x70] sm:$0xff]
        %v2159 = vld [vmem:[%s2143 + $0x78] sm:$0xff]
        %v2160 = vld [vmem:[%s2143 + $0x80] sm:$0xff]
        %v2161 = vld [vmem:[%s2143 + $0x88] sm:$0xff]
        %v2162 = vld [vmem:[%s2143 + $0x90] sm:$0xff]
        %v2163 = vld [vmem:[%s2143 + $0x98] sm:$0xff]
        %v2164 = vld [vmem:[%s2143 + $0xa0] sm:$0xff]
        %v2165 = vld [vmem:[%s2143 + $0xa8] sm:$0xff]
        %v2166 = vld [vmem:[%s2143 + $0xb0] sm:$0xff]
        %v2167 = vld [vmem:[%s2143 + $0xb8] sm:$0xff]
        %v2168 = vld [vmem:[%s2143 + $0xc0] sm:$0xff]
        %v2169 = vld [vmem:[%s2143 + $0xc8] sm:$0xff]
        %v2170 = vld [vmem:[%s2143 + $0xd0] sm:$0xff]
        %v2171 = vld [vmem:[%s2143 + $0xd8] sm:$0xff]
        %v2172 = vld [vmem:[%s2143 + $0xe0] sm:$0xff]
        %v2173 = vld [vmem:[%s2143 + $0xe8] sm:$0xff]
        %v2174 = vld [vmem:[%s2143 + $0xf0] sm:$0xff]
        %v2175 = vld [vmem:[%s2143 + $0xf8] sm:$0xff]
        %v2176 = vld [vmem:[%s2143 + $0x100] sm:$0xff]
        %v2177 = vld [vmem:[%s2143 + $0x108] sm:$0xff]
        %v2178 = vld [vmem:[%s2143 + $0x110] sm:$0xff]
        %v2179 = vld [vmem:[%s2143 + $0x118] sm:$0xff]
        %v2180 = vld [vmem:[%s2143 + $0x120] sm:$0xff]
        %v2181 = vld [vmem:[%s2143 + $0x128] sm:$0xff]
        %v2182 = vld [vmem:[%s2143 + $0x130] sm:$0xff]
        %v2183 = vld [vmem:[%s2143 + $0x138] sm:$0xff]
        %v2184 = vld [vmem:[%s2143 + $0x140] sm:$0xff]
        %v2185 = vld [vmem:[%s2143 + $0x148] sm:$0xff]
        %v2186 = vld [vmem:[%s2143 + $0x150] sm:$0xff]
        %v2187 = vld [vmem:[%s2143 + $0x158] sm:$0xff]
        %v2188 = vld [vmem:[%s2143 + $0x160] sm:$0xff]
        %v2189 = vld [vmem:[%s2143 + $0x168] sm:$0xff]
        %v2190 = vld [vmem:[%s2143 + $0x170] sm:$0xff]
        %v2191 = vld [vmem:[%s2143 + $0x178] sm:$0xff]
        %v2192 = vld [vmem:[%s2143 + $0x180] sm:$0xff]
        %v2193 = vld [vmem:[%s2143 + $0x188] sm:$0xff]
        %v2194 = vld [vmem:[%s2143 + $0x190] sm:$0xff]
        %v2195 = vld [vmem:[%s2143 + $0x198] sm:$0xff]
        %v2196 = vld [vmem:[%s2143 + $0x1a0] sm:$0xff]
        %v2197 = vld [vmem:[%s2143 + $0x1a8] sm:$0xff]
        %v2198 = vld [vmem:[%s2143 + $0x1b0] sm:$0xff]
        %v2199 = vld [vmem:[%s2143 + $0x1b8] sm:$0xff]
        %v2200 = vld [vmem:[%s2143 + $0x1c0] sm:$0xff]
        %v2201 = vld [vmem:[%s2143 + $0x1c8] sm:$0xff]
        %v2202 = vld [vmem:[%s2143 + $0x1d0] sm:$0xff]
        %v2203 = vld [vmem:[%s2143 + $0x1d8] sm:$0xff]
        %v2204 = vld [vmem:[%s2143 + $0x1e0] sm:$0xff]
        %v2205 = vld [vmem:[%s2143 + $0x1e8] sm:$0xff]
        %v2206 = vld [vmem:[%s2143 + $0x1f0] sm:$0xff]
        %v2207 = vld [vmem:[%s2143 + $0x1f8] sm:$0xff]
        %v2208 = vld [vmem:[%s2143 + $0x200] sm:$0xff]
        %v2209 = vld [vmem:[%s2143 + $0x208] sm:$0xff]
        %v2210 = vld [vmem:[%s2143 + $0x210] sm:$0xff]
        %v2211 = vld [vmem:[%s2143 + $0x218] sm:$0xff]
        %v2212 = vld [vmem:[%s2143 + $0x220] sm:$0xff]
        %v2213 = vld [vmem:[%s2143 + $0x228] sm:$0xff]
        %v2214 = vld [vmem:[%s2143 + $0x230] sm:$0xff]
        %v2215 = vld [vmem:[%s2143 + $0x238] sm:$0xff]
        %v2216 = vld [vmem:[%s2143 + $0x240] sm:$0xff]
        %v2217 = vld [vmem:[%s2143 + $0x248] sm:$0xff]
        %v2218 = vld [vmem:[%s2143 + $0x250] sm:$0xff]
        %v2219 = vld [vmem:[%s2143 + $0x258] sm:$0xff]
        %v2220 = vld [vmem:[%s2143 + $0x260] sm:$0xff]
        %v2221 = vld [vmem:[%s2143 + $0x268] sm:$0xff]
        %v2222 = vld [vmem:[%s2143 + $0x270] sm:$0xff]
        %v2223 = vld [vmem:[%s2143 + $0x278] sm:$0xff]
        %v2224 = vld [vmem:[%s2143 + $0x280] sm:$0xff]
        %v2225 = vld [vmem:[%s2143 + $0x288] sm:$0xff]
        %v2226 = vld [vmem:[%s2143 + $0x290] sm:$0xff]
        %v2227 = vld [vmem:[%s2143 + $0x298] sm:$0xff]
        %v2228 = vld [vmem:[%s2143 + $0x2a0] sm:$0xff]
        %v2229 = vld [vmem:[%s2143 + $0x2a8] sm:$0xff]
        %v2230 = vld [vmem:[%s2143 + $0x2b0] sm:$0xff]
        %v2231 = vld [vmem:[%s2143 + $0x2b8] sm:$0xff]
        %v2232 = vld [vmem:[%s2143 + $0x2c0] sm:$0xff]
        %v2233 = vld [vmem:[%s2143 + $0x2c8] sm:$0xff]
        %v2234 = vld [vmem:[%s2143 + $0x2d0] sm:$0xff]
        %v2235 = vld [vmem:[%s2143 + $0x2d8] sm:$0xff]
        %v2236 = vld [vmem:[%s2143 + $0x2e0] sm:$0xff]
        %v2237 = vld [vmem:[%s2143 + $0x2e8] sm:$0xff]
        %v2238 = vld [vmem:[%s2143 + $0x2f0] sm:$0xff]
        %v2239 = vld [vmem:[%s2143 + $0x2f8] sm:$0xff]
        %v2240 = vld [vmem:[%s2143 + $0x300] sm:$0xff]
        %v2241 = vld [vmem:[%s2143 + $0x308] sm:$0xff]
        %v2242 = vld [vmem:[%s2143 + $0x310] sm:$0xff]
        %v2243 = vld [vmem:[%s2143 + $0x318] sm:$0xff]
        %v2244 = vld [vmem:[%s2143 + $0x320] sm:$0xff]
        %v2245 = vld [vmem:[%s2143 + $0x328] sm:$0xff]
        %v2246 = vld [vmem:[%s2143 + $0x330] sm:$0xff]
        %v2247 = vld [vmem:[%s2143 + $0x338] sm:$0xff]
        %v2248 = vld [vmem:[%s2143 + $0x340] sm:$0xff]
        %v2249 = vld [vmem:[%s2143 + $0x348] sm:$0xff]
        %v2250 = vld [vmem:[%s2143 + $0x350] sm:$0xff]
        %v2251 = vld [vmem:[%s2143 + $0x358] sm:$0xff]
        %v2252 = vld [vmem:[%s2143 + $0x360] sm:$0xff]
        %v2253 = vld [vmem:[%s2143 + $0x368] sm:$0xff]
        %v2254 = vld [vmem:[%s2143 + $0x370] sm:$0xff]
        %v2255 = vld [vmem:[%s2143 + $0x378] sm:$0xff]
        %v2256 = vld [vmem:[%s2143 + $0x380] sm:$0xff]
        %v2257 = vld [vmem:[%s2143 + $0x388] sm:$0xff]
        %v2258 = vld [vmem:[%s2143 + $0x390] sm:$0xff]
        %v2259 = vld [vmem:[%s2143 + $0x398] sm:$0xff]
        %v2260 = vld [vmem:[%s2143 + $0x3a0] sm:$0xff]
        %v2261 = vld [vmem:[%s2143 + $0x3a8] sm:$0xff]
        %v2262 = vld [vmem:[%s2143 + $0x3b0] sm:$0xff]
        %v2263 = vld [vmem:[%s2143 + $0x3b8] sm:$0xff]
        %v2264 = vld [vmem:[%s2143 + $0x3c0] sm:$0xff]
        %v2265 = vld [vmem:[%s2143 + $0x3c8] sm:$0xff]
        %v2266 = vld [vmem:[%s2143 + $0x3d0] sm:$0xff]
        %v2267 = vld [vmem:[%s2143 + $0x3d8] sm:$0xff]
        %v2268 = vld [vmem:[%s2143 + $0x3e0] sm:$0xff]
        %v2269 = vld [vmem:[%s2143 + $0x3e8] sm:$0xff]
        %v2270 = vld [vmem:[%s2143 + $0x3f0] sm:$0xff]
        %v2271 = vld [vmem:[%s2143 + $0x3f8] sm:$0xff]
        %v2272 = vpack.c.bf16 %v2139, %v2139
        %v2273 = vpack.c.bf16 %v2140, %v2140
        %v2274 = vpack.c.bf16 %v2141, %v2141
        %v2275 = vpack.c.bf16 %v2142, %v2142
        %s2276 = scalar_lea.vmem [#allocation9], 4
        %v2277 = vld [vmem:[%s2276] sm:$0xf]
        %v2406 = vunpack.c.l.b16 %v2144
        %v2407 = vunpack.c.h.b16 %v2144
        %v2408 = vunpack.c.l.b16 %v2145
        %v2409 = vunpack.c.h.b16 %v2145
        %v2410 = vunpack.c.l.b16 %v2146
        %v2411 = vunpack.c.h.b16 %v2146
        %v2412 = vunpack.c.l.b16 %v2147
        %v2413 = vunpack.c.h.b16 %v2147
        %v2414 = vunpack.c.l.b16 %v2148
        %v2415 = vunpack.c.h.b16 %v2148
        %v2416 = vunpack.c.l.b16 %v2149
        %v2417 = vunpack.c.h.b16 %v2149
        %v2418 = vunpack.c.l.b16 %v2150
        %v2419 = vunpack.c.h.b16 %v2150
        %v2420 = vunpack.c.l.b16 %v2151
        %v2421 = vunpack.c.h.b16 %v2151
        %v2422 = vunpack.c.l.b16 %v2152
        %v2423 = vunpack.c.h.b16 %v2152
        %v2424 = vunpack.c.l.b16 %v2153
        %v2425 = vunpack.c.h.b16 %v2153
        %v2426 = vunpack.c.l.b16 %v2154
        %v2427 = vunpack.c.h.b16 %v2154
        %v2428 = vunpack.c.l.b16 %v2155
        %v2429 = vunpack.c.h.b16 %v2155
        %v2430 = vunpack.c.l.b16 %v2156
        %v2431 = vunpack.c.h.b16 %v2156
        %v2432 = vunpack.c.l.b16 %v2157
        %v2433 = vunpack.c.h.b16 %v2157
        %v2434 = vunpack.c.l.b16 %v2158
        %v2435 = vunpack.c.h.b16 %v2158
        %v2436 = vunpack.c.l.b16 %v2159
        %v2437 = vunpack.c.h.b16 %v2159
        %v2438 = vunpack.c.l.b16 %v2160
        %v2439 = vunpack.c.h.b16 %v2160
        %v2440 = vunpack.c.l.b16 %v2161
        %v2441 = vunpack.c.h.b16 %v2161
        %v2442 = vunpack.c.l.b16 %v2162
        %v2443 = vunpack.c.h.b16 %v2162
        %v2444 = vunpack.c.l.b16 %v2163
        %v2445 = vunpack.c.h.b16 %v2163
        %v2446 = vunpack.c.l.b16 %v2164
        %v2447 = vunpack.c.h.b16 %v2164
        %v2448 = vunpack.c.l.b16 %v2165
        %v2449 = vunpack.c.h.b16 %v2165
        %v2450 = vunpack.c.l.b16 %v2166
        %v2451 = vunpack.c.h.b16 %v2166
        %v2452 = vunpack.c.l.b16 %v2167
        %v2453 = vunpack.c.h.b16 %v2167
        %v2454 = vunpack.c.l.b16 %v2168
        %v2455 = vunpack.c.h.b16 %v2168
        %v2456 = vunpack.c.l.b16 %v2169
        %v2457 = vunpack.c.h.b16 %v2169
        %v2458 = vunpack.c.l.b16 %v2170
        %v2459 = vunpack.c.h.b16 %v2170
        %v2460 = vunpack.c.l.b16 %v2171
        %v2461 = vunpack.c.h.b16 %v2171
        %v2462 = vunpack.c.l.b16 %v2172
        %v2463 = vunpack.c.h.b16 %v2172
        %v2464 = vunpack.c.l.b16 %v2173
        %v2465 = vunpack.c.h.b16 %v2173
        %v2466 = vunpack.c.l.b16 %v2174
        %v2467 = vunpack.c.h.b16 %v2174
        %v2468 = vunpack.c.l.b16 %v2175
        %v2469 = vunpack.c.h.b16 %v2175
        %v2470 = vunpack.c.l.b16 %v2176
        %v2471 = vunpack.c.h.b16 %v2176
        %v2472 = vunpack.c.l.b16 %v2177
        %v2473 = vunpack.c.h.b16 %v2177
        %v2474 = vunpack.c.l.b16 %v2178
        %v2475 = vunpack.c.h.b16 %v2178
        %v2476 = vunpack.c.l.b16 %v2179
        %v2477 = vunpack.c.h.b16 %v2179
        %v2478 = vunpack.c.l.b16 %v2180
        %v2479 = vunpack.c.h.b16 %v2180
        %v2480 = vunpack.c.l.b16 %v2181
        %v2481 = vunpack.c.h.b16 %v2181
        %v2482 = vunpack.c.l.b16 %v2182
        %v2483 = vunpack.c.h.b16 %v2182
        %v2484 = vunpack.c.l.b16 %v2183
        %v2485 = vunpack.c.h.b16 %v2183
        %v2486 = vunpack.c.l.b16 %v2184
        %v2487 = vunpack.c.h.b16 %v2184
        %v2488 = vunpack.c.l.b16 %v2185
        %v2489 = vunpack.c.h.b16 %v2185
        %v2490 = vunpack.c.l.b16 %v2186
        %v2491 = vunpack.c.h.b16 %v2186
        %v2492 = vunpack.c.l.b16 %v2187
        %v2493 = vunpack.c.h.b16 %v2187
        %v2494 = vunpack.c.l.b16 %v2188
        %v2495 = vunpack.c.h.b16 %v2188
        %v2496 = vunpack.c.l.b16 %v2189
        %v2497 = vunpack.c.h.b16 %v2189
        %v2498 = vunpack.c.l.b16 %v2190
        %v2499 = vunpack.c.h.b16 %v2190
        %v2500 = vunpack.c.l.b16 %v2191
        %v2501 = vunpack.c.h.b16 %v2191
        %v2502 = vunpack.c.l.b16 %v2192
        %v2503 = vunpack.c.h.b16 %v2192
        %v2504 = vunpack.c.l.b16 %v2193
        %v2505 = vunpack.c.h.b16 %v2193
        %v2506 = vunpack.c.l.b16 %v2194
        %v2507 = vunpack.c.h.b16 %v2194
        %v2508 = vunpack.c.l.b16 %v2195
        %v2509 = vunpack.c.h.b16 %v2195
        %v2510 = vunpack.c.l.b16 %v2196
        %v2511 = vunpack.c.h.b16 %v2196
        %v2512 = vunpack.c.l.b16 %v2197
        %v2513 = vunpack.c.h.b16 %v2197
        %v2514 = vunpack.c.l.b16 %v2198
        %v2515 = vunpack.c.h.b16 %v2198
        %v2516 = vunpack.c.l.b16 %v2199
        %v2517 = vunpack.c.h.b16 %v2199
        %v2518 = vunpack.c.l.b16 %v2200
        %v2519 = vunpack.c.h.b16 %v2200
        %v2520 = vunpack.c.l.b16 %v2201
        %v2521 = vunpack.c.h.b16 %v2201
        %v2522 = vunpack.c.l.b16 %v2202
        %v2523 = vunpack.c.h.b16 %v2202
        %v2524 = vunpack.c.l.b16 %v2203
        %v2525 = vunpack.c.h.b16 %v2203
        %v2526 = vunpack.c.l.b16 %v2204
        %v2527 = vunpack.c.h.b16 %v2204
        %v2528 = vunpack.c.l.b16 %v2205
        %v2529 = vunpack.c.h.b16 %v2205
        %v2530 = vunpack.c.l.b16 %v2206
        %v2531 = vunpack.c.h.b16 %v2206
        %v2532 = vunpack.c.l.b16 %v2207
        %v2533 = vunpack.c.h.b16 %v2207
        %v2534 = vunpack.c.l.b16 %v2208
        %v2535 = vunpack.c.h.b16 %v2208
        %v2536 = vunpack.c.l.b16 %v2209
        %v2537 = vunpack.c.h.b16 %v2209
        %v2538 = vunpack.c.l.b16 %v2210
        %v2539 = vunpack.c.h.b16 %v2210
        %v2540 = vunpack.c.l.b16 %v2211
        %v2541 = vunpack.c.h.b16 %v2211
        %v2542 = vunpack.c.l.b16 %v2212
        %v2543 = vunpack.c.h.b16 %v2212
        %v2544 = vunpack.c.l.b16 %v2213
        %v2545 = vunpack.c.h.b16 %v2213
        %v2546 = vunpack.c.l.b16 %v2214
        %v2547 = vunpack.c.h.b16 %v2214
        %v2548 = vunpack.c.l.b16 %v2215
        %v2549 = vunpack.c.h.b16 %v2215
        %v2550 = vunpack.c.l.b16 %v2216
        %v2551 = vunpack.c.h.b16 %v2216
        %v2552 = vunpack.c.l.b16 %v2217
        %v2553 = vunpack.c.h.b16 %v2217
        %v2554 = vunpack.c.l.b16 %v2218
        %v2555 = vunpack.c.h.b16 %v2218
        %v2556 = vunpack.c.l.b16 %v2219
        %v2557 = vunpack.c.h.b16 %v2219
        %v2558 = vunpack.c.l.b16 %v2220
        %v2559 = vunpack.c.h.b16 %v2220
        %v2560 = vunpack.c.l.b16 %v2221
        %v2561 = vunpack.c.h.b16 %v2221
        %v2562 = vunpack.c.l.b16 %v2222
        %v2563 = vunpack.c.h.b16 %v2222
        %v2564 = vunpack.c.l.b16 %v2223
        %v2565 = vunpack.c.h.b16 %v2223
        %v2566 = vunpack.c.l.b16 %v2224
        %v2567 = vunpack.c.h.b16 %v2224
        %v2568 = vunpack.c.l.b16 %v2225
        %v2569 = vunpack.c.h.b16 %v2225
        %v2570 = vunpack.c.l.b16 %v2226
        %v2571 = vunpack.c.h.b16 %v2226
        %v2572 = vunpack.c.l.b16 %v2227
        %v2573 = vunpack.c.h.b16 %v2227
        %v2574 = vunpack.c.l.b16 %v2228
        %v2575 = vunpack.c.h.b16 %v2228
        %v2576 = vunpack.c.l.b16 %v2229
        %v2577 = vunpack.c.h.b16 %v2229
        %v2578 = vunpack.c.l.b16 %v2230
        %v2579 = vunpack.c.h.b16 %v2230
        %v2580 = vunpack.c.l.b16 %v2231
        %v2581 = vunpack.c.h.b16 %v2231
        %v2582 = vunpack.c.l.b16 %v2232
        %v2583 = vunpack.c.h.b16 %v2232
        %v2584 = vunpack.c.l.b16 %v2233
        %v2585 = vunpack.c.h.b16 %v2233
        %v2586 = vunpack.c.l.b16 %v2234
        %v2587 = vunpack.c.h.b16 %v2234
        %v2588 = vunpack.c.l.b16 %v2235
        %v2589 = vunpack.c.h.b16 %v2235
        %v2590 = vunpack.c.l.b16 %v2236
        %v2591 = vunpack.c.h.b16 %v2236
        %v2592 = vunpack.c.l.b16 %v2237
        %v2593 = vunpack.c.h.b16 %v2237
        %v2594 = vunpack.c.l.b16 %v2238
        %v2595 = vunpack.c.h.b16 %v2238
        %v2596 = vunpack.c.l.b16 %v2239
        %v2597 = vunpack.c.h.b16 %v2239
        %v2598 = vunpack.c.l.b16 %v2240
        %v2599 = vunpack.c.h.b16 %v2240
        %v2600 = vunpack.c.l.b16 %v2241
        %v2601 = vunpack.c.h.b16 %v2241
        %v2602 = vunpack.c.l.b16 %v2242
        %v2603 = vunpack.c.h.b16 %v2242
        %v2604 = vunpack.c.l.b16 %v2243
        %v2605 = vunpack.c.h.b16 %v2243
        %v2606 = vunpack.c.l.b16 %v2244
        %v2607 = vunpack.c.h.b16 %v2244
        %v2608 = vunpack.c.l.b16 %v2245
        %v2609 = vunpack.c.h.b16 %v2245
        %v2610 = vunpack.c.l.b16 %v2246
        %v2611 = vunpack.c.h.b16 %v2246
        %v2612 = vunpack.c.l.b16 %v2247
        %v2613 = vunpack.c.h.b16 %v2247
        %v2614 = vunpack.c.l.b16 %v2248
        %v2615 = vunpack.c.h.b16 %v2248
        %v2616 = vunpack.c.l.b16 %v2249
        %v2617 = vunpack.c.h.b16 %v2249
        %v2618 = vunpack.c.l.b16 %v2250
        %v2619 = vunpack.c.h.b16 %v2250
        %v2620 = vunpack.c.l.b16 %v2251
        %v2621 = vunpack.c.h.b16 %v2251
        %v2622 = vunpack.c.l.b16 %v2252
        %v2623 = vunpack.c.h.b16 %v2252
        %v2624 = vunpack.c.l.b16 %v2253
        %v2625 = vunpack.c.h.b16 %v2253
        %v2626 = vunpack.c.l.b16 %v2254
        %v2627 = vunpack.c.h.b16 %v2254
        %v2628 = vunpack.c.l.b16 %v2255
        %v2629 = vunpack.c.h.b16 %v2255
        %v2630 = vunpack.c.l.b16 %v2256
        %v2631 = vunpack.c.h.b16 %v2256
        %v2632 = vunpack.c.l.b16 %v2257
        %v2633 = vunpack.c.h.b16 %v2257
        %v2634 = vunpack.c.l.b16 %v2258
        %v2635 = vunpack.c.h.b16 %v2258
        %v2636 = vunpack.c.l.b16 %v2259
        %v2637 = vunpack.c.h.b16 %v2259
        %v2638 = vunpack.c.l.b16 %v2260
        %v2639 = vunpack.c.h.b16 %v2260
        %v2640 = vunpack.c.l.b16 %v2261
        %v2641 = vunpack.c.h.b16 %v2261
        %v2642 = vunpack.c.l.b16 %v2262
        %v2643 = vunpack.c.h.b16 %v2262
        %v2644 = vunpack.c.l.b16 %v2263
        %v2645 = vunpack.c.h.b16 %v2263
        %v2646 = vunpack.c.l.b16 %v2264
        %v2647 = vunpack.c.h.b16 %v2264
        %v2648 = vunpack.c.l.b16 %v2265
        %v2649 = vunpack.c.h.b16 %v2265
        %v2650 = vunpack.c.l.b16 %v2266
        %v2651 = vunpack.c.h.b16 %v2266
        %v2652 = vunpack.c.l.b16 %v2267
        %v2653 = vunpack.c.h.b16 %v2267
        %v2654 = vunpack.c.l.b16 %v2268
        %v2655 = vunpack.c.h.b16 %v2268
        %v2656 = vunpack.c.l.b16 %v2269
        %v2657 = vunpack.c.h.b16 %v2269
        %v2658 = vunpack.c.l.b16 %v2270
        %v2659 = vunpack.c.h.b16 %v2270
        %v2660 = vunpack.c.l.b16 %v2271
        %v2661 = vunpack.c.h.b16 %v2271
        %v2662 = vpack.c.b16 %v2410, %v2406
        %v2663 = vpack.c.b16 %v2411, %v2407
        %v2664 = vpack.c.b16 %v2412, %v2408
        %v2665 = vpack.c.b16 %v2413, %v2409
        %v2666 = vpack.c.b16 %v2418, %v2414
        %v2667 = vpack.c.b16 %v2419, %v2415
        %v2668 = vpack.c.b16 %v2420, %v2416
        %v2669 = vpack.c.b16 %v2421, %v2417
        %v2670 = vpack.c.b16 %v2426, %v2422
        %v2671 = vpack.c.b16 %v2427, %v2423
        %v2672 = vpack.c.b16 %v2428, %v2424
        %v2673 = vpack.c.b16 %v2429, %v2425
        %v2674 = vpack.c.b16 %v2434, %v2430
        %v2675 = vpack.c.b16 %v2435, %v2431
        %v2676 = vpack.c.b16 %v2436, %v2432
        %v2677 = vpack.c.b16 %v2437, %v2433
        %v2678 = vpack.c.b16 %v2442, %v2438
        %v2679 = vpack.c.b16 %v2443, %v2439
        %v2680 = vpack.c.b16 %v2444, %v2440
        %v2681 = vpack.c.b16 %v2445, %v2441
        %v2682 = vpack.c.b16 %v2450, %v2446
        %v2683 = vpack.c.b16 %v2451, %v2447
        %v2684 = vpack.c.b16 %v2452, %v2448
        %v2685 = vpack.c.b16 %v2453, %v2449
        %v2686 = vpack.c.b16 %v2458, %v2454
        %v2687 = vpack.c.b16 %v2459, %v2455
        %v2688 = vpack.c.b16 %v2460, %v2456
        %v2689 = vpack.c.b16 %v2461, %v2457
        %v2690 = vpack.c.b16 %v2466, %v2462
        %v2691 = vpack.c.b16 %v2467, %v2463
        %v2692 = vpack.c.b16 %v2468, %v2464
        %v2693 = vpack.c.b16 %v2469, %v2465
        %v2694 = vpack.c.b16 %v2474, %v2470
        %v2695 = vpack.c.b16 %v2475, %v2471
        %v2696 = vpack.c.b16 %v2476, %v2472
        %v2697 = vpack.c.b16 %v2477, %v2473
        %v2698 = vpack.c.b16 %v2482, %v2478
        %v2699 = vpack.c.b16 %v2483, %v2479
        %v2700 = vpack.c.b16 %v2484, %v2480
        %v2701 = vpack.c.b16 %v2485, %v2481
        %v2702 = vpack.c.b16 %v2490, %v2486
        %v2703 = vpack.c.b16 %v2491, %v2487
        %v2704 = vpack.c.b16 %v2492, %v2488
        %v2705 = vpack.c.b16 %v2493, %v2489
        %v2706 = vpack.c.b16 %v2498, %v2494
        %v2707 = vpack.c.b16 %v2499, %v2495
        %v2708 = vpack.c.b16 %v2500, %v2496
        %v2709 = vpack.c.b16 %v2501, %v2497
        %v2710 = vpack.c.b16 %v2506, %v2502
        %v2711 = vpack.c.b16 %v2507, %v2503
        %v2712 = vpack.c.b16 %v2508, %v2504
        %v2713 = vpack.c.b16 %v2509, %v2505
        %v2714 = vpack.c.b16 %v2514, %v2510
        %v2715 = vpack.c.b16 %v2515, %v2511
        %v2716 = vpack.c.b16 %v2516, %v2512
        %v2717 = vpack.c.b16 %v2517, %v2513
        %v2718 = vpack.c.b16 %v2522, %v2518
        %v2719 = vpack.c.b16 %v2523, %v2519
        %v2720 = vpack.c.b16 %v2524, %v2520
        %v2721 = vpack.c.b16 %v2525, %v2521
        %v2722 = vpack.c.b16 %v2530, %v2526
        %v2723 = vpack.c.b16 %v2531, %v2527
        %v2724 = vpack.c.b16 %v2532, %v2528
        %v2725 = vpack.c.b16 %v2533, %v2529
        %v2726 = vpack.c.b16 %v2538, %v2534
        %v2727 = vpack.c.b16 %v2539, %v2535
        %v2728 = vpack.c.b16 %v2540, %v2536
        %v2729 = vpack.c.b16 %v2541, %v2537
        %v2730 = vpack.c.b16 %v2546, %v2542
        %v2731 = vpack.c.b16 %v2547, %v2543
        %v2732 = vpack.c.b16 %v2548, %v2544
        %v2733 = vpack.c.b16 %v2549, %v2545
        %v2734 = vpack.c.b16 %v2554, %v2550
        %v2735 = vpack.c.b16 %v2555, %v2551
        %v2736 = vpack.c.b16 %v2556, %v2552
        %v2737 = vpack.c.b16 %v2557, %v2553
        %v2738 = vpack.c.b16 %v2562, %v2558
        %v2739 = vpack.c.b16 %v2563, %v2559
        %v2740 = vpack.c.b16 %v2564, %v2560
        %v2741 = vpack.c.b16 %v2565, %v2561
        %v2742 = vpack.c.b16 %v2570, %v2566
        %v2743 = vpack.c.b16 %v2571, %v2567
        %v2744 = vpack.c.b16 %v2572, %v2568
        %v2745 = vpack.c.b16 %v2573, %v2569
        %v2746 = vpack.c.b16 %v2578, %v2574
        %v2747 = vpack.c.b16 %v2579, %v2575
        %v2748 = vpack.c.b16 %v2580, %v2576
        %v2749 = vpack.c.b16 %v2581, %v2577
        %v2750 = vpack.c.b16 %v2586, %v2582
        %v2751 = vpack.c.b16 %v2587, %v2583
        %v2752 = vpack.c.b16 %v2588, %v2584
        %v2753 = vpack.c.b16 %v2589, %v2585
        %v2754 = vpack.c.b16 %v2594, %v2590
        %v2755 = vpack.c.b16 %v2595, %v2591
        %v2756 = vpack.c.b16 %v2596, %v2592
        %v2757 = vpack.c.b16 %v2597, %v2593
        %v2758 = vpack.c.b16 %v2602, %v2598
        %v2759 = vpack.c.b16 %v2603, %v2599
        %v2760 = vpack.c.b16 %v2604, %v2600
        %v2761 = vpack.c.b16 %v2605, %v2601
        %v2762 = vpack.c.b16 %v2610, %v2606
        %v2763 = vpack.c.b16 %v2611, %v2607
        %v2764 = vpack.c.b16 %v2612, %v2608
        %v2765 = vpack.c.b16 %v2613, %v2609
        %v2766 = vpack.c.b16 %v2618, %v2614
        %v2767 = vpack.c.b16 %v2619, %v2615
        %v2768 = vpack.c.b16 %v2620, %v2616
        %v2769 = vpack.c.b16 %v2621, %v2617
        %v2770 = vpack.c.b16 %v2626, %v2622
        %v2771 = vpack.c.b16 %v2627, %v2623
        %v2772 = vpack.c.b16 %v2628, %v2624
        %v2773 = vpack.c.b16 %v2629, %v2625
        %v2774 = vpack.c.b16 %v2634, %v2630
        %v2775 = vpack.c.b16 %v2635, %v2631
        %v2776 = vpack.c.b16 %v2636, %v2632
        %v2777 = vpack.c.b16 %v2637, %v2633
        %v2778 = vpack.c.b16 %v2642, %v2638
        %v2779 = vpack.c.b16 %v2643, %v2639
        %v2780 = vpack.c.b16 %v2644, %v2640
        %v2781 = vpack.c.b16 %v2645, %v2641
        %v2782 = vpack.c.b16 %v2650, %v2646
        %v2783 = vpack.c.b16 %v2651, %v2647
        %v2784 = vpack.c.b16 %v2652, %v2648
        %v2785 = vpack.c.b16 %v2653, %v2649
        %v2786 = vpack.c.b16 %v2658, %v2654
        %v2787 = vpack.c.b16 %v2659, %v2655
        %v2788 = vpack.c.b16 %v2660, %v2656
        %v2789 = vpack.c.b16 %v2661, %v2657
        %v2919 = vlaneseq
        %v2920 = vshrl.u32 %v2919, 7
        %v2921 = vsub.s32 0, %v2920
        %v2922 = vrot.slane %v2277, %v2921
        %v2923 = vlaneseq
        %v2924 = vshrl.u32 %v2923, 7
        %v2925 = vsub.s32 1, %v2924
        %v2926 = vrot.slane %v2277, %v2925
        %v2927 = vlaneseq
        %v2928 = vshrl.u32 %v2927, 7
        %v2929 = vsub.s32 2, %v2928
        %v2930 = vrot.slane %v2277, %v2929
        %v2931 = vlaneseq
        %v2932 = vshrl.u32 %v2931, 7
        %v2933 = vsub.s32 3, %v2932
        %v2934 = vrot.slane %v2277, %v2933
        %2939 = vmatprep.subr.bf16.mxu0 %v2663
        %2940 = vmatpush1.bf16.msra.mxu0 %v2662
        %2941 = vmatprep.subr.bf16.mxu0 %v2667
        %2942 = vmatpush1.bf16.msra.mxu0 %v2666
        %2943 = vmatprep.subr.bf16.mxu0 %v2671
        %2944 = vmatpush1.bf16.msra.mxu0 %v2670
        %2945 = vmatprep.subr.bf16.mxu0 %v2675
        %2946 = vmatpush1.bf16.msra.mxu0 %v2674
        %2947 = vmatprep.subr.bf16.mxu0 %v2679
        %2948 = vmatpush1.bf16.msra.mxu0 %v2678
        %2949 = vmatprep.subr.bf16.mxu0 %v2683
        %2950 = vmatpush1.bf16.msra.mxu0 %v2682
        %2951 = vmatprep.subr.bf16.mxu0 %v2687
        %2952 = vmatpush1.bf16.msra.mxu0 %v2686
        %2953 = vmatprep.subr.bf16.mxu0 %v2691
        %2954 = vmatpush1.bf16.msra.mxu0 %v2690
        %2955 = vmatprep.subr.bf16.mxu0 %v2695
        %2956 = vmatpush1.bf16.msra.mxu0 %v2694
        %2957 = vmatprep.subr.bf16.mxu0 %v2699
        %2958 = vmatpush1.bf16.msra.mxu0 %v2698
        %2959 = vmatprep.subr.bf16.mxu0 %v2703
        %2960 = vmatpush1.bf16.msra.mxu0 %v2702
        %2961 = vmatprep.subr.bf16.mxu0 %v2707
        %2962 = vmatpush1.bf16.msra.mxu0 %v2706
        %2963 = vmatprep.subr.bf16.mxu0 %v2711
        %2964 = vmatpush1.bf16.msra.mxu0 %v2710
        %2965 = vmatprep.subr.bf16.mxu0 %v2715
        %2966 = vmatpush1.bf16.msra.mxu0 %v2714
        %2967 = vmatprep.subr.bf16.mxu0 %v2719
        %2968 = vmatpush1.bf16.msra.mxu0 %v2718
        %2969 = vmatprep.subr.bf16.mxu0 %v2723
        %2970 = vmatpush1.bf16.msra.mxu0 %v2722
        %2971 = vmatprep.mubr.bf16.mxu0 %v2273
        %2972 = vmatmul.mubr.bf16.gmra.mrb[0].mxu0 %v2272
        %v2973 = vpop.f32.mrb[0].mxu0
        %v2974 = vadd.f32 %v2922, %v2973
        %v2975 = vpop.f32.mrb[0].mxu0
        %v2976 = vadd.f32 %v2926, %v2975
        %v2977 = vpop.f32.mrb[0].mxu0
        %v2978 = vpop.f32.mrb[0].mxu0
        %2979 = vdwg.mxu0
        %2980 = vmatprep.subr.bf16.mxu0 %v2727
        %2981 = vmatpush1.bf16.msra.mxu0 %v2726
        %2982 = vmatprep.subr.bf16.mxu0 %v2731
        %2983 = vmatpush1.bf16.msra.mxu0 %v2730
        %2984 = vmatprep.subr.bf16.mxu0 %v2735
        %2985 = vmatpush1.bf16.msra.mxu0 %v2734
        %2986 = vmatprep.subr.bf16.mxu0 %v2739
        %2987 = vmatpush1.bf16.msra.mxu0 %v2738
        %2988 = vmatprep.subr.bf16.mxu0 %v2743
        %2989 = vmatpush1.bf16.msra.mxu0 %v2742
        %2990 = vmatprep.subr.bf16.mxu0 %v2747
        %2991 = vmatpush1.bf16.msra.mxu0 %v2746
        %2992 = vmatprep.subr.bf16.mxu0 %v2751
        %2993 = vmatpush1.bf16.msra.mxu0 %v2750
        %2994 = vmatprep.subr.bf16.mxu0 %v2755
        %2995 = vmatpush1.bf16.msra.mxu0 %v2754
        %2996 = vmatprep.subr.bf16.mxu0 %v2759
        %2997 = vmatpush1.bf16.msra.mxu0 %v2758
        %2998 = vmatprep.subr.bf16.mxu0 %v2763
        %2999 = vmatpush1.bf16.msra.mxu0 %v2762
        %3000 = vmatprep.subr.bf16.mxu0 %v2767
        %3001 = vmatpush1.bf16.msra.mxu0 %v2766
        %3002 = vmatprep.subr.bf16.mxu0 %v2771
        %3003 = vmatpush1.bf16.msra.mxu0 %v2770
        %3004 = vmatprep.subr.bf16.mxu0 %v2775
        %3005 = vmatpush1.bf16.msra.mxu0 %v2774
        %3006 = vmatprep.subr.bf16.mxu0 %v2779
        %3007 = vmatpush1.bf16.msra.mxu0 %v2778
        %3008 = vmatprep.subr.bf16.mxu0 %v2783
        %3009 = vmatpush1.bf16.msra.mxu0 %v2782
        %3010 = vmatprep.subr.bf16.mxu0 %v2787
        %3011 = vmatpush1.bf16.msra.mxu0 %v2786
        %3012 = vmatprep.mubr.bf16.mxu0 %v2275
        %3013 = vmatmul.mubr.bf16.gmra.mrb[0].mxu0 %v2274
        %v3014 = vpop.f32.mrb[0].mxu0
        %v3015 = vadd.f32 %v2974, %v3014
        %v3016 = vpop.f32.mrb[0].mxu0
        %v3017 = vadd.f32 %v2976, %v3016
        %v3018 = vpop.f32.mrb[0].mxu0
        %v3019 = vpop.f32.mrb[0].mxu0
        %3020 = vdwg.mxu0
        %3021 = vmatprep.subr.bf16.mxu0 %v2665
        %3022 = vmatpush1.bf16.msra.mxu0 %v2664
        %3023 = vmatprep.subr.bf16.mxu0 %v2669
        %3024 = vmatpush1.bf16.msra.mxu0 %v2668
        %3025 = vmatprep.subr.bf16.mxu0 %v2673
        %3026 = vmatpush1.bf16.msra.mxu0 %v2672
        %3027 = vmatprep.subr.bf16.mxu0 %v2677
        %3028 = vmatpush1.bf16.msra.mxu0 %v2676
        %3029 = vmatprep.subr.bf16.mxu0 %v2681
        %3030 = vmatpush1.bf16.msra.mxu0 %v2680
        %3031 = vmatprep.subr.bf16.mxu0 %v2685
        %3032 = vmatpush1.bf16.msra.mxu0 %v2684
        %3033 = vmatprep.subr.bf16.mxu0 %v2689
        %3034 = vmatpush1.bf16.msra.mxu0 %v2688
        %3035 = vmatprep.subr.bf16.mxu0 %v2693
        %3036 = vmatpush1.bf16.msra.mxu0 %v2692
        %3037 = vmatprep.subr.bf16.mxu0 %v2697
        %3038 = vmatpush1.bf16.msra.mxu0 %v2696
        %3039 = vmatprep.subr.bf16.mxu0 %v2701
        %3040 = vmatpush1.bf16.msra.mxu0 %v2700
        %3041 = vmatprep.subr.bf16.mxu0 %v2705
        %3042 = vmatpush1.bf16.msra.mxu0 %v2704
        %3043 = vmatprep.subr.bf16.mxu0 %v2709
        %3044 = vmatpush1.bf16.msra.mxu0 %v2708
        %3045 = vmatprep.subr.bf16.mxu0 %v2713
        %3046 = vmatpush1.bf16.msra.mxu0 %v2712
        %3047 = vmatprep.subr.bf16.mxu0 %v2717
        %3048 = vmatpush1.bf16.msra.mxu0 %v2716
        %3049 = vmatprep.subr.bf16.mxu0 %v2721
        %3050 = vmatpush1.bf16.msra.mxu0 %v2720
        %3051 = vmatprep.subr.bf16.mxu0 %v2725
        %3052 = vmatpush1.bf16.msra.mxu0 %v2724
        %3053 = vmatprep.mubr.bf16.mxu0 %v2273
        %3054 = vmatmul.mubr.bf16.gmra.mrb[0].mxu0 %v2272
        %v3055 = vpop.f32.mrb[0].mxu0
        %v3056 = vadd.f32 %v2930, %v3055
        %v3057 = vpop.f32.mrb[0].mxu0
        %v3058 = vadd.f32 %v2934, %v3057
        %v3059 = vpop.f32.mrb[0].mxu0
        %v3060 = vpop.f32.mrb[0].mxu0
        %3061 = vdwg.mxu0
        %3062 = vmatprep.subr.bf16.mxu0 %v2729
        %3063 = vmatpush1.bf16.msra.mxu0 %v2728
        %3064 = vmatprep.subr.bf16.mxu0 %v2733
        %3065 = vmatpush1.bf16.msra.mxu0 %v2732
        %3066 = vmatprep.subr.bf16.mxu0 %v2737
        %3067 = vmatpush1.bf16.msra.mxu0 %v2736
        %3068 = vmatprep.subr.bf16.mxu0 %v2741
        %3069 = vmatpush1.bf16.msra.mxu0 %v2740
        %3070 = vmatprep.subr.bf16.mxu0 %v2745
        %3071 = vmatpush1.bf16.msra.mxu0 %v2744
        %3072 = vmatprep.subr.bf16.mxu0 %v2749
        %3073 = vmatpush1.bf16.msra.mxu0 %v2748
        %3074 = vmatprep.subr.bf16.mxu0 %v2753
        %3075 = vmatpush1.bf16.msra.mxu0 %v2752
        %3076 = vmatprep.subr.bf16.mxu0 %v2757
        %3077 = vmatpush1.bf16.msra.mxu0 %v2756
        %3078 = vmatprep.subr.bf16.mxu0 %v2761
        %3079 = vmatpush1.bf16.msra.mxu0 %v2760
        %3080 = vmatprep.subr.bf16.mxu0 %v2765
        %3081 = vmatpush1.bf16.msra.mxu0 %v2764
        %3082 = vmatprep.subr.bf16.mxu0 %v2769
        %3083 = vmatpush1.bf16.msra.mxu0 %v2768
        %3084 = vmatprep.subr.bf16.mxu0 %v2773
        %3085 = vmatpush1.bf16.msra.mxu0 %v2772
        %3086 = vmatprep.subr.bf16.mxu0 %v2777
        %3087 = vmatpush1.bf16.msra.mxu0 %v2776
        %3088 = vmatprep.subr.bf16.mxu0 %v2781
        %3089 = vmatpush1.bf16.msra.mxu0 %v2780
        %3090 = vmatprep.subr.bf16.mxu0 %v2785
        %3091 = vmatpush1.bf16.msra.mxu0 %v2784
        %3092 = vmatprep.subr.bf16.mxu0 %v2789
        %3093 = vmatpush1.bf16.msra.mxu0 %v2788
        %3094 = vmatprep.mubr.bf16.mxu0 %v2275
        %3095 = vmatmul.mubr.bf16.gmra.mrb[0].mxu0 %v2274
        %v3096 = vpop.f32.mrb[0].mxu0
        %v3097 = vadd.f32 %v3056, %v3096
        %v3098 = vpop.f32.mrb[0].mxu0
        %v3099 = vadd.f32 %v3058, %v3098
        %v3100 = vpop.f32.mrb[0].mxu0
        %v3101 = vpop.f32.mrb[0].mxu0
        %3102 = vdwg.mxu0
        %v3107 = vcombine.low %v3015, %v3017
        %v3108 = vcombine.low %v3097, %v3099
        %v3110 = vunpack.c.l.s4 1966171168
        %v3111 = vunpack.c.0.s8 %v3110
        %v3112 = vlaneseq
        %v3113 = vshrl.u32 %v3112, 7
        %v3114 = vsub.s32 %v3111, %v3113
        %v3115 = vrot.slane %v3107, %v3114
        %v3117 = vunpack.c.l.s4 1966171168
        %v3118 = vunpack.c.0.s8 %v3117
        %v3119 = vlaneseq
        %v3120 = vshrl.u32 %v3119, 7
        %v3121 = vsub.s32 %v3118, %v3120
        %v3122 = vrot.slane %v3108, %v3121
        %v3123 = vcombine.low %v3115, %v3122
        %v3125 = vunpack.c.l.s4 1966171168
        %v3126 = vunpack.c.0.s8 %v3125
        %v3127 = vlaneseq
        %v3128 = vshrl.u32 %v3127, 7
        %v3129 = vsub.s32 %v3126, %v3128
        %v3130 = vrot.slane %v3123, %v3129
        %v3132 = vadd.f32 %v894, %v3130
        %v3133 = vsel %vm895, %v3132, 0.0
        %3134 = vadd.xlane.f32.xlu0 %v3133
        %v3135 = vpop.xlane.xlu0 %3134
        %v3136 = vmul.f32 %v3135, %v899
        %v3137 = vsub.f32 %v3132, %v3136
        %v3138 = vmul.f32 %v3137, %v3137
        %v3139 = vsel %vm895, %v3138, 0.0
        %3140 = vadd.xlane.f32.xlu0 %v3139
        %v3141 = vpop.xlane.xlu0 %3140
        %v3142 = vmul.f32 %v3141, %v899
        %v3143 = vadd.f32 %v3142, 1e-05
        %v3144 = vrsqrt.pop %v3143
        %v3145 = vmul.f32 %v3137, %v3144
        %v3147 = vlaneseq
        %v3148 = vshrl.u32 %v3147, 7
        %v3149 = vsub.s32 1, %v3148
        %v3150 = vrot.slane %v3132, %v3149
        %v3152 = vsel %vm895, %v3150, 0.0
        %3153 = vadd.xlane.f32.xlu0 %v3152
        %v3154 = vpop.xlane.xlu0 %3153
        %v3155 = vmul.f32 %v3154, %v899
        %v3156 = vrot.slane %v3132, 1
        %v3158 = vsub.f32 %v3156, %v3155
        %v3159 = vmul.f32 %v3158, %v3158
        %v3160 = vsel %vm895, %v3159, 0.0
        %3161 = vadd.xlane.f32.xlu0 %v3160
        %v3162 = vpop.xlane.xlu0 %3161
        %v3163 = vmul.f32 %v3162, %v899
        %v3164 = vadd.f32 %v3163, 1e-05
        %v3165 = vrsqrt.pop %v3164
        %v3166 = vmul.f32 %v3158, %v3165
        %v3167 = vlaneseq
        %v3168 = vshrl.u32 %v3167, 7
        %v3169 = vsub.s32 2, %v3168
        %v3170 = vrot.slane %v3132, %v3169
        %v3172 = vsel %vm895, %v3170, 0.0
        %3173 = vadd.xlane.f32.xlu0 %v3172
        %v3174 = vpop.xlane.xlu0 %3173
        %v3175 = vmul.f32 %v3174, %v899
        %v3176 = vrot.slane %v3132, 2
        %v3178 = vsub.f32 %v3176, %v3175
        %v3179 = vmul.f32 %v3178, %v3178
        %v3180 = vsel %vm895, %v3179, 0.0
        %3181 = vadd.xlane.f32.xlu0 %v3180
        %v3182 = vpop.xlane.xlu0 %3181
        %v3183 = vmul.f32 %v3182, %v899
        %v3184 = vadd.f32 %v3183, 1e-05
        %v3185 = vrsqrt.pop %v3184
        %v3186 = vmul.f32 %v3178, %v3185
        %v3187 = vlaneseq
        %v3188 = vshrl.u32 %v3187, 7
        %v3189 = vsub.s32 3, %v3188
        %v3190 = vrot.slane %v3132, %v3189
        %v3192 = vsel %vm895, %v3190, 0.0
        %3193 = vadd.xlane.f32.xlu0 %v3192
        %v3194 = vpop.xlane.xlu0 %3193
        %v3195 = vmul.f32 %v3194, %v899
        %v3196 = vrot.slane %v3132, 3
        %v3198 = vsub.f32 %v3196, %v3195
        %v3199 = vmul.f32 %v3198, %v3198
        %v3200 = vsel %vm895, %v3199, 0.0
        %3201 = vadd.xlane.f32.xlu0 %v3200
        %v3202 = vpop.xlane.xlu0 %3201
        %v3203 = vmul.f32 %v3202, %v899
        %v3204 = vadd.f32 %v3203, 1e-05
        %v3205 = vrsqrt.pop %v3204
        %v3206 = vmul.f32 %v3198, %v3205
        %s3207 = scalar_lea.vmem [#allocation6], 8
        %v3208 = vld [vmem:[%s3207] sm:$0xf]
        %v3210 = vlaneseq
        %v3211 = vshrl.u32 %v3210, 7
        %v3212 = vsub.s32 0, %v3211
        %v3213 = vrot.slane %v3208, %v3212
        %v3214 = vlaneseq
        %v3215 = vshrl.u32 %v3214, 7
        %v3216 = vsub.s32 1, %v3215
        %v3217 = vrot.slane %v3208, %v3216
        %v3218 = vlaneseq
        %v3219 = vshrl.u32 %v3218, 7
        %v3220 = vsub.s32 2, %v3219
        %v3221 = vrot.slane %v3208, %v3220
        %v3222 = vlaneseq
        %v3223 = vshrl.u32 %v3222, 7
        %v3224 = vsub.s32 3, %v3223
        %v3225 = vrot.slane %v3208, %v3224
        %v3230 = vmul.f32 %v3145, %v3213
        %v3231 = vmul.f32 %v3166, %v3217
        %v3232 = vmul.f32 %v3186, %v3221
        %v3233 = vmul.f32 %v3206, %v3225
        %s3234 = scalar_lea.vmem [#allocation7], 8
        %v3235 = vld [vmem:[%s3234] sm:$0xf]
        %v3237 = vlaneseq
        %v3238 = vshrl.u32 %v3237, 7
        %v3239 = vsub.s32 0, %v3238
        %v3240 = vrot.slane %v3235, %v3239
        %v3241 = vlaneseq
        %v3242 = vshrl.u32 %v3241, 7
        %v3243 = vsub.s32 1, %v3242
        %v3244 = vrot.slane %v3235, %v3243
        %v3245 = vlaneseq
        %v3246 = vshrl.u32 %v3245, 7
        %v3247 = vsub.s32 2, %v3246
        %v3248 = vrot.slane %v3235, %v3247
        %v3249 = vlaneseq
        %v3250 = vshrl.u32 %v3249, 7
        %v3251 = vsub.s32 3, %v3250
        %v3252 = vrot.slane %v3235, %v3251
        %v3257 = vadd.f32 %v3230, %v3240
        %v3258 = vadd.f32 %v3231, %v3244
        %v3259 = vadd.f32 %v3232, %v3248
        %v3260 = vadd.f32 %v3233, %v3252
        %v3261 = vxor.u32 %v3257, 2147483648
        %v3262 = vxor.u32 %v3258, 2147483648
        %v3263 = vxor.u32 %v3259, 2147483648
        %v3264 = vxor.u32 %v3260, 2147483648
        %v3265 = vmul.f32 %v3261, 1.442695
        %v3266 = vpow.pop %v3265
        %v3267 = vmul.f32 %v3262, 1.442695
        %v3268 = vpow.pop %v3267
        %v3269 = vmul.f32 %v3263, 1.442695
        %v3270 = vpow.pop %v3269
        %v3271 = vmul.f32 %v3264, 1.442695
        %v3272 = vpow.pop %v3271
        %v3273 = vadd.f32 %v3266, 1.0
        %v3274 = vadd.f32 %v3268, 1.0
        %v3275 = vadd.f32 %v3270, 1.0
        %v3276 = vadd.f32 %v3272, 1.0
        %v3277 = vrcp.pop %v3273
        %v3278 = vmul.f32 1.0, %v3277
        %v3279 = vrcp.pop %v3274
        %v3280 = vmul.f32 1.0, %v3279
        %v3281 = vrcp.pop %v3275
        %v3282 = vmul.f32 1.0, %v3281
        %v3283 = vrcp.pop %v3276
        %v3284 = vmul.f32 1.0, %v3283
        %v3285 = vmul.f32 %v3257, %v3278
        %v3286 = vmul.f32 %v3258, %v3280
        %v3287 = vmul.f32 %v3259, %v3282
        %v3288 = vmul.f32 %v3260, %v3284
        %s3289 = scalar_lea.vmem [#allocation4], 2048
        %v3290 = vld [vmem:[%s3289] sm:$0xff]
        %v3291 = vld [vmem:[%s3289 + $0x8] sm:$0xff]
        %v3292 = vld [vmem:[%s3289 + $0x10] sm:$0xff]
        %v3293 = vld [vmem:[%s3289 + $0x18] sm:$0xff]
        %v3294 = vld [vmem:[%s3289 + $0x20] sm:$0xff]
        %v3295 = vld [vmem:[%s3289 + $0x28] sm:$0xff]
        %v3296 = vld [vmem:[%s3289 + $0x30] sm:$0xff]
        %v3297 = vld [vmem:[%s3289 + $0x38] sm:$0xff]
        %v3298 = vld [vmem:[%s3289 + $0x40] sm:$0xff]
        %v3299 = vld [vmem:[%s3289 + $0x48] sm:$0xff]
        %v3300 = vld [vmem:[%s3289 + $0x50] sm:$0xff]
        %v3301 = vld [vmem:[%s3289 + $0x58] sm:$0xff]
        %v3302 = vld [vmem:[%s3289 + $0x60] sm:$0xff]
        %v3303 = vld [vmem:[%s3289 + $0x68] sm:$0xff]
        %v3304 = vld [vmem:[%s3289 + $0x70] sm:$0xff]
        %v3305 = vld [vmem:[%s3289 + $0x78] sm:$0xff]
        %v3306 = vld [vmem:[%s3289 + $0x80] sm:$0xff]
        %v3307 = vld [vmem:[%s3289 + $0x88] sm:$0xff]
        %v3308 = vld [vmem:[%s3289 + $0x90] sm:$0xff]
        %v3309 = vld [vmem:[%s3289 + $0x98] sm:$0xff]
        %v3310 = vld [vmem:[%s3289 + $0xa0] sm:$0xff]
        %v3311 = vld [vmem:[%s3289 + $0xa8] sm:$0xff]
        %v3312 = vld [vmem:[%s3289 + $0xb0] sm:$0xff]
        %v3313 = vld [vmem:[%s3289 + $0xb8] sm:$0xff]
        %v3314 = vld [vmem:[%s3289 + $0xc0] sm:$0xff]
        %v3315 = vld [vmem:[%s3289 + $0xc8] sm:$0xff]
        %v3316 = vld [vmem:[%s3289 + $0xd0] sm:$0xff]
        %v3317 = vld [vmem:[%s3289 + $0xd8] sm:$0xff]
        %v3318 = vld [vmem:[%s3289 + $0xe0] sm:$0xff]
        %v3319 = vld [vmem:[%s3289 + $0xe8] sm:$0xff]
        %v3320 = vld [vmem:[%s3289 + $0xf0] sm:$0xff]
        %v3321 = vld [vmem:[%s3289 + $0xf8] sm:$0xff]
        %v3322 = vld [vmem:[%s3289 + $0x100] sm:$0xff]
        %v3323 = vld [vmem:[%s3289 + $0x108] sm:$0xff]
        %v3324 = vld [vmem:[%s3289 + $0x110] sm:$0xff]
        %v3325 = vld [vmem:[%s3289 + $0x118] sm:$0xff]
        %v3326 = vld [vmem:[%s3289 + $0x120] sm:$0xff]
        %v3327 = vld [vmem:[%s3289 + $0x128] sm:$0xff]
        %v3328 = vld [vmem:[%s3289 + $0x130] sm:$0xff]
        %v3329 = vld [vmem:[%s3289 + $0x138] sm:$0xff]
        %v3330 = vld [vmem:[%s3289 + $0x140] sm:$0xff]
        %v3331 = vld [vmem:[%s3289 + $0x148] sm:$0xff]
        %v3332 = vld [vmem:[%s3289 + $0x150] sm:$0xff]
        %v3333 = vld [vmem:[%s3289 + $0x158] sm:$0xff]
        %v3334 = vld [vmem:[%s3289 + $0x160] sm:$0xff]
        %v3335 = vld [vmem:[%s3289 + $0x168] sm:$0xff]
        %v3336 = vld [vmem:[%s3289 + $0x170] sm:$0xff]
        %v3337 = vld [vmem:[%s3289 + $0x178] sm:$0xff]
        %v3338 = vld [vmem:[%s3289 + $0x180] sm:$0xff]
        %v3339 = vld [vmem:[%s3289 + $0x188] sm:$0xff]
        %v3340 = vld [vmem:[%s3289 + $0x190] sm:$0xff]
        %v3341 = vld [vmem:[%s3289 + $0x198] sm:$0xff]
        %v3342 = vld [vmem:[%s3289 + $0x1a0] sm:$0xff]
        %v3343 = vld [vmem:[%s3289 + $0x1a8] sm:$0xff]
        %v3344 = vld [vmem:[%s3289 + $0x1b0] sm:$0xff]
        %v3345 = vld [vmem:[%s3289 + $0x1b8] sm:$0xff]
        %v3346 = vld [vmem:[%s3289 + $0x1c0] sm:$0xff]
        %v3347 = vld [vmem:[%s3289 + $0x1c8] sm:$0xff]
        %v3348 = vld [vmem:[%s3289 + $0x1d0] sm:$0xff]
        %v3349 = vld [vmem:[%s3289 + $0x1d8] sm:$0xff]
        %v3350 = vld [vmem:[%s3289 + $0x1e0] sm:$0xff]
        %v3351 = vld [vmem:[%s3289 + $0x1e8] sm:$0xff]
        %v3352 = vld [vmem:[%s3289 + $0x1f0] sm:$0xff]
        %v3353 = vld [vmem:[%s3289 + $0x1f8] sm:$0xff]
        %v3354 = vld [vmem:[%s3289 + $0x200] sm:$0xff]
        %v3355 = vld [vmem:[%s3289 + $0x208] sm:$0xff]
        %v3356 = vld [vmem:[%s3289 + $0x210] sm:$0xff]
        %v3357 = vld [vmem:[%s3289 + $0x218] sm:$0xff]
        %v3358 = vld [vmem:[%s3289 + $0x220] sm:$0xff]
        %v3359 = vld [vmem:[%s3289 + $0x228] sm:$0xff]
        %v3360 = vld [vmem:[%s3289 + $0x230] sm:$0xff]
        %v3361 = vld [vmem:[%s3289 + $0x238] sm:$0xff]
        %v3362 = vld [vmem:[%s3289 + $0x240] sm:$0xff]
        %v3363 = vld [vmem:[%s3289 + $0x248] sm:$0xff]
        %v3364 = vld [vmem:[%s3289 + $0x250] sm:$0xff]
        %v3365 = vld [vmem:[%s3289 + $0x258] sm:$0xff]
        %v3366 = vld [vmem:[%s3289 + $0x260] sm:$0xff]
        %v3367 = vld [vmem:[%s3289 + $0x268] sm:$0xff]
        %v3368 = vld [vmem:[%s3289 + $0x270] sm:$0xff]
        %v3369 = vld [vmem:[%s3289 + $0x278] sm:$0xff]
        %v3370 = vld [vmem:[%s3289 + $0x280] sm:$0xff]
        %v3371 = vld [vmem:[%s3289 + $0x288] sm:$0xff]
        %v3372 = vld [vmem:[%s3289 + $0x290] sm:$0xff]
        %v3373 = vld [vmem:[%s3289 + $0x298] sm:$0xff]
        %v3374 = vld [vmem:[%s3289 + $0x2a0] sm:$0xff]
        %v3375 = vld [vmem:[%s3289 + $0x2a8] sm:$0xff]
        %v3376 = vld [vmem:[%s3289 + $0x2b0] sm:$0xff]
        %v3377 = vld [vmem:[%s3289 + $0x2b8] sm:$0xff]
        %v3378 = vld [vmem:[%s3289 + $0x2c0] sm:$0xff]
        %v3379 = vld [vmem:[%s3289 + $0x2c8] sm:$0xff]
        %v3380 = vld [vmem:[%s3289 + $0x2d0] sm:$0xff]
        %v3381 = vld [vmem:[%s3289 + $0x2d8] sm:$0xff]
        %v3382 = vld [vmem:[%s3289 + $0x2e0] sm:$0xff]
        %v3383 = vld [vmem:[%s3289 + $0x2e8] sm:$0xff]
        %v3384 = vld [vmem:[%s3289 + $0x2f0] sm:$0xff]
        %v3385 = vld [vmem:[%s3289 + $0x2f8] sm:$0xff]
        %v3386 = vld [vmem:[%s3289 + $0x300] sm:$0xff]
        %v3387 = vld [vmem:[%s3289 + $0x308] sm:$0xff]
        %v3388 = vld [vmem:[%s3289 + $0x310] sm:$0xff]
        %v3389 = vld [vmem:[%s3289 + $0x318] sm:$0xff]
        %v3390 = vld [vmem:[%s3289 + $0x320] sm:$0xff]
        %v3391 = vld [vmem:[%s3289 + $0x328] sm:$0xff]
        %v3392 = vld [vmem:[%s3289 + $0x330] sm:$0xff]
        %v3393 = vld [vmem:[%s3289 + $0x338] sm:$0xff]
        %v3394 = vld [vmem:[%s3289 + $0x340] sm:$0xff]
        %v3395 = vld [vmem:[%s3289 + $0x348] sm:$0xff]
        %v3396 = vld [vmem:[%s3289 + $0x350] sm:$0xff]
        %v3397 = vld [vmem:[%s3289 + $0x358] sm:$0xff]
        %v3398 = vld [vmem:[%s3289 + $0x360] sm:$0xff]
        %v3399 = vld [vmem:[%s3289 + $0x368] sm:$0xff]
        %v3400 = vld [vmem:[%s3289 + $0x370] sm:$0xff]
        %v3401 = vld [vmem:[%s3289 + $0x378] sm:$0xff]
        %v3402 = vld [vmem:[%s3289 + $0x380] sm:$0xff]
        %v3403 = vld [vmem:[%s3289 + $0x388] sm:$0xff]
        %v3404 = vld [vmem:[%s3289 + $0x390] sm:$0xff]
        %v3405 = vld [vmem:[%s3289 + $0x398] sm:$0xff]
        %v3406 = vld [vmem:[%s3289 + $0x3a0] sm:$0xff]
        %v3407 = vld [vmem:[%s3289 + $0x3a8] sm:$0xff]
        %v3408 = vld [vmem:[%s3289 + $0x3b0] sm:$0xff]
        %v3409 = vld [vmem:[%s3289 + $0x3b8] sm:$0xff]
        %v3410 = vld [vmem:[%s3289 + $0x3c0] sm:$0xff]
        %v3411 = vld [vmem:[%s3289 + $0x3c8] sm:$0xff]
        %v3412 = vld [vmem:[%s3289 + $0x3d0] sm:$0xff]
        %v3413 = vld [vmem:[%s3289 + $0x3d8] sm:$0xff]
        %v3414 = vld [vmem:[%s3289 + $0x3e0] sm:$0xff]
        %v3415 = vld [vmem:[%s3289 + $0x3e8] sm:$0xff]
        %v3416 = vld [vmem:[%s3289 + $0x3f0] sm:$0xff]
        %v3417 = vld [vmem:[%s3289 + $0x3f8] sm:$0xff]
        %v3418 = vpack.c.bf16 %v3285, %v3285
        %v3419 = vpack.c.bf16 %v3286, %v3286
        %v3420 = vpack.c.bf16 %v3287, %v3287
        %v3421 = vpack.c.bf16 %v3288, %v3288
        %s3422 = scalar_lea.vmem [#allocation9], 8
        %v3423 = vld [vmem:[%s3422] sm:$0xf]
        %v3552 = vunpack.c.l.b16 %v3290
        %v3553 = vunpack.c.h.b16 %v3290
        %v3554 = vunpack.c.l.b16 %v3291
        %v3555 = vunpack.c.h.b16 %v3291
        %v3556 = vunpack.c.l.b16 %v3292
        %v3557 = vunpack.c.h.b16 %v3292
        %v3558 = vunpack.c.l.b16 %v3293
        %v3559 = vunpack.c.h.b16 %v3293
        %v3560 = vunpack.c.l.b16 %v3294
        %v3561 = vunpack.c.h.b16 %v3294
        %v3562 = vunpack.c.l.b16 %v3295
        %v3563 = vunpack.c.h.b16 %v3295
        %v3564 = vunpack.c.l.b16 %v3296
        %v3565 = vunpack.c.h.b16 %v3296
        %v3566 = vunpack.c.l.b16 %v3297
        %v3567 = vunpack.c.h.b16 %v3297
        %v3568 = vunpack.c.l.b16 %v3298
        %v3569 = vunpack.c.h.b16 %v3298
        %v3570 = vunpack.c.l.b16 %v3299
        %v3571 = vunpack.c.h.b16 %v3299
        %v3572 = vunpack.c.l.b16 %v3300
        %v3573 = vunpack.c.h.b16 %v3300
        %v3574 = vunpack.c.l.b16 %v3301
        %v3575 = vunpack.c.h.b16 %v3301
        %v3576 = vunpack.c.l.b16 %v3302
        %v3577 = vunpack.c.h.b16 %v3302
        %v3578 = vunpack.c.l.b16 %v3303
        %v3579 = vunpack.c.h.b16 %v3303
        %v3580 = vunpack.c.l.b16 %v3304
        %v3581 = vunpack.c.h.b16 %v3304
        %v3582 = vunpack.c.l.b16 %v3305
        %v3583 = vunpack.c.h.b16 %v3305
        %v3584 = vunpack.c.l.b16 %v3306
        %v3585 = vunpack.c.h.b16 %v3306
        %v3586 = vunpack.c.l.b16 %v3307
        %v3587 = vunpack.c.h.b16 %v3307
        %v3588 = vunpack.c.l.b16 %v3308
        %v3589 = vunpack.c.h.b16 %v3308
        %v3590 = vunpack.c.l.b16 %v3309
        %v3591 = vunpack.c.h.b16 %v3309
        %v3592 = vunpack.c.l.b16 %v3310
        %v3593 = vunpack.c.h.b16 %v3310
        %v3594 = vunpack.c.l.b16 %v3311
        %v3595 = vunpack.c.h.b16 %v3311
        %v3596 = vunpack.c.l.b16 %v3312
        %v3597 = vunpack.c.h.b16 %v3312
        %v3598 = vunpack.c.l.b16 %v3313
        %v3599 = vunpack.c.h.b16 %v3313
        %v3600 = vunpack.c.l.b16 %v3314
        %v3601 = vunpack.c.h.b16 %v3314
        %v3602 = vunpack.c.l.b16 %v3315
        %v3603 = vunpack.c.h.b16 %v3315
        %v3604 = vunpack.c.l.b16 %v3316
        %v3605 = vunpack.c.h.b16 %v3316
        %v3606 = vunpack.c.l.b16 %v3317
        %v3607 = vunpack.c.h.b16 %v3317
        %v3608 = vunpack.c.l.b16 %v3318
        %v3609 = vunpack.c.h.b16 %v3318
        %v3610 = vunpack.c.l.b16 %v3319
        %v3611 = vunpack.c.h.b16 %v3319
        %v3612 = vunpack.c.l.b16 %v3320
        %v3613 = vunpack.c.h.b16 %v3320
        %v3614 = vunpack.c.l.b16 %v3321
        %v3615 = vunpack.c.h.b16 %v3321
        %v3616 = vunpack.c.l.b16 %v3322
        %v3617 = vunpack.c.h.b16 %v3322
        %v3618 = vunpack.c.l.b16 %v3323
        %v3619 = vunpack.c.h.b16 %v3323
        %v3620 = vunpack.c.l.b16 %v3324
        %v3621 = vunpack.c.h.b16 %v3324
        %v3622 = vunpack.c.l.b16 %v3325
        %v3623 = vunpack.c.h.b16 %v3325
        %v3624 = vunpack.c.l.b16 %v3326
        %v3625 = vunpack.c.h.b16 %v3326
        %v3626 = vunpack.c.l.b16 %v3327
        %v3627 = vunpack.c.h.b16 %v3327
        %v3628 = vunpack.c.l.b16 %v3328
        %v3629 = vunpack.c.h.b16 %v3328
        %v3630 = vunpack.c.l.b16 %v3329
        %v3631 = vunpack.c.h.b16 %v3329
        %v3632 = vunpack.c.l.b16 %v3330
        %v3633 = vunpack.c.h.b16 %v3330
        %v3634 = vunpack.c.l.b16 %v3331
        %v3635 = vunpack.c.h.b16 %v3331
        %v3636 = vunpack.c.l.b16 %v3332
        %v3637 = vunpack.c.h.b16 %v3332
        %v3638 = vunpack.c.l.b16 %v3333
        %v3639 = vunpack.c.h.b16 %v3333
        %v3640 = vunpack.c.l.b16 %v3334
        %v3641 = vunpack.c.h.b16 %v3334
        %v3642 = vunpack.c.l.b16 %v3335
        %v3643 = vunpack.c.h.b16 %v3335
        %v3644 = vunpack.c.l.b16 %v3336
        %v3645 = vunpack.c.h.b16 %v3336
        %v3646 = vunpack.c.l.b16 %v3337
        %v3647 = vunpack.c.h.b16 %v3337
        %v3648 = vunpack.c.l.b16 %v3338
        %v3649 = vunpack.c.h.b16 %v3338
        %v3650 = vunpack.c.l.b16 %v3339
        %v3651 = vunpack.c.h.b16 %v3339
        %v3652 = vunpack.c.l.b16 %v3340
        %v3653 = vunpack.c.h.b16 %v3340
        %v3654 = vunpack.c.l.b16 %v3341
        %v3655 = vunpack.c.h.b16 %v3341
        %v3656 = vunpack.c.l.b16 %v3342
        %v3657 = vunpack.c.h.b16 %v3342
        %v3658 = vunpack.c.l.b16 %v3343
        %v3659 = vunpack.c.h.b16 %v3343
        %v3660 = vunpack.c.l.b16 %v3344
        %v3661 = vunpack.c.h.b16 %v3344
        %v3662 = vunpack.c.l.b16 %v3345
        %v3663 = vunpack.c.h.b16 %v3345
        %v3664 = vunpack.c.l.b16 %v3346
        %v3665 = vunpack.c.h.b16 %v3346
        %v3666 = vunpack.c.l.b16 %v3347
        %v3667 = vunpack.c.h.b16 %v3347
        %v3668 = vunpack.c.l.b16 %v3348
        %v3669 = vunpack.c.h.b16 %v3348
        %v3670 = vunpack.c.l.b16 %v3349
        %v3671 = vunpack.c.h.b16 %v3349
        %v3672 = vunpack.c.l.b16 %v3350
        %v3673 = vunpack.c.h.b16 %v3350
        %v3674 = vunpack.c.l.b16 %v3351
        %v3675 = vunpack.c.h.b16 %v3351
        %v3676 = vunpack.c.l.b16 %v3352
        %v3677 = vunpack.c.h.b16 %v3352
        %v3678 = vunpack.c.l.b16 %v3353
        %v3679 = vunpack.c.h.b16 %v3353
        %v3680 = vunpack.c.l.b16 %v3354
        %v3681 = vunpack.c.h.b16 %v3354
        %v3682 = vunpack.c.l.b16 %v3355
        %v3683 = vunpack.c.h.b16 %v3355
        %v3684 = vunpack.c.l.b16 %v3356
        %v3685 = vunpack.c.h.b16 %v3356
        %v3686 = vunpack.c.l.b16 %v3357
        %v3687 = vunpack.c.h.b16 %v3357
        %v3688 = vunpack.c.l.b16 %v3358
        %v3689 = vunpack.c.h.b16 %v3358
        %v3690 = vunpack.c.l.b16 %v3359
        %v3691 = vunpack.c.h.b16 %v3359
        %v3692 = vunpack.c.l.b16 %v3360
        %v3693 = vunpack.c.h.b16 %v3360
        %v3694 = vunpack.c.l.b16 %v3361
        %v3695 = vunpack.c.h.b16 %v3361
        %v3696 = vunpack.c.l.b16 %v3362
        %v3697 = vunpack.c.h.b16 %v3362
        %v3698 = vunpack.c.l.b16 %v3363
        %v3699 = vunpack.c.h.b16 %v3363
        %v3700 = vunpack.c.l.b16 %v3364
        %v3701 = vunpack.c.h.b16 %v3364
        %v3702 = vunpack.c.l.b16 %v3365
        %v3703 = vunpack.c.h.b16 %v3365
        %v3704 = vunpack.c.l.b16 %v3366
        %v3705 = vunpack.c.h.b16 %v3366
        %v3706 = vunpack.c.l.b16 %v3367
        %v3707 = vunpack.c.h.b16 %v3367
        %v3708 = vunpack.c.l.b16 %v3368
        %v3709 = vunpack.c.h.b16 %v3368
        %v3710 = vunpack.c.l.b16 %v3369
        %v3711 = vunpack.c.h.b16 %v3369
        %v3712 = vunpack.c.l.b16 %v3370
        %v3713 = vunpack.c.h.b16 %v3370
        %v3714 = vunpack.c.l.b16 %v3371
        %v3715 = vunpack.c.h.b16 %v3371
        %v3716 = vunpack.c.l.b16 %v3372
        %v3717 = vunpack.c.h.b16 %v3372
        %v3718 = vunpack.c.l.b16 %v3373
        %v3719 = vunpack.c.h.b16 %v3373
        %v3720 = vunpack.c.l.b16 %v3374
        %v3721 = vunpack.c.h.b16 %v3374
        %v3722 = vunpack.c.l.b16 %v3375
        %v3723 = vunpack.c.h.b16 %v3375
        %v3724 = vunpack.c.l.b16 %v3376
        %v3725 = vunpack.c.h.b16 %v3376
        %v3726 = vunpack.c.l.b16 %v3377
        %v3727 = vunpack.c.h.b16 %v3377
        %v3728 = vunpack.c.l.b16 %v3378
        %v3729 = vunpack.c.h.b16 %v3378
        %v3730 = vunpack.c.l.b16 %v3379
        %v3731 = vunpack.c.h.b16 %v3379
        %v3732 = vunpack.c.l.b16 %v3380
        %v3733 = vunpack.c.h.b16 %v3380
        %v3734 = vunpack.c.l.b16 %v3381
        %v3735 = vunpack.c.h.b16 %v3381
        %v3736 = vunpack.c.l.b16 %v3382
        %v3737 = vunpack.c.h.b16 %v3382
        %v3738 = vunpack.c.l.b16 %v3383
        %v3739 = vunpack.c.h.b16 %v3383
        %v3740 = vunpack.c.l.b16 %v3384
        %v3741 = vunpack.c.h.b16 %v3384
        %v3742 = vunpack.c.l.b16 %v3385
        %v3743 = vunpack.c.h.b16 %v3385
        %v3744 = vunpack.c.l.b16 %v3386
        %v3745 = vunpack.c.h.b16 %v3386
        %v3746 = vunpack.c.l.b16 %v3387
        %v3747 = vunpack.c.h.b16 %v3387
        %v3748 = vunpack.c.l.b16 %v3388
        %v3749 = vunpack.c.h.b16 %v3388
        %v3750 = vunpack.c.l.b16 %v3389
        %v3751 = vunpack.c.h.b16 %v3389
        %v3752 = vunpack.c.l.b16 %v3390
        %v3753 = vunpack.c.h.b16 %v3390
        %v3754 = vunpack.c.l.b16 %v3391
        %v3755 = vunpack.c.h.b16 %v3391
        %v3756 = vunpack.c.l.b16 %v3392
        %v3757 = vunpack.c.h.b16 %v3392
        %v3758 = vunpack.c.l.b16 %v3393
        %v3759 = vunpack.c.h.b16 %v3393
        %v3760 = vunpack.c.l.b16 %v3394
        %v3761 = vunpack.c.h.b16 %v3394
        %v3762 = vunpack.c.l.b16 %v3395
        %v3763 = vunpack.c.h.b16 %v3395
        %v3764 = vunpack.c.l.b16 %v3396
        %v3765 = vunpack.c.h.b16 %v3396
        %v3766 = vunpack.c.l.b16 %v3397
        %v3767 = vunpack.c.h.b16 %v3397
        %v3768 = vunpack.c.l.b16 %v3398
        %v3769 = vunpack.c.h.b16 %v3398
        %v3770 = vunpack.c.l.b16 %v3399
        %v3771 = vunpack.c.h.b16 %v3399
        %v3772 = vunpack.c.l.b16 %v3400
        %v3773 = vunpack.c.h.b16 %v3400
        %v3774 = vunpack.c.l.b16 %v3401
        %v3775 = vunpack.c.h.b16 %v3401
        %v3776 = vunpack.c.l.b16 %v3402
        %v3777 = vunpack.c.h.b16 %v3402
        %v3778 = vunpack.c.l.b16 %v3403
        %v3779 = vunpack.c.h.b16 %v3403
        %v3780 = vunpack.c.l.b16 %v3404
        %v3781 = vunpack.c.h.b16 %v3404
        %v3782 = vunpack.c.l.b16 %v3405
        %v3783 = vunpack.c.h.b16 %v3405
        %v3784 = vunpack.c.l.b16 %v3406
        %v3785 = vunpack.c.h.b16 %v3406
        %v3786 = vunpack.c.l.b16 %v3407
        %v3787 = vunpack.c.h.b16 %v3407
        %v3788 = vunpack.c.l.b16 %v3408
        %v3789 = vunpack.c.h.b16 %v3408
        %v3790 = vunpack.c.l.b16 %v3409
        %v3791 = vunpack.c.h.b16 %v3409
        %v3792 = vunpack.c.l.b16 %v3410
        %v3793 = vunpack.c.h.b16 %v3410
        %v3794 = vunpack.c.l.b16 %v3411
        %v3795 = vunpack.c.h.b16 %v3411
        %v3796 = vunpack.c.l.b16 %v3412
        %v3797 = vunpack.c.h.b16 %v3412
        %v3798 = vunpack.c.l.b16 %v3413
        %v3799 = vunpack.c.h.b16 %v3413
        %v3800 = vunpack.c.l.b16 %v3414
        %v3801 = vunpack.c.h.b16 %v3414
        %v3802 = vunpack.c.l.b16 %v3415
        %v3803 = vunpack.c.h.b16 %v3415
        %v3804 = vunpack.c.l.b16 %v3416
        %v3805 = vunpack.c.h.b16 %v3416
        %v3806 = vunpack.c.l.b16 %v3417
        %v3807 = vunpack.c.h.b16 %v3417
        %v3808 = vpack.c.b16 %v3556, %v3552
        %v3809 = vpack.c.b16 %v3557, %v3553
        %v3810 = vpack.c.b16 %v3558, %v3554
        %v3811 = vpack.c.b16 %v3559, %v3555
        %v3812 = vpack.c.b16 %v3564, %v3560
        %v3813 = vpack.c.b16 %v3565, %v3561
        %v3814 = vpack.c.b16 %v3566, %v3562
        %v3815 = vpack.c.b16 %v3567, %v3563
        %v3816 = vpack.c.b16 %v3572, %v3568
        %v3817 = vpack.c.b16 %v3573, %v3569
        %v3818 = vpack.c.b16 %v3574, %v3570
        %v3819 = vpack.c.b16 %v3575, %v3571
        %v3820 = vpack.c.b16 %v3580, %v3576
        %v3821 = vpack.c.b16 %v3581, %v3577
        %v3822 = vpack.c.b16 %v3582, %v3578
        %v3823 = vpack.c.b16 %v3583, %v3579
        %v3824 = vpack.c.b16 %v3588, %v3584
        %v3825 = vpack.c.b16 %v3589, %v3585
        %v3826 = vpack.c.b16 %v3590, %v3586
        %v3827 = vpack.c.b16 %v3591, %v3587
        %v3828 = vpack.c.b16 %v3596, %v3592
        %v3829 = vpack.c.b16 %v3597, %v3593
        %v3830 = vpack.c.b16 %v3598, %v3594
        %v3831 = vpack.c.b16 %v3599, %v3595
        %v3832 = vpack.c.b16 %v3604, %v3600
        %v3833 = vpack.c.b16 %v3605, %v3601
        %v3834 = vpack.c.b16 %v3606, %v3602
        %v3835 = vpack.c.b16 %v3607, %v3603
        %v3836 = vpack.c.b16 %v3612, %v3608
        %v3837 = vpack.c.b16 %v3613, %v3609
        %v3838 = vpack.c.b16 %v3614, %v3610
        %v3839 = vpack.c.b16 %v3615, %v3611
        %v3840 = vpack.c.b16 %v3620, %v3616
        %v3841 = vpack.c.b16 %v3621, %v3617
        %v3842 = vpack.c.b16 %v3622, %v3618
        %v3843 = vpack.c.b16 %v3623, %v3619
        %v3844 = vpack.c.b16 %v3628, %v3624
        %v3845 = vpack.c.b16 %v3629, %v3625
        %v3846 = vpack.c.b16 %v3630, %v3626
        %v3847 = vpack.c.b16 %v3631, %v3627
        %v3848 = vpack.c.b16 %v3636, %v3632
        %v3849 = vpack.c.b16 %v3637, %v3633
        %v3850 = vpack.c.b16 %v3638, %v3634
        %v3851 = vpack.c.b16 %v3639, %v3635
        %v3852 = vpack.c.b16 %v3644, %v3640
        %v3853 = vpack.c.b16 %v3645, %v3641
        %v3854 = vpack.c.b16 %v3646, %v3642
        %v3855 = vpack.c.b16 %v3647, %v3643
        %v3856 = vpack.c.b16 %v3652, %v3648
        %v3857 = vpack.c.b16 %v3653, %v3649
        %v3858 = vpack.c.b16 %v3654, %v3650
        %v3859 = vpack.c.b16 %v3655, %v3651
        %v3860 = vpack.c.b16 %v3660, %v3656
        %v3861 = vpack.c.b16 %v3661, %v3657
        %v3862 = vpack.c.b16 %v3662, %v3658
        %v3863 = vpack.c.b16 %v3663, %v3659
        %v3864 = vpack.c.b16 %v3668, %v3664
        %v3865 = vpack.c.b16 %v3669, %v3665
        %v3866 = vpack.c.b16 %v3670, %v3666
        %v3867 = vpack.c.b16 %v3671, %v3667
        %v3868 = vpack.c.b16 %v3676, %v3672
        %v3869 = vpack.c.b16 %v3677, %v3673
        %v3870 = vpack.c.b16 %v3678, %v3674
        %v3871 = vpack.c.b16 %v3679, %v3675
        %v3872 = vpack.c.b16 %v3684, %v3680
        %v3873 = vpack.c.b16 %v3685, %v3681
        %v3874 = vpack.c.b16 %v3686, %v3682
        %v3875 = vpack.c.b16 %v3687, %v3683
        %v3876 = vpack.c.b16 %v3692, %v3688
        %v3877 = vpack.c.b16 %v3693, %v3689
        %v3878 = vpack.c.b16 %v3694, %v3690
        %v3879 = vpack.c.b16 %v3695, %v3691
        %v3880 = vpack.c.b16 %v3700, %v3696
        %v3881 = vpack.c.b16 %v3701, %v3697
        %v3882 = vpack.c.b16 %v3702, %v3698
        %v3883 = vpack.c.b16 %v3703, %v3699
        %v3884 = vpack.c.b16 %v3708, %v3704
        %v3885 = vpack.c.b16 %v3709, %v3705
        %v3886 = vpack.c.b16 %v3710, %v3706
        %v3887 = vpack.c.b16 %v3711, %v3707
        %v3888 = vpack.c.b16 %v3716, %v3712
        %v3889 = vpack.c.b16 %v3717, %v3713
        %v3890 = vpack.c.b16 %v3718, %v3714
        %v3891 = vpack.c.b16 %v3719, %v3715
        %v3892 = vpack.c.b16 %v3724, %v3720
        %v3893 = vpack.c.b16 %v3725, %v3721
        %v3894 = vpack.c.b16 %v3726, %v3722
        %v3895 = vpack.c.b16 %v3727, %v3723
        %v3896 = vpack.c.b16 %v3732, %v3728
        %v3897 = vpack.c.b16 %v3733, %v3729
        %v3898 = vpack.c.b16 %v3734, %v3730
        %v3899 = vpack.c.b16 %v3735, %v3731
        %v3900 = vpack.c.b16 %v3740, %v3736
        %v3901 = vpack.c.b16 %v3741, %v3737
        %v3902 = vpack.c.b16 %v3742, %v3738
        %v3903 = vpack.c.b16 %v3743, %v3739
        %v3904 = vpack.c.b16 %v3748, %v3744
        %v3905 = vpack.c.b16 %v3749, %v3745
        %v3906 = vpack.c.b16 %v3750, %v3746
        %v3907 = vpack.c.b16 %v3751, %v3747
        %v3908 = vpack.c.b16 %v3756, %v3752
        %v3909 = vpack.c.b16 %v3757, %v3753
        %v3910 = vpack.c.b16 %v3758, %v3754
        %v3911 = vpack.c.b16 %v3759, %v3755
        %v3912 = vpack.c.b16 %v3764, %v3760
        %v3913 = vpack.c.b16 %v3765, %v3761
        %v3914 = vpack.c.b16 %v3766, %v3762
        %v3915 = vpack.c.b16 %v3767, %v3763
        %v3916 = vpack.c.b16 %v3772, %v3768
        %v3917 = vpack.c.b16 %v3773, %v3769
        %v3918 = vpack.c.b16 %v3774, %v3770
        %v3919 = vpack.c.b16 %v3775, %v3771
        %v3920 = vpack.c.b16 %v3780, %v3776
        %v3921 = vpack.c.b16 %v3781, %v3777
        %v3922 = vpack.c.b16 %v3782, %v3778
        %v3923 = vpack.c.b16 %v3783, %v3779
        %v3924 = vpack.c.b16 %v3788, %v3784
        %v3925 = vpack.c.b16 %v3789, %v3785
        %v3926 = vpack.c.b16 %v3790, %v3786
        %v3927 = vpack.c.b16 %v3791, %v3787
        %v3928 = vpack.c.b16 %v3796, %v3792
        %v3929 = vpack.c.b16 %v3797, %v3793
        %v3930 = vpack.c.b16 %v3798, %v3794
        %v3931 = vpack.c.b16 %v3799, %v3795
        %v3932 = vpack.c.b16 %v3804, %v3800
        %v3933 = vpack.c.b16 %v3805, %v3801
        %v3934 = vpack.c.b16 %v3806, %v3802
        %v3935 = vpack.c.b16 %v3807, %v3803
        %v4065 = vlaneseq
        %v4066 = vshrl.u32 %v4065, 7
        %v4067 = vsub.s32 0, %v4066
        %v4068 = vrot.slane %v3423, %v4067
        %v4069 = vlaneseq
        %v4070 = vshrl.u32 %v4069, 7
        %v4071 = vsub.s32 1, %v4070
        %v4072 = vrot.slane %v3423, %v4071
        %v4073 = vlaneseq
        %v4074 = vshrl.u32 %v4073, 7
        %v4075 = vsub.s32 2, %v4074
        %v4076 = vrot.slane %v3423, %v4075
        %v4077 = vlaneseq
        %v4078 = vshrl.u32 %v4077, 7
        %v4079 = vsub.s32 3, %v4078
        %v4080 = vrot.slane %v3423, %v4079
        %4085 = vmatprep.subr.bf16.mxu0 %v3809
        %4086 = vmatpush1.bf16.msra.mxu0 %v3808
        %4087 = vmatprep.subr.bf16.mxu0 %v3813
        %4088 = vmatpush1.bf16.msra.mxu0 %v3812
        %4089 = vmatprep.subr.bf16.mxu0 %v3817
        %4090 = vmatpush1.bf16.msra.mxu0 %v3816
        %4091 = vmatprep.subr.bf16.mxu0 %v3821
        %4092 = vmatpush1.bf16.msra.mxu0 %v3820
        %4093 = vmatprep.subr.bf16.mxu0 %v3825
        %4094 = vmatpush1.bf16.msra.mxu0 %v3824
        %4095 = vmatprep.subr.bf16.mxu0 %v3829
        %4096 = vmatpush1.bf16.msra.mxu0 %v3828
        %4097 = vmatprep.subr.bf16.mxu0 %v3833
        %4098 = vmatpush1.bf16.msra.mxu0 %v3832
        %4099 = vmatprep.subr.bf16.mxu0 %v3837
        %4100 = vmatpush1.bf16.msra.mxu0 %v3836
        %4101 = vmatprep.subr.bf16.mxu0 %v3841
        %4102 = vmatpush1.bf16.msra.mxu0 %v3840
        %4103 = vmatprep.subr.bf16.mxu0 %v3845
        %4104 = vmatpush1.bf16.msra.mxu0 %v3844
        %4105 = vmatprep.subr.bf16.mxu0 %v3849
        %4106 = vmatpush1.bf16.msra.mxu0 %v3848
        %4107 = vmatprep.subr.bf16.mxu0 %v3853
        %4108 = vmatpush1.bf16.msra.mxu0 %v3852
        %4109 = vmatprep.subr.bf16.mxu0 %v3857
        %4110 = vmatpush1.bf16.msra.mxu0 %v3856
        %4111 = vmatprep.subr.bf16.mxu0 %v3861
        %4112 = vmatpush1.bf16.msra.mxu0 %v3860
        %4113 = vmatprep.subr.bf16.mxu0 %v3865
        %4114 = vmatpush1.bf16.msra.mxu0 %v3864
        %4115 = vmatprep.subr.bf16.mxu0 %v3869
        %4116 = vmatpush1.bf16.msra.mxu0 %v3868
        %4117 = vmatprep.mubr.bf16.mxu0 %v3419
        %4118 = vmatmul.mubr.bf16.gmra.mrb[0].mxu0 %v3418
        %v4119 = vpop.f32.mrb[0].mxu0
        %v4120 = vadd.f32 %v4068, %v4119
        %v4121 = vpop.f32.mrb[0].mxu0
        %v4122 = vadd.f32 %v4072, %v4121
        %v4123 = vpop.f32.mrb[0].mxu0
        %v4124 = vpop.f32.mrb[0].mxu0
        %4125 = vdwg.mxu0
        %4126 = vmatprep.subr.bf16.mxu0 %v3873
        %4127 = vmatpush1.bf16.msra.mxu0 %v3872
        %4128 = vmatprep.subr.bf16.mxu0 %v3877
        %4129 = vmatpush1.bf16.msra.mxu0 %v3876
        %4130 = vmatprep.subr.bf16.mxu0 %v3881
        %4131 = vmatpush1.bf16.msra.mxu0 %v3880
        %4132 = vmatprep.subr.bf16.mxu0 %v3885
        %4133 = vmatpush1.bf16.msra.mxu0 %v3884
        %4134 = vmatprep.subr.bf16.mxu0 %v3889
        %4135 = vmatpush1.bf16.msra.mxu0 %v3888
        %4136 = vmatprep.subr.bf16.mxu0 %v3893
        %4137 = vmatpush1.bf16.msra.mxu0 %v3892
        %4138 = vmatprep.subr.bf16.mxu0 %v3897
        %4139 = vmatpush1.bf16.msra.mxu0 %v3896
        %4140 = vmatprep.subr.bf16.mxu0 %v3901
        %4141 = vmatpush1.bf16.msra.mxu0 %v3900
        %4142 = vmatprep.subr.bf16.mxu0 %v3905
        %4143 = vmatpush1.bf16.msra.mxu0 %v3904
        %4144 = vmatprep.subr.bf16.mxu0 %v3909
        %4145 = vmatpush1.bf16.msra.mxu0 %v3908
        %4146 = vmatprep.subr.bf16.mxu0 %v3913
        %4147 = vmatpush1.bf16.msra.mxu0 %v3912
        %4148 = vmatprep.subr.bf16.mxu0 %v3917
        %4149 = vmatpush1.bf16.msra.mxu0 %v3916
        %4150 = vmatprep.subr.bf16.mxu0 %v3921
        %4151 = vmatpush1.bf16.msra.mxu0 %v3920
        %4152 = vmatprep.subr.bf16.mxu0 %v3925
        %4153 = vmatpush1.bf16.msra.mxu0 %v3924
        %4154 = vmatprep.subr.bf16.mxu0 %v3929
        %4155 = vmatpush1.bf16.msra.mxu0 %v3928
        %4156 = vmatprep.subr.bf16.mxu0 %v3933
        %4157 = vmatpush1.bf16.msra.mxu0 %v3932
        %4158 = vmatprep.mubr.bf16.mxu0 %v3421
        %4159 = vmatmul.mubr.bf16.gmra.mrb[0].mxu0 %v3420
        %v4160 = vpop.f32.mrb[0].mxu0
        %v4161 = vadd.f32 %v4120, %v4160
        %v4162 = vpop.f32.mrb[0].mxu0
        %v4163 = vadd.f32 %v4122, %v4162
        %v4164 = vpop.f32.mrb[0].mxu0
        %v4165 = vpop.f32.mrb[0].mxu0
        %4166 = vdwg.mxu0
        %4167 = vmatprep.subr.bf16.mxu0 %v3811
        %4168 = vmatpush1.bf16.msra.mxu0 %v3810
        %4169 = vmatprep.subr.bf16.mxu0 %v3815
        %4170 = vmatpush1.bf16.msra.mxu0 %v3814
        %4171 = vmatprep.subr.bf16.mxu0 %v3819
        %4172 = vmatpush1.bf16.msra.mxu0 %v3818
        %4173 = vmatprep.subr.bf16.mxu0 %v3823
        %4174 = vmatpush1.bf16.msra.mxu0 %v3822
        %4175 = vmatprep.subr.bf16.mxu0 %v3827
        %4176 = vmatpush1.bf16.msra.mxu0 %v3826
        %4177 = vmatprep.subr.bf16.mxu0 %v3831
        %4178 = vmatpush1.bf16.msra.mxu0 %v3830
        %4179 = vmatprep.subr.bf16.mxu0 %v3835
        %4180 = vmatpush1.bf16.msra.mxu0 %v3834
        %4181 = vmatprep.subr.bf16.mxu0 %v3839
        %4182 = vmatpush1.bf16.msra.mxu0 %v3838
        %4183 = vmatprep.subr.bf16.mxu0 %v3843
        %4184 = vmatpush1.bf16.msra.mxu0 %v3842
        %4185 = vmatprep.subr.bf16.mxu0 %v3847
        %4186 = vmatpush1.bf16.msra.mxu0 %v3846
        %4187 = vmatprep.subr.bf16.mxu0 %v3851
        %4188 = vmatpush1.bf16.msra.mxu0 %v3850
        %4189 = vmatprep.subr.bf16.mxu0 %v3855
        %4190 = vmatpush1.bf16.msra.mxu0 %v3854
        %4191 = vmatprep.subr.bf16.mxu0 %v3859
        %4192 = vmatpush1.bf16.msra.mxu0 %v3858
        %4193 = vmatprep.subr.bf16.mxu0 %v3863
        %4194 = vmatpush1.bf16.msra.mxu0 %v3862
        %4195 = vmatprep.subr.bf16.mxu0 %v3867
        %4196 = vmatpush1.bf16.msra.mxu0 %v3866
        %4197 = vmatprep.subr.bf16.mxu0 %v3871
        %4198 = vmatpush1.bf16.msra.mxu0 %v3870
        %4199 = vmatprep.mubr.bf16.mxu0 %v3419
        %4200 = vmatmul.mubr.bf16.gmra.mrb[0].mxu0 %v3418
        %v4201 = vpop.f32.mrb[0].mxu0
        %v4202 = vadd.f32 %v4076, %v4201
        %v4203 = vpop.f32.mrb[0].mxu0
        %v4204 = vadd.f32 %v4080, %v4203
        %v4205 = vpop.f32.mrb[0].mxu0
        %v4206 = vpop.f32.mrb[0].mxu0
        %4207 = vdwg.mxu0
        %4208 = vmatprep.subr.bf16.mxu0 %v3875
        %4209 = vmatpush1.bf16.msra.mxu0 %v3874
        %4210 = vmatprep.subr.bf16.mxu0 %v3879
        %4211 = vmatpush1.bf16.msra.mxu0 %v3878
        %4212 = vmatprep.subr.bf16.mxu0 %v3883
        %4213 = vmatpush1.bf16.msra.mxu0 %v3882
        %4214 = vmatprep.subr.bf16.mxu0 %v3887
        %4215 = vmatpush1.bf16.msra.mxu0 %v3886
        %4216 = vmatprep.subr.bf16.mxu0 %v3891
        %4217 = vmatpush1.bf16.msra.mxu0 %v3890
        %4218 = vmatprep.subr.bf16.mxu0 %v3895
        %4219 = vmatpush1.bf16.msra.mxu0 %v3894
        %4220 = vmatprep.subr.bf16.mxu0 %v3899
        %4221 = vmatpush1.bf16.msra.mxu0 %v3898
        %4222 = vmatprep.subr.bf16.mxu0 %v3903
        %4223 = vmatpush1.bf16.msra.mxu0 %v3902
        %4224 = vmatprep.subr.bf16.mxu0 %v3907
        %4225 = vmatpush1.bf16.msra.mxu0 %v3906
        %4226 = vmatprep.subr.bf16.mxu0 %v3911
        %4227 = vmatpush1.bf16.msra.mxu0 %v3910
        %4228 = vmatprep.subr.bf16.mxu0 %v3915
        %4229 = vmatpush1.bf16.msra.mxu0 %v3914
        %4230 = vmatprep.subr.bf16.mxu0 %v3919
        %4231 = vmatpush1.bf16.msra.mxu0 %v3918
        %4232 = vmatprep.subr.bf16.mxu0 %v3923
        %4233 = vmatpush1.bf16.msra.mxu0 %v3922
        %4234 = vmatprep.subr.bf16.mxu0 %v3927
        %4235 = vmatpush1.bf16.msra.mxu0 %v3926
        %4236 = vmatprep.subr.bf16.mxu0 %v3931
        %4237 = vmatpush1.bf16.msra.mxu0 %v3930
        %4238 = vmatprep.subr.bf16.mxu0 %v3935
        %4239 = vmatpush1.bf16.msra.mxu0 %v3934
        %4240 = vmatprep.mubr.bf16.mxu0 %v3421
        %4241 = vmatmul.mubr.bf16.gmra.mrb[0].mxu0 %v3420
        %v4242 = vpop.f32.mrb[0].mxu0
        %v4243 = vadd.f32 %v4202, %v4242
        %v4244 = vpop.f32.mrb[0].mxu0
        %v4245 = vadd.f32 %v4204, %v4244
        %v4246 = vpop.f32.mrb[0].mxu0
        %v4247 = vpop.f32.mrb[0].mxu0
        %4248 = vdwg.mxu0
        %v4249 = vsel %vm895, %v4161, 0.0
        %4250 = vadd.xlane.f32.xlu0 %v4249
        %v4251 = vpop.xlane.xlu0 %4250
        %v4252 = vmul.f32 %v4251, %v899
        %v4253 = vsub.f32 %v4161, %v4252
        %v4254 = vmul.f32 %v4253, %v4253
        %v4255 = vsel %vm895, %v4254, 0.0
        %4256 = vadd.xlane.f32.xlu0 %v4255
        %v4257 = vpop.xlane.xlu0 %4256
        %v4258 = vmul.f32 %v4257, %v899
        %v4259 = vadd.f32 %v4258, 1e-05
        %v4260 = vrsqrt.pop %v4259
        %v4261 = vmul.f32 %v4253, %v4260
        %v4262 = vsel %vm895, %v4163, 0.0
        %4263 = vadd.xlane.f32.xlu0 %v4262
        %v4264 = vpop.xlane.xlu0 %4263
        %v4265 = vmul.f32 %v4264, %v899
        %v4266 = vsub.f32 %v4163, %v4265
        %v4267 = vmul.f32 %v4266, %v4266
        %v4268 = vsel %vm895, %v4267, 0.0
        %4269 = vadd.xlane.f32.xlu0 %v4268
        %v4270 = vpop.xlane.xlu0 %4269
        %v4271 = vmul.f32 %v4270, %v899
        %v4272 = vadd.f32 %v4271, 1e-05
        %v4273 = vrsqrt.pop %v4272
        %v4274 = vmul.f32 %v4266, %v4273
        %v4275 = vsel %vm895, %v4243, 0.0
        %4276 = vadd.xlane.f32.xlu0 %v4275
        %v4277 = vpop.xlane.xlu0 %4276
        %v4278 = vmul.f32 %v4277, %v899
        %v4279 = vsub.f32 %v4243, %v4278
        %v4280 = vmul.f32 %v4279, %v4279
        %v4281 = vsel %vm895, %v4280, 0.0
        %4282 = vadd.xlane.f32.xlu0 %v4281
        %v4283 = vpop.xlane.xlu0 %4282
        %v4284 = vmul.f32 %v4283, %v899
        %v4285 = vadd.f32 %v4284, 1e-05
        %v4286 = vrsqrt.pop %v4285
        %v4287 = vmul.f32 %v4279, %v4286
        %v4288 = vsel %vm895, %v4245, 0.0
        %4289 = vadd.xlane.f32.xlu0 %v4288
        %v4290 = vpop.xlane.xlu0 %4289
        %v4291 = vmul.f32 %v4290, %v899
        %v4292 = vsub.f32 %v4245, %v4291
        %v4293 = vmul.f32 %v4292, %v4292
        %v4294 = vsel %vm895, %v4293, 0.0
        %4295 = vadd.xlane.f32.xlu0 %v4294
        %v4296 = vpop.xlane.xlu0 %4295
        %v4297 = vmul.f32 %v4296, %v899
        %v4298 = vadd.f32 %v4297, 1e-05
        %v4299 = vrsqrt.pop %v4298
        %v4300 = vmul.f32 %v4292, %v4299
        %s4301 = scalar_lea.vmem [#allocation6], 12
        %v4302 = vld [vmem:[%s4301] sm:$0xf]
        %v4304 = vlaneseq
        %v4305 = vshrl.u32 %v4304, 7
        %v4306 = vsub.s32 0, %v4305
        %v4307 = vrot.slane %v4302, %v4306
        %v4308 = vlaneseq
        %v4309 = vshrl.u32 %v4308, 7
        %v4310 = vsub.s32 1, %v4309
        %v4311 = vrot.slane %v4302, %v4310
        %v4312 = vlaneseq
        %v4313 = vshrl.u32 %v4312, 7
        %v4314 = vsub.s32 2, %v4313
        %v4315 = vrot.slane %v4302, %v4314
        %v4316 = vlaneseq
        %v4317 = vshrl.u32 %v4316, 7
        %v4318 = vsub.s32 3, %v4317
        %v4319 = vrot.slane %v4302, %v4318
        %v4324 = vmul.f32 %v4261, %v4307
        %v4325 = vmul.f32 %v4274, %v4311
        %v4326 = vmul.f32 %v4287, %v4315
        %v4327 = vmul.f32 %v4300, %v4319
        %s4328 = scalar_lea.vmem [#allocation7], 12
        %v4329 = vld [vmem:[%s4328] sm:$0xf]
        %v4331 = vlaneseq
        %v4332 = vshrl.u32 %v4331, 7
        %v4333 = vsub.s32 0, %v4332
        %v4334 = vrot.slane %v4329, %v4333
        %v4335 = vlaneseq
        %v4336 = vshrl.u32 %v4335, 7
        %v4337 = vsub.s32 1, %v4336
        %v4338 = vrot.slane %v4329, %v4337
        %v4339 = vlaneseq
        %v4340 = vshrl.u32 %v4339, 7
        %v4341 = vsub.s32 2, %v4340
        %v4342 = vrot.slane %v4329, %v4341
        %v4343 = vlaneseq
        %v4344 = vshrl.u32 %v4343, 7
        %v4345 = vsub.s32 3, %v4344
        %v4346 = vrot.slane %v4329, %v4345
        %v4351 = vadd.f32 %v4324, %v4334
        %v4352 = vadd.f32 %v4325, %v4338
        %v4353 = vadd.f32 %v4326, %v4342
        %v4354 = vadd.f32 %v4327, %v4346
        %v4355 = vxor.u32 %v4351, 2147483648
        %v4356 = vxor.u32 %v4352, 2147483648
        %v4357 = vxor.u32 %v4353, 2147483648
        %v4358 = vxor.u32 %v4354, 2147483648
        %v4359 = vmul.f32 %v4355, 1.442695
        %v4360 = vpow.pop %v4359
        %v4361 = vmul.f32 %v4356, 1.442695
        %v4362 = vpow.pop %v4361
        %v4363 = vmul.f32 %v4357, 1.442695
        %v4364 = vpow.pop %v4363
        %v4365 = vmul.f32 %v4358, 1.442695
        %v4366 = vpow.pop %v4365
        %v4367 = vadd.f32 %v4360, 1.0
        %v4368 = vadd.f32 %v4362, 1.0
        %v4369 = vadd.f32 %v4364, 1.0
        %v4370 = vadd.f32 %v4366, 1.0
        %v4371 = vrcp.pop %v4367
        %v4372 = vmul.f32 1.0, %v4371
        %v4373 = vrcp.pop %v4368
        %v4374 = vmul.f32 1.0, %v4373
        %v4375 = vrcp.pop %v4369
        %v4376 = vmul.f32 1.0, %v4375
        %v4377 = vrcp.pop %v4370
        %v4378 = vmul.f32 1.0, %v4377
        %v4379 = vmul.f32 %v4351, %v4372
        %v4380 = vmul.f32 %v4352, %v4374
        %v4381 = vmul.f32 %v4353, %v4376
        %v4382 = vmul.f32 %v4354, %v4378
        %s4383 = scalar_lea.vmem [#allocation4], 3072
        %v4384 = vld [vmem:[%s4383] sm:$0xff]
        %v4385 = vld [vmem:[%s4383 + $0x8] sm:$0xff]
        %v4386 = vld [vmem:[%s4383 + $0x10] sm:$0xff]
        %v4387 = vld [vmem:[%s4383 + $0x18] sm:$0xff]
        %v4388 = vld [vmem:[%s4383 + $0x20] sm:$0xff]
        %v4389 = vld [vmem:[%s4383 + $0x28] sm:$0xff]
        %v4390 = vld [vmem:[%s4383 + $0x30] sm:$0xff]
        %v4391 = vld [vmem:[%s4383 + $0x38] sm:$0xff]
        %v4392 = vld [vmem:[%s4383 + $0x40] sm:$0xff]
        %v4393 = vld [vmem:[%s4383 + $0x48] sm:$0xff]
        %v4394 = vld [vmem:[%s4383 + $0x50] sm:$0xff]
        %v4395 = vld [vmem:[%s4383 + $0x58] sm:$0xff]
        %v4396 = vld [vmem:[%s4383 + $0x60] sm:$0xff]
        %v4397 = vld [vmem:[%s4383 + $0x68] sm:$0xff]
        %v4398 = vld [vmem:[%s4383 + $0x70] sm:$0xff]
        %v4399 = vld [vmem:[%s4383 + $0x78] sm:$0xff]
        %v4400 = vld [vmem:[%s4383 + $0x80] sm:$0xff]
        %v4401 = vld [vmem:[%s4383 + $0x88] sm:$0xff]
        %v4402 = vld [vmem:[%s4383 + $0x90] sm:$0xff]
        %v4403 = vld [vmem:[%s4383 + $0x98] sm:$0xff]
        %v4404 = vld [vmem:[%s4383 + $0xa0] sm:$0xff]
        %v4405 = vld [vmem:[%s4383 + $0xa8] sm:$0xff]
        %v4406 = vld [vmem:[%s4383 + $0xb0] sm:$0xff]
        %v4407 = vld [vmem:[%s4383 + $0xb8] sm:$0xff]
        %v4408 = vld [vmem:[%s4383 + $0xc0] sm:$0xff]
        %v4409 = vld [vmem:[%s4383 + $0xc8] sm:$0xff]
        %v4410 = vld [vmem:[%s4383 + $0xd0] sm:$0xff]
        %v4411 = vld [vmem:[%s4383 + $0xd8] sm:$0xff]
        %v4412 = vld [vmem:[%s4383 + $0xe0] sm:$0xff]
        %v4413 = vld [vmem:[%s4383 + $0xe8] sm:$0xff]
        %v4414 = vld [vmem:[%s4383 + $0xf0] sm:$0xff]
        %v4415 = vld [vmem:[%s4383 + $0xf8] sm:$0xff]
        %v4416 = vld [vmem:[%s4383 + $0x100] sm:$0xff]
        %v4417 = vld [vmem:[%s4383 + $0x108] sm:$0xff]
        %v4418 = vld [vmem:[%s4383 + $0x110] sm:$0xff]
        %v4419 = vld [vmem:[%s4383 + $0x118] sm:$0xff]
        %v4420 = vld [vmem:[%s4383 + $0x120] sm:$0xff]
        %v4421 = vld [vmem:[%s4383 + $0x128] sm:$0xff]
        %v4422 = vld [vmem:[%s4383 + $0x130] sm:$0xff]
        %v4423 = vld [vmem:[%s4383 + $0x138] sm:$0xff]
        %v4424 = vld [vmem:[%s4383 + $0x140] sm:$0xff]
        %v4425 = vld [vmem:[%s4383 + $0x148] sm:$0xff]
        %v4426 = vld [vmem:[%s4383 + $0x150] sm:$0xff]
        %v4427 = vld [vmem:[%s4383 + $0x158] sm:$0xff]
        %v4428 = vld [vmem:[%s4383 + $0x160] sm:$0xff]
        %v4429 = vld [vmem:[%s4383 + $0x168] sm:$0xff]
        %v4430 = vld [vmem:[%s4383 + $0x170] sm:$0xff]
        %v4431 = vld [vmem:[%s4383 + $0x178] sm:$0xff]
        %v4432 = vld [vmem:[%s4383 + $0x180] sm:$0xff]
        %v4433 = vld [vmem:[%s4383 + $0x188] sm:$0xff]
        %v4434 = vld [vmem:[%s4383 + $0x190] sm:$0xff]
        %v4435 = vld [vmem:[%s4383 + $0x198] sm:$0xff]
        %v4436 = vld [vmem:[%s4383 + $0x1a0] sm:$0xff]
        %v4437 = vld [vmem:[%s4383 + $0x1a8] sm:$0xff]
        %v4438 = vld [vmem:[%s4383 + $0x1b0] sm:$0xff]
        %v4439 = vld [vmem:[%s4383 + $0x1b8] sm:$0xff]
        %v4440 = vld [vmem:[%s4383 + $0x1c0] sm:$0xff]
        %v4441 = vld [vmem:[%s4383 + $0x1c8] sm:$0xff]
        %v4442 = vld [vmem:[%s4383 + $0x1d0] sm:$0xff]
        %v4443 = vld [vmem:[%s4383 + $0x1d8] sm:$0xff]
        %v4444 = vld [vmem:[%s4383 + $0x1e0] sm:$0xff]
        %v4445 = vld [vmem:[%s4383 + $0x1e8] sm:$0xff]
        %v4446 = vld [vmem:[%s4383 + $0x1f0] sm:$0xff]
        %v4447 = vld [vmem:[%s4383 + $0x1f8] sm:$0xff]
        %v4448 = vld [vmem:[%s4383 + $0x200] sm:$0xff]
        %v4449 = vld [vmem:[%s4383 + $0x208] sm:$0xff]
        %v4450 = vld [vmem:[%s4383 + $0x210] sm:$0xff]
        %v4451 = vld [vmem:[%s4383 + $0x218] sm:$0xff]
        %v4452 = vld [vmem:[%s4383 + $0x220] sm:$0xff]
        %v4453 = vld [vmem:[%s4383 + $0x228] sm:$0xff]
        %v4454 = vld [vmem:[%s4383 + $0x230] sm:$0xff]
        %v4455 = vld [vmem:[%s4383 + $0x238] sm:$0xff]
        %v4456 = vld [vmem:[%s4383 + $0x240] sm:$0xff]
        %v4457 = vld [vmem:[%s4383 + $0x248] sm:$0xff]
        %v4458 = vld [vmem:[%s4383 + $0x250] sm:$0xff]
        %v4459 = vld [vmem:[%s4383 + $0x258] sm:$0xff]
        %v4460 = vld [vmem:[%s4383 + $0x260] sm:$0xff]
        %v4461 = vld [vmem:[%s4383 + $0x268] sm:$0xff]
        %v4462 = vld [vmem:[%s4383 + $0x270] sm:$0xff]
        %v4463 = vld [vmem:[%s4383 + $0x278] sm:$0xff]
        %v4464 = vld [vmem:[%s4383 + $0x280] sm:$0xff]
        %v4465 = vld [vmem:[%s4383 + $0x288] sm:$0xff]
        %v4466 = vld [vmem:[%s4383 + $0x290] sm:$0xff]
        %v4467 = vld [vmem:[%s4383 + $0x298] sm:$0xff]
        %v4468 = vld [vmem:[%s4383 + $0x2a0] sm:$0xff]
        %v4469 = vld [vmem:[%s4383 + $0x2a8] sm:$0xff]
        %v4470 = vld [vmem:[%s4383 + $0x2b0] sm:$0xff]
        %v4471 = vld [vmem:[%s4383 + $0x2b8] sm:$0xff]
        %v4472 = vld [vmem:[%s4383 + $0x2c0] sm:$0xff]
        %v4473 = vld [vmem:[%s4383 + $0x2c8] sm:$0xff]
        %v4474 = vld [vmem:[%s4383 + $0x2d0] sm:$0xff]
        %v4475 = vld [vmem:[%s4383 + $0x2d8] sm:$0xff]
        %v4476 = vld [vmem:[%s4383 + $0x2e0] sm:$0xff]
        %v4477 = vld [vmem:[%s4383 + $0x2e8] sm:$0xff]
        %v4478 = vld [vmem:[%s4383 + $0x2f0] sm:$0xff]
        %v4479 = vld [vmem:[%s4383 + $0x2f8] sm:$0xff]
        %v4480 = vld [vmem:[%s4383 + $0x300] sm:$0xff]
        %v4481 = vld [vmem:[%s4383 + $0x308] sm:$0xff]
        %v4482 = vld [vmem:[%s4383 + $0x310] sm:$0xff]
        %v4483 = vld [vmem:[%s4383 + $0x318] sm:$0xff]
        %v4484 = vld [vmem:[%s4383 + $0x320] sm:$0xff]
        %v4485 = vld [vmem:[%s4383 + $0x328] sm:$0xff]
        %v4486 = vld [vmem:[%s4383 + $0x330] sm:$0xff]
        %v4487 = vld [vmem:[%s4383 + $0x338] sm:$0xff]
        %v4488 = vld [vmem:[%s4383 + $0x340] sm:$0xff]
        %v4489 = vld [vmem:[%s4383 + $0x348] sm:$0xff]
        %v4490 = vld [vmem:[%s4383 + $0x350] sm:$0xff]
        %v4491 = vld [vmem:[%s4383 + $0x358] sm:$0xff]
        %v4492 = vld [vmem:[%s4383 + $0x360] sm:$0xff]
        %v4493 = vld [vmem:[%s4383 + $0x368] sm:$0xff]
        %v4494 = vld [vmem:[%s4383 + $0x370] sm:$0xff]
        %v4495 = vld [vmem:[%s4383 + $0x378] sm:$0xff]
        %v4496 = vld [vmem:[%s4383 + $0x380] sm:$0xff]
        %v4497 = vld [vmem:[%s4383 + $0x388] sm:$0xff]
        %v4498 = vld [vmem:[%s4383 + $0x390] sm:$0xff]
        %v4499 = vld [vmem:[%s4383 + $0x398] sm:$0xff]
        %v4500 = vld [vmem:[%s4383 + $0x3a0] sm:$0xff]
        %v4501 = vld [vmem:[%s4383 + $0x3a8] sm:$0xff]
        %v4502 = vld [vmem:[%s4383 + $0x3b0] sm:$0xff]
        %v4503 = vld [vmem:[%s4383 + $0x3b8] sm:$0xff]
        %v4504 = vld [vmem:[%s4383 + $0x3c0] sm:$0xff]
        %v4505 = vld [vmem:[%s4383 + $0x3c8] sm:$0xff]
        %v4506 = vld [vmem:[%s4383 + $0x3d0] sm:$0xff]
        %v4507 = vld [vmem:[%s4383 + $0x3d8] sm:$0xff]
        %v4508 = vld [vmem:[%s4383 + $0x3e0] sm:$0xff]
        %v4509 = vld [vmem:[%s4383 + $0x3e8] sm:$0xff]
        %v4510 = vld [vmem:[%s4383 + $0x3f0] sm:$0xff]
        %v4511 = vld [vmem:[%s4383 + $0x3f8] sm:$0xff]
        %v4512 = vpack.c.bf16 %v4379, %v4379
        %v4513 = vpack.c.bf16 %v4380, %v4380
        %v4514 = vpack.c.bf16 %v4381, %v4381
        %v4515 = vpack.c.bf16 %v4382, %v4382
        %s4516 = scalar_lea.vmem [#allocation9], 12
        %v4517 = vld [vmem:[%s4516] sm:$0xf]
        %v4646 = vunpack.c.l.b16 %v4384
        %v4647 = vunpack.c.h.b16 %v4384
        %v4648 = vunpack.c.l.b16 %v4385
        %v4649 = vunpack.c.h.b16 %v4385
        %v4650 = vunpack.c.l.b16 %v4386
        %v4651 = vunpack.c.h.b16 %v4386
        %v4652 = vunpack.c.l.b16 %v4387
        %v4653 = vunpack.c.h.b16 %v4387
        %v4654 = vunpack.c.l.b16 %v4388
        %v4655 = vunpack.c.h.b16 %v4388
        %v4656 = vunpack.c.l.b16 %v4389
        %v4657 = vunpack.c.h.b16 %v4389
        %v4658 = vunpack.c.l.b16 %v4390
        %v4659 = vunpack.c.h.b16 %v4390
        %v4660 = vunpack.c.l.b16 %v4391
        %v4661 = vunpack.c.h.b16 %v4391
        %v4662 = vunpack.c.l.b16 %v4392
        %v4663 = vunpack.c.h.b16 %v4392
        %v4664 = vunpack.c.l.b16 %v4393
        %v4665 = vunpack.c.h.b16 %v4393
        %v4666 = vunpack.c.l.b16 %v4394
        %v4667 = vunpack.c.h.b16 %v4394
        %v4668 = vunpack.c.l.b16 %v4395
        %v4669 = vunpack.c.h.b16 %v4395
        %v4670 = vunpack.c.l.b16 %v4396
        %v4671 = vunpack.c.h.b16 %v4396
        %v4672 = vunpack.c.l.b16 %v4397
        %v4673 = vunpack.c.h.b16 %v4397
        %v4674 = vunpack.c.l.b16 %v4398
        %v4675 = vunpack.c.h.b16 %v4398
        %v4676 = vunpack.c.l.b16 %v4399
        %v4677 = vunpack.c.h.b16 %v4399
        %v4678 = vunpack.c.l.b16 %v4400
        %v4679 = vunpack.c.h.b16 %v4400
        %v4680 = vunpack.c.l.b16 %v4401
        %v4681 = vunpack.c.h.b16 %v4401
        %v4682 = vunpack.c.l.b16 %v4402
        %v4683 = vunpack.c.h.b16 %v4402
        %v4684 = vunpack.c.l.b16 %v4403
        %v4685 = vunpack.c.h.b16 %v4403
        %v4686 = vunpack.c.l.b16 %v4404
        %v4687 = vunpack.c.h.b16 %v4404
        %v4688 = vunpack.c.l.b16 %v4405
        %v4689 = vunpack.c.h.b16 %v4405
        %v4690 = vunpack.c.l.b16 %v4406
        %v4691 = vunpack.c.h.b16 %v4406
        %v4692 = vunpack.c.l.b16 %v4407
        %v4693 = vunpack.c.h.b16 %v4407
        %v4694 = vunpack.c.l.b16 %v4408
        %v4695 = vunpack.c.h.b16 %v4408
        %v4696 = vunpack.c.l.b16 %v4409
        %v4697 = vunpack.c.h.b16 %v4409
        %v4698 = vunpack.c.l.b16 %v4410
        %v4699 = vunpack.c.h.b16 %v4410
        %v4700 = vunpack.c.l.b16 %v4411
        %v4701 = vunpack.c.h.b16 %v4411
        %v4702 = vunpack.c.l.b16 %v4412
        %v4703 = vunpack.c.h.b16 %v4412
        %v4704 = vunpack.c.l.b16 %v4413
        %v4705 = vunpack.c.h.b16 %v4413
        %v4706 = vunpack.c.l.b16 %v4414
        %v4707 = vunpack.c.h.b16 %v4414
        %v4708 = vunpack.c.l.b16 %v4415
        %v4709 = vunpack.c.h.b16 %v4415
        %v4710 = vunpack.c.l.b16 %v4416
        %v4711 = vunpack.c.h.b16 %v4416
        %v4712 = vunpack.c.l.b16 %v4417
        %v4713 = vunpack.c.h.b16 %v4417
        %v4714 = vunpack.c.l.b16 %v4418
        %v4715 = vunpack.c.h.b16 %v4418
        %v4716 = vunpack.c.l.b16 %v4419
        %v4717 = vunpack.c.h.b16 %v4419
        %v4718 = vunpack.c.l.b16 %v4420
        %v4719 = vunpack.c.h.b16 %v4420
        %v4720 = vunpack.c.l.b16 %v4421
        %v4721 = vunpack.c.h.b16 %v4421
        %v4722 = vunpack.c.l.b16 %v4422
        %v4723 = vunpack.c.h.b16 %v4422
        %v4724 = vunpack.c.l.b16 %v4423
        %v4725 = vunpack.c.h.b16 %v4423
        %v4726 = vunpack.c.l.b16 %v4424
        %v4727 = vunpack.c.h.b16 %v4424
        %v4728 = vunpack.c.l.b16 %v4425
        %v4729 = vunpack.c.h.b16 %v4425
        %v4730 = vunpack.c.l.b16 %v4426
        %v4731 = vunpack.c.h.b16 %v4426
        %v4732 = vunpack.c.l.b16 %v4427
        %v4733 = vunpack.c.h.b16 %v4427
        %v4734 = vunpack.c.l.b16 %v4428
        %v4735 = vunpack.c.h.b16 %v4428
        %v4736 = vunpack.c.l.b16 %v4429
        %v4737 = vunpack.c.h.b16 %v4429
        %v4738 = vunpack.c.l.b16 %v4430
        %v4739 = vunpack.c.h.b16 %v4430
        %v4740 = vunpack.c.l.b16 %v4431
        %v4741 = vunpack.c.h.b16 %v4431
        %v4742 = vunpack.c.l.b16 %v4432
        %v4743 = vunpack.c.h.b16 %v4432
        %v4744 = vunpack.c.l.b16 %v4433
        %v4745 = vunpack.c.h.b16 %v4433
        %v4746 = vunpack.c.l.b16 %v4434
        %v4747 = vunpack.c.h.b16 %v4434
        %v4748 = vunpack.c.l.b16 %v4435
        %v4749 = vunpack.c.h.b16 %v4435
        %v4750 = vunpack.c.l.b16 %v4436
        %v4751 = vunpack.c.h.b16 %v4436
        %v4752 = vunpack.c.l.b16 %v4437
        %v4753 = vunpack.c.h.b16 %v4437
        %v4754 = vunpack.c.l.b16 %v4438
        %v4755 = vunpack.c.h.b16 %v4438
        %v4756 = vunpack.c.l.b16 %v4439
        %v4757 = vunpack.c.h.b16 %v4439
        %v4758 = vunpack.c.l.b16 %v4440
        %v4759 = vunpack.c.h.b16 %v4440
        %v4760 = vunpack.c.l.b16 %v4441
        %v4761 = vunpack.c.h.b16 %v4441
        %v4762 = vunpack.c.l.b16 %v4442
        %v4763 = vunpack.c.h.b16 %v4442
        %v4764 = vunpack.c.l.b16 %v4443
        %v4765 = vunpack.c.h.b16 %v4443
        %v4766 = vunpack.c.l.b16 %v4444
        %v4767 = vunpack.c.h.b16 %v4444
        %v4768 = vunpack.c.l.b16 %v4445
        %v4769 = vunpack.c.h.b16 %v4445
        %v4770 = vunpack.c.l.b16 %v4446
        %v4771 = vunpack.c.h.b16 %v4446
        %v4772 = vunpack.c.l.b16 %v4447
        %v4773 = vunpack.c.h.b16 %v4447
        %v4774 = vunpack.c.l.b16 %v4448
        %v4775 = vunpack.c.h.b16 %v4448
        %v4776 = vunpack.c.l.b16 %v4449
        %v4777 = vunpack.c.h.b16 %v4449
        %v4778 = vunpack.c.l.b16 %v4450
        %v4779 = vunpack.c.h.b16 %v4450
        %v4780 = vunpack.c.l.b16 %v4451
        %v4781 = vunpack.c.h.b16 %v4451
        %v4782 = vunpack.c.l.b16 %v4452
        %v4783 = vunpack.c.h.b16 %v4452
        %v4784 = vunpack.c.l.b16 %v4453
        %v4785 = vunpack.c.h.b16 %v4453
        %v4786 = vunpack.c.l.b16 %v4454
        %v4787 = vunpack.c.h.b16 %v4454
        %v4788 = vunpack.c.l.b16 %v4455
        %v4789 = vunpack.c.h.b16 %v4455
        %v4790 = vunpack.c.l.b16 %v4456
        %v4791 = vunpack.c.h.b16 %v4456
        %v4792 = vunpack.c.l.b16 %v4457
        %v4793 = vunpack.c.h.b16 %v4457
        %v4794 = vunpack.c.l.b16 %v4458
        %v4795 = vunpack.c.h.b16 %v4458
        %v4796 = vunpack.c.l.b16 %v4459
        %v4797 = vunpack.c.h.b16 %v4459
        %v4798 = vunpack.c.l.b16 %v4460
        %v4799 = vunpack.c.h.b16 %v4460
        %v4800 = vunpack.c.l.b16 %v4461
        %v4801 = vunpack.c.h.b16 %v4461
        %v4802 = vunpack.c.l.b16 %v4462
        %v4803 = vunpack.c.h.b16 %v4462
        %v4804 = vunpack.c.l.b16 %v4463
        %v4805 = vunpack.c.h.b16 %v4463
        %v4806 = vunpack.c.l.b16 %v4464
        %v4807 = vunpack.c.h.b16 %v4464
        %v4808 = vunpack.c.l.b16 %v4465
        %v4809 = vunpack.c.h.b16 %v4465
        %v4810 = vunpack.c.l.b16 %v4466
        %v4811 = vunpack.c.h.b16 %v4466
        %v4812 = vunpack.c.l.b16 %v4467
        %v4813 = vunpack.c.h.b16 %v4467
        %v4814 = vunpack.c.l.b16 %v4468
        %v4815 = vunpack.c.h.b16 %v4468
        %v4816 = vunpack.c.l.b16 %v4469
        %v4817 = vunpack.c.h.b16 %v4469
        %v4818 = vunpack.c.l.b16 %v4470
        %v4819 = vunpack.c.h.b16 %v4470
        %v4820 = vunpack.c.l.b16 %v4471
        %v4821 = vunpack.c.h.b16 %v4471
        %v4822 = vunpack.c.l.b16 %v4472
        %v4823 = vunpack.c.h.b16 %v4472
        %v4824 = vunpack.c.l.b16 %v4473
        %v4825 = vunpack.c.h.b16 %v4473
        %v4826 = vunpack.c.l.b16 %v4474
        %v4827 = vunpack.c.h.b16 %v4474
        %v4828 = vunpack.c.l.b16 %v4475
        %v4829 = vunpack.c.h.b16 %v4475
        %v4830 = vunpack.c.l.b16 %v4476
        %v4831 = vunpack.c.h.b16 %v4476
        %v4832 = vunpack.c.l.b16 %v4477
        %v4833 = vunpack.c.h.b16 %v4477
        %v4834 = vunpack.c.l.b16 %v4478
        %v4835 = vunpack.c.h.b16 %v4478
        %v4836 = vunpack.c.l.b16 %v4479
        %v4837 = vunpack.c.h.b16 %v4479
        %v4838 = vunpack.c.l.b16 %v4480
        %v4839 = vunpack.c.h.b16 %v4480
        %v4840 = vunpack.c.l.b16 %v4481
        %v4841 = vunpack.c.h.b16 %v4481
        %v4842 = vunpack.c.l.b16 %v4482
        %v4843 = vunpack.c.h.b16 %v4482
        %v4844 = vunpack.c.l.b16 %v4483
        %v4845 = vunpack.c.h.b16 %v4483
        %v4846 = vunpack.c.l.b16 %v4484
        %v4847 = vunpack.c.h.b16 %v4484
        %v4848 = vunpack.c.l.b16 %v4485
        %v4849 = vunpack.c.h.b16 %v4485
        %v4850 = vunpack.c.l.b16 %v4486
        %v4851 = vunpack.c.h.b16 %v4486
        %v4852 = vunpack.c.l.b16 %v4487
        %v4853 = vunpack.c.h.b16 %v4487
        %v4854 = vunpack.c.l.b16 %v4488
        %v4855 = vunpack.c.h.b16 %v4488
        %v4856 = vunpack.c.l.b16 %v4489
        %v4857 = vunpack.c.h.b16 %v4489
        %v4858 = vunpack.c.l.b16 %v4490
        %v4859 = vunpack.c.h.b16 %v4490
        %v4860 = vunpack.c.l.b16 %v4491
        %v4861 = vunpack.c.h.b16 %v4491
        %v4862 = vunpack.c.l.b16 %v4492
        %v4863 = vunpack.c.h.b16 %v4492
        %v4864 = vunpack.c.l.b16 %v4493
        %v4865 = vunpack.c.h.b16 %v4493
        %v4866 = vunpack.c.l.b16 %v4494
        %v4867 = vunpack.c.h.b16 %v4494
        %v4868 = vunpack.c.l.b16 %v4495
        %v4869 = vunpack.c.h.b16 %v4495
        %v4870 = vunpack.c.l.b16 %v4496
        %v4871 = vunpack.c.h.b16 %v4496
        %v4872 = vunpack.c.l.b16 %v4497
        %v4873 = vunpack.c.h.b16 %v4497
        %v4874 = vunpack.c.l.b16 %v4498
        %v4875 = vunpack.c.h.b16 %v4498
        %v4876 = vunpack.c.l.b16 %v4499
        %v4877 = vunpack.c.h.b16 %v4499
        %v4878 = vunpack.c.l.b16 %v4500
        %v4879 = vunpack.c.h.b16 %v4500
        %v4880 = vunpack.c.l.b16 %v4501
        %v4881 = vunpack.c.h.b16 %v4501
        %v4882 = vunpack.c.l.b16 %v4502
        %v4883 = vunpack.c.h.b16 %v4502
        %v4884 = vunpack.c.l.b16 %v4503
        %v4885 = vunpack.c.h.b16 %v4503
        %v4886 = vunpack.c.l.b16 %v4504
        %v4887 = vunpack.c.h.b16 %v4504
        %v4888 = vunpack.c.l.b16 %v4505
        %v4889 = vunpack.c.h.b16 %v4505
        %v4890 = vunpack.c.l.b16 %v4506
        %v4891 = vunpack.c.h.b16 %v4506
        %v4892 = vunpack.c.l.b16 %v4507
        %v4893 = vunpack.c.h.b16 %v4507
        %v4894 = vunpack.c.l.b16 %v4508
        %v4895 = vunpack.c.h.b16 %v4508
        %v4896 = vunpack.c.l.b16 %v4509
        %v4897 = vunpack.c.h.b16 %v4509
        %v4898 = vunpack.c.l.b16 %v4510
        %v4899 = vunpack.c.h.b16 %v4510
        %v4900 = vunpack.c.l.b16 %v4511
        %v4901 = vunpack.c.h.b16 %v4511
        %v4902 = vpack.c.b16 %v4650, %v4646
        %v4903 = vpack.c.b16 %v4651, %v4647
        %v4904 = vpack.c.b16 %v4652, %v4648
        %v4905 = vpack.c.b16 %v4653, %v4649
        %v4906 = vpack.c.b16 %v4658, %v4654
        %v4907 = vpack.c.b16 %v4659, %v4655
        %v4908 = vpack.c.b16 %v4660, %v4656
        %v4909 = vpack.c.b16 %v4661, %v4657
        %v4910 = vpack.c.b16 %v4666, %v4662
        %v4911 = vpack.c.b16 %v4667, %v4663
        %v4912 = vpack.c.b16 %v4668, %v4664
        %v4913 = vpack.c.b16 %v4669, %v4665
        %v4914 = vpack.c.b16 %v4674, %v4670
        %v4915 = vpack.c.b16 %v4675, %v4671
        %v4916 = vpack.c.b16 %v4676, %v4672
        %v4917 = vpack.c.b16 %v4677, %v4673
        %v4918 = vpack.c.b16 %v4682, %v4678
        %v4919 = vpack.c.b16 %v4683, %v4679
        %v4920 = vpack.c.b16 %v4684, %v4680
        %v4921 = vpack.c.b16 %v4685, %v4681
        %v4922 = vpack.c.b16 %v4690, %v4686
        %v4923 = vpack.c.b16 %v4691, %v4687
        %v4924 = vpack.c.b16 %v4692, %v4688
        %v4925 = vpack.c.b16 %v4693, %v4689
        %v4926 = vpack.c.b16 %v4698, %v4694
        %v4927 = vpack.c.b16 %v4699, %v4695
        %v4928 = vpack.c.b16 %v4700, %v4696
        %v4929 = vpack.c.b16 %v4701, %v4697
        %v4930 = vpack.c.b16 %v4706, %v4702
        %v4931 = vpack.c.b16 %v4707, %v4703
        %v4932 = vpack.c.b16 %v4708, %v4704
        %v4933 = vpack.c.b16 %v4709, %v4705
        %v4934 = vpack.c.b16 %v4714, %v4710
        %v4935 = vpack.c.b16 %v4715, %v4711
        %v4936 = vpack.c.b16 %v4716, %v4712
        %v4937 = vpack.c.b16 %v4717, %v4713
        %v4938 = vpack.c.b16 %v4722, %v4718
        %v4939 = vpack.c.b16 %v4723, %v4719
        %v4940 = vpack.c.b16 %v4724, %v4720
        %v4941 = vpack.c.b16 %v4725, %v4721
        %v4942 = vpack.c.b16 %v4730, %v4726
        %v4943 = vpack.c.b16 %v4731, %v4727
        %v4944 = vpack.c.b16 %v4732, %v4728
        %v4945 = vpack.c.b16 %v4733, %v4729
        %v4946 = vpack.c.b16 %v4738, %v4734
        %v4947 = vpack.c.b16 %v4739, %v4735
        %v4948 = vpack.c.b16 %v4740, %v4736
        %v4949 = vpack.c.b16 %v4741, %v4737
        %v4950 = vpack.c.b16 %v4746, %v4742
        %v4951 = vpack.c.b16 %v4747, %v4743
        %v4952 = vpack.c.b16 %v4748, %v4744
        %v4953 = vpack.c.b16 %v4749, %v4745
        %v4954 = vpack.c.b16 %v4754, %v4750
        %v4955 = vpack.c.b16 %v4755, %v4751
        %v4956 = vpack.c.b16 %v4756, %v4752
        %v4957 = vpack.c.b16 %v4757, %v4753
        %v4958 = vpack.c.b16 %v4762, %v4758
        %v4959 = vpack.c.b16 %v4763, %v4759
        %v4960 = vpack.c.b16 %v4764, %v4760
        %v4961 = vpack.c.b16 %v4765, %v4761
        %v4962 = vpack.c.b16 %v4770, %v4766
        %v4963 = vpack.c.b16 %v4771, %v4767
        %v4964 = vpack.c.b16 %v4772, %v4768
        %v4965 = vpack.c.b16 %v4773, %v4769
        %v4966 = vpack.c.b16 %v4778, %v4774
        %v4967 = vpack.c.b16 %v4779, %v4775
        %v4968 = vpack.c.b16 %v4780, %v4776
        %v4969 = vpack.c.b16 %v4781, %v4777
        %v4970 = vpack.c.b16 %v4786, %v4782
        %v4971 = vpack.c.b16 %v4787, %v4783
        %v4972 = vpack.c.b16 %v4788, %v4784
        %v4973 = vpack.c.b16 %v4789, %v4785
        %v4974 = vpack.c.b16 %v4794, %v4790
        %v4975 = vpack.c.b16 %v4795, %v4791
        %v4976 = vpack.c.b16 %v4796, %v4792
        %v4977 = vpack.c.b16 %v4797, %v4793
        %v4978 = vpack.c.b16 %v4802, %v4798
        %v4979 = vpack.c.b16 %v4803, %v4799
        %v4980 = vpack.c.b16 %v4804, %v4800
        %v4981 = vpack.c.b16 %v4805, %v4801
        %v4982 = vpack.c.b16 %v4810, %v4806
        %v4983 = vpack.c.b16 %v4811, %v4807
        %v4984 = vpack.c.b16 %v4812, %v4808
        %v4985 = vpack.c.b16 %v4813, %v4809
        %v4986 = vpack.c.b16 %v4818, %v4814
        %v4987 = vpack.c.b16 %v4819, %v4815
        %v4988 = vpack.c.b16 %v4820, %v4816
        %v4989 = vpack.c.b16 %v4821, %v4817
        %v4990 = vpack.c.b16 %v4826, %v4822
        %v4991 = vpack.c.b16 %v4827, %v4823
        %v4992 = vpack.c.b16 %v4828, %v4824
        %v4993 = vpack.c.b16 %v4829, %v4825
        %v4994 = vpack.c.b16 %v4834, %v4830
        %v4995 = vpack.c.b16 %v4835, %v4831
        %v4996 = vpack.c.b16 %v4836, %v4832
        %v4997 = vpack.c.b16 %v4837, %v4833
        %v4998 = vpack.c.b16 %v4842, %v4838
        %v4999 = vpack.c.b16 %v4843, %v4839
        %v5000 = vpack.c.b16 %v4844, %v4840
        %v5001 = vpack.c.b16 %v4845, %v4841
        %v5002 = vpack.c.b16 %v4850, %v4846
        %v5003 = vpack.c.b16 %v4851, %v4847
        %v5004 = vpack.c.b16 %v4852, %v4848
        %v5005 = vpack.c.b16 %v4853, %v4849
        %v5006 = vpack.c.b16 %v4858, %v4854
        %v5007 = vpack.c.b16 %v4859, %v4855
        %v5008 = vpack.c.b16 %v4860, %v4856
        %v5009 = vpack.c.b16 %v4861, %v4857
        %v5010 = vpack.c.b16 %v4866, %v4862
        %v5011 = vpack.c.b16 %v4867, %v4863
        %v5012 = vpack.c.b16 %v4868, %v4864
        %v5013 = vpack.c.b16 %v4869, %v4865
        %v5014 = vpack.c.b16 %v4874, %v4870
        %v5015 = vpack.c.b16 %v4875, %v4871
        %v5016 = vpack.c.b16 %v4876, %v4872
        %v5017 = vpack.c.b16 %v4877, %v4873
        %v5018 = vpack.c.b16 %v4882, %v4878
        %v5019 = vpack.c.b16 %v4883, %v4879
        %v5020 = vpack.c.b16 %v4884, %v4880
        %v5021 = vpack.c.b16 %v4885, %v4881
        %v5022 = vpack.c.b16 %v4890, %v4886
        %v5023 = vpack.c.b16 %v4891, %v4887
        %v5024 = vpack.c.b16 %v4892, %v4888
        %v5025 = vpack.c.b16 %v4893, %v4889
        %v5026 = vpack.c.b16 %v4898, %v4894
        %v5027 = vpack.c.b16 %v4899, %v4895
        %v5028 = vpack.c.b16 %v4900, %v4896
        %v5029 = vpack.c.b16 %v4901, %v4897
        %v5159 = vlaneseq
        %v5160 = vshrl.u32 %v5159, 7
        %v5161 = vsub.s32 0, %v5160
        %v5162 = vrot.slane %v4517, %v5161
        %v5163 = vlaneseq
        %v5164 = vshrl.u32 %v5163, 7
        %v5165 = vsub.s32 1, %v5164
        %v5166 = vrot.slane %v4517, %v5165
        %v5167 = vlaneseq
        %v5168 = vshrl.u32 %v5167, 7
        %v5169 = vsub.s32 2, %v5168
        %v5170 = vrot.slane %v4517, %v5169
        %v5171 = vlaneseq
        %v5172 = vshrl.u32 %v5171, 7
        %v5173 = vsub.s32 3, %v5172
        %v5174 = vrot.slane %v4517, %v5173
        %5179 = vmatprep.subr.bf16.mxu0 %v4903
        %5180 = vmatpush1.bf16.msra.mxu0 %v4902
        %5181 = vmatprep.subr.bf16.mxu0 %v4907
        %5182 = vmatpush1.bf16.msra.mxu0 %v4906
        %5183 = vmatprep.subr.bf16.mxu0 %v4911
        %5184 = vmatpush1.bf16.msra.mxu0 %v4910
        %5185 = vmatprep.subr.bf16.mxu0 %v4915
        %5186 = vmatpush1.bf16.msra.mxu0 %v4914
        %5187 = vmatprep.subr.bf16.mxu0 %v4919
        %5188 = vmatpush1.bf16.msra.mxu0 %v4918
        %5189 = vmatprep.subr.bf16.mxu0 %v4923
        %5190 = vmatpush1.bf16.msra.mxu0 %v4922
        %5191 = vmatprep.subr.bf16.mxu0 %v4927
        %5192 = vmatpush1.bf16.msra.mxu0 %v4926
        %5193 = vmatprep.subr.bf16.mxu0 %v4931
        %5194 = vmatpush1.bf16.msra.mxu0 %v4930
        %5195 = vmatprep.subr.bf16.mxu0 %v4935
        %5196 = vmatpush1.bf16.msra.mxu0 %v4934
        %5197 = vmatprep.subr.bf16.mxu0 %v4939
        %5198 = vmatpush1.bf16.msra.mxu0 %v4938
        %5199 = vmatprep.subr.bf16.mxu0 %v4943
        %5200 = vmatpush1.bf16.msra.mxu0 %v4942
        %5201 = vmatprep.subr.bf16.mxu0 %v4947
        %5202 = vmatpush1.bf16.msra.mxu0 %v4946
        %5203 = vmatprep.subr.bf16.mxu0 %v4951
        %5204 = vmatpush1.bf16.msra.mxu0 %v4950
        %5205 = vmatprep.subr.bf16.mxu0 %v4955
        %5206 = vmatpush1.bf16.msra.mxu0 %v4954
        %5207 = vmatprep.subr.bf16.mxu0 %v4959
        %5208 = vmatpush1.bf16.msra.mxu0 %v4958
        %5209 = vmatprep.subr.bf16.mxu0 %v4963
        %5210 = vmatpush1.bf16.msra.mxu0 %v4962
        %5211 = vmatprep.mubr.bf16.mxu0 %v4513
        %5212 = vmatmul.mubr.bf16.gmra.mrb[0].mxu0 %v4512
        %v5213 = vpop.f32.mrb[0].mxu0
        %v5214 = vadd.f32 %v5162, %v5213
        %v5215 = vpop.f32.mrb[0].mxu0
        %v5216 = vadd.f32 %v5166, %v5215
        %v5217 = vpop.f32.mrb[0].mxu0
        %v5218 = vpop.f32.mrb[0].mxu0
        %5219 = vdwg.mxu0
        %5220 = vmatprep.subr.bf16.mxu0 %v4967
        %5221 = vmatpush1.bf16.msra.mxu0 %v4966
        %5222 = vmatprep.subr.bf16.mxu0 %v4971
        %5223 = vmatpush1.bf16.msra.mxu0 %v4970
        %5224 = vmatprep.subr.bf16.mxu0 %v4975
        %5225 = vmatpush1.bf16.msra.mxu0 %v4974
        %5226 = vmatprep.subr.bf16.mxu0 %v4979
        %5227 = vmatpush1.bf16.msra.mxu0 %v4978
        %5228 = vmatprep.subr.bf16.mxu0 %v4983
        %5229 = vmatpush1.bf16.msra.mxu0 %v4982
        %5230 = vmatprep.subr.bf16.mxu0 %v4987
        %5231 = vmatpush1.bf16.msra.mxu0 %v4986
        %5232 = vmatprep.subr.bf16.mxu0 %v4991
        %5233 = vmatpush1.bf16.msra.mxu0 %v4990
        %5234 = vmatprep.subr.bf16.mxu0 %v4995
        %5235 = vmatpush1.bf16.msra.mxu0 %v4994
        %5236 = vmatprep.subr.bf16.mxu0 %v4999
        %5237 = vmatpush1.bf16.msra.mxu0 %v4998
        %5238 = vmatprep.subr.bf16.mxu0 %v5003
        %5239 = vmatpush1.bf16.msra.mxu0 %v5002
        %5240 = vmatprep.subr.bf16.mxu0 %v5007
        %5241 = vmatpush1.bf16.msra.mxu0 %v5006
        %5242 = vmatprep.subr.bf16.mxu0 %v5011
        %5243 = vmatpush1.bf16.msra.mxu0 %v5010
        %5244 = vmatprep.subr.bf16.mxu0 %v5015
        %5245 = vmatpush1.bf16.msra.mxu0 %v5014
        %5246 = vmatprep.subr.bf16.mxu0 %v5019
        %5247 = vmatpush1.bf16.msra.mxu0 %v5018
        %5248 = vmatprep.subr.bf16.mxu0 %v5023
        %5249 = vmatpush1.bf16.msra.mxu0 %v5022
        %5250 = vmatprep.subr.bf16.mxu0 %v5027
        %5251 = vmatpush1.bf16.msra.mxu0 %v5026
        %5252 = vmatprep.mubr.bf16.mxu0 %v4515
        %5253 = vmatmul.mubr.bf16.gmra.mrb[0].mxu0 %v4514
        %v5254 = vpop.f32.mrb[0].mxu0
        %v5255 = vadd.f32 %v5214, %v5254
        %v5256 = vpop.f32.mrb[0].mxu0
        %v5257 = vadd.f32 %v5216, %v5256
        %v5258 = vpop.f32.mrb[0].mxu0
        %v5259 = vpop.f32.mrb[0].mxu0
        %5260 = vdwg.mxu0
        %5261 = vmatprep.subr.bf16.mxu0 %v4905
        %5262 = vmatpush1.bf16.msra.mxu0 %v4904
        %5263 = vmatprep.subr.bf16.mxu0 %v4909
        %5264 = vmatpush1.bf16.msra.mxu0 %v4908
        %5265 = vmatprep.subr.bf16.mxu0 %v4913
        %5266 = vmatpush1.bf16.msra.mxu0 %v4912
        %5267 = vmatprep.subr.bf16.mxu0 %v4917
        %5268 = vmatpush1.bf16.msra.mxu0 %v4916
        %5269 = vmatprep.subr.bf16.mxu0 %v4921
        %5270 = vmatpush1.bf16.msra.mxu0 %v4920
        %5271 = vmatprep.subr.bf16.mxu0 %v4925
        %5272 = vmatpush1.bf16.msra.mxu0 %v4924
        %5273 = vmatprep.subr.bf16.mxu0 %v4929
        %5274 = vmatpush1.bf16.msra.mxu0 %v4928
        %5275 = vmatprep.subr.bf16.mxu0 %v4933
        %5276 = vmatpush1.bf16.msra.mxu0 %v4932
        %5277 = vmatprep.subr.bf16.mxu0 %v4937
        %5278 = vmatpush1.bf16.msra.mxu0 %v4936
        %5279 = vmatprep.subr.bf16.mxu0 %v4941
        %5280 = vmatpush1.bf16.msra.mxu0 %v4940
        %5281 = vmatprep.subr.bf16.mxu0 %v4945
        %5282 = vmatpush1.bf16.msra.mxu0 %v4944
        %5283 = vmatprep.subr.bf16.mxu0 %v4949
        %5284 = vmatpush1.bf16.msra.mxu0 %v4948
        %5285 = vmatprep.subr.bf16.mxu0 %v4953
        %5286 = vmatpush1.bf16.msra.mxu0 %v4952
        %5287 = vmatprep.subr.bf16.mxu0 %v4957
        %5288 = vmatpush1.bf16.msra.mxu0 %v4956
        %5289 = vmatprep.subr.bf16.mxu0 %v4961
        %5290 = vmatpush1.bf16.msra.mxu0 %v4960
        %5291 = vmatprep.subr.bf16.mxu0 %v4965
        %5292 = vmatpush1.bf16.msra.mxu0 %v4964
        %5293 = vmatprep.mubr.bf16.mxu0 %v4513
        %5294 = vmatmul.mubr.bf16.gmra.mrb[0].mxu0 %v4512
        %v5295 = vpop.f32.mrb[0].mxu0
        %v5296 = vadd.f32 %v5170, %v5295
        %v5297 = vpop.f32.mrb[0].mxu0
        %v5298 = vadd.f32 %v5174, %v5297
        %v5299 = vpop.f32.mrb[0].mxu0
        %v5300 = vpop.f32.mrb[0].mxu0
        %5301 = vdwg.mxu0
        %5302 = vmatprep.subr.bf16.mxu0 %v4969
        %5303 = vmatpush1.bf16.msra.mxu0 %v4968
        %5304 = vmatprep.subr.bf16.mxu0 %v4973
        %5305 = vmatpush1.bf16.msra.mxu0 %v4972
        %5306 = vmatprep.subr.bf16.mxu0 %v4977
        %5307 = vmatpush1.bf16.msra.mxu0 %v4976
        %5308 = vmatprep.subr.bf16.mxu0 %v4981
        %5309 = vmatpush1.bf16.msra.mxu0 %v4980
        %5310 = vmatprep.subr.bf16.mxu0 %v4985
        %5311 = vmatpush1.bf16.msra.mxu0 %v4984
        %5312 = vmatprep.subr.bf16.mxu0 %v4989
        %5313 = vmatpush1.bf16.msra.mxu0 %v4988
        %5314 = vmatprep.subr.bf16.mxu0 %v4993
        %5315 = vmatpush1.bf16.msra.mxu0 %v4992
        %5316 = vmatprep.subr.bf16.mxu0 %v4997
        %5317 = vmatpush1.bf16.msra.mxu0 %v4996
        %5318 = vmatprep.subr.bf16.mxu0 %v5001
        %5319 = vmatpush1.bf16.msra.mxu0 %v5000
        %5320 = vmatprep.subr.bf16.mxu0 %v5005
        %5321 = vmatpush1.bf16.msra.mxu0 %v5004
        %5322 = vmatprep.subr.bf16.mxu0 %v5009
        %5323 = vmatpush1.bf16.msra.mxu0 %v5008
        %5324 = vmatprep.subr.bf16.mxu0 %v5013
        %5325 = vmatpush1.bf16.msra.mxu0 %v5012
        %5326 = vmatprep.subr.bf16.mxu0 %v5017
        %5327 = vmatpush1.bf16.msra.mxu0 %v5016
        %5328 = vmatprep.subr.bf16.mxu0 %v5021
        %5329 = vmatpush1.bf16.msra.mxu0 %v5020
        %5330 = vmatprep.subr.bf16.mxu0 %v5025
        %5331 = vmatpush1.bf16.msra.mxu0 %v5024
        %5332 = vmatprep.subr.bf16.mxu0 %v5029
        %5333 = vmatpush1.bf16.msra.mxu0 %v5028
        %5334 = vmatprep.mubr.bf16.mxu0 %v4515
        %5335 = vmatmul.mubr.bf16.gmra.mrb[0].mxu0 %v4514
        %v5336 = vpop.f32.mrb[0].mxu0
        %v5337 = vadd.f32 %v5296, %v5336
        %v5338 = vpop.f32.mrb[0].mxu0
        %v5339 = vadd.f32 %v5298, %v5338
        %v5340 = vpop.f32.mrb[0].mxu0
        %v5341 = vpop.f32.mrb[0].mxu0
        %5342 = vdwg.mxu0
        %v5347 = vcombine.low %v5255, %v5257
        %v5348 = vcombine.low %v5337, %v5339
        %v5350 = vunpack.c.l.s4 1966171168
        %v5351 = vunpack.c.0.s8 %v5350
        %v5352 = vlaneseq
        %v5353 = vshrl.u32 %v5352, 7
        %v5354 = vsub.s32 %v5351, %v5353
        %v5355 = vrot.slane %v5347, %v5354
        %v5357 = vunpack.c.l.s4 1966171168
        %v5358 = vunpack.c.0.s8 %v5357
        %v5359 = vlaneseq
        %v5360 = vshrl.u32 %v5359, 7
        %v5361 = vsub.s32 %v5358, %v5360
        %v5362 = vrot.slane %v5348, %v5361
        %v5363 = vcombine.low %v5355, %v5362
        %v5365 = vunpack.c.l.s4 1966171168
        %v5366 = vunpack.c.0.s8 %v5365
        %v5367 = vlaneseq
        %v5368 = vshrl.u32 %v5367, 7
        %v5369 = vsub.s32 %v5366, %v5368
        %v5370 = vrot.slane %v5363, %v5369
        %v5372 = vadd.f32 %v3132, %v5370
        %v5373 = vld [vmem:[#allocation10] sm:$0xf]
        %v5374 = vld [vmem:[#allocation10 + $0x4] sm:$0xf]
        %v5375 = vld [vmem:[#allocation10 + $0x8] sm:$0xf]
        %v5376 = vld [vmem:[#allocation10 + $0xc] sm:$0xf]
        %v5377 = vld [vmem:[#allocation10 + $0x10] sm:$0xf]
        %v5378 = vld [vmem:[#allocation10 + $0x14] sm:$0xf]
        %v5379 = vld [vmem:[#allocation10 + $0x18] sm:$0xf]
        %v5380 = vld [vmem:[#allocation10 + $0x1c] sm:$0xf]
        %v5381 = vld [vmem:[#allocation10 + $0x20] sm:$0xf]
        %v5382 = vld [vmem:[#allocation10 + $0x24] sm:$0xf]
        %v5383 = vld [vmem:[#allocation10 + $0x28] sm:$0xf]
        %v5384 = vld [vmem:[#allocation10 + $0x2c] sm:$0xf]
        %v5385 = vld [vmem:[#allocation10 + $0x30] sm:$0xf]
        %v5386 = vld [vmem:[#allocation10 + $0x34] sm:$0xf]
        %v5387 = vld [vmem:[#allocation10 + $0x38] sm:$0xf]
        %v5388 = vld [vmem:[#allocation10 + $0x3c] sm:$0xf]
        %v5389 = vld [vmem:[#allocation10 + $0x40] sm:$0xf]
        %v5390 = vld [vmem:[#allocation10 + $0x44] sm:$0xf]
        %v5391 = vld [vmem:[#allocation10 + $0x48] sm:$0xf]
        %v5392 = vld [vmem:[#allocation10 + $0x4c] sm:$0xf]
        %v5393 = vld [vmem:[#allocation10 + $0x50] sm:$0xf]
        %v5394 = vld [vmem:[#allocation10 + $0x54] sm:$0xf]
        %v5395 = vld [vmem:[#allocation10 + $0x58] sm:$0xf]
        %v5396 = vld [vmem:[#allocation10 + $0x5c] sm:$0xf]
        %v5397 = vld [vmem:[#allocation10 + $0x60] sm:$0xf]
        %v5398 = vld [vmem:[#allocation10 + $0x64] sm:$0xf]
        %v5399 = vld [vmem:[#allocation10 + $0x68] sm:$0xf]
        %v5400 = vld [vmem:[#allocation10 + $0x6c] sm:$0xf]
        %v5401 = vld [vmem:[#allocation10 + $0x70] sm:$0xf]
        %v5402 = vld [vmem:[#allocation10 + $0x74] sm:$0xf]
        %v5403 = vld [vmem:[#allocation10 + $0x78] sm:$0xf]
        %v5404 = vld [vmem:[#allocation10 + $0x7c] sm:$0xf]
        %v5405 = vld [vmem:[#allocation10 + $0x80] sm:$0xf]
        %v5406 = vld [vmem:[#allocation10 + $0x84] sm:$0xf]
        %v5407 = vld [vmem:[#allocation10 + $0x88] sm:$0xf]
        %v5408 = vld [vmem:[#allocation10 + $0x8c] sm:$0xf]
        %v5409 = vld [vmem:[#allocation10 + $0x90] sm:$0xf]
        %v5410 = vld [vmem:[#allocation10 + $0x94] sm:$0xf]
        %v5411 = vld [vmem:[#allocation10 + $0x98] sm:$0xf]
        %v5412 = vld [vmem:[#allocation10 + $0x9c] sm:$0xf]
        %v5413 = vld [vmem:[#allocation10 + $0xa0] sm:$0xf]
        %v5414 = vld [vmem:[#allocation10 + $0xa4] sm:$0xf]
        %v5415 = vld [vmem:[#allocation10 + $0xa8] sm:$0xf]
        %v5416 = vld [vmem:[#allocation10 + $0xac] sm:$0xf]
        %v5417 = vld [vmem:[#allocation10 + $0xb0] sm:$0xf]
        %v5418 = vld [vmem:[#allocation10 + $0xb4] sm:$0xf]
        %v5419 = vld [vmem:[#allocation10 + $0xb8] sm:$0xf]
        %v5420 = vld [vmem:[#allocation10 + $0xbc] sm:$0xf]
        %v5421 = vld [vmem:[#allocation10 + $0xc0] sm:$0xf]
        %v5422 = vld [vmem:[#allocation10 + $0xc4] sm:$0xf]
        %v5423 = vld [vmem:[#allocation10 + $0xc8] sm:$0xf]
        %v5424 = vld [vmem:[#allocation10 + $0xcc] sm:$0xf]
        %v5425 = vld [vmem:[#allocation10 + $0xd0] sm:$0xf]
        %v5426 = vld [vmem:[#allocation10 + $0xd4] sm:$0xf]
        %v5427 = vld [vmem:[#allocation10 + $0xd8] sm:$0xf]
        %v5428 = vld [vmem:[#allocation10 + $0xdc] sm:$0xf]
        %v5429 = vld [vmem:[#allocation10 + $0xe0] sm:$0xf]
        %v5430 = vld [vmem:[#allocation10 + $0xe4] sm:$0xf]
        %v5431 = vld [vmem:[#allocation10 + $0xe8] sm:$0xf]
        %v5432 = vld [vmem:[#allocation10 + $0xec] sm:$0xf]
        %v5433 = vld [vmem:[#allocation10 + $0xf0] sm:$0xf]
        %v5434 = vld [vmem:[#allocation10 + $0xf4] sm:$0xf]
        %v5435 = vld [vmem:[#allocation10 + $0xf8] sm:$0xf]
        %v5436 = vld [vmem:[#allocation10 + $0xfc] sm:$0xf]
        %v5438 = vlaneseq
        %v5439 = vshrl.u32 %v5438, 7
        %v5440 = vsub.s32 0, %v5439
        %v5441 = vrot.slane %v5372, %v5440
        %v5442 = vlaneseq
        %v5443 = vshrl.u32 %v5442, 7
        %v5444 = vsub.s32 1, %v5443
        %v5445 = vrot.slane %v5372, %v5444
        %v5446 = vlaneseq
        %v5447 = vshrl.u32 %v5446, 7
        %v5448 = vsub.s32 2, %v5447
        %v5449 = vrot.slane %v5372, %v5448
        %v5450 = vlaneseq
        %v5451 = vshrl.u32 %v5450, 7
        %v5452 = vsub.s32 3, %v5451
        %v5453 = vrot.slane %v5372, %v5452
        %v5458 = vpack.c.bf16 %v5441, %v5441
        %v5459 = vpack.c.bf16 %v5445, %v5445
        %v5460 = vpack.c.bf16 %v5449, %v5449
        %v5461 = vpack.c.bf16 %v5453, %v5453
        %v5462 = vld [vmem:[#allocation12] sm:$0x1]
        %v5527 = vunpack.c.l.b16 %v5373
        %v5528 = vunpack.c.l.b16 %v5374
        %v5529 = vunpack.c.l.b16 %v5375
        %v5530 = vunpack.c.l.b16 %v5376
        %v5531 = vunpack.c.l.b16 %v5377
        %v5532 = vunpack.c.l.b16 %v5378
        %v5533 = vunpack.c.l.b16 %v5379
        %v5534 = vunpack.c.l.b16 %v5380
        %v5535 = vunpack.c.l.b16 %v5381
        %v5536 = vunpack.c.l.b16 %v5382
        %v5537 = vunpack.c.l.b16 %v5383
        %v5538 = vunpack.c.l.b16 %v5384
        %v5539 = vunpack.c.l.b16 %v5385
        %v5540 = vunpack.c.l.b16 %v5386
        %v5541 = vunpack.c.l.b16 %v5387
        %v5542 = vunpack.c.l.b16 %v5388
        %v5543 = vunpack.c.l.b16 %v5389
        %v5544 = vunpack.c.l.b16 %v5390
        %v5545 = vunpack.c.l.b16 %v5391
        %v5546 = vunpack.c.l.b16 %v5392
        %v5547 = vunpack.c.l.b16 %v5393
        %v5548 = vunpack.c.l.b16 %v5394
        %v5549 = vunpack.c.l.b16 %v5395
        %v5550 = vunpack.c.l.b16 %v5396
        %v5551 = vunpack.c.l.b16 %v5397
        %v5552 = vunpack.c.l.b16 %v5398
        %v5553 = vunpack.c.l.b16 %v5399
        %v5554 = vunpack.c.l.b16 %v5400
        %v5555 = vunpack.c.l.b16 %v5401
        %v5556 = vunpack.c.l.b16 %v5402
        %v5557 = vunpack.c.l.b16 %v5403
        %v5558 = vunpack.c.l.b16 %v5404
        %v5559 = vunpack.c.l.b16 %v5405
        %v5560 = vunpack.c.l.b16 %v5406
        %v5561 = vunpack.c.l.b16 %v5407
        %v5562 = vunpack.c.l.b16 %v5408
        %v5563 = vunpack.c.l.b16 %v5409
        %v5564 = vunpack.c.l.b16 %v5410
        %v5565 = vunpack.c.l.b16 %v5411
        %v5566 = vunpack.c.l.b16 %v5412
        %v5567 = vunpack.c.l.b16 %v5413
        %v5568 = vunpack.c.l.b16 %v5414
        %v5569 = vunpack.c.l.b16 %v5415
        %v5570 = vunpack.c.l.b16 %v5416
        %v5571 = vunpack.c.l.b16 %v5417
        %v5572 = vunpack.c.l.b16 %v5418
        %v5573 = vunpack.c.l.b16 %v5419
        %v5574 = vunpack.c.l.b16 %v5420
        %v5575 = vunpack.c.l.b16 %v5421
        %v5576 = vunpack.c.l.b16 %v5422
        %v5577 = vunpack.c.l.b16 %v5423
        %v5578 = vunpack.c.l.b16 %v5424
        %v5579 = vunpack.c.l.b16 %v5425
        %v5580 = vunpack.c.l.b16 %v5426
        %v5581 = vunpack.c.l.b16 %v5427
        %v5582 = vunpack.c.l.b16 %v5428
        %v5583 = vunpack.c.l.b16 %v5429
        %v5584 = vunpack.c.l.b16 %v5430
        %v5585 = vunpack.c.l.b16 %v5431
        %v5586 = vunpack.c.l.b16 %v5432
        %v5587 = vunpack.c.l.b16 %v5433
        %v5588 = vunpack.c.l.b16 %v5434
        %v5589 = vunpack.c.l.b16 %v5435
        %v5590 = vunpack.c.l.b16 %v5436
        %v5591 = vpack.c.b16 %v5528, %v5527
        %v5592 = vpack.c.b16 %v5530, %v5529
        %v5593 = vpack.c.b16 %v5532, %v5531
        %v5594 = vpack.c.b16 %v5534, %v5533
        %v5595 = vpack.c.b16 %v5536, %v5535
        %v5596 = vpack.c.b16 %v5538, %v5537
        %v5597 = vpack.c.b16 %v5540, %v5539
        %v5598 = vpack.c.b16 %v5542, %v5541
        %v5599 = vpack.c.b16 %v5544, %v5543
        %v5600 = vpack.c.b16 %v5546, %v5545
        %v5601 = vpack.c.b16 %v5548, %v5547
        %v5602 = vpack.c.b16 %v5550, %v5549
        %v5603 = vpack.c.b16 %v5552, %v5551
        %v5604 = vpack.c.b16 %v5554, %v5553
        %v5605 = vpack.c.b16 %v5556, %v5555
        %v5606 = vpack.c.b16 %v5558, %v5557
        %v5607 = vpack.c.b16 %v5560, %v5559
        %v5608 = vpack.c.b16 %v5562, %v5561
        %v5609 = vpack.c.b16 %v5564, %v5563
        %v5610 = vpack.c.b16 %v5566, %v5565
        %v5611 = vpack.c.b16 %v5568, %v5567
        %v5612 = vpack.c.b16 %v5570, %v5569
        %v5613 = vpack.c.b16 %v5572, %v5571
        %v5614 = vpack.c.b16 %v5574, %v5573
        %v5615 = vpack.c.b16 %v5576, %v5575
        %v5616 = vpack.c.b16 %v5578, %v5577
        %v5617 = vpack.c.b16 %v5580, %v5579
        %v5618 = vpack.c.b16 %v5582, %v5581
        %v5619 = vpack.c.b16 %v5584, %v5583
        %v5620 = vpack.c.b16 %v5586, %v5585
        %v5621 = vpack.c.b16 %v5588, %v5587
        %v5622 = vpack.c.b16 %v5590, %v5589
        %5655 = vmatprep.subr.bf16.mxu0 0
        %5656 = vmatpush1.bf16.msra.mxu0 %v5591
        %5657 = vmatprep.subr.bf16.mxu0 0
        %5658 = vmatpush1.bf16.msra.mxu0 %v5592
        %5659 = vmatprep.subr.bf16.mxu0 0
        %5660 = vmatpush1.bf16.msra.mxu0 %v5593
        %5661 = vmatprep.subr.bf16.mxu0 0
        %5662 = vmatpush1.bf16.msra.mxu0 %v5594
        %5663 = vmatprep.subr.bf16.mxu0 0
        %5664 = vmatpush1.bf16.msra.mxu0 %v5595
        %5665 = vmatprep.subr.bf16.mxu0 0
        %5666 = vmatpush1.bf16.msra.mxu0 %v5596
        %5667 = vmatprep.subr.bf16.mxu0 0
        %5668 = vmatpush1.bf16.msra.mxu0 %v5597
        %5669 = vmatprep.subr.bf16.mxu0 0
        %5670 = vmatpush1.bf16.msra.mxu0 %v5598
        %5671 = vmatprep.subr.bf16.mxu0 0
        %5672 = vmatpush1.bf16.msra.mxu0 %v5599
        %5673 = vmatprep.subr.bf16.mxu0 0
        %5674 = vmatpush1.bf16.msra.mxu0 %v5600
        %5675 = vmatprep.subr.bf16.mxu0 0
        %5676 = vmatpush1.bf16.msra.mxu0 %v5601
        %5677 = vmatprep.subr.bf16.mxu0 0
        %5678 = vmatpush1.bf16.msra.mxu0 %v5602
        %5679 = vmatprep.subr.bf16.mxu0 0
        %5680 = vmatpush1.bf16.msra.mxu0 %v5603
        %5681 = vmatprep.subr.bf16.mxu0 0
        %5682 = vmatpush1.bf16.msra.mxu0 %v5604
        %5683 = vmatprep.subr.bf16.mxu0 0
        %5684 = vmatpush1.bf16.msra.mxu0 %v5605
        %5685 = vmatprep.subr.bf16.mxu0 0
        %5686 = vmatpush1.bf16.msra.mxu0 %v5606
        %5687 = vmatprep.mubr.bf16.mxu0 %v5459
        %5688 = vmatmul.mubr.bf16.gmra.mrb[0].mxu0 %v5458
        %v5689 = vpop.f32.mrb[0].mxu0
        %v5690 = vadd.f32 %v5462, %v5689
        %v5691 = vpop.f32.mrb[0].mxu0
        %v5692 = vpop.f32.mrb[0].mxu0
        %v5693 = vpop.f32.mrb[0].mxu0
        %5694 = vdwg.mxu0
        %5695 = vmatprep.subr.bf16.mxu0 0
        %5696 = vmatpush1.bf16.msra.mxu0 %v5607
        %5697 = vmatprep.subr.bf16.mxu0 0
        %5698 = vmatpush1.bf16.msra.mxu0 %v5608
        %5699 = vmatprep.subr.bf16.mxu0 0
        %5700 = vmatpush1.bf16.msra.mxu0 %v5609
        %5701 = vmatprep.subr.bf16.mxu0 0
        %5702 = vmatpush1.bf16.msra.mxu0 %v5610
        %5703 = vmatprep.subr.bf16.mxu0 0
        %5704 = vmatpush1.bf16.msra.mxu0 %v5611
        %5705 = vmatprep.subr.bf16.mxu0 0
        %5706 = vmatpush1.bf16.msra.mxu0 %v5612
        %5707 = vmatprep.subr.bf16.mxu0 0
        %5708 = vmatpush1.bf16.msra.mxu0 %v5613
        %5709 = vmatprep.subr.bf16.mxu0 0
        %5710 = vmatpush1.bf16.msra.mxu0 %v5614
        %5711 = vmatprep.subr.bf16.mxu0 0
        %5712 = vmatpush1.bf16.msra.mxu0 %v5615
        %5713 = vmatprep.subr.bf16.mxu0 0
        %5714 = vmatpush1.bf16.msra.mxu0 %v5616
        %5715 = vmatprep.subr.bf16.mxu0 0
        %5716 = vmatpush1.bf16.msra.mxu0 %v5617
        %5717 = vmatprep.subr.bf16.mxu0 0
        %5718 = vmatpush1.bf16.msra.mxu0 %v5618
        %5719 = vmatprep.subr.bf16.mxu0 0
        %5720 = vmatpush1.bf16.msra.mxu0 %v5619
        %5721 = vmatprep.subr.bf16.mxu0 0
        %5722 = vmatpush1.bf16.msra.mxu0 %v5620
        %5723 = vmatprep.subr.bf16.mxu0 0
        %5724 = vmatpush1.bf16.msra.mxu0 %v5621
        %5725 = vmatprep.subr.bf16.mxu0 0
        %5726 = vmatpush1.bf16.msra.mxu0 %v5622
        %5727 = vmatprep.mubr.bf16.mxu0 %v5461
        %5728 = vmatmul.mubr.bf16.gmra.mrb[0].mxu0 %v5460
        %v5729 = vpop.f32.mrb[0].mxu0
        %v5730 = vadd.f32 %v5690, %v5729
        %v5731 = vpop.f32.mrb[0].mxu0
        %v5732 = vpop.f32.mrb[0].mxu0
        %v5733 = vpop.f32.mrb[0].mxu0
        %5734 = vdwg.mxu0
        %v5735 = vld [vmem:[%s759] sm:$0x7]
        %vm5736 = vcmask 124928
        %v5737 = vsel %vm5736, %v5735, 0.0
        %5738 = vadd.xlane.f32.xlu0 %v5737
        %v5739 = vpop.xlane.xlu0 %5738
        %v5740 = vrcp.pop 16.0
        %v5741 = vmul.f32 %v5739, %v5740
        %v5742 = vsub.f32 %v5735, %v5741
        %v5743 = vmul.f32 %v5742, %v5742
        %v5744 = vsel %vm5736, %v5743, 0.0
        %5745 = vadd.xlane.f32.xlu0 %v5744
        %v5746 = vpop.xlane.xlu0 %5745
        %v5747 = vmul.f32 %v5746, %v5740
        %v5748 = vadd.f32 %v5747, 1e-05
        %v5749 = vrsqrt.pop %v5748
        %v5750 = vmul.f32 %v5742, %v5749
        %v5751 = vld [vmem:[#allocation13] sm:$0x1]
        %v5753 = vlaneseq
        %v5754 = vshrl.u32 %v5753, 7
        %v5755 = vsub.s32 0, %v5754
        %v5756 = vrot.slane %v5751, %v5755
        %v5758 = vmul.f32 %v5750, %v5756
        %v5759 = vld [vmem:[#allocation15] sm:$0x1]
        %v5761 = vlaneseq
        %v5762 = vshrl.u32 %v5761, 7
        %v5763 = vsub.s32 0, %v5762
        %v5764 = vrot.slane %v5759, %v5763
        %v5766 = vadd.f32 %v5758, %v5764
        %v5767 = vld [vmem:[#allocation16] sm:$0xf]
        %v5768 = vld [vmem:[#allocation16 + $0x4] sm:$0xf]
        %v5769 = vpack.c.bf16 %v5766, %v5766
        %v5772 = vunpack.c.l.b16 %v5767
        %v5773 = vunpack.c.l.b16 %v5768
        %v5774 = vpack.c.b16 %v5773, %v5772
        %vm5776 = vcmask 130048
        %v5778 = vsel %vm5776, %v5769, 0
        %5780 = vmatprep.subr.bf16.mxu0 0
        %5781 = vmatpush1.bf16.msra.mxu0 %v5774
        %5782 = vmatprep.subr.bf16.mxu0 0
        %5783 = vmatpush1.bf16.msra.mxu0 0
        %5784 = vmatprep.subr.bf16.mxu0 0
        %5785 = vmatpush1.bf16.msra.mxu0 0
        %5786 = vmatprep.subr.bf16.mxu0 0
        %5787 = vmatpush1.bf16.msra.mxu0 0
        %5788 = vmatprep.subr.bf16.mxu0 0
        %5789 = vmatpush1.bf16.msra.mxu0 0
        %5790 = vmatprep.subr.bf16.mxu0 0
        %5791 = vmatpush1.bf16.msra.mxu0 0
        %5792 = vmatprep.subr.bf16.mxu0 0
        %5793 = vmatpush1.bf16.msra.mxu0 0
        %5794 = vmatprep.subr.bf16.mxu0 0
        %5795 = vmatpush1.bf16.msra.mxu0 0
        %5796 = vmatprep.subr.bf16.mxu0 0
        %5797 = vmatpush1.bf16.msra.mxu0 0
        %5798 = vmatprep.subr.bf16.mxu0 0
        %5799 = vmatpush1.bf16.msra.mxu0 0
        %5800 = vmatprep.subr.bf16.mxu0 0
        %5801 = vmatpush1.bf16.msra.mxu0 0
        %5802 = vmatprep.subr.bf16.mxu0 0
        %5803 = vmatpush1.bf16.msra.mxu0 0
        %5804 = vmatprep.subr.bf16.mxu0 0
        %5805 = vmatpush1.bf16.msra.mxu0 0
        %5806 = vmatprep.subr.bf16.mxu0 0
        %5807 = vmatpush1.bf16.msra.mxu0 0
        %5808 = vmatprep.subr.bf16.mxu0 0
        %5809 = vmatpush1.bf16.msra.mxu0 0
        %5810 = vmatprep.subr.bf16.mxu0 0
        %5811 = vmatpush1.bf16.msra.mxu0 0
        %5812 = vmatprep.mubr.bf16.mxu0 0
        %5813 = vmatmul.mubr.bf16.gmra.mrb[0].mxu0 %v5778
        %v5814 = vpop.f32.mrb[0].mxu0
        %v5815 = vadd.f32 0.0, %v5814
        %v5816 = vpop.f32.mrb[0].mxu0
        %v5817 = vpop.f32.mrb[0].mxu0
        %v5818 = vpop.f32.mrb[0].mxu0
        %5819 = vdwg.mxu0
        %v5820 = vld [vmem:[#allocation18] sm:$0xf]
        %v5821 = vld [vmem:[#allocation18 + $0x4] sm:$0xf]
        %v5822 = vld [vmem:[#allocation18 + $0x8] sm:$0xf]
        %v5823 = vld [vmem:[#allocation18 + $0xc] sm:$0xf]
        %v5824 = vld [vmem:[#allocation18 + $0x10] sm:$0xf]
        %v5825 = vld [vmem:[#allocation18 + $0x14] sm:$0xf]
        %v5826 = vld [vmem:[#allocation18 + $0x18] sm:$0xf]
        %v5827 = vld [vmem:[#allocation18 + $0x1c] sm:$0xf]
        %v5828 = vld [vmem:[#allocation18 + $0x20] sm:$0xf]
        %v5829 = vld [vmem:[#allocation18 + $0x24] sm:$0xf]
        %v5830 = vld [vmem:[#allocation18 + $0x28] sm:$0xf]
        %v5831 = vld [vmem:[#allocation18 + $0x2c] sm:$0xf]
        %v5832 = vld [vmem:[#allocation18 + $0x30] sm:$0xf]
        %v5833 = vld [vmem:[#allocation18 + $0x34] sm:$0xf]
        %v5834 = vld [vmem:[#allocation18 + $0x38] sm:$0xf]
        %v5835 = vld [vmem:[#allocation18 + $0x3c] sm:$0xf]
        %v5836 = vpack.c.bf16 %v5815, %v5815
        %v5837 = vld [vmem:[#allocation19] sm:$0x1]
        %v5839 = vlaneseq
        %v5840 = vshrl.u32 %v5839, 7
        %v5841 = vsub.s32 0, %v5840
        %v5842 = vrot.slane %v5837, %v5841
        %v5860 = vunpack.c.l.b16 %v5820
        %v5861 = vunpack.c.l.b16 %v5821
        %v5862 = vunpack.c.l.b16 %v5822
        %v5863 = vunpack.c.l.b16 %v5823
        %v5864 = vunpack.c.l.b16 %v5824
        %v5865 = vunpack.c.l.b16 %v5825
        %v5866 = vunpack.c.l.b16 %v5826
        %v5867 = vunpack.c.l.b16 %v5827
        %v5868 = vunpack.c.l.b16 %v5828
        %v5869 = vunpack.c.l.b16 %v5829
        %v5870 = vunpack.c.l.b16 %v5830
        %v5871 = vunpack.c.l.b16 %v5831
        %v5872 = vunpack.c.l.b16 %v5832
        %v5873 = vunpack.c.l.b16 %v5833
        %v5874 = vunpack.c.l.b16 %v5834
        %v5875 = vunpack.c.l.b16 %v5835
        %v5876 = vpack.c.b16 %v5861, %v5860
        %v5877 = vpack.c.b16 %v5863, %v5862
        %v5878 = vpack.c.b16 %v5865, %v5864
        %v5879 = vpack.c.b16 %v5867, %v5866
        %v5880 = vpack.c.b16 %v5869, %v5868
        %v5881 = vpack.c.b16 %v5871, %v5870
        %v5882 = vpack.c.b16 %v5873, %v5872
        %v5883 = vpack.c.b16 %v5875, %v5874
        %5892 = vmatprep.subr.bf16.mxu0 0
        %5893 = vmatpush1.bf16.msra.mxu0 %v5876
        %5894 = vmatprep.subr.bf16.mxu0 0
        %5895 = vmatpush1.bf16.msra.mxu0 %v5877
        %5896 = vmatprep.subr.bf16.mxu0 0
        %5897 = vmatpush1.bf16.msra.mxu0 %v5878
        %5898 = vmatprep.subr.bf16.mxu0 0
        %5899 = vmatpush1.bf16.msra.mxu0 %v5879
        %5900 = vmatprep.subr.bf16.mxu0 0
        %5901 = vmatpush1.bf16.msra.mxu0 %v5880
        %5902 = vmatprep.subr.bf16.mxu0 0
        %5903 = vmatpush1.bf16.msra.mxu0 %v5881
        %5904 = vmatprep.subr.bf16.mxu0 0
        %5905 = vmatpush1.bf16.msra.mxu0 %v5882
        %5906 = vmatprep.subr.bf16.mxu0 0
        %5907 = vmatpush1.bf16.msra.mxu0 %v5883
        %5908 = vmatprep.subr.bf16.mxu0 0
        %5909 = vmatpush1.bf16.msra.mxu0 0
        %5910 = vmatprep.subr.bf16.mxu0 0
        %5911 = vmatpush1.bf16.msra.mxu0 0
        %5912 = vmatprep.subr.bf16.mxu0 0
        %5913 = vmatpush1.bf16.msra.mxu0 0
        %5914 = vmatprep.subr.bf16.mxu0 0
        %5915 = vmatpush1.bf16.msra.mxu0 0
        %5916 = vmatprep.subr.bf16.mxu0 0
        %5917 = vmatpush1.bf16.msra.mxu0 0
        %5918 = vmatprep.subr.bf16.mxu0 0
        %5919 = vmatpush1.bf16.msra.mxu0 0
        %5920 = vmatprep.subr.bf16.mxu0 0
        %5921 = vmatpush1.bf16.msra.mxu0 0
        %5922 = vmatprep.subr.bf16.mxu0 0
        %5923 = vmatpush1.bf16.msra.mxu0 0
        %5924 = vmatprep.mubr.bf16.mxu0 0
        %5925 = vmatmul.mubr.bf16.gmra.mrb[0].mxu0 %v5836
        %v5926 = vpop.f32.mrb[0].mxu0
        %v5927 = vadd.f32 %v5842, %v5926
        %v5928 = vpop.f32.mrb[0].mxu0
        %v5929 = vpop.f32.mrb[0].mxu0
        %v5930 = vpop.f32.mrb[0].mxu0
        %5931 = vdwg.mxu0
        %v5932 = vld [vmem:[#allocation21] sm:$0xff]
        %v5933 = vld [vmem:[#allocation21 + $0x8] sm:$0xf]
        %v5934 = vld [vmem:[#allocation21 + $0xc] sm:$0xff]
        %v5935 = vld [vmem:[#allocation21 + $0x14] sm:$0xf]
        %v5936 = vld [vmem:[#allocation21 + $0x18] sm:$0xff]
        %v5937 = vld [vmem:[#allocation21 + $0x20] sm:$0xf]
        %v5938 = vld [vmem:[#allocation21 + $0x24] sm:$0xff]
        %v5939 = vld [vmem:[#allocation21 + $0x2c] sm:$0xf]
        %v5940 = vld [vmem:[#allocation21 + $0x30] sm:$0xff]
        %v5941 = vld [vmem:[#allocation21 + $0x38] sm:$0xf]
        %v5942 = vld [vmem:[#allocation21 + $0x3c] sm:$0xff]
        %v5943 = vld [vmem:[#allocation21 + $0x44] sm:$0xf]
        %v5944 = vld [vmem:[#allocation21 + $0x48] sm:$0xff]
        %v5945 = vld [vmem:[#allocation21 + $0x50] sm:$0xf]
        %v5946 = vld [vmem:[#allocation21 + $0x54] sm:$0xff]
        %v5947 = vld [vmem:[#allocation21 + $0x5c] sm:$0xf]
        %v5948 = vld [vmem:[#allocation21 + $0x60] sm:$0xff]
        %v5949 = vld [vmem:[#allocation21 + $0x68] sm:$0xf]
        %v5950 = vld [vmem:[#allocation21 + $0x6c] sm:$0xff]
        %v5951 = vld [vmem:[#allocation21 + $0x74] sm:$0xf]
        %v5952 = vld [vmem:[#allocation21 + $0x78] sm:$0xff]
        %v5953 = vld [vmem:[#allocation21 + $0x80] sm:$0xf]
        %v5954 = vld [vmem:[#allocation21 + $0x84] sm:$0xff]
        %v5955 = vld [vmem:[#allocation21 + $0x8c] sm:$0xf]
        %v5956 = vld [vmem:[#allocation21 + $0x90] sm:$0xff]
        %v5957 = vld [vmem:[#allocation21 + $0x98] sm:$0xf]
        %v5958 = vld [vmem:[#allocation21 + $0x9c] sm:$0xff]
        %v5959 = vld [vmem:[#allocation21 + $0xa4] sm:$0xf]
        %v5960 = vld [vmem:[#allocation21 + $0xa8] sm:$0xff]
        %v5961 = vld [vmem:[#allocation21 + $0xb0] sm:$0xf]
        %v5962 = vld [vmem:[#allocation21 + $0xb4] sm:$0xff]
        %v5963 = vld [vmem:[#allocation21 + $0xbc] sm:$0xf]
        %v5964 = vpack.c.bf16 %v5927, %v5927
        %v5965 = vld [vmem:[#allocation24] sm:$0x7]
        %v5967 = vlaneseq
        %v5968 = vshrl.u32 %v5967, 7
        %v5969 = vsub.s32 0, %v5968
        %v5970 = vrot.slane %v5965, %v5969
        %v5971 = vlaneseq
        %v5972 = vshrl.u32 %v5971, 7
        %v5973 = vsub.s32 1, %v5972
        %v5974 = vrot.slane %v5965, %v5973
        %v5975 = vlaneseq
        %v5976 = vshrl.u32 %v5975, 7
        %v5977 = vsub.s32 2, %v5976
        %v5978 = vrot.slane %v5965, %v5977
        %v6014 = vunpack.c.l.b16 %v5932
        %v6015 = vunpack.c.h.b16 %v5932
        %v6016 = vunpack.c.l.b16 %v5933
        %v6017 = vunpack.c.l.b16 %v5934
        %v6018 = vunpack.c.h.b16 %v5934
        %v6019 = vunpack.c.l.b16 %v5935
        %v6020 = vunpack.c.l.b16 %v5936
        %v6021 = vunpack.c.h.b16 %v5936
        %v6022 = vunpack.c.l.b16 %v5937
        %v6023 = vunpack.c.l.b16 %v5938
        %v6024 = vunpack.c.h.b16 %v5938
        %v6025 = vunpack.c.l.b16 %v5939
        %v6026 = vunpack.c.l.b16 %v5940
        %v6027 = vunpack.c.h.b16 %v5940
        %v6028 = vunpack.c.l.b16 %v5941
        %v6029 = vunpack.c.l.b16 %v5942
        %v6030 = vunpack.c.h.b16 %v5942
        %v6031 = vunpack.c.l.b16 %v5943
        %v6032 = vunpack.c.l.b16 %v5944
        %v6033 = vunpack.c.h.b16 %v5944
        %v6034 = vunpack.c.l.b16 %v5945
        %v6035 = vunpack.c.l.b16 %v5946
        %v6036 = vunpack.c.h.b16 %v5946
        %v6037 = vunpack.c.l.b16 %v5947
        %v6038 = vunpack.c.l.b16 %v5948
        %v6039 = vunpack.c.h.b16 %v5948
        %v6040 = vunpack.c.l.b16 %v5949
        %v6041 = vunpack.c.l.b16 %v5950
        %v6042 = vunpack.c.h.b16 %v5950
        %v6043 = vunpack.c.l.b16 %v5951
        %v6044 = vunpack.c.l.b16 %v5952
        %v6045 = vunpack.c.h.b16 %v5952
        %v6046 = vunpack.c.l.b16 %v5953
        %v6047 = vunpack.c.l.b16 %v5954
        %v6048 = vunpack.c.h.b16 %v5954
        %v6049 = vunpack.c.l.b16 %v5955
        %v6050 = vunpack.c.l.b16 %v5956
        %v6051 = vunpack.c.h.b16 %v5956
        %v6052 = vunpack.c.l.b16 %v5957
        %v6053 = vunpack.c.l.b16 %v5958
        %v6054 = vunpack.c.h.b16 %v5958
        %v6055 = vunpack.c.l.b16 %v5959
        %v6056 = vunpack.c.l.b16 %v5960
        %v6057 = vunpack.c.h.b16 %v5960
        %v6058 = vunpack.c.l.b16 %v5961
        %v6059 = vunpack.c.l.b16 %v5962
        %v6060 = vunpack.c.h.b16 %v5962
        %v6061 = vunpack.c.l.b16 %v5963
        %v6062 = vpack.c.b16 %v6017, %v6014
        %v6063 = vpack.c.b16 %v6018, %v6015
        %v6064 = vpack.c.b16 %v6019, %v6016
        %v6065 = vpack.c.b16 %v6023, %v6020
        %v6066 = vpack.c.b16 %v6024, %v6021
        %v6067 = vpack.c.b16 %v6025, %v6022
        %v6068 = vpack.c.b16 %v6029, %v6026
        %v6069 = vpack.c.b16 %v6030, %v6027
        %v6070 = vpack.c.b16 %v6031, %v6028
        %v6071 = vpack.c.b16 %v6035, %v6032
        %v6072 = vpack.c.b16 %v6036, %v6033
        %v6073 = vpack.c.b16 %v6037, %v6034
        %v6074 = vpack.c.b16 %v6041, %v6038
        %v6075 = vpack.c.b16 %v6042, %v6039
        %v6076 = vpack.c.b16 %v6043, %v6040
        %v6077 = vpack.c.b16 %v6047, %v6044
        %v6078 = vpack.c.b16 %v6048, %v6045
        %v6079 = vpack.c.b16 %v6049, %v6046
        %v6080 = vpack.c.b16 %v6053, %v6050
        %v6081 = vpack.c.b16 %v6054, %v6051
        %v6082 = vpack.c.b16 %v6055, %v6052
        %v6083 = vpack.c.b16 %v6059, %v6056
        %v6084 = vpack.c.b16 %v6060, %v6057
        %v6085 = vpack.c.b16 %v6061, %v6058
        %6110 = vmatprep.subr.bf16.mxu0 %v6063
        %6111 = vmatpush1.bf16.msra.mxu0 %v6062
        %6112 = vmatprep.subr.bf16.mxu0 %v6066
        %6113 = vmatpush1.bf16.msra.mxu0 %v6065
        %6114 = vmatprep.subr.bf16.mxu0 %v6069
        %6115 = vmatpush1.bf16.msra.mxu0 %v6068
        %6116 = vmatprep.subr.bf16.mxu0 %v6072
        %6117 = vmatpush1.bf16.msra.mxu0 %v6071
        %6118 = vmatprep.subr.bf16.mxu0 %v6075
        %6119 = vmatpush1.bf16.msra.mxu0 %v6074
        %6120 = vmatprep.subr.bf16.mxu0 %v6078
        %6121 = vmatpush1.bf16.msra.mxu0 %v6077
        %6122 = vmatprep.subr.bf16.mxu0 %v6081
        %6123 = vmatpush1.bf16.msra.mxu0 %v6080
        %6124 = vmatprep.subr.bf16.mxu0 %v6084
        %6125 = vmatpush1.bf16.msra.mxu0 %v6083
        %6126 = vmatprep.subr.bf16.mxu0 0
        %6127 = vmatpush1.bf16.msra.mxu0 0
        %6128 = vmatprep.subr.bf16.mxu0 0
        %6129 = vmatpush1.bf16.msra.mxu0 0
        %6130 = vmatprep.subr.bf16.mxu0 0
        %6131 = vmatpush1.bf16.msra.mxu0 0
        %6132 = vmatprep.subr.bf16.mxu0 0
        %6133 = vmatpush1.bf16.msra.mxu0 0
        %6134 = vmatprep.subr.bf16.mxu0 0
        %6135 = vmatpush1.bf16.msra.mxu0 0
        %6136 = vmatprep.subr.bf16.mxu0 0
        %6137 = vmatpush1.bf16.msra.mxu0 0
        %6138 = vmatprep.subr.bf16.mxu0 0
        %6139 = vmatpush1.bf16.msra.mxu0 0
        %6140 = vmatprep.subr.bf16.mxu0 0
        %6141 = vmatpush1.bf16.msra.mxu0 0
        %6142 = vmatprep.mubr.bf16.mxu0 0
        %6143 = vmatmul.mubr.bf16.gmra.mrb[0].mxu0 %v5964
        %v6144 = vpop.f32.mrb[0].mxu0
        %v6145 = vadd.f32 %v5970, %v6144
        %v6146 = vpop.f32.mrb[0].mxu0
        %v6147 = vadd.f32 %v5974, %v6146
        %v6148 = vpop.f32.mrb[0].mxu0
        %v6149 = vpop.f32.mrb[0].mxu0
        %6150 = vdwg.mxu0
        %6151 = vmatprep.subr.bf16.mxu0 0
        %6152 = vmatpush1.bf16.msra.mxu0 %v6064
        %6153 = vmatprep.subr.bf16.mxu0 0
        %6154 = vmatpush1.bf16.msra.mxu0 %v6067
        %6155 = vmatprep.subr.bf16.mxu0 0
        %6156 = vmatpush1.bf16.msra.mxu0 %v6070
        %6157 = vmatprep.subr.bf16.mxu0 0
        %6158 = vmatpush1.bf16.msra.mxu0 %v6073
        %6159 = vmatprep.subr.bf16.mxu0 0
        %6160 = vmatpush1.bf16.msra.mxu0 %v6076
        %6161 = vmatprep.subr.bf16.mxu0 0
        %6162 = vmatpush1.bf16.msra.mxu0 %v6079
        %6163 = vmatprep.subr.bf16.mxu0 0
        %6164 = vmatpush1.bf16.msra.mxu0 %v6082
        %6165 = vmatprep.subr.bf16.mxu0 0
        %6166 = vmatpush1.bf16.msra.mxu0 %v6085
        %6167 = vmatprep.subr.bf16.mxu0 0
        %6168 = vmatpush1.bf16.msra.mxu0 0
        %6169 = vmatprep.subr.bf16.mxu0 0
        %6170 = vmatpush1.bf16.msra.mxu0 0
        %6171 = vmatprep.subr.bf16.mxu0 0
        %6172 = vmatpush1.bf16.msra.mxu0 0
        %6173 = vmatprep.subr.bf16.mxu0 0
        %6174 = vmatpush1.bf16.msra.mxu0 0
        %6175 = vmatprep.subr.bf16.mxu0 0
        %6176 = vmatpush1.bf16.msra.mxu0 0
        %6177 = vmatprep.subr.bf16.mxu0 0
        %6178 = vmatpush1.bf16.msra.mxu0 0
        %6179 = vmatprep.subr.bf16.mxu0 0
        %6180 = vmatpush1.bf16.msra.mxu0 0
        %6181 = vmatprep.subr.bf16.mxu0 0
        %6182 = vmatpush1.bf16.msra.mxu0 0
        %6183 = vmatprep.mubr.bf16.mxu0 0
        %6184 = vmatmul.mubr.bf16.gmra.mrb[0].mxu0 %v5964
        %v6185 = vpop.f32.mrb[0].mxu0
        %v6186 = vadd.f32 %v5978, %v6185
        %v6187 = vpop.f32.mrb[0].mxu0
        %v6188 = vpop.f32.mrb[0].mxu0
        %v6189 = vpop.f32.mrb[0].mxu0
        %6190 = vdwg.mxu0
        %v6191 = vld [vmem:[#allocation27] sm:$0xf]
        %v6192 = vld [vmem:[#allocation27 + $0x4] sm:$0xf]
        %v6193 = vpack.c.bf16 %v5735, %v5735
        %v6196 = vunpack.c.l.b16 %v6191
        %v6197 = vunpack.c.l.b16 %v6192
        %v6198 = vpack.c.b16 %v6197, %v6196
        %v6201 = vsel %vm5776, %v6193, 0
        %6203 = vmatprep.subr.bf16.mxu0 0
        %6204 = vmatpush1.bf16.msra.mxu0 %v6198
        %6205 = vmatprep.subr.bf16.mxu0 0
        %6206 = vmatpush1.bf16.msra.mxu0 0
        %6207 = vmatprep.subr.bf16.mxu0 0
        %6208 = vmatpush1.bf16.msra.mxu0 0
        %6209 = vmatprep.subr.bf16.mxu0 0
        %6210 = vmatpush1.bf16.msra.mxu0 0
        %6211 = vmatprep.subr.bf16.mxu0 0
        %6212 = vmatpush1.bf16.msra.mxu0 0
        %6213 = vmatprep.subr.bf16.mxu0 0
        %6214 = vmatpush1.bf16.msra.mxu0 0
        %6215 = vmatprep.subr.bf16.mxu0 0
        %6216 = vmatpush1.bf16.msra.mxu0 0
        %6217 = vmatprep.subr.bf16.mxu0 0
        %6218 = vmatpush1.bf16.msra.mxu0 0
        %6219 = vmatprep.subr.bf16.mxu0 0
        %6220 = vmatpush1.bf16.msra.mxu0 0
        %6221 = vmatprep.subr.bf16.mxu0 0
        %6222 = vmatpush1.bf16.msra.mxu0 0
        %6223 = vmatprep.subr.bf16.mxu0 0
        %6224 = vmatpush1.bf16.msra.mxu0 0
        %6225 = vmatprep.subr.bf16.mxu0 0
        %6226 = vmatpush1.bf16.msra.mxu0 0
        %6227 = vmatprep.subr.bf16.mxu0 0
        %6228 = vmatpush1.bf16.msra.mxu0 0
        %6229 = vmatprep.subr.bf16.mxu0 0
        %6230 = vmatpush1.bf16.msra.mxu0 0
        %6231 = vmatprep.subr.bf16.mxu0 0
        %6232 = vmatpush1.bf16.msra.mxu0 0
        %6233 = vmatprep.subr.bf16.mxu0 0
        %6234 = vmatpush1.bf16.msra.mxu0 0
        %6235 = vmatprep.mubr.bf16.mxu0 0
        %6236 = vmatmul.mubr.bf16.gmra.mrb[0].mxu0 %v6201
        %v6237 = vpop.f32.mrb[0].mxu0
        %v6238 = vadd.f32 0.0, %v6237
        %v6239 = vpop.f32.mrb[0].mxu0
        %v6240 = vpop.f32.mrb[0].mxu0
        %v6241 = vpop.f32.mrb[0].mxu0
        %6242 = vdwg.mxu0
        %v6243 = vld [vmem:[#allocation22] sm:$0xff]
        %v6244 = vld [vmem:[#allocation22 + $0x8] sm:$0xf]
        %v6245 = vld [vmem:[#allocation22 + $0xc] sm:$0xff]
        %v6246 = vld [vmem:[#allocation22 + $0x14] sm:$0xf]
        %v6247 = vld [vmem:[#allocation22 + $0x18] sm:$0xff]
        %v6248 = vld [vmem:[#allocation22 + $0x20] sm:$0xf]
        %v6249 = vld [vmem:[#allocation22 + $0x24] sm:$0xff]
        %v6250 = vld [vmem:[#allocation22 + $0x2c] sm:$0xf]
        %v6251 = vld [vmem:[#allocation22 + $0x30] sm:$0xff]
        %v6252 = vld [vmem:[#allocation22 + $0x38] sm:$0xf]
        %v6253 = vld [vmem:[#allocation22 + $0x3c] sm:$0xff]
        %v6254 = vld [vmem:[#allocation22 + $0x44] sm:$0xf]
        %v6255 = vld [vmem:[#allocation22 + $0x48] sm:$0xff]
        %v6256 = vld [vmem:[#allocation22 + $0x50] sm:$0xf]
        %v6257 = vld [vmem:[#allocation22 + $0x54] sm:$0xff]
        %v6258 = vld [vmem:[#allocation22 + $0x5c] sm:$0xf]
        %v6259 = vld [vmem:[#allocation22 + $0x60] sm:$0xff]
        %v6260 = vld [vmem:[#allocation22 + $0x68] sm:$0xf]
        %v6261 = vld [vmem:[#allocation22 + $0x6c] sm:$0xff]
        %v6262 = vld [vmem:[#allocation22 + $0x74] sm:$0xf]
        %v6263 = vld [vmem:[#allocation22 + $0x78] sm:$0xff]
        %v6264 = vld [vmem:[#allocation22 + $0x80] sm:$0xf]
        %v6265 = vld [vmem:[#allocation22 + $0x84] sm:$0xff]
        %v6266 = vld [vmem:[#allocation22 + $0x8c] sm:$0xf]
        %v6267 = vld [vmem:[#allocation22 + $0x90] sm:$0xff]
        %v6268 = vld [vmem:[#allocation22 + $0x98] sm:$0xf]
        %v6269 = vld [vmem:[#allocation22 + $0x9c] sm:$0xff]
        %v6270 = vld [vmem:[#allocation22 + $0xa4] sm:$0xf]
        %v6271 = vld [vmem:[#allocation22 + $0xa8] sm:$0xff]
        %v6272 = vld [vmem:[#allocation22 + $0xb0] sm:$0xf]
        %v6273 = vld [vmem:[#allocation22 + $0xb4] sm:$0xff]
        %v6274 = vld [vmem:[#allocation22 + $0xbc] sm:$0xf]
        %v6275 = vld [vmem:[#allocation25] sm:$0x7]
        %v6276 = vpack.c.bf16 %v5730, %v5730
        %v6309 = vunpack.c.l.b16 %v6243
        %v6310 = vunpack.c.h.b16 %v6243
        %v6311 = vunpack.c.l.b16 %v6244
        %v6312 = vunpack.c.l.b16 %v6245
        %v6313 = vunpack.c.h.b16 %v6245
        %v6314 = vunpack.c.l.b16 %v6246
        %v6315 = vunpack.c.l.b16 %v6247
        %v6316 = vunpack.c.h.b16 %v6247
        %v6317 = vunpack.c.l.b16 %v6248
        %v6318 = vunpack.c.l.b16 %v6249
        %v6319 = vunpack.c.h.b16 %v6249
        %v6320 = vunpack.c.l.b16 %v6250
        %v6321 = vunpack.c.l.b16 %v6251
        %v6322 = vunpack.c.h.b16 %v6251
        %v6323 = vunpack.c.l.b16 %v6252
        %v6324 = vunpack.c.l.b16 %v6253
        %v6325 = vunpack.c.h.b16 %v6253
        %v6326 = vunpack.c.l.b16 %v6254
        %v6327 = vunpack.c.l.b16 %v6255
        %v6328 = vunpack.c.h.b16 %v6255
        %v6329 = vunpack.c.l.b16 %v6256
        %v6330 = vunpack.c.l.b16 %v6257
        %v6331 = vunpack.c.h.b16 %v6257
        %v6332 = vunpack.c.l.b16 %v6258
        %v6333 = vunpack.c.l.b16 %v6259
        %v6334 = vunpack.c.h.b16 %v6259
        %v6335 = vunpack.c.l.b16 %v6260
        %v6336 = vunpack.c.l.b16 %v6261
        %v6337 = vunpack.c.h.b16 %v6261
        %v6338 = vunpack.c.l.b16 %v6262
        %v6339 = vunpack.c.l.b16 %v6263
        %v6340 = vunpack.c.h.b16 %v6263
        %v6341 = vunpack.c.l.b16 %v6264
        %v6342 = vunpack.c.l.b16 %v6265
        %v6343 = vunpack.c.h.b16 %v6265
        %v6344 = vunpack.c.l.b16 %v6266
        %v6345 = vunpack.c.l.b16 %v6267
        %v6346 = vunpack.c.h.b16 %v6267
        %v6347 = vunpack.c.l.b16 %v6268
        %v6348 = vunpack.c.l.b16 %v6269
        %v6349 = vunpack.c.h.b16 %v6269
        %v6350 = vunpack.c.l.b16 %v6270
        %v6351 = vunpack.c.l.b16 %v6271
        %v6352 = vunpack.c.h.b16 %v6271
        %v6353 = vunpack.c.l.b16 %v6272
        %v6354 = vunpack.c.l.b16 %v6273
        %v6355 = vunpack.c.h.b16 %v6273
        %v6356 = vunpack.c.l.b16 %v6274
        %v6357 = vpack.c.b16 %v6312, %v6309
        %v6358 = vpack.c.b16 %v6313, %v6310
        %v6359 = vpack.c.b16 %v6314, %v6311
        %v6360 = vpack.c.b16 %v6318, %v6315
        %v6361 = vpack.c.b16 %v6319, %v6316
        %v6362 = vpack.c.b16 %v6320, %v6317
        %v6363 = vpack.c.b16 %v6324, %v6321
        %v6364 = vpack.c.b16 %v6325, %v6322
        %v6365 = vpack.c.b16 %v6326, %v6323
        %v6366 = vpack.c.b16 %v6330, %v6327
        %v6367 = vpack.c.b16 %v6331, %v6328
        %v6368 = vpack.c.b16 %v6332, %v6329
        %v6369 = vpack.c.b16 %v6336, %v6333
        %v6370 = vpack.c.b16 %v6337, %v6334
        %v6371 = vpack.c.b16 %v6338, %v6335
        %v6372 = vpack.c.b16 %v6342, %v6339
        %v6373 = vpack.c.b16 %v6343, %v6340
        %v6374 = vpack.c.b16 %v6344, %v6341
        %v6375 = vpack.c.b16 %v6348, %v6345
        %v6376 = vpack.c.b16 %v6349, %v6346
        %v6377 = vpack.c.b16 %v6350, %v6347
        %v6378 = vpack.c.b16 %v6354, %v6351
        %v6379 = vpack.c.b16 %v6355, %v6352
        %v6380 = vpack.c.b16 %v6356, %v6353
        %v6406 = vlaneseq
        %v6407 = vshrl.u32 %v6406, 7
        %v6408 = vsub.s32 0, %v6407
        %v6409 = vrot.slane %v6275, %v6408
        %v6410 = vlaneseq
        %v6411 = vshrl.u32 %v6410, 7
        %v6412 = vsub.s32 1, %v6411
        %v6413 = vrot.slane %v6275, %v6412
        %v6414 = vlaneseq
        %v6415 = vshrl.u32 %v6414, 7
        %v6416 = vsub.s32 2, %v6415
        %v6417 = vrot.slane %v6275, %v6416
        %6421 = vmatprep.subr.bf16.mxu0 %v6358
        %6422 = vmatpush1.bf16.msra.mxu0 %v6357
        %6423 = vmatprep.subr.bf16.mxu0 %v6361
        %6424 = vmatpush1.bf16.msra.mxu0 %v6360
        %6425 = vmatprep.subr.bf16.mxu0 %v6364
        %6426 = vmatpush1.bf16.msra.mxu0 %v6363
        %6427 = vmatprep.subr.bf16.mxu0 %v6367
        %6428 = vmatpush1.bf16.msra.mxu0 %v6366
        %6429 = vmatprep.subr.bf16.mxu0 %v6370
        %6430 = vmatpush1.bf16.msra.mxu0 %v6369
        %6431 = vmatprep.subr.bf16.mxu0 %v6373
        %6432 = vmatpush1.bf16.msra.mxu0 %v6372
        %6433 = vmatprep.subr.bf16.mxu0 %v6376
        %6434 = vmatpush1.bf16.msra.mxu0 %v6375
        %6435 = vmatprep.subr.bf16.mxu0 %v6379
        %6436 = vmatpush1.bf16.msra.mxu0 %v6378
        %6437 = vmatprep.subr.bf16.mxu0 0
        %6438 = vmatpush1.bf16.msra.mxu0 0
        %6439 = vmatprep.subr.bf16.mxu0 0
        %6440 = vmatpush1.bf16.msra.mxu0 0
        %6441 = vmatprep.subr.bf16.mxu0 0
        %6442 = vmatpush1.bf16.msra.mxu0 0
        %6443 = vmatprep.subr.bf16.mxu0 0
        %6444 = vmatpush1.bf16.msra.mxu0 0
        %6445 = vmatprep.subr.bf16.mxu0 0
        %6446 = vmatpush1.bf16.msra.mxu0 0
        %6447 = vmatprep.subr.bf16.mxu0 0
        %6448 = vmatpush1.bf16.msra.mxu0 0
        %6449 = vmatprep.subr.bf16.mxu0 0
        %6450 = vmatpush1.bf16.msra.mxu0 0
        %6451 = vmatprep.subr.bf16.mxu0 0
        %6452 = vmatpush1.bf16.msra.mxu0 0
        %6453 = vmatprep.mubr.bf16.mxu0 0
        %6454 = vmatmul.mubr.bf16.gmra.mrb[0].mxu0 %v6276
        %v6455 = vpop.f32.mrb[0].mxu0
        %v6456 = vadd.f32 %v6409, %v6455
        %v6457 = vpop.f32.mrb[0].mxu0
        %v6458 = vadd.f32 %v6413, %v6457
        %v6459 = vpop.f32.mrb[0].mxu0
        %v6460 = vpop.f32.mrb[0].mxu0
        %6461 = vdwg.mxu0
        %6462 = vmatprep.subr.bf16.mxu0 0
        %6463 = vmatpush1.bf16.msra.mxu0 %v6359
        %6464 = vmatprep.subr.bf16.mxu0 0
        %6465 = vmatpush1.bf16.msra.mxu0 %v6362
        %6466 = vmatprep.subr.bf16.mxu0 0
        %6467 = vmatpush1.bf16.msra.mxu0 %v6365
        %6468 = vmatprep.subr.bf16.mxu0 0
        %6469 = vmatpush1.bf16.msra.mxu0 %v6368
        %6470 = vmatprep.subr.bf16.mxu0 0
        %6471 = vmatpush1.bf16.msra.mxu0 %v6371
        %6472 = vmatprep.subr.bf16.mxu0 0
        %6473 = vmatpush1.bf16.msra.mxu0 %v6374
        %6474 = vmatprep.subr.bf16.mxu0 0
        %6475 = vmatpush1.bf16.msra.mxu0 %v6377
        %6476 = vmatprep.subr.bf16.mxu0 0
        %6477 = vmatpush1.bf16.msra.mxu0 %v6380
        %6478 = vmatprep.subr.bf16.mxu0 0
        %6479 = vmatpush1.bf16.msra.mxu0 0
        %6480 = vmatprep.subr.bf16.mxu0 0
        %6481 = vmatpush1.bf16.msra.mxu0 0
        %6482 = vmatprep.subr.bf16.mxu0 0
        %6483 = vmatpush1.bf16.msra.mxu0 0
        %6484 = vmatprep.subr.bf16.mxu0 0
        %6485 = vmatpush1.bf16.msra.mxu0 0
        %6486 = vmatprep.subr.bf16.mxu0 0
        %6487 = vmatpush1.bf16.msra.mxu0 0
        %6488 = vmatprep.subr.bf16.mxu0 0
        %6489 = vmatpush1.bf16.msra.mxu0 0
        %6490 = vmatprep.subr.bf16.mxu0 0
        %6491 = vmatpush1.bf16.msra.mxu0 0
        %6492 = vmatprep.subr.bf16.mxu0 0
        %6493 = vmatpush1.bf16.msra.mxu0 0
        %6494 = vmatprep.mubr.bf16.mxu0 0
        %6495 = vmatmul.mubr.bf16.gmra.mrb[0].mxu0 %v6276
        %v6496 = vpop.f32.mrb[0].mxu0
        %v6497 = vadd.f32 %v6417, %v6496
        %v6498 = vpop.f32.mrb[0].mxu0
        %v6499 = vpop.f32.mrb[0].mxu0
        %v6500 = vpop.f32.mrb[0].mxu0
        %6501 = vdwg.mxu0
        %v6502 = vadd.f32 %v6145, %v6456
        %v6503 = vxor.u32 %v6502, 2147483648
        %v6504 = vmul.f32 %v6503, 1.442695
        %v6505 = vpow.pop %v6504
        %v6506 = vadd.f32 %v6505, 1.0
        %v6507 = vrcp.pop %v6506
        %v6508 = vmul.f32 1.0, %v6507
        %v6509 = vadd.f32 %v6147, %v6458
        %v6510 = vxor.u32 %v6509, 2147483648
        %v6511 = vmul.f32 %v6510, 1.442695
        %v6512 = vpow.pop %v6511
        %v6513 = vadd.f32 %v6512, 1.0
        %v6514 = vrcp.pop %v6513
        %v6515 = vmul.f32 1.0, %v6514
        %v6516 = vmul.f32 %v6508, %v6497
        %v6517 = vadd.f32 %v6186, %v6516
        %v6518 = vtanh.pop %v6517
        %v6519 = vsub.f32 1.0, %v6515
        %v6520 = vmul.f32 %v6519, %v6518
        %v6521 = vmul.f32 %v6515, %v5730
        %v6522 = vadd.f32 %v6520, %v6521
        %v6523 = vpack.c.bf16 %v6522, %v6522
        %6524 = vmatprep.subr.bf16.mxu0 %v6358
        %6525 = vmatpush1.bf16.msra.mxu0 %v6357
        %6526 = vmatprep.subr.bf16.mxu0 %v6361
        %6527 = vmatpush1.bf16.msra.mxu0 %v6360
        %6528 = vmatprep.subr.bf16.mxu0 %v6364
        %6529 = vmatpush1.bf16.msra.mxu0 %v6363
        %6530 = vmatprep.subr.bf16.mxu0 %v6367
        %6531 = vmatpush1.bf16.msra.mxu0 %v6366
        %6532 = vmatprep.subr.bf16.mxu0 %v6370
        %6533 = vmatpush1.bf16.msra.mxu0 %v6369
        %6534 = vmatprep.subr.bf16.mxu0 %v6373
        %6535 = vmatpush1.bf16.msra.mxu0 %v6372
        %6536 = vmatprep.subr.bf16.mxu0 %v6376
        %6537 = vmatpush1.bf16.msra.mxu0 %v6375
        %6538 = vmatprep.subr.bf16.mxu0 %v6379
        %6539 = vmatpush1.bf16.msra.mxu0 %v6378
        %6540 = vmatprep.subr.bf16.mxu0 0
        %6541 = vmatpush1.bf16.msra.mxu0 0
        %6542 = vmatprep.subr.bf16.mxu0 0
        %6543 = vmatpush1.bf16.msra.mxu0 0
        %6544 = vmatprep.subr.bf16.mxu0 0
        %6545 = vmatpush1.bf16.msra.mxu0 0
        %6546 = vmatprep.subr.bf16.mxu0 0
        %6547 = vmatpush1.bf16.msra.mxu0 0
        %6548 = vmatprep.subr.bf16.mxu0 0
        %6549 = vmatpush1.bf16.msra.mxu0 0
        %6550 = vmatprep.subr.bf16.mxu0 0
        %6551 = vmatpush1.bf16.msra.mxu0 0
        %6552 = vmatprep.subr.bf16.mxu0 0
        %6553 = vmatpush1.bf16.msra.mxu0 0
        %6554 = vmatprep.subr.bf16.mxu0 0
        %6555 = vmatpush1.bf16.msra.mxu0 0
        %6556 = vmatprep.mubr.bf16.mxu0 0
        %6557 = vmatmul.mubr.bf16.gmra.mrb[0].mxu0 %v6523
        %v6558 = vpop.f32.mrb[0].mxu0
        %v6559 = vadd.f32 %v6409, %v6558
        %v6560 = vpop.f32.mrb[0].mxu0
        %v6561 = vadd.f32 %v6413, %v6560
        %v6562 = vpop.f32.mrb[0].mxu0
        %v6563 = vpop.f32.mrb[0].mxu0
        %6564 = vdwg.mxu0
        %6565 = vmatprep.subr.bf16.mxu0 0
        %6566 = vmatpush1.bf16.msra.mxu0 %v6359
        %6567 = vmatprep.subr.bf16.mxu0 0
        %6568 = vmatpush1.bf16.msra.mxu0 %v6362
        %6569 = vmatprep.subr.bf16.mxu0 0
        %6570 = vmatpush1.bf16.msra.mxu0 %v6365
        %6571 = vmatprep.subr.bf16.mxu0 0
        %6572 = vmatpush1.bf16.msra.mxu0 %v6368
        %6573 = vmatprep.subr.bf16.mxu0 0
        %6574 = vmatpush1.bf16.msra.mxu0 %v6371
        %6575 = vmatprep.subr.bf16.mxu0 0
        %6576 = vmatpush1.bf16.msra.mxu0 %v6374
        %6577 = vmatprep.subr.bf16.mxu0 0
        %6578 = vmatpush1.bf16.msra.mxu0 %v6377
        %6579 = vmatprep.subr.bf16.mxu0 0
        %6580 = vmatpush1.bf16.msra.mxu0 %v6380
        %6581 = vmatprep.subr.bf16.mxu0 0
        %6582 = vmatpush1.bf16.msra.mxu0 0
        %6583 = vmatprep.subr.bf16.mxu0 0
        %6584 = vmatpush1.bf16.msra.mxu0 0
        %6585 = vmatprep.subr.bf16.mxu0 0
        %6586 = vmatpush1.bf16.msra.mxu0 0
        %6587 = vmatprep.subr.bf16.mxu0 0
        %6588 = vmatpush1.bf16.msra.mxu0 0
        %6589 = vmatprep.subr.bf16.mxu0 0
        %6590 = vmatpush1.bf16.msra.mxu0 0
        %6591 = vmatprep.subr.bf16.mxu0 0
        %6592 = vmatpush1.bf16.msra.mxu0 0
        %6593 = vmatprep.subr.bf16.mxu0 0
        %6594 = vmatpush1.bf16.msra.mxu0 0
        %6595 = vmatprep.subr.bf16.mxu0 0
        %6596 = vmatpush1.bf16.msra.mxu0 0
        %6597 = vmatprep.mubr.bf16.mxu0 0
        %6598 = vmatmul.mubr.bf16.gmra.mrb[0].mxu0 %v6523
        %v6599 = vpop.f32.mrb[0].mxu0
        %v6600 = vadd.f32 %v6417, %v6599
        %v6601 = vpop.f32.mrb[0].mxu0
        %v6602 = vpop.f32.mrb[0].mxu0
        %v6603 = vpop.f32.mrb[0].mxu0
        %6604 = vdwg.mxu0
        %v6606 = vrot.slane %v6559, 7
        %v6608 = vadd.f32 %v6145, %v6606
        %v6609 = vxor.u32 %v6608, 2147483648
        %v6610 = vmul.f32 %v6609, 1.442695
        %v6611 = vpow.pop %v6610
        %v6612 = vadd.f32 %v6611, 1.0
        %v6613 = vrcp.pop %v6612
        %v6614 = vmul.f32 1.0, %v6613
        %v6616 = vrot.slane %v6561, 7
        %v6618 = vadd.f32 %v6147, %v6616
        %v6619 = vxor.u32 %v6618, 2147483648
        %v6620 = vmul.f32 %v6619, 1.442695
        %v6621 = vpow.pop %v6620
        %v6622 = vadd.f32 %v6621, 1.0
        %v6623 = vrcp.pop %v6622
        %v6624 = vmul.f32 1.0, %v6623
        %v6626 = vrot.slane %v6600, 7
        %v6628 = vmul.f32 %v6614, %v6626
        %v6629 = vadd.f32 %v6186, %v6628
        %v6630 = vtanh.pop %v6629
        %v6631 = vsub.f32 1.0, %v6624
        %v6632 = vmul.f32 %v6631, %v6630
        %v6634 = vrot.slane %v6522, 7
        %v6636 = vmul.f32 %v6624, %v6634
        %v6637 = vadd.f32 %v6632, %v6636
        %v6638 = vpack.c.bf16 %v6637, %v6637
        %v6640 = vshrl.u32 %v6638, 16
        %6643 = vmatprep.subr.bf16.mxu0 %v6358
        %6644 = vmatpush1.bf16.msra.mxu0 %v6357
        %6645 = vmatprep.subr.bf16.mxu0 %v6361
        %6646 = vmatpush1.bf16.msra.mxu0 %v6360
        %6647 = vmatprep.subr.bf16.mxu0 %v6364
        %6648 = vmatpush1.bf16.msra.mxu0 %v6363
        %6649 = vmatprep.subr.bf16.mxu0 %v6367
        %6650 = vmatpush1.bf16.msra.mxu0 %v6366
        %6651 = vmatprep.subr.bf16.mxu0 %v6370
        %6652 = vmatpush1.bf16.msra.mxu0 %v6369
        %6653 = vmatprep.subr.bf16.mxu0 %v6373
        %6654 = vmatpush1.bf16.msra.mxu0 %v6372
        %6655 = vmatprep.subr.bf16.mxu0 %v6376
        %6656 = vmatpush1.bf16.msra.mxu0 %v6375
        %6657 = vmatprep.subr.bf16.mxu0 %v6379
        %6658 = vmatpush1.bf16.msra.mxu0 %v6378
        %6659 = vmatprep.subr.bf16.mxu0 0
        %6660 = vmatpush1.bf16.msra.mxu0 0
        %6661 = vmatprep.subr.bf16.mxu0 0
        %6662 = vmatpush1.bf16.msra.mxu0 0
        %6663 = vmatprep.subr.bf16.mxu0 0
        %6664 = vmatpush1.bf16.msra.mxu0 0
        %6665 = vmatprep.subr.bf16.mxu0 0
        %6666 = vmatpush1.bf16.msra.mxu0 0
        %6667 = vmatprep.subr.bf16.mxu0 0
        %6668 = vmatpush1.bf16.msra.mxu0 0
        %6669 = vmatprep.subr.bf16.mxu0 0
        %6670 = vmatpush1.bf16.msra.mxu0 0
        %6671 = vmatprep.subr.bf16.mxu0 0
        %6672 = vmatpush1.bf16.msra.mxu0 0
        %6673 = vmatprep.subr.bf16.mxu0 0
        %6674 = vmatpush1.bf16.msra.mxu0 0
        %6675 = vmatprep.mubr.bf16.mxu0 0
        %6676 = vmatmul.mubr.bf16.gmra.mrb[0].mxu0 %v6640
        %v6677 = vpop.f32.mrb[0].mxu0
        %v6678 = vadd.f32 %v6409, %v6677
        %v6679 = vpop.f32.mrb[0].mxu0
        %v6680 = vadd.f32 %v6413, %v6679
        %v6681 = vpop.f32.mrb[0].mxu0
        %v6682 = vpop.f32.mrb[0].mxu0
        %6683 = vdwg.mxu0
        %6684 = vmatprep.subr.bf16.mxu0 0
        %6685 = vmatpush1.bf16.msra.mxu0 %v6359
        %6686 = vmatprep.subr.bf16.mxu0 0
        %6687 = vmatpush1.bf16.msra.mxu0 %v6362
        %6688 = vmatprep.subr.bf16.mxu0 0
        %6689 = vmatpush1.bf16.msra.mxu0 %v6365
        %6690 = vmatprep.subr.bf16.mxu0 0
        %6691 = vmatpush1.bf16.msra.mxu0 %v6368
        %6692 = vmatprep.subr.bf16.mxu0 0
        %6693 = vmatpush1.bf16.msra.mxu0 %v6371
        %6694 = vmatprep.subr.bf16.mxu0 0
        %6695 = vmatpush1.bf16.msra.mxu0 %v6374
        %6696 = vmatprep.subr.bf16.mxu0 0
        %6697 = vmatpush1.bf16.msra.mxu0 %v6377
        %6698 = vmatprep.subr.bf16.mxu0 0
        %6699 = vmatpush1.bf16.msra.mxu0 %v6380
        %6700 = vmatprep.subr.bf16.mxu0 0
        %6701 = vmatpush1.bf16.msra.mxu0 0
        %6702 = vmatprep.subr.bf16.mxu0 0
        %6703 = vmatpush1.bf16.msra.mxu0 0
        %6704 = vmatprep.subr.bf16.mxu0 0
        %6705 = vmatpush1.bf16.msra.mxu0 0
        %6706 = vmatprep.subr.bf16.mxu0 0
        %6707 = vmatpush1.bf16.msra.mxu0 0
        %6708 = vmatprep.subr.bf16.mxu0 0
        %6709 = vmatpush1.bf16.msra.mxu0 0
        %6710 = vmatprep.subr.bf16.mxu0 0
        %6711 = vmatpush1.bf16.msra.mxu0 0
        %6712 = vmatprep.subr.bf16.mxu0 0
        %6713 = vmatpush1.bf16.msra.mxu0 0
        %6714 = vmatprep.subr.bf16.mxu0 0
        %6715 = vmatpush1.bf16.msra.mxu0 0
        %6716 = vmatprep.mubr.bf16.mxu0 0
        %6717 = vmatmul.mubr.bf16.gmra.mrb[0].mxu0 %v6640
        %v6718 = vpop.f32.mrb[0].mxu0
        %v6719 = vadd.f32 %v6417, %v6718
        %v6720 = vpop.f32.mrb[0].mxu0
        %v6721 = vpop.f32.mrb[0].mxu0
        %v6722 = vpop.f32.mrb[0].mxu0
        %6723 = vdwg.mxu0
        %v6725 = vrot.slane %v6678, 6
        %v6727 = vadd.f32 %v6145, %v6725
        %v6728 = vxor.u32 %v6727, 2147483648
        %v6729 = vmul.f32 %v6728, 1.442695
        %v6730 = vpow.pop %v6729
        %v6731 = vadd.f32 %v6730, 1.0
        %v6732 = vrcp.pop %v6731
        %v6733 = vmul.f32 1.0, %v6732
        %v6735 = vrot.slane %v6680, 6
        %v6737 = vadd.f32 %v6147, %v6735
        %v6738 = vxor.u32 %v6737, 2147483648
        %v6739 = vmul.f32 %v6738, 1.442695
        %v6740 = vpow.pop %v6739
        %v6741 = vadd.f32 %v6740, 1.0
        %v6742 = vrcp.pop %v6741
        %v6743 = vmul.f32 1.0, %v6742
        %v6745 = vrot.slane %v6719, 6
        %v6747 = vmul.f32 %v6733, %v6745
        %v6748 = vadd.f32 %v6186, %v6747
        %v6749 = vtanh.pop %v6748
        %v6750 = vsub.f32 1.0, %v6743
        %v6751 = vmul.f32 %v6750, %v6749
        %v6753 = vrot.slane %v6637, 7
        %v6755 = vmul.f32 %v6743, %v6753
        %v6756 = vadd.f32 %v6751, %v6755
        %v6758 = vrot.slane %v6756, 7
        %v6760 = vsel %vm895, %v5730, %v6634
        %vm6761 = vcmask 1041408
        %v6762 = vsel %vm6761, %v6760, %v6753
        %vm6763 = vcmask 1042432
        %v6764 = vsel %vm6763, %v6762, %v6758
        %v6765 = vld [vmem:[%s17] sm:$0xf]
        %v6766 = vld [vmem:[%s17 + $0x4] sm:$0xf]
        %v6767 = vld [vmem:[%s17 + $0x8] sm:$0xf]
        %v6768 = vld [vmem:[%s17 + $0xc] sm:$0xf]
        %v6769 = vld [vmem:[%s17 + $0x10] sm:$0xf]
        %v6770 = vld [vmem:[%s17 + $0x14] sm:$0xf]
        %v6771 = vld [vmem:[%s17 + $0x18] sm:$0xf]
        %v6772 = vld [vmem:[%s17 + $0x1c] sm:$0xf]
        %v6773 = vld [vmem:[%s17 + $0x20] sm:$0xf]
        %v6774 = vld [vmem:[%s17 + $0x24] sm:$0xf]
        %v6775 = vld [vmem:[%s17 + $0x28] sm:$0xf]
        %v6776 = vld [vmem:[%s17 + $0x2c] sm:$0xf]
        %v6777 = vld [vmem:[%s17 + $0x30] sm:$0xf]
        %v6778 = vld [vmem:[%s17 + $0x34] sm:$0xf]
        %v6779 = vld [vmem:[%s17 + $0x38] sm:$0xf]
        %v6780 = vld [vmem:[%s17 + $0x3c] sm:$0xf]
        %v6781 = vpack.c.bf16 %v6764, %v6764
        %v6782 = vld [vmem:[#allocation28] sm:$0x1]
        %v6784 = vlaneseq
        %v6785 = vshrl.u32 %v6784, 7
        %v6786 = vsub.s32 0, %v6785
        %v6787 = vrot.slane %v6782, %v6786
        %v6805 = vunpack.c.l.b16 %v6765
        %v6806 = vunpack.c.l.b16 %v6766
        %v6807 = vunpack.c.l.b16 %v6767
        %v6808 = vunpack.c.l.b16 %v6768
        %v6809 = vunpack.c.l.b16 %v6769
        %v6810 = vunpack.c.l.b16 %v6770
        %v6811 = vunpack.c.l.b16 %v6771
        %v6812 = vunpack.c.l.b16 %v6772
        %v6813 = vunpack.c.l.b16 %v6773
        %v6814 = vunpack.c.l.b16 %v6774
        %v6815 = vunpack.c.l.b16 %v6775
        %v6816 = vunpack.c.l.b16 %v6776
        %v6817 = vunpack.c.l.b16 %v6777
        %v6818 = vunpack.c.l.b16 %v6778
        %v6819 = vunpack.c.l.b16 %v6779
        %v6820 = vunpack.c.l.b16 %v6780
        %v6821 = vpack.c.b16 %v6806, %v6805
        %v6822 = vpack.c.b16 %v6808, %v6807
        %v6823 = vpack.c.b16 %v6810, %v6809
        %v6824 = vpack.c.b16 %v6812, %v6811
        %v6825 = vpack.c.b16 %v6814, %v6813
        %v6826 = vpack.c.b16 %v6816, %v6815
        %v6827 = vpack.c.b16 %v6818, %v6817
        %v6828 = vpack.c.b16 %v6820, %v6819
        %6837 = vmatprep.subr.bf16.mxu0 0
        %6838 = vmatpush1.bf16.msra.mxu0 %v6821
        %6839 = vmatprep.subr.bf16.mxu0 0
        %6840 = vmatpush1.bf16.msra.mxu0 %v6822
        %6841 = vmatprep.subr.bf16.mxu0 0
        %6842 = vmatpush1.bf16.msra.mxu0 %v6823
        %6843 = vmatprep.subr.bf16.mxu0 0
        %6844 = vmatpush1.bf16.msra.mxu0 %v6824
        %6845 = vmatprep.subr.bf16.mxu0 0
        %6846 = vmatpush1.bf16.msra.mxu0 %v6825
        %6847 = vmatprep.subr.bf16.mxu0 0
        %6848 = vmatpush1.bf16.msra.mxu0 %v6826
        %6849 = vmatprep.subr.bf16.mxu0 0
        %6850 = vmatpush1.bf16.msra.mxu0 %v6827
        %6851 = vmatprep.subr.bf16.mxu0 0
        %6852 = vmatpush1.bf16.msra.mxu0 %v6828
        %6853 = vmatprep.subr.bf16.mxu0 0
        %6854 = vmatpush1.bf16.msra.mxu0 0
        %6855 = vmatprep.subr.bf16.mxu0 0
        %6856 = vmatpush1.bf16.msra.mxu0 0
        %6857 = vmatprep.subr.bf16.mxu0 0
        %6858 = vmatpush1.bf16.msra.mxu0 0
        %6859 = vmatprep.subr.bf16.mxu0 0
        %6860 = vmatpush1.bf16.msra.mxu0 0
        %6861 = vmatprep.subr.bf16.mxu0 0
        %6862 = vmatpush1.bf16.msra.mxu0 0
        %6863 = vmatprep.subr.bf16.mxu0 0
        %6864 = vmatpush1.bf16.msra.mxu0 0
        %6865 = vmatprep.subr.bf16.mxu0 0
        %6866 = vmatpush1.bf16.msra.mxu0 0
        %6867 = vmatprep.subr.bf16.mxu0 0
        %6868 = vmatpush1.bf16.msra.mxu0 0
        %6869 = vmatprep.mubr.bf16.mxu0 0
        %6870 = vmatmul.mubr.bf16.gmra.mrb[0].mxu0 %v6781
        %v6871 = vpop.f32.mrb[0].mxu0
        %v6872 = vadd.f32 %v6787, %v6871
        %v6873 = vpop.f32.mrb[0].mxu0
        %v6874 = vpop.f32.mrb[0].mxu0
        %v6875 = vpop.f32.mrb[0].mxu0
        %6876 = vdwg.mxu0
        %v6878 = vrot.slane %v6238, 7
        %v6880 = vadd.f32 %v6872, %v6878
        %v6882 = vrot.slane %v6880, 1
        %6883 = vrot.lane.b32.xlu0 %v6882, 32
        %v6884 = vpop.permute.xlu0 %6883
        %v6886 = vrot.slane %v6880, 2
        %6887 = vrot.lane.b32.xlu0 %v6886, 64
        %v6888 = vpop.permute.xlu0 %6887
        %v6890 = vrot.slane %v6880, 3
        %6891 = vrot.lane.b32.xlu0 %v6890, 96
        %v6892 = vpop.permute.xlu0 %6891
        %vm6894 = vcmask 261120
        %v6895 = vsel %vm6894, %v6872, %v6884
        %vm6896 = vcmask 523264
        %v6897 = vsel %vm6896, %v6895, %v6888
        %vm6898 = vcmask 785408
        %v6899 = vsel %vm6898, %v6897, %v6892
        %6900 = vst [vmem:[%s892] sm:$0x1] %v6899
        %p6901 = scmp.lt.s32.totalorder %s43, 1
        %s6902 = scalar_select %p6901, %s43, 1
        %s6903 = scalar_lea.vmem %s20, %s6902
        // Predicated region
        $region173: #{actionformer6_forward.1} parent=99 // pred_check
          %p6904 = pneg %p491
        $region174: #{actionformer6_forward.1} parent=99 // pred_check_branch
          %6906 = sbr.rel (%p6904) target = $region176
        $region175: #{actionformer6_forward.1} parent=99 // pred_region
          _
        $region176: #{actionformer6_forward.1} parent=99 // pred_fallthru
          _
      $region100: #{actionformer6_forward.1} parent=5 // pred_fallthru
        _
      %p6907 = scmp.le.s32.totalorder 2, %s38
      // Predicated region
      $region177: #{actionformer6_forward.1} parent=5 // pred_check
        %p6908 = pneg %p6907
      $region178: #{actionformer6_forward.1} parent=5 // pred_check_branch
        %6910 = sbr.rel (%p6908) target = $region180
      $region179: #{actionformer6_forward.1} parent=5 // pred_region
        %s6911 = ssub.s32 %s38, 2
        // Predicated region
        $region181: #{actionformer6_forward.1} parent=179 // pred_check
          %p6912 = pneg %p497
        $region182: #{actionformer6_forward.1} parent=179 // pred_check_branch
          %6914 = sbr.rel (%p6912) target = $region184
        $region183: #{actionformer6_forward.1} parent=179 // pred_region
          %p6915 = scmp.lt.s32.totalorder %s44, 1
          %s6916 = scalar_select %p6915, %s44, 1
          %s6917 = scalar_lea.vmem %s20, %s6916
        $region184: #{actionformer6_forward.1} parent=179 // pred_fallthru
          _
      $region180: #{actionformer6_forward.1} parent=5 // pred_fallthru
        _
    $region6: #{actionformer6_forward.1} parent=1 // loop_footer
      %s42 = sadd.s32 1, %s38
    $region7: #{actionformer6_forward.1} parent=1 // loop_footer_branch
      %37 = sbr.rel target = $region3
    $region8: #{actionformer6_forward.1} parent=1 // loop_exit
      _
    %6918 = vsyncpa [#allocation3], 1
    %s6919 = scalar_lea.sflag [#allocation3], 1
    %6920 = vsyncpa %s6919, 1
    %6921 = vsyncpa [#allocation5], 1
    %6922 = vsyncpa [#allocation8], 1
    %6923 = vsyncpa [#allocation11], 1
    %6924 = vsyncpa [#allocation14], 1
    %6925 = vsyncpa [#allocation17], 1
    %6926 = vsyncpa [#allocation20], 1
    %6927 = vsyncpa [#allocation23], 1
    %6928 = vsyncpa [#allocation26], 1
    %6929 = vsyncpa [#allocation29], 1

</llo_original>
